<compile_context>
chip_gen: v7x
topology: tpu7x:2x2x1
jax: 0.10.0
libtpu: 0.0.40
codegen_flags: <defaults>
</compile_context>

<pallas_src>
import functools
import math

import jax
import jax.numpy as jnp
from jax import lax
from jax.experimental import pallas as pl
from jax.experimental.pallas import tpu as pltpu

# ---------------- model constants (from the PyTorch module) -----------------
D_MODEL = 256
N_HEADS = 8
HEAD_DIM = D_MODEL // N_HEADS          # 32
N_QUERY = 9
TIMESTEP = 5
OUT_STEP = 2
PLAN_OUT = TIMESTEP * OUT_STEP * 10    # 100
PLAN_HID = 128
BEV_C = 384
FFN_DIM = D_MODEL * 4                  # 1024
TAIL_PACK = 128                        # lane-dense packed tail output (100 + 1 + 27 pad)
NEG_INF = -1e30
_INV_SQRT_HD = 1.0 / math.sqrt(HEAD_DIM)
_SQRT_2_OVER_PI = 0.7978845608028654


# ---------------- small math helpers (usable inside Pallas kernels) ---------
def _gelu(x):
    # tanh-approx GELU (tanh rides the EUP slot). nn.GELU() is erf-based; |err| < 1e-3,
    # well inside the test tolerance.  Works for f32 and bf16 inputs.
    return 0.5 * x * (1.0 + jnp.tanh(_SQRT_2_OVER_PI * (x + 0.044715 * x * x * x)))


def _elu(x):                            # nn.ELU(alpha=1)
    return jnp.where(x > 0, x, jnp.exp(jnp.minimum(x, 0.0)) - 1.0)


def _layernorm(x, g, b, eps=1e-5):
    mu = jnp.mean(x, axis=-1, keepdims=True)
    var = jnp.mean(jnp.square(x - mu), axis=-1, keepdims=True)
    return (x - mu) * lax.rsqrt(var + eps) * g + b


# ---------------- Pallas kernels ---------------------------------------------
def _cross_attn_kernel(q_ref, ma_ref, mask_ref, reg_ref,
                       wkv_ref, bkv_ref, wo_ref, bo_ref, out_ref):
    """Masked cross-attention of the (precomputed, scaled) plan queries vs map/actors."""
    q = q_ref[...]                                                     # (9, 256) f32
    xkv = ma_ref[0].astype(jnp.bfloat16)                               # (N, 256)
    kvp = jnp.dot(xkv, wkv_ref[...], preferred_element_type=jnp.float32) + bkv_ref[...]
    k = kvp[:, :D_MODEL].astype(jnp.bfloat16)
    v = kvp[:, D_MODEL:].astype(jnp.bfloat16)
    add_mask = mask_ref[0]                                             # (1, N)
    heads = []
    for h in range(N_HEADS):                                           # static head loop
        sl = slice(h * HEAD_DIM, (h + 1) * HEAD_DIM)
        s = lax.dot_general(q[:, sl].astype(jnp.bfloat16), k[:, sl],
                            dimension_numbers=(((1,), (1,)), ((), ())),
                            preferred_element_type=jnp.float32)        # (9, N)
        s = s + add_mask
        p = jnp.exp(s - jnp.max(s, axis=-1, keepdims=True))
        p = p * pl.reciprocal(jnp.sum(p, axis=-1, keepdims=True), approx=True)
        heads.append(jnp.dot(p.astype(jnp.bfloat16), v[:, sl],
                             preferred_element_type=jnp.float32))      # (9, 32)
    o = jnp.concatenate(heads, axis=-1).astype(jnp.bfloat16)           # single out-proj
    # Fold the region_embed residual (plan_query) in here so the tail only adds two terms.
    out_ref[0] = (jnp.dot(o, wo_ref[...], preferred_element_type=jnp.float32)
                  + bo_ref[...] + reg_ref[...])


def _bev_attn_kernel(q_ref, bevc_ref, bwT_ref, bbT_ref,
                     wkvT_ref, bkvT_ref, wo_ref, bo_ref,
                     out_ref, m_sc, l_sc, acc_sc, *, tk, lk, need_mask):
    kv = pl.program_id(1)

    @pl.when(kv == 0)
    def _init():
        m_sc[...] = jnp.full_like(m_sc, NEG_INF)
        l_sc[...] = jnp.zeros_like(l_sc)
        acc_sc[...] = jnp.zeros_like(acc_sc)

    # bev_layer on the raw channels-major bf16 tile: xT = W^T @ bev_c (+b), GELU in bf16.
    bev_c = bevc_ref[0]                                                # (384, TK) bf16
    xT = jnp.dot(bwT_ref[...], bev_c, preferred_element_type=jnp.float32) + bbT_ref[...]
    xT = _gelu(xT.astype(jnp.bfloat16))                                # (256, TK) bf16
    # fused K/V projection, kept token-minor: (512, TK)
    kvpT = (jnp.dot(wkvT_ref[...], xT, preferred_element_type=jnp.float32)
            + bkvT_ref[...]).astype(jnp.bfloat16)

    q = q_ref[...]                                                     # (9, 256) f32
    m_prev = m_sc[...]                                                 # (9, 8)
    l_prev = l_sc[...]                                                 # (9, 8)
    if need_mask:                                                      # static flag
        col = kv * tk + lax.broadcasted_iota(jnp.int32, (1, tk), 1)
        valid = col < lk

    m_cols, a_cols, l_cols, a_full, pv_full = [], [], [], [], []
    for h in range(N_HEADS):                                           # static head loop
        sl = slice(h * HEAD_DIM, (h + 1) * HEAD_DIM)
        kh = kvpT[sl, :]                                               # (32, TK)
        vh = kvpT[D_MODEL + h * HEAD_DIM:D_MODEL + (h + 1) * HEAD_DIM, :]
        s = jnp.dot(q[:, sl].astype(jnp.bfloat16), kh,
                    preferred_element_type=jnp.float32)                # (9, TK)
        if need_mask:
            s = jnp.where(valid, s, NEG_INF)
        m_h_prev = m_prev[:, h:h + 1]
        m_h = jnp.maximum(m_h_prev, jnp.max(s, axis=-1, keepdims=True))
        a_h = jnp.exp(m_h_prev - m_h)                                  # (9, 1)
        p = jnp.exp(s - m_h)
        pv = lax.dot_general(p.astype(jnp.bfloat16), vh,
                             dimension_numbers=(((1,), (1,)), ((), ())),
                             preferred_element_type=jnp.float32)       # (9, 32)
        m_cols.append(m_h)
        a_cols.append(a_h)
        l_cols.append(jnp.sum(p, axis=-1, keepdims=True))
        a_full.append(jnp.broadcast_to(a_h, (N_QUERY, HEAD_DIM)))
        pv_full.append(pv)

    # One lane-dense (9,256) accumulator RMW + one (9,8) write each for m/l per kv tile
    # (instead of 8x 32-lane + 16x 1-lane masked vst.msk stores).
    acc_sc[...] = (jnp.concatenate(a_full, axis=-1) * acc_sc[...]
                   + jnp.concatenate(pv_full, axis=-1))
    m_sc[...] = jnp.concatenate(m_cols, axis=-1)
    l_sc[...] = jnp.concatenate(a_cols, axis=-1) * l_prev + jnp.concatenate(l_cols, axis=-1)

    @pl.when(kv == pl.num_programs(1) - 1)
    def _finalize():
        inv_l = pl.reciprocal(l_sc[...], approx=True)                  # (9, 8)
        inv_full = jnp.concatenate(
            [jnp.broadcast_to(inv_l[:, h:h + 1], (N_QUERY, HEAD_DIM))
             for h in range(N_HEADS)], axis=-1)                        # (9, 256) full-width
        o = (acc_sc[...] * inv_full).astype(jnp.bfloat16)
        out_ref[0] = jnp.dot(o, wo_ref[...],
                             preferred_element_type=jnp.float32) + bo_ref[...]


def _tail_kernel(dense_ref, bev_ref,
                 g0, be0, fw1, fb1, fw2, fb2, g1, be1,
                 pw1, pb1, pw2, pb2, sw1, sb1, sw2, sb2, out_ref):
    # dense already contains the region_embed residual (folded in K1).
    x = dense_ref[...] + bev_ref[...]                                  # (rows, 256)
    att = _layernorm(x, g0[...], be0[...])
    h = _gelu(jnp.dot(att.astype(jnp.bfloat16), fw1[...],
                      preferred_element_type=jnp.float32) + fb1[...])
    ff = jnp.dot(h.astype(jnp.bfloat16), fw2[...],
                 preferred_element_type=jnp.float32) + fb2[...]
    out = _layernorm(ff + att, g1[...], be1[...])
    ob = out.astype(jnp.bfloat16)
    ph = _elu(jnp.dot(ob, pw1[...], preferred_element_type=jnp.float32) + pb1[...])
    traj = jnp.dot(ph.astype(jnp.bfloat16), pw2[...],
                   preferred_element_type=jnp.float32) + pb2[...]      # (rows, 100)
    sh = _elu(jnp.dot(ob, sw1[...], preferred_element_type=jnp.float32) + sb1[...])
    score = jnp.dot(sh.astype(jnp.bfloat16), sw2[...],
                    preferred_element_type=jnp.float32) + sb2[...]     # (rows, 1)
    pad = jnp.zeros((x.shape[0], TAIL_PACK - PLAN_OUT - 1), jnp.float32)
    out_ref[...] = jnp.concatenate([traj, score, pad], axis=-1)        # lane-dense 128 wide


# ---------------- pallas_call wrappers ---------------------------------------
def _const_spec(a):
    zeros = (0,) * a.ndim
    return pl.BlockSpec(a.shape, lambda *_: zeros)


def _pick_kv_tile(lk, max_tile=1024):
    """Return (tile, num_tiles, padded_lk).  Never emits a non-128-multiple multi-tile."""
    for tk in (1024, 512, 256, 128):
        if tk <= max_tile and lk % tk == 0:
            return tk, lk // tk, lk
    if lk <= max_tile:
        return lk, 1, lk                      # one full-extent tile (any lk), no padding
    tk = min(512, max_tile)                   # pad + mask the last tile
    n = pl.cdiv(lk, tk)
    return tk, n, n * tk


# ---------------- pure-JAX reference pieces (also used for param prep) -------
def _mha_ref(xq, xkv, add_mask, p):
    q = xq @ p['wq'] + p['bq']
    kvp = xkv @ p['wkv'] + p['bkv']
    k, v = kvp[..., :D_MODEL], kvp[..., D_MODEL:]
    b, lq, _ = q.shape
    lk = k.shape[1]
    qh = q.reshape(b, lq, N_HEADS, HEAD_DIM).transpose(0, 2, 1, 3)
    kh = k.reshape(b, lk, N_HEADS, HEAD_DIM).transpose(0, 2, 1, 3)
    vh = v.reshape(b, lk, N_HEADS, HEAD_DIM).transpose(0, 2, 1, 3)
    s = jnp.einsum('bhqd,bhkd->bhqk', qh, kh) * _INV_SQRT_HD + add_mask[:, None, :, :]
    a = jax.nn.softmax(s, axis=-1)
    o = jnp.einsum('bhqk,bhkd->bhqd', a, vh).transpose(0, 2, 1, 3).reshape(b, lq, D_MODEL)
    return o @ p['wo'] + p['bo']


# ---------------- parameter prep (run ONCE, outside jit) ----------------------
def prepare_params(params):
    """Pre-computes all batch-invariant quantities and kernel-ready weight layouts."""
    bf16 = jnp.bfloat16
    sa, ca, ba = params['self_attn'], params['cross_attn'], params['bev_attn']
    region = params['region_embed']                                    # (1, 9, 256)

    # Self-attention over the 9 plan queries depends only on parameters -> precompute.
    self_pq = _mha_ref(region, region, jnp.zeros((1, 1, N_QUERY), jnp.float32), sa)[0]
    # The cross-attn and bev-attn query projections (scaled) are therefore also constant.
    q_cross = (self_pq @ ca['wq'] + ca['bq']) * _INV_SQRT_HD           # (9, 256)
    q_bev = (self_pq @ ba['wq'] + ba['bq']) * _INV_SQRT_HD             # (9, 256)

    t = params['tail']
    return dict(
        reg2d=region[0],                                               # (9, 256) residual
        q_cross=q_cross,
        ca_wkv=ca['wkv'].astype(bf16), ca_bkv=ca['bkv'],
        ca_wo=ca['wo'].astype(bf16), ca_bo=ca['bo'],
        q_bev=q_bev,
        bev_wT=jnp.transpose(params['bev_w']).astype(bf16),            # (256, 384)
        bev_bT=jnp.transpose(params['bev_b']),                         # (256, 1)
        ba_wkvT=jnp.transpose(ba['wkv']).astype(bf16),                 # (512, 256)
        ba_bkvT=jnp.transpose(ba['bkv']),                              # (512, 1)
        ba_wo=ba['wo'].astype(bf16), ba_bo=ba['bo'],
        g0=t['g0'], be0=t['be0'],
        fw1=t['fw1'].astype(bf16), fb1=t['fb1'],
        fw2=t['fw2'].astype(bf16), fb2=t['fb2'],
        g1=t['g1'], be1=t['be1'],
        pw1=t['pw1'].astype(bf16), pb1=t['pb1'],
        pw2=t['pw2'].astype(bf16), pb2=t['pb2'],
        sw1=t['sw1'].astype(bf16), sb1=t['sb1'],
        sw2=t['sw2'].astype(bf16), sb2=t['sb2'],
    )


# ---------------- forward (jit this) ------------------------------------------
def planning_decoder_pallas(prep, encodings, masks, bev_feature, actors, *, max_kv_tile=1024):
    f32, bf16 = jnp.float32, jnp.bfloat16
    b = encodings.shape[0]

    # ---- K1: masked cross-attention over the 9 plan queries (per-batch grid) ----
    map_actors = encodings[:, 0]                                       # (b, N, 256)
    n = map_actors.shape[1]
    km = masks[:, 0].at[:, 0].set(False)                               # col 0 forced unmasked
    add_mask = jnp.where(km, NEG_INF, 0.0).astype(f32)[:, None, :]     # (b, 1, N)

    k1_in = [prep['q_cross'], map_actors, add_mask, prep['reg2d'],
             prep['ca_wkv'], prep['ca_bkv'], prep['ca_wo'], prep['ca_bo']]
    k1_specs = [_const_spec(prep['q_cross']),
                pl.BlockSpec((1, n, D_MODEL), lambda i: (i, 0, 0)),
                pl.BlockSpec((1, 1, n), lambda i: (i, 0, 0))] + \
               [_const_spec(a) for a in k1_in[3:]]
    dense = pl.pallas_call(
        _cross_attn_kernel,
        out_shape=jax.ShapeDtypeStruct((b, N_QUERY, D_MODEL), f32),
        grid=(b,),
        in_specs=k1_specs,
        out_specs=pl.BlockSpec((1, N_QUERY, D_MODEL), lambda i: (i, 0, 0)),
        compiler_params=pltpu.CompilerParams(dimension_semantics=("parallel",)),
    )(*k1_in)

    # ---- K2: fused bev_layer + BEV attention, tiled over the token axis ----
    bb, c, hh, ww = bev_feature.shape
    lk = hh * ww
    bev_chan = bev_feature.reshape(bb, c, lk)          # free reshape, no XLA transpose
    if bev_chan.dtype != bf16:
        # Upstream BEV producer should emit bf16 (halves K2's HBM bytes); fallback cast
        # only triggers when it does not.
        bev_chan = bev_chan.astype(bf16)
    tk, n_kv, lk_pad = _pick_kv_tile(lk, max_kv_tile)
    need_mask = lk_pad != lk
    if need_mask:
        bev_chan = jnp.pad(bev_chan, ((0, 0), (0, 0), (0, lk_pad - lk)))

    k2_in = [prep['q_bev'], bev_chan,
             prep['bev_wT'], prep['bev_bT'],
             prep['ba_wkvT'], prep['ba_bkvT'], prep['ba_wo'], prep['ba_bo']]
    k2_specs = [_const_spec(prep['q_bev']),
                pl.BlockSpec((1, c, tk), lambda i, j: (i, 0, j))] + \
               [_const_spec(a) for a in k2_in[2:]]
    bev_att = pl.pallas_call(
        functools.partial(_bev_attn_kernel, tk=tk, lk=lk, need_mask=need_mask),
        out_shape=jax.ShapeDtypeStruct((b, N_QUERY, D_MODEL), f32),
        grid=(b, n_kv),
        in_specs=k2_specs,
        out_specs=pl.BlockSpec((1, N_QUERY, D_MODEL), lambda i, j: (i, 0, 0)),
        scratch_shapes=[pltpu.VMEM((N_QUERY, N_HEADS), f32),           # running max
                        pltpu.VMEM((N_QUERY, N_HEADS), f32),           # running sum
                        pltpu.VMEM((N_QUERY, D_MODEL), f32)],          # acc (heads concat)
        compiler_params=pltpu.CompilerParams(
            dimension_semantics=("parallel", "arbitrary")),
    )(*k2_in)

    # ---- K3: residual + norms + FFN + EgoPlanner heads, batch flattened into rows ----
    rows = b * N_QUERY
    dense2 = dense.reshape(rows, D_MODEL)
    bev2 = bev_att.reshape(rows, D_MODEL)
    if rows <= 512:
        tm, n_row, rows_pad = rows, 1, rows
    else:
        tm = 128
        rows_pad = pl.cdiv(rows, tm) * tm
        if rows_pad != rows:
            dense2 = jnp.pad(dense2, ((0, rows_pad - rows), (0, 0)))
            bev2 = jnp.pad(bev2, ((0, rows_pad - rows), (0, 0)))
        n_row = rows_pad // tm

    k3_in = [dense2, bev2,
             prep['g0'], prep['be0'], prep['fw1'], prep['fb1'], prep['fw2'], prep['fb2'],
             prep['g1'], prep['be1'],
             prep['pw1'], prep['pb1'], prep['pw2'], prep['pb2'],
             prep['sw1'], prep['sb1'], prep['sw2'], prep['sb2']]
    k3_specs = [pl.BlockSpec((tm, D_MODEL), lambda i: (i, 0)),
                pl.BlockSpec((tm, D_MODEL), lambda i: (i, 0))] + \
               [_const_spec(a) for a in k3_in[2:]]
    packed = pl.pallas_call(
        _tail_kernel,
        out_shape=jax.ShapeDtypeStruct((rows_pad, TAIL_PACK), f32),
        grid=(n_row,),
        in_specs=k3_specs,
        out_specs=pl.BlockSpec((tm, TAIL_PACK), lambda i: (i, 0)),
        compiler_params=pltpu.CompilerParams(dimension_semantics=("parallel",)),
    )(*k3_in)

    traj = packed[:rows, :PLAN_OUT].reshape(b, N_QUERY, TIMESTEP * 10, OUT_STEP)
    score = packed[:rows, PLAN_OUT].reshape(b, N_QUERY)

    _ego_current = actors[:, 0, -1, :]  # extracted as in PyTorch; unused (use_dynamic=False)
    return traj, score


# ---------------- pure-JAX reference (for correctness check) ------------------
def planning_decoder_ref(params, encodings, masks, bev_feature, actors):
    b = encodings.shape[0]
    region_embed = params['region_embed']
    plan_query = jnp.broadcast_to(region_embed, (b, N_QUERY, D_MODEL))
    self_pq = _mha_ref(plan_query, plan_query,
                       jnp.zeros((b, 1, N_QUERY), jnp.float32), params['self_attn'])
    map_actors = encodings[:, 0]
    km = masks[:, 0].at[:, 0].set(False)
    add_mask = jnp.where(km, NEG_INF, 0.0).astype(jnp.float32)[:, None, :]
    dense = _mha_ref(self_pq, map_actors, add_mask, params['cross_attn'])
    bb, c, hh, ww = bev_feature.shape
    bev_tokens = jnp.transpose(bev_feature.astype(jnp.float32).reshape(bb, c, hh * ww),
                               (0, 2, 1))
    bev_proj = jax.nn.gelu(bev_tokens @ params['bev_w'] + params['bev_b'], approximate=False)
    bev_att = _mha_ref(self_pq, bev_proj,
                       jnp.zeros((b, 1, hh * ww), jnp.float32), params['bev_attn'])
    t = params['tail']
    x = dense + bev_att + plan_query
    att = _layernorm(x, t['g0'], t['be0'])
    ff = jax.nn.gelu(att @ t['fw1'] + t['fb1'], approximate=False) @ t['fw2'] + t['fb2']
    out = _layernorm(ff + att, t['g1'], t['be1'])
    traj = jax.nn.elu(out @ t['pw1'] + t['pb1']) @ t['pw2'] + t['pb2']
    score = jax.nn.elu(out @ t['sw1'] + t['sb1']) @ t['sw2'] + t['sb2']
    return traj.reshape(b, N_QUERY, TIMESTEP * 10, OUT_STEP), score[..., 0]


# ---------------- deterministic parameter init --------------------------------
def _linear(key, din, dout):
    k1, k2 = jax.random.split(key)
    s = 1.0 / math.sqrt(din)
    w = jax.random.uniform(k1, (din, dout), jnp.float32, -s, s)   # stored as W^T: (din, dout)
    b = jax.random.uniform(k2, (1, dout), jnp.float32, -s, s)
    return w, b


def _mha_params(key):
    ks = jax.random.split(key, 4)
    wq, bq = _linear(ks[0], D_MODEL, D_MODEL)
    wk, bk = _linear(ks[1], D_MODEL, D_MODEL)
    wv, bv = _linear(ks[2], D_MODEL, D_MODEL)
    wo, bo = _linear(ks[3], D_MODEL, D_MODEL)
    return dict(wq=wq, bq=bq,
                wkv=jnp.concatenate([wk, wv], axis=1),     # fused K/V projection (256,512)
                bkv=jnp.concatenate([bk, bv], axis=1),
                wo=wo, bo=bo)


def init_params(key):
    keys = jax.random.split(key, 11)
    region_embed = jax.random.uniform(keys[0], (1, N_QUERY, D_MODEL), jnp.float32,
                                      -1.0, 1.0) * math.sqrt(6.0 / D_MODEL)
    self_attn = _mha_params(keys[1])
    cross_attn = _mha_params(keys[2])
    bev_attn = _mha_params(keys[3])
    bev_w, bev_b = _linear(keys[4], BEV_C, D_MODEL)
    fw1, fb1 = _linear(keys[5], D_MODEL, FFN_DIM)
    fw2, fb2 = _linear(keys[6], FFN_DIM, D_MODEL)
    pw1, pb1 = _linear(keys[7], D_MODEL, PLAN_HID)
    pw2, pb2 = _linear(keys[8], PLAN_HID, PLAN_OUT)
    sw1, sb1 = _linear(keys[9], D_MODEL, PLAN_HID)
    sw2, sb2 = _linear(keys[10], PLAN_HID, 1)
    tail = dict(g0=jnp.ones((1, D_MODEL), jnp.float32),
                be0=jnp.zeros((1, D_MODEL), jnp.float32),
                fw1=fw1, fb1=fb1, fw2=fw2, fb2=fb2,
                g1=jnp.ones((1, D_MODEL), jnp.float32),
                be1=jnp.zeros((1, D_MODEL), jnp.float32),
                pw1=pw1, pb1=pb1, pw2=pw2, pb2=pb2,
                sw1=sw1, sb1=sb1, sw2=sw2, sb2=sb2)
    return dict(region_embed=region_embed, self_attn=self_attn, cross_attn=cross_attn,
                bev_attn=bev_attn, bev_w=bev_w, bev_b=bev_b, tail=tail)


# ---------------- main ---------------------------------------------------------
if __name__ == "__main__":
    key = jax.random.PRNGKey(0)
    kp, kd = jax.random.split(key)
    params = init_params(kp)
    prep = prepare_params(params)          # one-time: transposes, bf16 casts, self-attn hoist

    b, n_tokens, hh, ww = 2, 16, 16, 18    # Lk = 288 -> exercises multi-tile + masked tail
    ks = jax.random.split(kd, 4)
    encodings = jax.random.normal(ks[0], (b, 2, n_tokens, D_MODEL), jnp.float32)
    masks = jax.random.bernoulli(ks[1], 0.3, (b, 2, n_tokens))
    # Upstream producer emits the BEV feature in bf16 (halves K2's HBM traffic).
    bev_feature = jax.random.normal(ks[2], (b, BEV_C, hh, ww), jnp.float32).astype(jnp.bfloat16)
    actors = jax.random.normal(ks[3], (b, 3, 4, 7), jnp.float32)

    fwd = jax.jit(planning_decoder_pallas, static_argnames=("max_kv_tile",))
    traj, score = fwd(prep, encodings, masks, bev_feature, actors, max_kv_tile=128)
    traj, score = jax.block_until_ready((traj, score))

    traj_ref, score_ref = planning_decoder_ref(params, encodings, masks, bev_feature, actors)

    assert traj.shape == (b, N_QUERY, TIMESTEP * 10, OUT_STEP)
    assert score.shape == (b, N_QUERY)
    assert bool(jnp.allclose(traj, traj_ref, atol=5e-2, rtol=5e-2))
    assert bool(jnp.allclose(score, score_ref, atol=5e-2, rtol=5e-2))
    print("KERNEL_OK")
</pallas_src>

<mosaic_0001>
module attributes {stable_mosaic.version = 11 : i64} {
  func.func @_bev_attn_kernel(%arg0: i32, %arg1: i32, %arg2: memref<9x256xf32, #tpu.memory_space<vmem>>, %arg3: memref<1x384x128xbf16, #tpu.memory_space<vmem>>, %arg4: memref<256x384xbf16, #tpu.memory_space<vmem>>, %arg5: memref<256x1xf32, #tpu.memory_space<vmem>>, %arg6: memref<512x256xbf16, #tpu.memory_space<vmem>>, %arg7: memref<512x1xf32, #tpu.memory_space<vmem>>, %arg8: memref<256x256xbf16, #tpu.memory_space<vmem>>, %arg9: memref<1x256xf32, #tpu.memory_space<vmem>>, %arg10: memref<1x9x256xf32, #tpu.memory_space<vmem>>, %arg11: memref<9x8xf32, #tpu.memory_space<vmem>>, %arg12: memref<9x8xf32, #tpu.memory_space<vmem>>, %arg13: memref<9x256xf32, #tpu.memory_space<vmem>>) attributes {dimension_semantics = [#tpu.dimension_semantics<parallel>, #tpu.dimension_semantics<arbitrary>], iteration_bounds = array<i64: 2, 3>, scalar_prefetch = 0 : i64, scratch_operands = 3 : i64, tpu.core_type = #tpu.core_type<tc>, window_params = [{pipeline_mode = #tpu.pipeline_mode<synchronous>, transform_indices = @transform_0, window_bounds = array<i64: 9, 256>}, {transform_indices = @transform_1, window_bounds = array<i64: 1, 384, 128>}, {pipeline_mode = #tpu.pipeline_mode<synchronous>, transform_indices = @transform_2, window_bounds = array<i64: 256, 384>}, {pipeline_mode = #tpu.pipeline_mode<synchronous>, transform_indices = @transform_3, window_bounds = array<i64: 256, 1>}, {pipeline_mode = #tpu.pipeline_mode<synchronous>, transform_indices = @transform_4, window_bounds = array<i64: 512, 256>}, {pipeline_mode = #tpu.pipeline_mode<synchronous>, transform_indices = @transform_5, window_bounds = array<i64: 512, 1>}, {pipeline_mode = #tpu.pipeline_mode<synchronous>, transform_indices = @transform_6, window_bounds = array<i64: 256, 256>}, {pipeline_mode = #tpu.pipeline_mode<synchronous>, transform_indices = @transform_7, window_bounds = array<i64: 1, 256>}, {transform_indices = @transform_8, window_bounds = array<i64: 1, 9, 256>}]} {
    %c0_i32 = arith.constant 0 : i32
    %0 = arith.cmpi eq, %arg1, %c0_i32 : i32
    %1 = arith.extui %0 : i1 to i32
    %c0_i32_0 = arith.constant 0 : i32
    %2 = arith.cmpi ne, %1, %c0_i32_0 : i32
    scf.if %2 {
      %cst_71 = arith.constant -1.000000e+30 : f32
      %247 = vector.broadcast %cst_71 : f32 to vector<9x8xf32>
      %c0_72 = arith.constant 0 : index
      %c0_73 = arith.constant 0 : index
      %248 = vector.load %arg11[%c0_72, %c0_73] : memref<9x8xf32, #tpu.memory_space<vmem>>, vector<9x8xf32>
      tpu.vector_store %arg11[%c0_72, %c0_73], %247 {strides = array<i32>} : memref<9x8xf32, #tpu.memory_space<vmem>>, vector<9x8xf32>,
      %cst_74 = arith.constant 0.000000e+00 : f32
      %249 = vector.broadcast %cst_74 : f32 to vector<9x8xf32>
      %c0_75 = arith.constant 0 : index
      %c0_76 = arith.constant 0 : index
      %250 = vector.load %arg12[%c0_75, %c0_76] : memref<9x8xf32, #tpu.memory_space<vmem>>, vector<9x8xf32>
      tpu.vector_store %arg12[%c0_75, %c0_76], %249 {strides = array<i32>} : memref<9x8xf32, #tpu.memory_space<vmem>>, vector<9x8xf32>,
      %cst_77 = arith.constant 0.000000e+00 : f32
      %251 = vector.broadcast %cst_77 : f32 to vector<9x256xf32>
      %c0_78 = arith.constant 0 : index
      %c0_79 = arith.constant 0 : index
      %252 = vector.load %arg13[%c0_78, %c0_79] : memref<9x256xf32, #tpu.memory_space<vmem>>, vector<9x256xf32>
      tpu.vector_store %arg13[%c0_78, %c0_79], %251 {strides = array<i32>} : memref<9x256xf32, #tpu.memory_space<vmem>>, vector<9x256xf32>,
    } else {
    }
    %c0 = arith.constant 0 : index
    %c0_1 = arith.constant 0 : index
    %c0_2 = arith.constant 0 : index
    %3 = vector.load %arg3[%c0, %c0_1, %c0_2] : memref<1x384x128xbf16, #tpu.memory_space<vmem>>, vector<1x384x128xbf16>
    %4 = vector.shape_cast %3 : vector<1x384x128xbf16> to vector<384x128xbf16>
    %c0_3 = arith.constant 0 : index
    %c0_4 = arith.constant 0 : index
    %5 = vector.load %arg4[%c0_3, %c0_4] : memref<256x384xbf16, #tpu.memory_space<vmem>>, vector<256x384xbf16>
    %cst = arith.constant dense<0.000000e+00> : vector<256x128xf32>
    %6 = tpu.matmul %5, %4, %cst {dimension_numbers = #tpu.dot_dimension_numbers<[1], [0], [0], [1], [0, 0, 1, 1], [], []>} : vector<256x384xbf16>, vector<384x128xbf16>, vector<256x128xf32> -> vector<256x128xf32>
    %c0_5 = arith.constant 0 : index
    %c0_6 = arith.constant 0 : index
    %7 = vector.load %arg5[%c0_5, %c0_6] : memref<256x1xf32, #tpu.memory_space<vmem>>, vector<256x1xf32>
    %8 = vector.broadcast %7 : vector<256x1xf32> to vector<256x128xf32>
    %9 = arith.addf %6, %8 : vector<256x128xf32>
    %10 = arith.truncf %9 : vector<256x128xf32> to vector<256x128xbf16>
    %cst_7 = arith.constant 5.000000e-01 : bf16
    %11 = vector.broadcast %cst_7 : bf16 to vector<256x128xbf16>
    %12 = arith.mulf %11, %10 : vector<256x128xbf16>
    %cst_8 = arith.constant 4.467770e-02 : bf16
    %13 = vector.broadcast %cst_8 : bf16 to vector<256x128xbf16>
    %14 = arith.mulf %13, %10 : vector<256x128xbf16>
    %15 = arith.mulf %14, %10 : vector<256x128xbf16>
    %16 = arith.mulf %15, %10 : vector<256x128xbf16>
    %17 = arith.addf %10, %16 : vector<256x128xbf16>
    %cst_9 = arith.constant 7.968750e-01 : bf16
    %18 = vector.broadcast %cst_9 : bf16 to vector<256x128xbf16>
    %19 = arith.mulf %18, %17 : vector<256x128xbf16>
    %20 = math.tanh %19 : vector<256x128xbf16>
    %cst_10 = arith.constant 1.000000e+00 : bf16
    %21 = vector.broadcast %cst_10 : bf16 to vector<256x128xbf16>
    %22 = arith.addf %21, %20 : vector<256x128xbf16>
    %23 = arith.mulf %12, %22 : vector<256x128xbf16>
    %c0_11 = arith.constant 0 : index
    %c0_12 = arith.constant 0 : index
    %24 = vector.load %arg6[%c0_11, %c0_12] : memref<512x256xbf16, #tpu.memory_space<vmem>>, vector<512x256xbf16>
    %cst_13 = arith.constant dense<0.000000e+00> : vector<512x128xf32>
    %25 = tpu.matmul %24, %23, %cst_13 {dimension_numbers = #tpu.dot_dimension_numbers<[1], [0], [0], [1], [0, 0, 1, 1], [], []>} : vector<512x256xbf16>, vector<256x128xbf16>, vector<512x128xf32> -> vector<512x128xf32>
    %c0_14 = arith.constant 0 : index
    %c0_15 = arith.constant 0 : index
    %26 = vector.load %arg7[%c0_14, %c0_15] : memref<512x1xf32, #tpu.memory_space<vmem>>, vector<512x1xf32>
    %27 = vector.broadcast %26 : vector<512x1xf32> to vector<512x128xf32>
    %28 = arith.addf %25, %27 : vector<512x128xf32>
    %29 = arith.truncf %28 : vector<512x128xf32> to vector<512x128xbf16>
    %c0_16 = arith.constant 0 : index
    %c0_17 = arith.constant 0 : index
    %30 = vector.load %arg2[%c0_16, %c0_17] : memref<9x256xf32, #tpu.memory_space<vmem>>, vector<9x256xf32>
    %c0_18 = arith.constant 0 : index
    %c0_19 = arith.constant 0 : index
    %31 = vector.load %arg11[%c0_18, %c0_19] : memref<9x8xf32, #tpu.memory_space<vmem>>, vector<9x8xf32>
    %c0_20 = arith.constant 0 : index
    %c0_21 = arith.constant 0 : index
    %32 = vector.load %arg12[%c0_20, %c0_21] : memref<9x8xf32, #tpu.memory_space<vmem>>, vector<9x8xf32>
    %c128_i32 = arith.constant 128 : i32
    %33 = arith.muli %arg1, %c128_i32 : i32
    %34 = tpu.iota {dimensions = array<i32: 1>} : vector<1x128xi32>
    %35 = vector.broadcast %33 : i32 to vector<1x128xi32>
    %36 = arith.addi %35, %34 : vector<1x128xi32>
    %c288_i32 = arith.constant 288 : i32
    %37 = vector.broadcast %c288_i32 : i32 to vector<1x128xi32>
    %38 = arith.cmpi slt, %36, %37 : vector<1x128xi32>
    %39 = vector.extract_strided_slice %29 {offsets = [0, 0], sizes = [32, 128], strides = [1, 1]} : vector<512x128xbf16> to vector<32x128xbf16>
    %40 = vector.extract_strided_slice %29 {offsets = [256, 0], sizes = [32, 128], strides = [1, 1]} : vector<512x128xbf16> to vector<32x128xbf16>
    %41 = vector.extract_strided_slice %30 {offsets = [0, 0], sizes = [9, 32], strides = [1, 1]} : vector<9x256xf32> to vector<9x32xf32>
    %42 = arith.truncf %41 : vector<9x32xf32> to vector<9x32xbf16>
    %cst_22 = arith.constant dense<0.000000e+00> : vector<9x128xf32>
    %43 = tpu.matmul %42, %39, %cst_22 {dimension_numbers = #tpu.dot_dimension_numbers<[1], [0], [0], [1], [0, 0, 1, 1], [], []>} : vector<9x32xbf16>, vector<32x128xbf16>, vector<9x128xf32> -> vector<9x128xf32>
    %cst_23 = arith.constant -1.000000e+30 : f32
    %44 = vector.shape_cast %38 : vector<1x128xi1> to vector<1x128xi1>
    %45 = vector.broadcast %44 : vector<1x128xi1> to vector<9x128xi1>
    %46 = vector.broadcast %cst_23 : f32 to vector<9x128xf32>
    %47 = arith.select %45, %43, %46 : vector<9x128xi1>, vector<9x128xf32>
    %48 = vector.extract_strided_slice %31 {offsets = [0, 0], sizes = [9, 1], strides = [1, 1]} : vector<9x8xf32> to vector<9x1xf32>
    %cst_24 = arith.constant dense<0xFF800000> : vector<9xf32>
    %49 = vector.multi_reduction <maximumf>, %47, %cst_24 [1] : vector<9x128xf32> to vector<9xf32>
    %50 = vector.shape_cast %49 : vector<9xf32> to vector<9x1xf32>
    %51 = arith.maximumf %48, %50 : vector<9x1xf32>
    %52 = arith.subf %48, %51 : vector<9x1xf32>
    %53 = math.exp %52 : vector<9x1xf32>
    %54 = vector.broadcast %51 : vector<9x1xf32> to vector<9x128xf32>
    %55 = arith.subf %47, %54 : vector<9x128xf32>
    %56 = math.exp %55 : vector<9x128xf32>
    %57 = arith.truncf %56 : vector<9x128xf32> to vector<9x128xbf16>
    %cst_25 = arith.constant dense<0.000000e+00> : vector<9x32xf32>
    %58 = tpu.matmul %57, %40, %cst_25 {dimension_numbers = #tpu.dot_dimension_numbers<[1], [1], [0], [0], [0, 0, 1, 0], [], []>} : vector<9x128xbf16>, vector<32x128xbf16>, vector<9x32xf32> -> vector<9x32xf32>
    %cst_26 = arith.constant dense<0.000000e+00> : vector<9xf32>
    %59 = vector.multi_reduction <add>, %56, %cst_26 [1] : vector<9x128xf32> to vector<9xf32>
    %60 = vector.shape_cast %59 : vector<9xf32> to vector<9x1xf32>
    %61 = vector.shape_cast %53 : vector<9x1xf32> to vector<9x1xf32>
    %62 = vector.broadcast %61 : vector<9x1xf32> to vector<9x32xf32>
    %63 = vector.extract_strided_slice %29 {offsets = [32, 0], sizes = [32, 128], strides = [1, 1]} : vector<512x128xbf16> to vector<32x128xbf16>
    %64 = vector.extract_strided_slice %29 {offsets = [288, 0], sizes = [32, 128], strides = [1, 1]} : vector<512x128xbf16> to vector<32x128xbf16>
    %65 = vector.extract_strided_slice %30 {offsets = [0, 32], sizes = [9, 32], strides = [1, 1]} : vector<9x256xf32> to vector<9x32xf32>
    %66 = arith.truncf %65 : vector<9x32xf32> to vector<9x32xbf16>
    %cst_27 = arith.constant dense<0.000000e+00> : vector<9x128xf32>
    %67 = tpu.matmul %66, %63, %cst_27 {dimension_numbers = #tpu.dot_dimension_numbers<[1], [0], [0], [1], [0, 0, 1, 1], [], []>} : vector<9x32xbf16>, vector<32x128xbf16>, vector<9x128xf32> -> vector<9x128xf32>
    %cst_28 = arith.constant -1.000000e+30 : f32
    %68 = vector.shape_cast %38 : vector<1x128xi1> to vector<1x128xi1>
    %69 = vector.broadcast %68 : vector<1x128xi1> to vector<9x128xi1>
    %70 = vector.broadcast %cst_28 : f32 to vector<9x128xf32>
    %71 = arith.select %69, %67, %70 : vector<9x128xi1>, vector<9x128xf32>
    %72 = vector.extract_strided_slice %31 {offsets = [0, 1], sizes = [9, 1], strides = [1, 1]} : vector<9x8xf32> to vector<9x1xf32>
    %cst_29 = arith.constant dense<0xFF800000> : vector<9xf32>
    %73 = vector.multi_reduction <maximumf>, %71, %cst_29 [1] : vector<9x128xf32> to vector<9xf32>
    %74 = vector.shape_cast %73 : vector<9xf32> to vector<9x1xf32>
    %75 = arith.maximumf %72, %74 : vector<9x1xf32>
    %76 = arith.subf %72, %75 : vector<9x1xf32>
    %77 = math.exp %76 : vector<9x1xf32>
    %78 = vector.broadcast %75 : vector<9x1xf32> to vector<9x128xf32>
    %79 = arith.subf %71, %78 : vector<9x128xf32>
    %80 = math.exp %79 : vector<9x128xf32>
    %81 = arith.truncf %80 : vector<9x128xf32> to vector<9x128xbf16>
    %cst_30 = arith.constant dense<0.000000e+00> : vector<9x32xf32>
    %82 = tpu.matmul %81, %64, %cst_30 {dimension_numbers = #tpu.dot_dimension_numbers<[1], [1], [0], [0], [0, 0, 1, 0], [], []>} : vector<9x128xbf16>, vector<32x128xbf16>, vector<9x32xf32> -> vector<9x32xf32>
    %cst_31 = arith.constant dense<0.000000e+00> : vector<9xf32>
    %83 = vector.multi_reduction <add>, %80, %cst_31 [1] : vector<9x128xf32> to vector<9xf32>
    %84 = vector.shape_cast %83 : vector<9xf32> to vector<9x1xf32>
    %85 = vector.shape_cast %77 : vector<9x1xf32> to vector<9x1xf32>
    %86 = vector.broadcast %85 : vector<9x1xf32> to vector<9x32xf32>
    %87 = vector.extract_strided_slice %29 {offsets = [64, 0], sizes = [32, 128], strides = [1, 1]} : vector<512x128xbf16> to vector<32x128xbf16>
    %88 = vector.extract_strided_slice %29 {offsets = [320, 0], sizes = [32, 128], strides = [1, 1]} : vector<512x128xbf16> to vector<32x128xbf16>
    %89 = vector.extract_strided_slice %30 {offsets = [0, 64], sizes = [9, 32], strides = [1, 1]} : vector<9x256xf32> to vector<9x32xf32>
    %90 = arith.truncf %89 : vector<9x32xf32> to vector<9x32xbf16>
    %cst_32 = arith.constant dense<0.000000e+00> : vector<9x128xf32>
    %91 = tpu.matmul %90, %87, %cst_32 {dimension_numbers = #tpu.dot_dimension_numbers<[1], [0], [0], [1], [0, 0, 1, 1], [], []>} : vector<9x32xbf16>, vector<32x128xbf16>, vector<9x128xf32> -> vector<9x128xf32>
    %cst_33 = arith.constant -1.000000e+30 : f32
    %92 = vector.shape_cast %38 : vector<1x128xi1> to vector<1x128xi1>
    %93 = vector.broadcast %92 : vector<1x128xi1> to vector<9x128xi1>
    %94 = vector.broadcast %cst_33 : f32 to vector<9x128xf32>
    %95 = arith.select %93, %91, %94 : vector<9x128xi1>, vector<9x128xf32>
    %96 = vector.extract_strided_slice %31 {offsets = [0, 2], sizes = [9, 1], strides = [1, 1]} : vector<9x8xf32> to vector<9x1xf32>
    %cst_34 = arith.constant dense<0xFF800000> : vector<9xf32>
    %97 = vector.multi_reduction <maximumf>, %95, %cst_34 [1] : vector<9x128xf32> to vector<9xf32>
    %98 = vector.shape_cast %97 : vector<9xf32> to vector<9x1xf32>
    %99 = arith.maximumf %96, %98 : vector<9x1xf32>
    %100 = arith.subf %96, %99 : vector<9x1xf32>
    %101 = math.exp %100 : vector<9x1xf32>
    %102 = vector.broadcast %99 : vector<9x1xf32> to vector<9x128xf32>
    %103 = arith.subf %95, %102 : vector<9x128xf32>
    %104 = math.exp %103 : vector<9x128xf32>
    %105 = arith.truncf %104 : vector<9x128xf32> to vector<9x128xbf16>
    %cst_35 = arith.constant dense<0.000000e+00> : vector<9x32xf32>
    %106 = tpu.matmul %105, %88, %cst_35 {dimension_numbers = #tpu.dot_dimension_numbers<[1], [1], [0], [0], [0, 0, 1, 0], [], []>} : vector<9x128xbf16>, vector<32x128xbf16>, vector<9x32xf32> -> vector<9x32xf32>
    %cst_36 = arith.constant dense<0.000000e+00> : vector<9xf32>
    %107 = vector.multi_reduction <add>, %104, %cst_36 [1] : vector<9x128xf32> to vector<9xf32>
    %108 = vector.shape_cast %107 : vector<9xf32> to vector<9x1xf32>
    %109 = vector.shape_cast %101 : vector<9x1xf32> to vector<9x1xf32>
    %110 = vector.broadcast %109 : vector<9x1xf32> to vector<9x32xf32>
    %111 = vector.extract_strided_slice %29 {offsets = [96, 0], sizes = [32, 128], strides = [1, 1]} : vector<512x128xbf16> to vector<32x128xbf16>
    %112 = vector.extract_strided_slice %29 {offsets = [352, 0], sizes = [32, 128], strides = [1, 1]} : vector<512x128xbf16> to vector<32x128xbf16>
    %113 = vector.extract_strided_slice %30 {offsets = [0, 96], sizes = [9, 32], strides = [1, 1]} : vector<9x256xf32> to vector<9x32xf32>
    %114 = arith.truncf %113 : vector<9x32xf32> to vector<9x32xbf16>
    %cst_37 = arith.constant dense<0.000000e+00> : vector<9x128xf32>
    %115 = tpu.matmul %114, %111, %cst_37 {dimension_numbers = #tpu.dot_dimension_numbers<[1], [0], [0], [1], [0, 0, 1, 1], [], []>} : vector<9x32xbf16>, vector<32x128xbf16>, vector<9x128xf32> -> vector<9x128xf32>
    %cst_38 = arith.constant -1.000000e+30 : f32
    %116 = vector.shape_cast %38 : vector<1x128xi1> to vector<1x128xi1>
    %117 = vector.broadcast %116 : vector<1x128xi1> to vector<9x128xi1>
    %118 = vector.broadcast %cst_38 : f32 to vector<9x128xf32>
    %119 = arith.select %117, %115, %118 : vector<9x128xi1>, vector<9x128xf32>
    %120 = vector.extract_strided_slice %31 {offsets = [0, 3], sizes = [9, 1], strides = [1, 1]} : vector<9x8xf32> to vector<9x1xf32>
    %cst_39 = arith.constant dense<0xFF800000> : vector<9xf32>
    %121 = vector.multi_reduction <maximumf>, %119, %cst_39 [1] : vector<9x128xf32> to vector<9xf32>
    %122 = vector.shape_cast %121 : vector<9xf32> to vector<9x1xf32>
    %123 = arith.maximumf %120, %122 : vector<9x1xf32>
    %124 = arith.subf %120, %123 : vector<9x1xf32>
    %125 = math.exp %124 : vector<9x1xf32>
    %126 = vector.broadcast %123 : vector<9x1xf32> to vector<9x128xf32>
    %127 = arith.subf %119, %126 : vector<9x128xf32>
    %128 = math.exp %127 : vector<9x128xf32>
    %129 = arith.truncf %128 : vector<9x128xf32> to vector<9x128xbf16>
    %cst_40 = arith.constant dense<0.000000e+00> : vector<9x32xf32>
    %130 = tpu.matmul %129, %112, %cst_40 {dimension_numbers = #tpu.dot_dimension_numbers<[1], [1], [0], [0], [0, 0, 1, 0], [], []>} : vector<9x128xbf16>, vector<32x128xbf16>, vector<9x32xf32> -> vector<9x32xf32>
    %cst_41 = arith.constant dense<0.000000e+00> : vector<9xf32>
    %131 = vector.multi_reduction <add>, %128, %cst_41 [1] : vector<9x128xf32> to vector<9xf32>
    %132 = vector.shape_cast %131 : vector<9xf32> to vector<9x1xf32>
    %133 = vector.shape_cast %125 : vector<9x1xf32> to vector<9x1xf32>
    %134 = vector.broadcast %133 : vector<9x1xf32> to vector<9x32xf32>
    %135 = vector.extract_strided_slice %29 {offsets = [128, 0], sizes = [32, 128], strides = [1, 1]} : vector<512x128xbf16> to vector<32x128xbf16>
    %136 = vector.extract_strided_slice %29 {offsets = [384, 0], sizes = [32, 128], strides = [1, 1]} : vector<512x128xbf16> to vector<32x128xbf16>
    %137 = vector.extract_strided_slice %30 {offsets = [0, 128], sizes = [9, 32], strides = [1, 1]} : vector<9x256xf32> to vector<9x32xf32>
    %138 = arith.truncf %137 : vector<9x32xf32> to vector<9x32xbf16>
    %cst_42 = arith.constant dense<0.000000e+00> : vector<9x128xf32>
    %139 = tpu.matmul %138, %135, %cst_42 {dimension_numbers = #tpu.dot_dimension_numbers<[1], [0], [0], [1], [0, 0, 1, 1], [], []>} : vector<9x32xbf16>, vector<32x128xbf16>, vector<9x128xf32> -> vector<9x128xf32>
    %cst_43 = arith.constant -1.000000e+30 : f32
    %140 = vector.shape_cast %38 : vector<1x128xi1> to vector<1x128xi1>
    %141 = vector.broadcast %140 : vector<1x128xi1> to vector<9x128xi1>
    %142 = vector.broadcast %cst_43 : f32 to vector<9x128xf32>
    %143 = arith.select %141, %139, %142 : vector<9x128xi1>, vector<9x128xf32>
    %144 = vector.extract_strided_slice %31 {offsets = [0, 4], sizes = [9, 1], strides = [1, 1]} : vector<9x8xf32> to vector<9x1xf32>
    %cst_44 = arith.constant dense<0xFF800000> : vector<9xf32>
    %145 = vector.multi_reduction <maximumf>, %143, %cst_44 [1] : vector<9x128xf32> to vector<9xf32>
    %146 = vector.shape_cast %145 : vector<9xf32> to vector<9x1xf32>
    %147 = arith.maximumf %144, %146 : vector<9x1xf32>
    %148 = arith.subf %144, %147 : vector<9x1xf32>
    %149 = math.exp %148 : vector<9x1xf32>
    %150 = vector.broadcast %147 : vector<9x1xf32> to vector<9x128xf32>
    %151 = arith.subf %143, %150 : vector<9x128xf32>
    %152 = math.exp %151 : vector<9x128xf32>
    %153 = arith.truncf %152 : vector<9x128xf32> to vector<9x128xbf16>
    %cst_45 = arith.constant dense<0.000000e+00> : vector<9x32xf32>
    %154 = tpu.matmul %153, %136, %cst_45 {dimension_numbers = #tpu.dot_dimension_numbers<[1], [1], [0], [0], [0, 0, 1, 0], [], []>} : vector<9x128xbf16>, vector<32x128xbf16>, vector<9x32xf32> -> vector<9x32xf32>
    %cst_46 = arith.constant dense<0.000000e+00> : vector<9xf32>
    %155 = vector.multi_reduction <add>, %152, %cst_46 [1] : vector<9x128xf32> to vector<9xf32>
    %156 = vector.shape_cast %155 : vector<9xf32> to vector<9x1xf32>
    %157 = vector.shape_cast %149 : vector<9x1xf32> to vector<9x1xf32>
    %158 = vector.broadcast %157 : vector<9x1xf32> to vector<9x32xf32>
    %159 = vector.extract_strided_slice %29 {offsets = [160, 0], sizes = [32, 128], strides = [1, 1]} : vector<512x128xbf16> to vector<32x128xbf16>
    %160 = vector.extract_strided_slice %29 {offsets = [416, 0], sizes = [32, 128], strides = [1, 1]} : vector<512x128xbf16> to vector<32x128xbf16>
    %161 = vector.extract_strided_slice %30 {offsets = [0, 160], sizes = [9, 32], strides = [1, 1]} : vector<9x256xf32> to vector<9x32xf32>
    %162 = arith.truncf %161 : vector<9x32xf32> to vector<9x32xbf16>
    %cst_47 = arith.constant dense<0.000000e+00> : vector<9x128xf32>
    %163 = tpu.matmul %162, %159, %cst_47 {dimension_numbers = #tpu.dot_dimension_numbers<[1], [0], [0], [1], [0, 0, 1, 1], [], []>} : vector<9x32xbf16>, vector<32x128xbf16>, vector<9x128xf32> -> vector<9x128xf32>
    %cst_48 = arith.constant -1.000000e+30 : f32
    %164 = vector.shape_cast %38 : vector<1x128xi1> to vector<1x128xi1>
    %165 = vector.broadcast %164 : vector<1x128xi1> to vector<9x128xi1>
    %166 = vector.broadcast %cst_48 : f32 to vector<9x128xf32>
    %167 = arith.select %165, %163, %166 : vector<9x128xi1>, vector<9x128xf32>
    %168 = vector.extract_strided_slice %31 {offsets = [0, 5], sizes = [9, 1], strides = [1, 1]} : vector<9x8xf32> to vector<9x1xf32>
    %cst_49 = arith.constant dense<0xFF800000> : vector<9xf32>
    %169 = vector.multi_reduction <maximumf>, %167, %cst_49 [1] : vector<9x128xf32> to vector<9xf32>
    %170 = vector.shape_cast %169 : vector<9xf32> to vector<9x1xf32>
    %171 = arith.maximumf %168, %170 : vector<9x1xf32>
    %172 = arith.subf %168, %171 : vector<9x1xf32>
    %173 = math.exp %172 : vector<9x1xf32>
    %174 = vector.broadcast %171 : vector<9x1xf32> to vector<9x128xf32>
    %175 = arith.subf %167, %174 : vector<9x128xf32>
    %176 = math.exp %175 : vector<9x128xf32>
    %177 = arith.truncf %176 : vector<9x128xf32> to vector<9x128xbf16>
    %cst_50 = arith.constant dense<0.000000e+00> : vector<9x32xf32>
    %178 = tpu.matmul %177, %160, %cst_50 {dimension_numbers = #tpu.dot_dimension_numbers<[1], [1], [0], [0], [0, 0, 1, 0], [], []>} : vector<9x128xbf16>, vector<32x128xbf16>, vector<9x32xf32> -> vector<9x32xf32>
    %cst_51 = arith.constant dense<0.000000e+00> : vector<9xf32>
    %179 = vector.multi_reduction <add>, %176, %cst_51 [1] : vector<9x128xf32> to vector<9xf32>
    %180 = vector.shape_cast %179 : vector<9xf32> to vector<9x1xf32>
    %181 = vector.shape_cast %173 : vector<9x1xf32> to vector<9x1xf32>
    %182 = vector.broadcast %181 : vector<9x1xf32> to vector<9x32xf32>
    %183 = vector.extract_strided_slice %29 {offsets = [192, 0], sizes = [32, 128], strides = [1, 1]} : vector<512x128xbf16> to vector<32x128xbf16>
    %184 = vector.extract_strided_slice %29 {offsets = [448, 0], sizes = [32, 128], strides = [1, 1]} : vector<512x128xbf16> to vector<32x128xbf16>
    %185 = vector.extract_strided_slice %30 {offsets = [0, 192], sizes = [9, 32], strides = [1, 1]} : vector<9x256xf32> to vector<9x32xf32>
    %186 = arith.truncf %185 : vector<9x32xf32> to vector<9x32xbf16>
    %cst_52 = arith.constant dense<0.000000e+00> : vector<9x128xf32>
    %187 = tpu.matmul %186, %183, %cst_52 {dimension_numbers = #tpu.dot_dimension_numbers<[1], [0], [0], [1], [0, 0, 1, 1], [], []>} : vector<9x32xbf16>, vector<32x128xbf16>, vector<9x128xf32> -> vector<9x128xf32>
    %cst_53 = arith.constant -1.000000e+30 : f32
    %188 = vector.shape_cast %38 : vector<1x128xi1> to vector<1x128xi1>
    %189 = vector.broadcast %188 : vector<1x128xi1> to vector<9x128xi1>
    %190 = vector.broadcast %cst_53 : f32 to vector<9x128xf32>
    %191 = arith.select %189, %187, %190 : vector<9x128xi1>, vector<9x128xf32>
    %192 = vector.extract_strided_slice %31 {offsets = [0, 6], sizes = [9, 1], strides = [1, 1]} : vector<9x8xf32> to vector<9x1xf32>
    %cst_54 = arith.constant dense<0xFF800000> : vector<9xf32>
    %193 = vector.multi_reduction <maximumf>, %191, %cst_54 [1] : vector<9x128xf32> to vector<9xf32>
    %194 = vector.shape_cast %193 : vector<9xf32> to vector<9x1xf32>
    %195 = arith.maximumf %192, %194 : vector<9x1xf32>
    %196 = arith.subf %192, %195 : vector<9x1xf32>
    %197 = math.exp %196 : vector<9x1xf32>
    %198 = vector.broadcast %195 : vector<9x1xf32> to vector<9x128xf32>
    %199 = arith.subf %191, %198 : vector<9x128xf32>
    %200 = math.exp %199 : vector<9x128xf32>
    %201 = arith.truncf %200 : vector<9x128xf32> to vector<9x128xbf16>
    %cst_55 = arith.constant dense<0.000000e+00> : vector<9x32xf32>
    %202 = tpu.matmul %201, %184, %cst_55 {dimension_numbers = #tpu.dot_dimension_numbers<[1], [1], [0], [0], [0, 0, 1, 0], [], []>} : vector<9x128xbf16>, vector<32x128xbf16>, vector<9x32xf32> -> vector<9x32xf32>
    %cst_56 = arith.constant dense<0.000000e+00> : vector<9xf32>
    %203 = vector.multi_reduction <add>, %200, %cst_56 [1] : vector<9x128xf32> to vector<9xf32>
    %204 = vector.shape_cast %203 : vector<9xf32> to vector<9x1xf32>
    %205 = vector.shape_cast %197 : vector<9x1xf32> to vector<9x1xf32>
    %206 = vector.broadcast %205 : vector<9x1xf32> to vector<9x32xf32>
    %207 = vector.extract_strided_slice %29 {offsets = [224, 0], sizes = [32, 128], strides = [1, 1]} : vector<512x128xbf16> to vector<32x128xbf16>
    %208 = vector.extract_strided_slice %29 {offsets = [480, 0], sizes = [32, 128], strides = [1, 1]} : vector<512x128xbf16> to vector<32x128xbf16>
    %209 = vector.extract_strided_slice %30 {offsets = [0, 224], sizes = [9, 32], strides = [1, 1]} : vector<9x256xf32> to vector<9x32xf32>
    %210 = arith.truncf %209 : vector<9x32xf32> to vector<9x32xbf16>
    %cst_57 = arith.constant dense<0.000000e+00> : vector<9x128xf32>
    %211 = tpu.matmul %210, %207, %cst_57 {dimension_numbers = #tpu.dot_dimension_numbers<[1], [0], [0], [1], [0, 0, 1, 1], [], []>} : vector<9x32xbf16>, vector<32x128xbf16>, vector<9x128xf32> -> vector<9x128xf32>
    %cst_58 = arith.constant -1.000000e+30 : f32
    %212 = vector.shape_cast %38 : vector<1x128xi1> to vector<1x128xi1>
    %213 = vector.broadcast %212 : vector<1x128xi1> to vector<9x128xi1>
    %214 = vector.broadcast %cst_58 : f32 to vector<9x128xf32>
    %215 = arith.select %213, %211, %214 : vector<9x128xi1>, vector<9x128xf32>
    %216 = vector.extract_strided_slice %31 {offsets = [0, 7], sizes = [9, 1], strides = [1, 1]} : vector<9x8xf32> to vector<9x1xf32>
    %cst_59 = arith.constant dense<0xFF800000> : vector<9xf32>
    %217 = vector.multi_reduction <maximumf>, %215, %cst_59 [1] : vector<9x128xf32> to vector<9xf32>
    %218 = vector.shape_cast %217 : vector<9xf32> to vector<9x1xf32>
    %219 = arith.maximumf %216, %218 : vector<9x1xf32>
    %220 = arith.subf %216, %219 : vector<9x1xf32>
    %221 = math.exp %220 : vector<9x1xf32>
    %222 = vector.broadcast %219 : vector<9x1xf32> to vector<9x128xf32>
    %223 = arith.subf %215, %222 : vector<9x128xf32>
    %224 = math.exp %223 : vector<9x128xf32>
    %225 = arith.truncf %224 : vector<9x128xf32> to vector<9x128xbf16>
    %cst_60 = arith.constant dense<0.000000e+00> : vector<9x32xf32>
    %226 = tpu.matmul %225, %208, %cst_60 {dimension_numbers = #tpu.dot_dimension_numbers<[1], [1], [0], [0], [0, 0, 1, 0], [], []>} : vector<9x128xbf16>, vector<32x128xbf16>, vector<9x32xf32> -> vector<9x32xf32>
    %cst_61 = arith.constant dense<0.000000e+00> : vector<9xf32>
    %227 = vector.multi_reduction <add>, %224, %cst_61 [1] : vector<9x128xf32> to vector<9xf32>
    %228 = vector.shape_cast %227 : vector<9xf32> to vector<9x1xf32>
    %229 = vector.shape_cast %221 : vector<9x1xf32> to vector<9x1xf32>
    %230 = vector.broadcast %229 : vector<9x1xf32> to vector<9x32xf32>
    %231 = tpu.concatenate %62, %86, %110, %134, %158, %182, %206, %230 in 1 : vector<9x32xf32>, vector<9x32xf32>, vector<9x32xf32>, vector<9x32xf32>, vector<9x32xf32>, vector<9x32xf32>, vector<9x32xf32>, vector<9x32xf32> -> vector<9x256xf32>
    %c0_62 = arith.constant 0 : index
    %c0_63 = arith.constant 0 : index
    %232 = vector.load %arg13[%c0_62, %c0_63] : memref<9x256xf32, #tpu.memory_space<vmem>>, vector<9x256xf32>
    %233 = arith.mulf %231, %232 : vector<9x256xf32>
    %234 = tpu.concatenate %58, %82, %106, %130, %154, %178, %202, %226 in 1 : vector<9x32xf32>, vector<9x32xf32>, vector<9x32xf32>, vector<9x32xf32>, vector<9x32xf32>, vector<9x32xf32>, vector<9x32xf32>, vector<9x32xf32> -> vector<9x256xf32>
    %235 = arith.addf %233, %234 : vector<9x256xf32>
    %c0_64 = arith.constant 0 : index
    %c0_65 = arith.constant 0 : index
    %236 = vector.load %arg13[%c0_64, %c0_65] : memref<9x256xf32, #tpu.memory_space<vmem>>, vector<9x256xf32>
    tpu.vector_store %arg13[%c0_64, %c0_65], %235 {strides = array<i32>} : memref<9x256xf32, #tpu.memory_space<vmem>>, vector<9x256xf32>,
    %237 = tpu.concatenate %51, %75, %99, %123, %147, %171, %195, %219 in 1 : vector<9x1xf32>, vector<9x1xf32>, vector<9x1xf32>, vector<9x1xf32>, vector<9x1xf32>, vector<9x1xf32>, vector<9x1xf32>, vector<9x1xf32> -> vector<9x8xf32>
    %c0_66 = arith.constant 0 : index
    %c0_67 = arith.constant 0 : index
    %238 = vector.load %arg11[%c0_66, %c0_67] : memref<9x8xf32, #tpu.memory_space<vmem>>, vector<9x8xf32>
    tpu.vector_store %arg11[%c0_66, %c0_67], %237 {strides = array<i32>} : memref<9x8xf32, #tpu.memory_space<vmem>>, vector<9x8xf32>,
    %239 = tpu.concatenate %53, %77, %101, %125, %149, %173, %197, %221 in 1 : vector<9x1xf32>, vector<9x1xf32>, vector<9x1xf32>, vector<9x1xf32>, vector<9x1xf32>, vector<9x1xf32>, vector<9x1xf32>, vector<9x1xf32> -> vector<9x8xf32>
    %240 = arith.mulf %239, %32 : vector<9x8xf32>
    %241 = tpu.concatenate %60, %84, %108, %132, %156, %180, %204, %228 in 1 : vector<9x1xf32>, vector<9x1xf32>, vector<9x1xf32>, vector<9x1xf32>, vector<9x1xf32>, vector<9x1xf32>, vector<9x1xf32>, vector<9x1xf32> -> vector<9x8xf32>
    %242 = arith.addf %240, %241 : vector<9x8xf32>
    %c0_68 = arith.constant 0 : index
    %c0_69 = arith.constant 0 : index
    %243 = vector.load %arg12[%c0_68, %c0_69] : memref<9x8xf32, #tpu.memory_space<vmem>>, vector<9x8xf32>
    tpu.vector_store %arg12[%c0_68, %c0_69], %242 {strides = array<i32>} : memref<9x8xf32, #tpu.memory_space<vmem>>, vector<9x8xf32>,
    %c2_i32 = arith.constant 2 : i32
    %244 = arith.cmpi eq, %arg1, %c2_i32 : i32
    %245 = arith.extui %244 : i1 to i32
    %c0_i32_70 = arith.constant 0 : i32
    %246 = arith.cmpi ne, %245, %c0_i32_70 : i32
    scf.if %246 {
      %c0_71 = arith.constant 0 : index
      %c0_72 = arith.constant 0 : index
      %247 = vector.load %arg12[%c0_71, %c0_72] : memref<9x8xf32, #tpu.memory_space<vmem>>, vector<9x8xf32>
      %248 = tpu.reciprocal %247 {approx = true} : vector<9x8xf32> -> vector<9x8xf32>
      %249 = vector.extract_strided_slice %248 {offsets = [0, 0], sizes = [9, 1], strides = [1, 1]} : vector<9x8xf32> to vector<9x1xf32>
      %250 = vector.shape_cast %249 : vector<9x1xf32> to vector<9x1xf32>
      %251 = vector.broadcast %250 : vector<9x1xf32> to vector<9x32xf32>
      %252 = vector.extract_strided_slice %248 {offsets = [0, 1], sizes = [9, 1], strides = [1, 1]} : vector<9x8xf32> to vector<9x1xf32>
      %253 = vector.shape_cast %252 : vector<9x1xf32> to vector<9x1xf32>
      %254 = vector.broadcast %253 : vector<9x1xf32> to vector<9x32xf32>
      %255 = vector.extract_strided_slice %248 {offsets = [0, 2], sizes = [9, 1], strides = [1, 1]} : vector<9x8xf32> to vector<9x1xf32>
      %256 = vector.shape_cast %255 : vector<9x1xf32> to vector<9x1xf32>
      %257 = vector.broadcast %256 : vector<9x1xf32> to vector<9x32xf32>
      %258 = vector.extract_strided_slice %248 {offsets = [0, 3], sizes = [9, 1], strides = [1, 1]} : vector<9x8xf32> to vector<9x1xf32>
      %259 = vector.shape_cast %258 : vector<9x1xf32> to vector<9x1xf32>
      %260 = vector.broadcast %259 : vector<9x1xf32> to vector<9x32xf32>
      %261 = vector.extract_strided_slice %248 {offsets = [0, 4], sizes = [9, 1], strides = [1, 1]} : vector<9x8xf32> to vector<9x1xf32>
      %262 = vector.shape_cast %261 : vector<9x1xf32> to vector<9x1xf32>
      %263 = vector.broadcast %262 : vector<9x1xf32> to vector<9x32xf32>
      %264 = vector.extract_strided_slice %248 {offsets = [0, 5], sizes = [9, 1], strides = [1, 1]} : vector<9x8xf32> to vector<9x1xf32>
      %265 = vector.shape_cast %264 : vector<9x1xf32> to vector<9x1xf32>
      %266 = vector.broadcast %265 : vector<9x1xf32> to vector<9x32xf32>
      %267 = vector.extract_strided_slice %248 {offsets = [0, 6], sizes = [9, 1], strides = [1, 1]} : vector<9x8xf32> to vector<9x1xf32>
      %268 = vector.shape_cast %267 : vector<9x1xf32> to vector<9x1xf32>
      %269 = vector.broadcast %268 : vector<9x1xf32> to vector<9x32xf32>
      %270 = vector.extract_strided_slice %248 {offsets = [0, 7], sizes = [9, 1], strides = [1, 1]} : vector<9x8xf32> to vector<9x1xf32>
      %271 = vector.shape_cast %270 : vector<9x1xf32> to vector<9x1xf32>
      %272 = vector.broadcast %271 : vector<9x1xf32> to vector<9x32xf32>
      %273 = tpu.concatenate %251, %254, %257, %260, %263, %266, %269, %272 in 1 : vector<9x32xf32>, vector<9x32xf32>, vector<9x32xf32>, vector<9x32xf32>, vector<9x32xf32>, vector<9x32xf32>, vector<9x32xf32>, vector<9x32xf32> -> vector<9x256xf32>
      %c0_73 = arith.constant 0 : index
      %c0_74 = arith.constant 0 : index
      %274 = vector.load %arg13[%c0_73, %c0_74] : memref<9x256xf32, #tpu.memory_space<vmem>>, vector<9x256xf32>
      %275 = arith.mulf %274, %273 : vector<9x256xf32>
      %276 = arith.truncf %275 : vector<9x256xf32> to vector<9x256xbf16>
      %c0_75 = arith.constant 0 : index
      %c0_76 = arith.constant 0 : index
      %277 = vector.load %arg8[%c0_75, %c0_76] : memref<256x256xbf16, #tpu.memory_space<vmem>>, vector<256x256xbf16>
      %cst_77 = arith.constant dense<0.000000e+00> : vector<9x256xf32>
      %278 = tpu.matmul %276, %277, %cst_77 {dimension_numbers = #tpu.dot_dimension_numbers<[1], [0], [0], [1], [0, 0, 1, 1], [], []>} : vector<9x256xbf16>, vector<256x256xbf16>, vector<9x256xf32> -> vector<9x256xf32>
      %c0_78 = arith.constant 0 : index
      %c0_79 = arith.constant 0 : index
      %279 = vector.load %arg9[%c0_78, %c0_79] : memref<1x256xf32, #tpu.memory_space<vmem>>, vector<1x256xf32>
      %280 = vector.broadcast %279 : vector<1x256xf32> to vector<9x256xf32>
      %281 = arith.addf %278, %280 : vector<9x256xf32>
      %c0_80 = arith.constant 0 : index
      %c0_81 = arith.constant 0 : index
      %c0_82 = arith.constant 0 : index
      %282 = vector.load %arg10[%c0_80, %c0_81, %c0_82] : memref<1x9x256xf32, #tpu.memory_space<vmem>>, vector<1x9x256xf32>
      %283 = vector.shape_cast %282 : vector<1x9x256xf32> to vector<9x256xf32>
      %284 = vector.shape_cast %281 : vector<9x256xf32> to vector<1x9x256xf32>
      tpu.vector_store %arg10[%c0_80, %c0_81, %c0_82], %284 {strides = array<i32>} : memref<1x9x256xf32, #tpu.memory_space<vmem>>, vector<1x9x256xf32>,
    } else {
    }
    return
  }
  func.func @transform_0(%arg0: i32, %arg1: i32) -> (i32, i32) {
    %c0_i32 = arith.constant 0 : i32
    %c0_i32_0 = arith.constant 0 : i32
    %c0_i32_1 = arith.constant 0 : i32
    return %c0_i32, %c0_i32_0 : i32, i32
  }
  func.func @transform_1(%arg0: i32, %arg1: i32) -> (i32, i32, i32) {
    %c0_i32 = arith.constant 0 : i32
    %c0_i32_0 = arith.constant 0 : i32
    return %arg0, %c0_i32, %arg1 : i32, i32, i32
  }
  func.func @transform_2(%arg0: i32, %arg1: i32) -> (i32, i32) {
    %c0_i32 = arith.constant 0 : i32
    %c0_i32_0 = arith.constant 0 : i32
    %c0_i32_1 = arith.constant 0 : i32
    return %c0_i32, %c0_i32_0 : i32, i32
  }
  func.func @transform_3(%arg0: i32, %arg1: i32) -> (i32, i32) {
    %c0_i32 = arith.constant 0 : i32
    %c0_i32_0 = arith.constant 0 : i32
    %c0_i32_1 = arith.constant 0 : i32
    return %c0_i32, %c0_i32_0 : i32, i32
  }
  func.func @transform_4(%arg0: i32, %arg1: i32) -> (i32, i32) {
    %c0_i32 = arith.constant 0 : i32
    %c0_i32_0 = arith.constant 0 : i32
    %c0_i32_1 = arith.constant 0 : i32
    return %c0_i32, %c0_i32_0 : i32, i32
  }
  func.func @transform_5(%arg0: i32, %arg1: i32) -> (i32, i32) {
    %c0_i32 = arith.constant 0 : i32
    %c0_i32_0 = arith.constant 0 : i32
    %c0_i32_1 = arith.constant 0 : i32
    return %c0_i32, %c0_i32_0 : i32, i32
  }
  func.func @transform_6(%arg0: i32, %arg1: i32) -> (i32, i32) {
    %c0_i32 = arith.constant 0 : i32
    %c0_i32_0 = arith.constant 0 : i32
    %c0_i32_1 = arith.constant 0 : i32
    return %c0_i32, %c0_i32_0 : i32, i32
  }
  func.func @transform_7(%arg0: i32, %arg1: i32) -> (i32, i32) {
    %c0_i32 = arith.constant 0 : i32
    %c0_i32_0 = arith.constant 0 : i32
    %c0_i32_1 = arith.constant 0 : i32
    return %c0_i32, %c0_i32_0 : i32, i32
  }
  func.func @transform_8(%arg0: i32, %arg1: i32) -> (i32, i32, i32) {
    %c0_i32 = arith.constant 0 : i32
    %c0_i32_0 = arith.constant 0 : i32
    %c0_i32_1 = arith.constant 0 : i32
    return %arg0, %c0_i32, %c0_i32_0 : i32, i32, i32
  }
}

module attributes {stable_mosaic.version = 11 : i64} {
  func.func @_cross_attn_kernel(%arg0: i32, %arg1: memref<9x256xf32, #tpu.memory_space<vmem>>, %arg2: memref<1x16x256xf32, #tpu.memory_space<vmem>>, %arg3: memref<1x1x16xf32, #tpu.memory_space<vmem>>, %arg4: memref<9x256xf32, #tpu.memory_space<vmem>>, %arg5: memref<256x512xbf16, #tpu.memory_space<vmem>>, %arg6: memref<1x512xf32, #tpu.memory_space<vmem>>, %arg7: memref<256x256xbf16, #tpu.memory_space<vmem>>, %arg8: memref<1x256xf32, #tpu.memory_space<vmem>>, %arg9: memref<1x9x256xf32, #tpu.memory_space<vmem>>) attributes {dimension_semantics = [#tpu.dimension_semantics<parallel>], iteration_bounds = array<i64: 2>, scalar_prefetch = 0 : i64, scratch_operands = 0 : i64, tpu.core_type = #tpu.core_type<tc>, window_params = [{pipeline_mode = #tpu.pipeline_mode<synchronous>, transform_indices = @transform_0, window_bounds = array<i64: 9, 256>}, {transform_indices = @transform_1, window_bounds = array<i64: 1, 16, 256>}, {transform_indices = @transform_2, window_bounds = array<i64: 1, 1, 16>}, {pipeline_mode = #tpu.pipeline_mode<synchronous>, transform_indices = @transform_3, window_bounds = array<i64: 9, 256>}, {pipeline_mode = #tpu.pipeline_mode<synchronous>, transform_indices = @transform_4, window_bounds = array<i64: 256, 512>}, {pipeline_mode = #tpu.pipeline_mode<synchronous>, transform_indices = @transform_5, window_bounds = array<i64: 1, 512>}, {pipeline_mode = #tpu.pipeline_mode<synchronous>, transform_indices = @transform_6, window_bounds = array<i64: 256, 256>}, {pipeline_mode = #tpu.pipeline_mode<synchronous>, transform_indices = @transform_7, window_bounds = array<i64: 1, 256>}, {transform_indices = @transform_8, window_bounds = array<i64: 1, 9, 256>}]} {
    %c0 = arith.constant 0 : index
    %c0_0 = arith.constant 0 : index
    %0 = vector.load %arg1[%c0, %c0_0] : memref<9x256xf32, #tpu.memory_space<vmem>>, vector<9x256xf32>
    %c0_1 = arith.constant 0 : index
    %c0_2 = arith.constant 0 : index
    %c0_3 = arith.constant 0 : index
    %1 = vector.load %arg2[%c0_1, %c0_2, %c0_3] : memref<1x16x256xf32, #tpu.memory_space<vmem>>, vector<1x16x256xf32>
    %2 = vector.shape_cast %1 : vector<1x16x256xf32> to vector<16x256xf32>
    %3 = arith.truncf %2 : vector<16x256xf32> to vector<16x256xbf16>
    %c0_4 = arith.constant 0 : index
    %c0_5 = arith.constant 0 : index
    %4 = vector.load %arg5[%c0_4, %c0_5] : memref<256x512xbf16, #tpu.memory_space<vmem>>, vector<256x512xbf16>
    %cst = arith.constant dense<0.000000e+00> : vector<16x512xf32>
    %5 = tpu.matmul %3, %4, %cst {dimension_numbers = #tpu.dot_dimension_numbers<[1], [0], [0], [1], [0, 0, 1, 1], [], []>} : vector<16x256xbf16>, vector<256x512xbf16>, vector<16x512xf32> -> vector<16x512xf32>
    %c0_6 = arith.constant 0 : index
    %c0_7 = arith.constant 0 : index
    %6 = vector.load %arg6[%c0_6, %c0_7] : memref<1x512xf32, #tpu.memory_space<vmem>>, vector<1x512xf32>
    %7 = vector.broadcast %6 : vector<1x512xf32> to vector<16x512xf32>
    %8 = arith.addf %5, %7 : vector<16x512xf32>
    %9 = vector.extract_strided_slice %8 {offsets = [0, 0], sizes = [16, 256], strides = [1, 1]} : vector<16x512xf32> to vector<16x256xf32>
    %10 = arith.truncf %9 : vector<16x256xf32> to vector<16x256xbf16>
    %11 = vector.extract_strided_slice %8 {offsets = [0, 256], sizes = [16, 256], strides = [1, 1]} : vector<16x512xf32> to vector<16x256xf32>
    %12 = arith.truncf %11 : vector<16x256xf32> to vector<16x256xbf16>
    %c0_8 = arith.constant 0 : index
    %c0_9 = arith.constant 0 : index
    %c0_10 = arith.constant 0 : index
    %13 = vector.load %arg3[%c0_8, %c0_9, %c0_10] : memref<1x1x16xf32, #tpu.memory_space<vmem>>, vector<1x1x16xf32>
    %14 = vector.shape_cast %13 : vector<1x1x16xf32> to vector<1x16xf32>
    %15 = vector.extract_strided_slice %0 {offsets = [0, 0], sizes = [9, 32], strides = [1, 1]} : vector<9x256xf32> to vector<9x32xf32>
    %16 = arith.truncf %15 : vector<9x32xf32> to vector<9x32xbf16>
    %17 = vector.extract_strided_slice %10 {offsets = [0, 0], sizes = [16, 32], strides = [1, 1]} : vector<16x256xbf16> to vector<16x32xbf16>
    %cst_11 = arith.constant dense<0.000000e+00> : vector<9x16xf32>
    %18 = tpu.matmul %16, %17, %cst_11 {dimension_numbers = #tpu.dot_dimension_numbers<[1], [1], [0], [0], [0, 0, 1, 0], [], []>} : vector<9x32xbf16>, vector<16x32xbf16>, vector<9x16xf32> -> vector<9x16xf32>
    %19 = vector.broadcast %14 : vector<1x16xf32> to vector<9x16xf32>
    %20 = arith.addf %18, %19 : vector<9x16xf32>
    %cst_12 = arith.constant dense<0xFF800000> : vector<9xf32>
    %21 = vector.multi_reduction <maximumf>, %20, %cst_12 [1] : vector<9x16xf32> to vector<9xf32>
    %22 = vector.shape_cast %21 : vector<9xf32> to vector<9x1xf32>
    %23 = vector.broadcast %22 : vector<9x1xf32> to vector<9x16xf32>
    %24 = arith.subf %20, %23 : vector<9x16xf32>
    %25 = math.exp %24 : vector<9x16xf32>
    %cst_13 = arith.constant dense<0.000000e+00> : vector<9xf32>
    %26 = vector.multi_reduction <add>, %25, %cst_13 [1] : vector<9x16xf32> to vector<9xf32>
    %27 = vector.shape_cast %26 : vector<9xf32> to vector<9x1xf32>
    %28 = tpu.reciprocal %27 {approx = true} : vector<9x1xf32> -> vector<9x1xf32>
    %29 = vector.broadcast %28 : vector<9x1xf32> to vector<9x16xf32>
    %30 = arith.mulf %25, %29 : vector<9x16xf32>
    %31 = arith.truncf %30 : vector<9x16xf32> to vector<9x16xbf16>
    %32 = vector.extract_strided_slice %12 {offsets = [0, 0], sizes = [16, 32], strides = [1, 1]} : vector<16x256xbf16> to vector<16x32xbf16>
    %cst_14 = arith.constant dense<0.000000e+00> : vector<9x32xf32>
    %33 = tpu.matmul %31, %32, %cst_14 {dimension_numbers = #tpu.dot_dimension_numbers<[1], [0], [0], [1], [0, 0, 1, 1], [], []>} : vector<9x16xbf16>, vector<16x32xbf16>, vector<9x32xf32> -> vector<9x32xf32>
    %34 = vector.extract_strided_slice %0 {offsets = [0, 32], sizes = [9, 32], strides = [1, 1]} : vector<9x256xf32> to vector<9x32xf32>
    %35 = arith.truncf %34 : vector<9x32xf32> to vector<9x32xbf16>
    %36 = vector.extract_strided_slice %10 {offsets = [0, 32], sizes = [16, 32], strides = [1, 1]} : vector<16x256xbf16> to vector<16x32xbf16>
    %cst_15 = arith.constant dense<0.000000e+00> : vector<9x16xf32>
    %37 = tpu.matmul %35, %36, %cst_15 {dimension_numbers = #tpu.dot_dimension_numbers<[1], [1], [0], [0], [0, 0, 1, 0], [], []>} : vector<9x32xbf16>, vector<16x32xbf16>, vector<9x16xf32> -> vector<9x16xf32>
    %38 = vector.broadcast %14 : vector<1x16xf32> to vector<9x16xf32>
    %39 = arith.addf %37, %38 : vector<9x16xf32>
    %cst_16 = arith.constant dense<0xFF800000> : vector<9xf32>
    %40 = vector.multi_reduction <maximumf>, %39, %cst_16 [1] : vector<9x16xf32> to vector<9xf32>
    %41 = vector.shape_cast %40 : vector<9xf32> to vector<9x1xf32>
    %42 = vector.broadcast %41 : vector<9x1xf32> to vector<9x16xf32>
    %43 = arith.subf %39, %42 : vector<9x16xf32>
    %44 = math.exp %43 : vector<9x16xf32>
    %cst_17 = arith.constant dense<0.000000e+00> : vector<9xf32>
    %45 = vector.multi_reduction <add>, %44, %cst_17 [1] : vector<9x16xf32> to vector<9xf32>
    %46 = vector.shape_cast %45 : vector<9xf32> to vector<9x1xf32>
    %47 = tpu.reciprocal %46 {approx = true} : vector<9x1xf32> -> vector<9x1xf32>
    %48 = vector.broadcast %47 : vector<9x1xf32> to vector<9x16xf32>
    %49 = arith.mulf %44, %48 : vector<9x16xf32>
    %50 = arith.truncf %49 : vector<9x16xf32> to vector<9x16xbf16>
    %51 = vector.extract_strided_slice %12 {offsets = [0, 32], sizes = [16, 32], strides = [1, 1]} : vector<16x256xbf16> to vector<16x32xbf16>
    %cst_18 = arith.constant dense<0.000000e+00> : vector<9x32xf32>
    %52 = tpu.matmul %50, %51, %cst_18 {dimension_numbers = #tpu.dot_dimension_numbers<[1], [0], [0], [1], [0, 0, 1, 1], [], []>} : vector<9x16xbf16>, vector<16x32xbf16>, vector<9x32xf32> -> vector<9x32xf32>
    %53 = vector.extract_strided_slice %0 {offsets = [0, 64], sizes = [9, 32], strides = [1, 1]} : vector<9x256xf32> to vector<9x32xf32>
    %54 = arith.truncf %53 : vector<9x32xf32> to vector<9x32xbf16>
    %55 = vector.extract_strided_slice %10 {offsets = [0, 64], sizes = [16, 32], strides = [1, 1]} : vector<16x256xbf16> to vector<16x32xbf16>
    %cst_19 = arith.constant dense<0.000000e+00> : vector<9x16xf32>
    %56 = tpu.matmul %54, %55, %cst_19 {dimension_numbers = #tpu.dot_dimension_numbers<[1], [1], [0], [0], [0, 0, 1, 0], [], []>} : vector<9x32xbf16>, vector<16x32xbf16>, vector<9x16xf32> -> vector<9x16xf32>
    %57 = vector.broadcast %14 : vector<1x16xf32> to vector<9x16xf32>
    %58 = arith.addf %56, %57 : vector<9x16xf32>
    %cst_20 = arith.constant dense<0xFF800000> : vector<9xf32>
    %59 = vector.multi_reduction <maximumf>, %58, %cst_20 [1] : vector<9x16xf32> to vector<9xf32>
    %60 = vector.shape_cast %59 : vector<9xf32> to vector<9x1xf32>
    %61 = vector.broadcast %60 : vector<9x1xf32> to vector<9x16xf32>
    %62 = arith.subf %58, %61 : vector<9x16xf32>
    %63 = math.exp %62 : vector<9x16xf32>
    %cst_21 = arith.constant dense<0.000000e+00> : vector<9xf32>
    %64 = vector.multi_reduction <add>, %63, %cst_21 [1] : vector<9x16xf32> to vector<9xf32>
    %65 = vector.shape_cast %64 : vector<9xf32> to vector<9x1xf32>
    %66 = tpu.reciprocal %65 {approx = true} : vector<9x1xf32> -> vector<9x1xf32>
    %67 = vector.broadcast %66 : vector<9x1xf32> to vector<9x16xf32>
    %68 = arith.mulf %63, %67 : vector<9x16xf32>
    %69 = arith.truncf %68 : vector<9x16xf32> to vector<9x16xbf16>
    %70 = vector.extract_strided_slice %12 {offsets = [0, 64], sizes = [16, 32], strides = [1, 1]} : vector<16x256xbf16> to vector<16x32xbf16>
    %cst_22 = arith.constant dense<0.000000e+00> : vector<9x32xf32>
    %71 = tpu.matmul %69, %70, %cst_22 {dimension_numbers = #tpu.dot_dimension_numbers<[1], [0], [0], [1], [0, 0, 1, 1], [], []>} : vector<9x16xbf16>, vector<16x32xbf16>, vector<9x32xf32> -> vector<9x32xf32>
    %72 = vector.extract_strided_slice %0 {offsets = [0, 96], sizes = [9, 32], strides = [1, 1]} : vector<9x256xf32> to vector<9x32xf32>
    %73 = arith.truncf %72 : vector<9x32xf32> to vector<9x32xbf16>
    %74 = vector.extract_strided_slice %10 {offsets = [0, 96], sizes = [16, 32], strides = [1, 1]} : vector<16x256xbf16> to vector<16x32xbf16>
    %cst_23 = arith.constant dense<0.000000e+00> : vector<9x16xf32>
    %75 = tpu.matmul %73, %74, %cst_23 {dimension_numbers = #tpu.dot_dimension_numbers<[1], [1], [0], [0], [0, 0, 1, 0], [], []>} : vector<9x32xbf16>, vector<16x32xbf16>, vector<9x16xf32> -> vector<9x16xf32>
    %76 = vector.broadcast %14 : vector<1x16xf32> to vector<9x16xf32>
    %77 = arith.addf %75, %76 : vector<9x16xf32>
    %cst_24 = arith.constant dense<0xFF800000> : vector<9xf32>
    %78 = vector.multi_reduction <maximumf>, %77, %cst_24 [1] : vector<9x16xf32> to vector<9xf32>
    %79 = vector.shape_cast %78 : vector<9xf32> to vector<9x1xf32>
    %80 = vector.broadcast %79 : vector<9x1xf32> to vector<9x16xf32>
    %81 = arith.subf %77, %80 : vector<9x16xf32>
    %82 = math.exp %81 : vector<9x16xf32>
    %cst_25 = arith.constant dense<0.000000e+00> : vector<9xf32>
    %83 = vector.multi_reduction <add>, %82, %cst_25 [1] : vector<9x16xf32> to vector<9xf32>
    %84 = vector.shape_cast %83 : vector<9xf32> to vector<9x1xf32>
    %85 = tpu.reciprocal %84 {approx = true} : vector<9x1xf32> -> vector<9x1xf32>
    %86 = vector.broadcast %85 : vector<9x1xf32> to vector<9x16xf32>
    %87 = arith.mulf %82, %86 : vector<9x16xf32>
    %88 = arith.truncf %87 : vector<9x16xf32> to vector<9x16xbf16>
    %89 = vector.extract_strided_slice %12 {offsets = [0, 96], sizes = [16, 32], strides = [1, 1]} : vector<16x256xbf16> to vector<16x32xbf16>
    %cst_26 = arith.constant dense<0.000000e+00> : vector<9x32xf32>
    %90 = tpu.matmul %88, %89, %cst_26 {dimension_numbers = #tpu.dot_dimension_numbers<[1], [0], [0], [1], [0, 0, 1, 1], [], []>} : vector<9x16xbf16>, vector<16x32xbf16>, vector<9x32xf32> -> vector<9x32xf32>
    %91 = vector.extract_strided_slice %0 {offsets = [0, 128], sizes = [9, 32], strides = [1, 1]} : vector<9x256xf32> to vector<9x32xf32>
    %92 = arith.truncf %91 : vector<9x32xf32> to vector<9x32xbf16>
    %93 = vector.extract_strided_slice %10 {offsets = [0, 128], sizes = [16, 32], strides = [1, 1]} : vector<16x256xbf16> to vector<16x32xbf16>
    %cst_27 = arith.constant dense<0.000000e+00> : vector<9x16xf32>
    %94 = tpu.matmul %92, %93, %cst_27 {dimension_numbers = #tpu.dot_dimension_numbers<[1], [1], [0], [0], [0, 0, 1, 0], [], []>} : vector<9x32xbf16>, vector<16x32xbf16>, vector<9x16xf32> -> vector<9x16xf32>
    %95 = vector.broadcast %14 : vector<1x16xf32> to vector<9x16xf32>
    %96 = arith.addf %94, %95 : vector<9x16xf32>
    %cst_28 = arith.constant dense<0xFF800000> : vector<9xf32>
    %97 = vector.multi_reduction <maximumf>, %96, %cst_28 [1] : vector<9x16xf32> to vector<9xf32>
    %98 = vector.shape_cast %97 : vector<9xf32> to vector<9x1xf32>
    %99 = vector.broadcast %98 : vector<9x1xf32> to vector<9x16xf32>
    %100 = arith.subf %96, %99 : vector<9x16xf32>
    %101 = math.exp %100 : vector<9x16xf32>
    %cst_29 = arith.constant dense<0.000000e+00> : vector<9xf32>
    %102 = vector.multi_reduction <add>, %101, %cst_29 [1] : vector<9x16xf32> to vector<9xf32>
    %103 = vector.shape_cast %102 : vector<9xf32> to vector<9x1xf32>
    %104 = tpu.reciprocal %103 {approx = true} : vector<9x1xf32> -> vector<9x1xf32>
    %105 = vector.broadcast %104 : vector<9x1xf32> to vector<9x16xf32>
    %106 = arith.mulf %101, %105 : vector<9x16xf32>
    %107 = arith.truncf %106 : vector<9x16xf32> to vector<9x16xbf16>
    %108 = vector.extract_strided_slice %12 {offsets = [0, 128], sizes = [16, 32], strides = [1, 1]} : vector<16x256xbf16> to vector<16x32xbf16>
    %cst_30 = arith.constant dense<0.000000e+00> : vector<9x32xf32>
    %109 = tpu.matmul %107, %108, %cst_30 {dimension_numbers = #tpu.dot_dimension_numbers<[1], [0], [0], [1], [0, 0, 1, 1], [], []>} : vector<9x16xbf16>, vector<16x32xbf16>, vector<9x32xf32> -> vector<9x32xf32>
    %110 = vector.extract_strided_slice %0 {offsets = [0, 160], sizes = [9, 32], strides = [1, 1]} : vector<9x256xf32> to vector<9x32xf32>
    %111 = arith.truncf %110 : vector<9x32xf32> to vector<9x32xbf16>
    %112 = vector.extract_strided_slice %10 {offsets = [0, 160], sizes = [16, 32], strides = [1, 1]} : vector<16x256xbf16> to vector<16x32xbf16>
    %cst_31 = arith.constant dense<0.000000e+00> : vector<9x16xf32>
    %113 = tpu.matmul %111, %112, %cst_31 {dimension_numbers = #tpu.dot_dimension_numbers<[1], [1], [0], [0], [0, 0, 1, 0], [], []>} : vector<9x32xbf16>, vector<16x32xbf16>, vector<9x16xf32> -> vector<9x16xf32>
    %114 = vector.broadcast %14 : vector<1x16xf32> to vector<9x16xf32>
    %115 = arith.addf %113, %114 : vector<9x16xf32>
    %cst_32 = arith.constant dense<0xFF800000> : vector<9xf32>
    %116 = vector.multi_reduction <maximumf>, %115, %cst_32 [1] : vector<9x16xf32> to vector<9xf32>
    %117 = vector.shape_cast %116 : vector<9xf32> to vector<9x1xf32>
    %118 = vector.broadcast %117 : vector<9x1xf32> to vector<9x16xf32>
    %119 = arith.subf %115, %118 : vector<9x16xf32>
    %120 = math.exp %119 : vector<9x16xf32>
    %cst_33 = arith.constant dense<0.000000e+00> : vector<9xf32>
    %121 = vector.multi_reduction <add>, %120, %cst_33 [1] : vector<9x16xf32> to vector<9xf32>
    %122 = vector.shape_cast %121 : vector<9xf32> to vector<9x1xf32>
    %123 = tpu.reciprocal %122 {approx = true} : vector<9x1xf32> -> vector<9x1xf32>
    %124 = vector.broadcast %123 : vector<9x1xf32> to vector<9x16xf32>
    %125 = arith.mulf %120, %124 : vector<9x16xf32>
    %126 = arith.truncf %125 : vector<9x16xf32> to vector<9x16xbf16>
    %127 = vector.extract_strided_slice %12 {offsets = [0, 160], sizes = [16, 32], strides = [1, 1]} : vector<16x256xbf16> to vector<16x32xbf16>
    %cst_34 = arith.constant dense<0.000000e+00> : vector<9x32xf32>
    %128 = tpu.matmul %126, %127, %cst_34 {dimension_numbers = #tpu.dot_dimension_numbers<[1], [0], [0], [1], [0, 0, 1, 1], [], []>} : vector<9x16xbf16>, vector<16x32xbf16>, vector<9x32xf32> -> vector<9x32xf32>
    %129 = vector.extract_strided_slice %0 {offsets = [0, 192], sizes = [9, 32], strides = [1, 1]} : vector<9x256xf32> to vector<9x32xf32>
    %130 = arith.truncf %129 : vector<9x32xf32> to vector<9x32xbf16>
    %131 = vector.extract_strided_slice %10 {offsets = [0, 192], sizes = [16, 32], strides = [1, 1]} : vector<16x256xbf16> to vector<16x32xbf16>
    %cst_35 = arith.constant dense<0.000000e+00> : vector<9x16xf32>
    %132 = tpu.matmul %130, %131, %cst_35 {dimension_numbers = #tpu.dot_dimension_numbers<[1], [1], [0], [0], [0, 0, 1, 0], [], []>} : vector<9x32xbf16>, vector<16x32xbf16>, vector<9x16xf32> -> vector<9x16xf32>
    %133 = vector.broadcast %14 : vector<1x16xf32> to vector<9x16xf32>
    %134 = arith.addf %132, %133 : vector<9x16xf32>
    %cst_36 = arith.constant dense<0xFF800000> : vector<9xf32>
    %135 = vector.multi_reduction <maximumf>, %134, %cst_36 [1] : vector<9x16xf32> to vector<9xf32>
    %136 = vector.shape_cast %135 : vector<9xf32> to vector<9x1xf32>
    %137 = vector.broadcast %136 : vector<9x1xf32> to vector<9x16xf32>
    %138 = arith.subf %134, %137 : vector<9x16xf32>
    %139 = math.exp %138 : vector<9x16xf32>
    %cst_37 = arith.constant dense<0.000000e+00> : vector<9xf32>
    %140 = vector.multi_reduction <add>, %139, %cst_37 [1] : vector<9x16xf32> to vector<9xf32>
    %141 = vector.shape_cast %140 : vector<9xf32> to vector<9x1xf32>
    %142 = tpu.reciprocal %141 {approx = true} : vector<9x1xf32> -> vector<9x1xf32>
    %143 = vector.broadcast %142 : vector<9x1xf32> to vector<9x16xf32>
    %144 = arith.mulf %139, %143 : vector<9x16xf32>
    %145 = arith.truncf %144 : vector<9x16xf32> to vector<9x16xbf16>
    %146 = vector.extract_strided_slice %12 {offsets = [0, 192], sizes = [16, 32], strides = [1, 1]} : vector<16x256xbf16> to vector<16x32xbf16>
    %cst_38 = arith.constant dense<0.000000e+00> : vector<9x32xf32>
    %147 = tpu.matmul %145, %146, %cst_38 {dimension_numbers = #tpu.dot_dimension_numbers<[1], [0], [0], [1], [0, 0, 1, 1], [], []>} : vector<9x16xbf16>, vector<16x32xbf16>, vector<9x32xf32> -> vector<9x32xf32>
    %148 = vector.extract_strided_slice %0 {offsets = [0, 224], sizes = [9, 32], strides = [1, 1]} : vector<9x256xf32> to vector<9x32xf32>
    %149 = arith.truncf %148 : vector<9x32xf32> to vector<9x32xbf16>
    %150 = vector.extract_strided_slice %10 {offsets = [0, 224], sizes = [16, 32], strides = [1, 1]} : vector<16x256xbf16> to vector<16x32xbf16>
    %cst_39 = arith.constant dense<0.000000e+00> : vector<9x16xf32>
    %151 = tpu.matmul %149, %150, %cst_39 {dimension_numbers = #tpu.dot_dimension_numbers<[1], [1], [0], [0], [0, 0, 1, 0], [], []>} : vector<9x32xbf16>, vector<16x32xbf16>, vector<9x16xf32> -> vector<9x16xf32>
    %152 = vector.broadcast %14 : vector<1x16xf32> to vector<9x16xf32>
    %153 = arith.addf %151, %152 : vector<9x16xf32>
    %cst_40 = arith.constant dense<0xFF800000> : vector<9xf32>
    %154 = vector.multi_reduction <maximumf>, %153, %cst_40 [1] : vector<9x16xf32> to vector<9xf32>
    %155 = vector.shape_cast %154 : vector<9xf32> to vector<9x1xf32>
    %156 = vector.broadcast %155 : vector<9x1xf32> to vector<9x16xf32>
    %157 = arith.subf %153, %156 : vector<9x16xf32>
    %158 = math.exp %157 : vector<9x16xf32>
    %cst_41 = arith.constant dense<0.000000e+00> : vector<9xf32>
    %159 = vector.multi_reduction <add>, %158, %cst_41 [1] : vector<9x16xf32> to vector<9xf32>
    %160 = vector.shape_cast %159 : vector<9xf32> to vector<9x1xf32>
    %161 = tpu.reciprocal %160 {approx = true} : vector<9x1xf32> -> vector<9x1xf32>
    %162 = vector.broadcast %161 : vector<9x1xf32> to vector<9x16xf32>
    %163 = arith.mulf %158, %162 : vector<9x16xf32>
    %164 = arith.truncf %163 : vector<9x16xf32> to vector<9x16xbf16>
    %165 = vector.extract_strided_slice %12 {offsets = [0, 224], sizes = [16, 32], strides = [1, 1]} : vector<16x256xbf16> to vector<16x32xbf16>
    %cst_42 = arith.constant dense<0.000000e+00> : vector<9x32xf32>
    %166 = tpu.matmul %164, %165, %cst_42 {dimension_numbers = #tpu.dot_dimension_numbers<[1], [0], [0], [1], [0, 0, 1, 1], [], []>} : vector<9x16xbf16>, vector<16x32xbf16>, vector<9x32xf32> -> vector<9x32xf32>
    %167 = tpu.concatenate %33, %52, %71, %90, %109, %128, %147, %166 in 1 : vector<9x32xf32>, vector<9x32xf32>, vector<9x32xf32>, vector<9x32xf32>, vector<9x32xf32>, vector<9x32xf32>, vector<9x32xf32>, vector<9x32xf32> -> vector<9x256xf32>
    %168 = arith.truncf %167 : vector<9x256xf32> to vector<9x256xbf16>
    %c0_43 = arith.constant 0 : index
    %c0_44 = arith.constant 0 : index
    %169 = vector.load %arg7[%c0_43, %c0_44] : memref<256x256xbf16, #tpu.memory_space<vmem>>, vector<256x256xbf16>
    %cst_45 = arith.constant dense<0.000000e+00> : vector<9x256xf32>
    %170 = tpu.matmul %168, %169, %cst_45 {dimension_numbers = #tpu.dot_dimension_numbers<[1], [0], [0], [1], [0, 0, 1, 1], [], []>} : vector<9x256xbf16>, vector<256x256xbf16>, vector<9x256xf32> -> vector<9x256xf32>
    %c0_46 = arith.constant 0 : index
    %c0_47 = arith.constant 0 : index
    %171 = vector.load %arg8[%c0_46, %c0_47] : memref<1x256xf32, #tpu.memory_space<vmem>>, vector<1x256xf32>
    %172 = vector.broadcast %171 : vector<1x256xf32> to vector<9x256xf32>
    %173 = arith.addf %170, %172 : vector<9x256xf32>
    %c0_48 = arith.constant 0 : index
    %c0_49 = arith.constant 0 : index
    %174 = vector.load %arg4[%c0_48, %c0_49] : memref<9x256xf32, #tpu.memory_space<vmem>>, vector<9x256xf32>
    %175 = arith.addf %173, %174 : vector<9x256xf32>
    %c0_50 = arith.constant 0 : index
    %c0_51 = arith.constant 0 : index
    %c0_52 = arith.constant 0 : index
    %176 = vector.load %arg9[%c0_50, %c0_51, %c0_52] : memref<1x9x256xf32, #tpu.memory_space<vmem>>, vector<1x9x256xf32>
    %177 = vector.shape_cast %176 : vector<1x9x256xf32> to vector<9x256xf32>
    %178 = vector.shape_cast %175 : vector<9x256xf32> to vector<1x9x256xf32>
    tpu.vector_store %arg9[%c0_50, %c0_51, %c0_52], %178 {strides = array<i32>} : memref<1x9x256xf32, #tpu.memory_space<vmem>>, vector<1x9x256xf32>,
    return
  }
  func.func @transform_0(%arg0: i32) -> (i32, i32) {
    %c0_i32 = arith.constant 0 : i32
    %c0_i32_0 = arith.constant 0 : i32
    %c0_i32_1 = arith.constant 0 : i32
    return %c0_i32, %c0_i32_0 : i32, i32
  }
  func.func @transform_1(%arg0: i32) -> (i32, i32, i32) {
    %c0_i32 = arith.constant 0 : i32
    %c0_i32_0 = arith.constant 0 : i32
    %c0_i32_1 = arith.constant 0 : i32
    return %arg0, %c0_i32, %c0_i32_0 : i32, i32, i32
  }
  func.func @transform_2(%arg0: i32) -> (i32, i32, i32) {
    %c0_i32 = arith.constant 0 : i32
    %c0_i32_0 = arith.constant 0 : i32
    %c0_i32_1 = arith.constant 0 : i32
    return %arg0, %c0_i32, %c0_i32_0 : i32, i32, i32
  }
  func.func @transform_3(%arg0: i32) -> (i32, i32) {
    %c0_i32 = arith.constant 0 : i32
    %c0_i32_0 = arith.constant 0 : i32
    %c0_i32_1 = arith.constant 0 : i32
    return %c0_i32, %c0_i32_0 : i32, i32
  }
  func.func @transform_4(%arg0: i32) -> (i32, i32) {
    %c0_i32 = arith.constant 0 : i32
    %c0_i32_0 = arith.constant 0 : i32
    %c0_i32_1 = arith.constant 0 : i32
    return %c0_i32, %c0_i32_0 : i32, i32
  }
  func.func @transform_5(%arg0: i32) -> (i32, i32) {
    %c0_i32 = arith.constant 0 : i32
    %c0_i32_0 = arith.constant 0 : i32
    %c0_i32_1 = arith.constant 0 : i32
    return %c0_i32, %c0_i32_0 : i32, i32
  }
  func.func @transform_6(%arg0: i32) -> (i32, i32) {
    %c0_i32 = arith.constant 0 : i32
    %c0_i32_0 = arith.constant 0 : i32
    %c0_i32_1 = arith.constant 0 : i32
    return %c0_i32, %c0_i32_0 : i32, i32
  }
  func.func @transform_7(%arg0: i32) -> (i32, i32) {
    %c0_i32 = arith.constant 0 : i32
    %c0_i32_0 = arith.constant 0 : i32
    %c0_i32_1 = arith.constant 0 : i32
    return %c0_i32, %c0_i32_0 : i32, i32
  }
  func.func @transform_8(%arg0: i32) -> (i32, i32, i32) {
    %c0_i32 = arith.constant 0 : i32
    %c0_i32_0 = arith.constant 0 : i32
    %c0_i32_1 = arith.constant 0 : i32
    return %arg0, %c0_i32, %c0_i32_0 : i32, i32, i32
  }
}

module attributes {stable_mosaic.version = 11 : i64} {
  func.func @_tail_kernel(%arg0: i32, %arg1: memref<18x256xf32, #tpu.memory_space<vmem>>, %arg2: memref<18x256xf32, #tpu.memory_space<vmem>>, %arg3: memref<1x256xf32, #tpu.memory_space<vmem>>, %arg4: memref<1x256xf32, #tpu.memory_space<vmem>>, %arg5: memref<256x1024xbf16, #tpu.memory_space<vmem>>, %arg6: memref<1x1024xf32, #tpu.memory_space<vmem>>, %arg7: memref<1024x256xbf16, #tpu.memory_space<vmem>>, %arg8: memref<1x256xf32, #tpu.memory_space<vmem>>, %arg9: memref<1x256xf32, #tpu.memory_space<vmem>>, %arg10: memref<1x256xf32, #tpu.memory_space<vmem>>, %arg11: memref<256x128xbf16, #tpu.memory_space<vmem>>, %arg12: memref<1x128xf32, #tpu.memory_space<vmem>>, %arg13: memref<128x100xbf16, #tpu.memory_space<vmem>>, %arg14: memref<1x100xf32, #tpu.memory_space<vmem>>, %arg15: memref<256x128xbf16, #tpu.memory_space<vmem>>, %arg16: memref<1x128xf32, #tpu.memory_space<vmem>>, %arg17: memref<128x1xbf16, #tpu.memory_space<vmem>>, %arg18: memref<1x1xf32, #tpu.memory_space<vmem>>, %arg19: memref<18x128xf32, #tpu.memory_space<vmem>>) attributes {dimension_semantics = [#tpu.dimension_semantics<parallel>], iteration_bounds = array<i64: 1>, scalar_prefetch = 0 : i64, scratch_operands = 0 : i64, tpu.core_type = #tpu.core_type<tc>, window_params = [{transform_indices = @transform_0, window_bounds = array<i64: 18, 256>}, {transform_indices = @transform_1, window_bounds = array<i64: 18, 256>}, {pipeline_mode = #tpu.pipeline_mode<synchronous>, transform_indices = @transform_2, window_bounds = array<i64: 1, 256>}, {pipeline_mode = #tpu.pipeline_mode<synchronous>, transform_indices = @transform_3, window_bounds = array<i64: 1, 256>}, {pipeline_mode = #tpu.pipeline_mode<synchronous>, transform_indices = @transform_4, window_bounds = array<i64: 256, 1024>}, {pipeline_mode = #tpu.pipeline_mode<synchronous>, transform_indices = @transform_5, window_bounds = array<i64: 1, 1024>}, {pipeline_mode = #tpu.pipeline_mode<synchronous>, transform_indices = @transform_6, window_bounds = array<i64: 1024, 256>}, {pipeline_mode = #tpu.pipeline_mode<synchronous>, transform_indices = @transform_7, window_bounds = array<i64: 1, 256>}, {pipeline_mode = #tpu.pipeline_mode<synchronous>, transform_indices = @transform_8, window_bounds = array<i64: 1, 256>}, {pipeline_mode = #tpu.pipeline_mode<synchronous>, transform_indices = @transform_9, window_bounds = array<i64: 1, 256>}, {pipeline_mode = #tpu.pipeline_mode<synchronous>, transform_indices = @transform_10, window_bounds = array<i64: 256, 128>}, {pipeline_mode = #tpu.pipeline_mode<synchronous>, transform_indices = @transform_11, window_bounds = array<i64: 1, 128>}, {pipeline_mode = #tpu.pipeline_mode<synchronous>, transform_indices = @transform_12, window_bounds = array<i64: 128, 100>}, {pipeline_mode = #tpu.pipeline_mode<synchronous>, transform_indices = @transform_13, window_bounds = array<i64: 1, 100>}, {pipeline_mode = #tpu.pipeline_mode<synchronous>, transform_indices = @transform_14, window_bounds = array<i64: 256, 128>}, {pipeline_mode = #tpu.pipeline_mode<synchronous>, transform_indices = @transform_15, window_bounds = array<i64: 1, 128>}, {pipeline_mode = #tpu.pipeline_mode<synchronous>, transform_indices = @transform_16, window_bounds = array<i64: 128, 1>}, {pipeline_mode = #tpu.pipeline_mode<synchronous>, transform_indices = @transform_17, window_bounds = array<i64: 1, 1>}, {transform_indices = @transform_18, window_bounds = array<i64: 18, 128>}]} {
    %c0 = arith.constant 0 : index
    %c0_0 = arith.constant 0 : index
    %0 = vector.load %arg1[%c0, %c0_0] : memref<18x256xf32, #tpu.memory_space<vmem>>, vector<18x256xf32>
    %c0_1 = arith.constant 0 : index
    %c0_2 = arith.constant 0 : index
    %1 = vector.load %arg2[%c0_1, %c0_2] : memref<18x256xf32, #tpu.memory_space<vmem>>, vector<18x256xf32>
    %2 = arith.addf %0, %1 : vector<18x256xf32>
    %c0_3 = arith.constant 0 : index
    %c0_4 = arith.constant 0 : index
    %3 = vector.load %arg3[%c0_3, %c0_4] : memref<1x256xf32, #tpu.memory_space<vmem>>, vector<1x256xf32>
    %c0_5 = arith.constant 0 : index
    %c0_6 = arith.constant 0 : index
    %4 = vector.load %arg4[%c0_5, %c0_6] : memref<1x256xf32, #tpu.memory_space<vmem>>, vector<1x256xf32>
    %cst = arith.constant dense<0.000000e+00> : vector<18xf32>
    %5 = vector.multi_reduction <add>, %2, %cst [1] : vector<18x256xf32> to vector<18xf32>
    %6 = vector.shape_cast %5 : vector<18xf32> to vector<18x1xf32>
    %cst_7 = arith.constant 2.560000e+02 : f32
    %7 = vector.broadcast %cst_7 : f32 to vector<18x1xf32>
    %8 = arith.divf %6, %7 : vector<18x1xf32>
    %9 = vector.broadcast %8 : vector<18x1xf32> to vector<18x256xf32>
    %10 = arith.subf %2, %9 : vector<18x256xf32>
    %11 = arith.mulf %10, %10 : vector<18x256xf32>
    %cst_8 = arith.constant dense<0.000000e+00> : vector<18xf32>
    %12 = vector.multi_reduction <add>, %11, %cst_8 [1] : vector<18x256xf32> to vector<18xf32>
    %13 = vector.shape_cast %12 : vector<18xf32> to vector<18x1xf32>
    %cst_9 = arith.constant 2.560000e+02 : f32
    %14 = vector.broadcast %cst_9 : f32 to vector<18x1xf32>
    %15 = arith.divf %13, %14 : vector<18x1xf32>
    %16 = vector.broadcast %8 : vector<18x1xf32> to vector<18x256xf32>
    %17 = arith.subf %2, %16 : vector<18x256xf32>
    %cst_10 = arith.constant 9.99999974E-6 : f32
    %18 = vector.broadcast %cst_10 : f32 to vector<18x1xf32>
    %19 = arith.addf %15, %18 : vector<18x1xf32>
    %20 = math.rsqrt %19 : vector<18x1xf32>
    %21 = vector.broadcast %20 : vector<18x1xf32> to vector<18x256xf32>
    %22 = arith.mulf %17, %21 : vector<18x256xf32>
    %23 = vector.broadcast %3 : vector<1x256xf32> to vector<18x256xf32>
    %24 = arith.mulf %22, %23 : vector<18x256xf32>
    %25 = vector.broadcast %4 : vector<1x256xf32> to vector<18x256xf32>
    %26 = arith.addf %24, %25 : vector<18x256xf32>
    %27 = arith.truncf %26 : vector<18x256xf32> to vector<18x256xbf16>
    %c0_11 = arith.constant 0 : index
    %c0_12 = arith.constant 0 : index
    %28 = vector.load %arg5[%c0_11, %c0_12] : memref<256x1024xbf16, #tpu.memory_space<vmem>>, vector<256x1024xbf16>
    %cst_13 = arith.constant dense<0.000000e+00> : vector<18x1024xf32>
    %29 = tpu.matmul %27, %28, %cst_13 {dimension_numbers = #tpu.dot_dimension_numbers<[1], [0], [0], [1], [0, 0, 1, 1], [], []>} : vector<18x256xbf16>, vector<256x1024xbf16>, vector<18x1024xf32> -> vector<18x1024xf32>
    %c0_14 = arith.constant 0 : index
    %c0_15 = arith.constant 0 : index
    %30 = vector.load %arg6[%c0_14, %c0_15] : memref<1x1024xf32, #tpu.memory_space<vmem>>, vector<1x1024xf32>
    %31 = vector.broadcast %30 : vector<1x1024xf32> to vector<18x1024xf32>
    %32 = arith.addf %29, %31 : vector<18x1024xf32>
    %cst_16 = arith.constant 5.000000e-01 : f32
    %33 = vector.broadcast %cst_16 : f32 to vector<18x1024xf32>
    %34 = arith.mulf %33, %32 : vector<18x1024xf32>
    %cst_17 = arith.constant 4.471500e-02 : f32
    %35 = vector.broadcast %cst_17 : f32 to vector<18x1024xf32>
    %36 = arith.mulf %35, %32 : vector<18x1024xf32>
    %37 = arith.mulf %36, %32 : vector<18x1024xf32>
    %38 = arith.mulf %37, %32 : vector<18x1024xf32>
    %39 = arith.addf %32, %38 : vector<18x1024xf32>
    %cst_18 = arith.constant 0.797884583 : f32
    %40 = vector.broadcast %cst_18 : f32 to vector<18x1024xf32>
    %41 = arith.mulf %40, %39 : vector<18x1024xf32>
    %42 = math.tanh %41 : vector<18x1024xf32>
    %cst_19 = arith.constant 1.000000e+00 : f32
    %43 = vector.broadcast %cst_19 : f32 to vector<18x1024xf32>
    %44 = arith.addf %43, %42 : vector<18x1024xf32>
    %45 = arith.mulf %34, %44 : vector<18x1024xf32>
    %46 = arith.truncf %45 : vector<18x1024xf32> to vector<18x1024xbf16>
    %c0_20 = arith.constant 0 : index
    %c0_21 = arith.constant 0 : index
    %47 = vector.load %arg7[%c0_20, %c0_21] : memref<1024x256xbf16, #tpu.memory_space<vmem>>, vector<1024x256xbf16>
    %cst_22 = arith.constant dense<0.000000e+00> : vector<18x256xf32>
    %48 = tpu.matmul %46, %47, %cst_22 {dimension_numbers = #tpu.dot_dimension_numbers<[1], [0], [0], [1], [0, 0, 1, 1], [], []>} : vector<18x1024xbf16>, vector<1024x256xbf16>, vector<18x256xf32> -> vector<18x256xf32>
    %c0_23 = arith.constant 0 : index
    %c0_24 = arith.constant 0 : index
    %49 = vector.load %arg8[%c0_23, %c0_24] : memref<1x256xf32, #tpu.memory_space<vmem>>, vector<1x256xf32>
    %50 = vector.broadcast %49 : vector<1x256xf32> to vector<18x256xf32>
    %51 = arith.addf %48, %50 : vector<18x256xf32>
    %52 = arith.addf %51, %26 : vector<18x256xf32>
    %c0_25 = arith.constant 0 : index
    %c0_26 = arith.constant 0 : index
    %53 = vector.load %arg9[%c0_25, %c0_26] : memref<1x256xf32, #tpu.memory_space<vmem>>, vector<1x256xf32>
    %c0_27 = arith.constant 0 : index
    %c0_28 = arith.constant 0 : index
    %54 = vector.load %arg10[%c0_27, %c0_28] : memref<1x256xf32, #tpu.memory_space<vmem>>, vector<1x256xf32>
    %cst_29 = arith.constant dense<0.000000e+00> : vector<18xf32>
    %55 = vector.multi_reduction <add>, %52, %cst_29 [1] : vector<18x256xf32> to vector<18xf32>
    %56 = vector.shape_cast %55 : vector<18xf32> to vector<18x1xf32>
    %cst_30 = arith.constant 2.560000e+02 : f32
    %57 = vector.broadcast %cst_30 : f32 to vector<18x1xf32>
    %58 = arith.divf %56, %57 : vector<18x1xf32>
    %59 = vector.broadcast %58 : vector<18x1xf32> to vector<18x256xf32>
    %60 = arith.subf %52, %59 : vector<18x256xf32>
    %61 = arith.mulf %60, %60 : vector<18x256xf32>
    %cst_31 = arith.constant dense<0.000000e+00> : vector<18xf32>
    %62 = vector.multi_reduction <add>, %61, %cst_31 [1] : vector<18x256xf32> to vector<18xf32>
    %63 = vector.shape_cast %62 : vector<18xf32> to vector<18x1xf32>
    %cst_32 = arith.constant 2.560000e+02 : f32
    %64 = vector.broadcast %cst_32 : f32 to vector<18x1xf32>
    %65 = arith.divf %63, %64 : vector<18x1xf32>
    %66 = vector.broadcast %58 : vector<18x1xf32> to vector<18x256xf32>
    %67 = arith.subf %52, %66 : vector<18x256xf32>
    %cst_33 = arith.constant 9.99999974E-6 : f32
    %68 = vector.broadcast %cst_33 : f32 to vector<18x1xf32>
    %69 = arith.addf %65, %68 : vector<18x1xf32>
    %70 = math.rsqrt %69 : vector<18x1xf32>
    %71 = vector.broadcast %70 : vector<18x1xf32> to vector<18x256xf32>
    %72 = arith.mulf %67, %71 : vector<18x256xf32>
    %73 = vector.broadcast %53 : vector<1x256xf32> to vector<18x256xf32>
    %74 = arith.mulf %72, %73 : vector<18x256xf32>
    %75 = vector.broadcast %54 : vector<1x256xf32> to vector<18x256xf32>
    %76 = arith.addf %74, %75 : vector<18x256xf32>
    %77 = arith.truncf %76 : vector<18x256xf32> to vector<18x256xbf16>
    %c0_34 = arith.constant 0 : index
    %c0_35 = arith.constant 0 : index
    %78 = vector.load %arg11[%c0_34, %c0_35] : memref<256x128xbf16, #tpu.memory_space<vmem>>, vector<256x128xbf16>
    %cst_36 = arith.constant dense<0.000000e+00> : vector<18x128xf32>
    %79 = tpu.matmul %77, %78, %cst_36 {dimension_numbers = #tpu.dot_dimension_numbers<[1], [0], [0], [1], [0, 0, 1, 1], [], []>} : vector<18x256xbf16>, vector<256x128xbf16>, vector<18x128xf32> -> vector<18x128xf32>
    %c0_37 = arith.constant 0 : index
    %c0_38 = arith.constant 0 : index
    %80 = vector.load %arg12[%c0_37, %c0_38] : memref<1x128xf32, #tpu.memory_space<vmem>>, vector<1x128xf32>
    %81 = vector.broadcast %80 : vector<1x128xf32> to vector<18x128xf32>
    %82 = arith.addf %79, %81 : vector<18x128xf32>
    %cst_39 = arith.constant 0.000000e+00 : f32
    %83 = vector.broadcast %cst_39 : f32 to vector<18x128xf32>
    %84 = arith.cmpf ogt, %82, %83 : vector<18x128xf32>
    %cst_40 = arith.constant 0.000000e+00 : f32
    %85 = vector.broadcast %cst_40 : f32 to vector<18x128xf32>
    %86 = arith.minimumf %82, %85 : vector<18x128xf32>
    %87 = math.exp %86 : vector<18x128xf32>
    %cst_41 = arith.constant 1.000000e+00 : f32
    %88 = vector.broadcast %cst_41 : f32 to vector<18x128xf32>
    %89 = arith.subf %87, %88 : vector<18x128xf32>
    %90 = arith.select %84, %82, %89 : vector<18x128xi1>, vector<18x128xf32>
    %91 = arith.truncf %90 : vector<18x128xf32> to vector<18x128xbf16>
    %c0_42 = arith.constant 0 : index
    %c0_43 = arith.constant 0 : index
    %92 = vector.load %arg13[%c0_42, %c0_43] : memref<128x100xbf16, #tpu.memory_space<vmem>>, vector<128x100xbf16>
    %cst_44 = arith.constant dense<0.000000e+00> : vector<18x100xf32>
    %93 = tpu.matmul %91, %92, %cst_44 {dimension_numbers = #tpu.dot_dimension_numbers<[1], [0], [0], [1], [0, 0, 1, 1], [], []>} : vector<18x128xbf16>, vector<128x100xbf16>, vector<18x100xf32> -> vector<18x100xf32>
    %c0_45 = arith.constant 0 : index
    %c0_46 = arith.constant 0 : index
    %94 = vector.load %arg14[%c0_45, %c0_46] : memref<1x100xf32, #tpu.memory_space<vmem>>, vector<1x100xf32>
    %95 = vector.broadcast %94 : vector<1x100xf32> to vector<18x100xf32>
    %96 = arith.addf %93, %95 : vector<18x100xf32>
    %c0_47 = arith.constant 0 : index
    %c0_48 = arith.constant 0 : index
    %97 = vector.load %arg15[%c0_47, %c0_48] : memref<256x128xbf16, #tpu.memory_space<vmem>>, vector<256x128xbf16>
    %cst_49 = arith.constant dense<0.000000e+00> : vector<18x128xf32>
    %98 = tpu.matmul %77, %97, %cst_49 {dimension_numbers = #tpu.dot_dimension_numbers<[1], [0], [0], [1], [0, 0, 1, 1], [], []>} : vector<18x256xbf16>, vector<256x128xbf16>, vector<18x128xf32> -> vector<18x128xf32>
    %c0_50 = arith.constant 0 : index
    %c0_51 = arith.constant 0 : index
    %99 = vector.load %arg16[%c0_50, %c0_51] : memref<1x128xf32, #tpu.memory_space<vmem>>, vector<1x128xf32>
    %100 = vector.broadcast %99 : vector<1x128xf32> to vector<18x128xf32>
    %101 = arith.addf %98, %100 : vector<18x128xf32>
    %cst_52 = arith.constant 0.000000e+00 : f32
    %102 = vector.broadcast %cst_52 : f32 to vector<18x128xf32>
    %103 = arith.cmpf ogt, %101, %102 : vector<18x128xf32>
    %cst_53 = arith.constant 0.000000e+00 : f32
    %104 = vector.broadcast %cst_53 : f32 to vector<18x128xf32>
    %105 = arith.minimumf %101, %104 : vector<18x128xf32>
    %106 = math.exp %105 : vector<18x128xf32>
    %cst_54 = arith.constant 1.000000e+00 : f32
    %107 = vector.broadcast %cst_54 : f32 to vector<18x128xf32>
    %108 = arith.subf %106, %107 : vector<18x128xf32>
    %109 = arith.select %103, %101, %108 : vector<18x128xi1>, vector<18x128xf32>
    %110 = arith.truncf %109 : vector<18x128xf32> to vector<18x128xbf16>
    %c0_55 = arith.constant 0 : index
    %c0_56 = arith.constant 0 : index
    %111 = vector.load %arg17[%c0_55, %c0_56] : memref<128x1xbf16, #tpu.memory_space<vmem>>, vector<128x1xbf16>
    %cst_57 = arith.constant dense<0.000000e+00> : vector<18x1xf32>
    %112 = tpu.matmul %110, %111, %cst_57 {dimension_numbers = #tpu.dot_dimension_numbers<[1], [0], [0], [1], [0, 0, 1, 1], [], []>} : vector<18x128xbf16>, vector<128x1xbf16>, vector<18x1xf32> -> vector<18x1xf32>
    %c0_58 = arith.constant 0 : index
    %c0_59 = arith.constant 0 : index
    %113 = vector.load %arg18[%c0_58, %c0_59] : memref<1x1xf32, #tpu.memory_space<vmem>>, vector<1x1xf32>
    %114 = vector.broadcast %113 : vector<1x1xf32> to vector<18x1xf32>
    %115 = arith.addf %112, %114 : vector<18x1xf32>
    %cst_60 = arith.constant 0.000000e+00 : f32
    %116 = vector.broadcast %cst_60 : f32 to vector<18x27xf32>
    %117 = tpu.concatenate %96, %115, %116 in 1 : vector<18x100xf32>, vector<18x1xf32>, vector<18x27xf32> -> vector<18x128xf32>
    %c0_61 = arith.constant 0 : index
    %c0_62 = arith.constant 0 : index
    %118 = vector.load %arg19[%c0_61, %c0_62] : memref<18x128xf32, #tpu.memory_space<vmem>>, vector<18x128xf32>
    tpu.vector_store %arg19[%c0_61, %c0_62], %117 {strides = array<i32>} : memref<18x128xf32, #tpu.memory_space<vmem>>, vector<18x128xf32>,
    return
  }
  func.func @transform_0(%arg0: i32) -> (i32, i32) {
    %c0_i32 = arith.constant 0 : i32
    %c0_i32_0 = arith.constant 0 : i32
    return %arg0, %c0_i32 : i32, i32
  }
  func.func @transform_1(%arg0: i32) -> (i32, i32) {
    %c0_i32 = arith.constant 0 : i32
    %c0_i32_0 = arith.constant 0 : i32
    return %arg0, %c0_i32 : i32, i32
  }
  func.func @transform_2(%arg0: i32) -> (i32, i32) {
    %c0_i32 = arith.constant 0 : i32
    %c0_i32_0 = arith.constant 0 : i32
    %c0_i32_1 = arith.constant 0 : i32
    return %c0_i32, %c0_i32_0 : i32, i32
  }
  func.func @transform_3(%arg0: i32) -> (i32, i32) {
    %c0_i32 = arith.constant 0 : i32
    %c0_i32_0 = arith.constant 0 : i32
    %c0_i32_1 = arith.constant 0 : i32
    return %c0_i32, %c0_i32_0 : i32, i32
  }
  func.func @transform_4(%arg0: i32) -> (i32, i32) {
    %c0_i32 = arith.constant 0 : i32
    %c0_i32_0 = arith.constant 0 : i32
    %c0_i32_1 = arith.constant 0 : i32
    return %c0_i32, %c0_i32_0 : i32, i32
  }
  func.func @transform_5(%arg0: i32) -> (i32, i32) {
    %c0_i32 = arith.constant 0 : i32
    %c0_i32_0 = arith.constant 0 : i32
    %c0_i32_1 = arith.constant 0 : i32
    return %c0_i32, %c0_i32_0 : i32, i32
  }
  func.func @transform_6(%arg0: i32) -> (i32, i32) {
    %c0_i32 = arith.constant 0 : i32
    %c0_i32_0 = arith.constant 0 : i32
    %c0_i32_1 = arith.constant 0 : i32
    return %c0_i32, %c0_i32_0 : i32, i32
  }
  func.func @transform_7(%arg0: i32) -> (i32, i32) {
    %c0_i32 = arith.constant 0 : i32
    %c0_i32_0 = arith.constant 0 : i32
    %c0_i32_1 = arith.constant 0 : i32
    return %c0_i32, %c0_i32_0 : i32, i32
  }
  func.func @transform_8(%arg0: i32) -> (i32, i32) {
    %c0_i32 = arith.constant 0 : i32
    %c0_i32_0 = arith.constant 0 : i32
    %c0_i32_1 = arith.constant 0 : i32
    return %c0_i32, %c0_i32_0 : i32, i32
  }
  func.func @transform_9(%arg0: i32) -> (i32, i32) {
    %c0_i32 = arith.constant 0 : i32
    %c0_i32_0 = arith.constant 0 : i32
    %c0_i32_1 = arith.constant 0 : i32
    return %c0_i32, %c0_i32_0 : i32, i32
  }
  func.func @transform_10(%arg0: i32) -> (i32, i32) {
    %c0_i32 = arith.constant 0 : i32
    %c0_i32_0 = arith.constant 0 : i32
    %c0_i32_1 = arith.constant 0 : i32
    return %c0_i32, %c0_i32_0 : i32, i32
  }
  func.func @transform_11(%arg0: i32) -> (i32, i32) {
    %c0_i32 = arith.constant 0 : i32
    %c0_i32_0 = arith.constant 0 : i32
    %c0_i32_1 = arith.constant 0 : i32
    return %c0_i32, %c0_i32_0 : i32, i32
  }
  func.func @transform_12(%arg0: i32) -> (i32, i32) {
    %c0_i32 = arith.constant 0 : i32
    %c0_i32_0 = arith.constant 0 : i32
    %c0_i32_1 = arith.constant 0 : i32
    return %c0_i32, %c0_i32_0 : i32, i32
  }
  func.func @transform_13(%arg0: i32) -> (i32, i32) {
    %c0_i32 = arith.constant 0 : i32
    %c0_i32_0 = arith.constant 0 : i32
    %c0_i32_1 = arith.constant 0 : i32
    return %c0_i32, %c0_i32_0 : i32, i32
  }
  func.func @transform_14(%arg0: i32) -> (i32, i32) {
    %c0_i32 = arith.constant 0 : i32
    %c0_i32_0 = arith.constant 0 : i32
    %c0_i32_1 = arith.constant 0 : i32
    return %c0_i32, %c0_i32_0 : i32, i32
  }
  func.func @transform_15(%arg0: i32) -> (i32, i32) {
    %c0_i32 = arith.constant 0 : i32
    %c0_i32_0 = arith.constant 0 : i32
    %c0_i32_1 = arith.constant 0 : i32
    return %c0_i32, %c0_i32_0 : i32, i32
  }
  func.func @transform_16(%arg0: i32) -> (i32, i32) {
    %c0_i32 = arith.constant 0 : i32
    %c0_i32_0 = arith.constant 0 : i32
    %c0_i32_1 = arith.constant 0 : i32
    return %c0_i32, %c0_i32_0 : i32, i32
  }
  func.func @transform_17(%arg0: i32) -> (i32, i32) {
    %c0_i32 = arith.constant 0 : i32
    %c0_i32_0 = arith.constant 0 : i32
    %c0_i32_1 = arith.constant 0 : i32
    return %c0_i32, %c0_i32_0 : i32, i32
  }
  func.func @transform_18(%arg0: i32) -> (i32, i32) {
    %c0_i32 = arith.constant 0 : i32
    %c0_i32_0 = arith.constant 0 : i32
    return %arg0, %c0_i32 : i32, i32
  }
}

</mosaic_0001>

<llo_original>
// kernel: planning_decoder_pallas.3
$region0: #{planning_decoder_pallas.3}
  #allocation0 [shape = 'u32[]', space=smem, size = 0x4, offset = 0x4, fixed_abs, tag = 'smem constant byte address 0x4 - core index']
  #allocation1 [shape = 'u32[144,128]{1,0:T(1,128)}', space=vmem, size = 0x12000, scoped, tag = 'internal scratch']
  %s0 = inlined_call_operand.vmem [shape: f32[9,256], index: 0, kind: input, shape index: {}]
  %s1 = inlined_call_operand.vmem [shape: f32[2,16,256], index: 1, kind: input, shape index: {}]
  %s2 = inlined_call_operand.vmem [shape: f32[2,1,16], index: 2, kind: input, shape index: {}]
  %s3 = inlined_call_operand.vmem [shape: f32[9,256], index: 3, kind: input, shape index: {}]
  %s4 = inlined_call_operand.vmem [shape: bf16[256,512], index: 4, kind: input, shape index: {}]
  %s5 = inlined_call_operand.vmem [shape: f32[1,512], index: 5, kind: input, shape index: {}]
  %s6 = inlined_call_operand.vmem [shape: bf16[256,256], index: 6, kind: input, shape index: {}]
  %s7 = inlined_call_operand.vmem [shape: f32[1,256], index: 7, kind: input, shape index: {}]
  %s8 = inlined_call_operand.vmem [shape: f32[2,9,256], index: 8, kind: output, shape index: {}]
  %s9 = sld [smem:[#allocation0]]
  $region65: #{planning_decoder_pallas.3} parent=0
    _
  %s11 = ssub.s32 1, %s9
  %s12 = scalar_select 0, %s11, %s9
  loop: start=0, step=1, limit=4
  $region2: #{planning_decoder_pallas.3} parent=0 // loop_pre_header
    _
  $region3: #{planning_decoder_pallas.3} parent=0 // loop_header
    %s14 = sphi 0, %s18
    %p15 = scmp.ge.s32.totalorder %s14, 4
    %s22 = sphi 0, %s22
    %s24 = sphi 0, %s22
    %s25 = sphi 0, %s24
    %s39 = sphi 0, %s25
    %s45 = sphi 0, %s47
    %s48 = sphi 0, %s45
    %s49 = sphi 0, %s48
    %s65 = sphi 0, %s49
    %s71 = sphi 0, %s73
    %s74 = sphi 0, %s71
    %s75 = sphi 0, %s74
    %s91 = sphi 0, %s75
    %s95 = sphi 0, %s95
    %s97 = sphi 0, %s95
    %s98 = sphi 0, %s97
    %s112 = sphi 0, %s98
    %s116 = sphi 0, %s116
    %s118 = sphi 0, %s116
    %s119 = sphi 0, %s118
    %s133 = sphi 0, %s119
    %s137 = sphi 0, %s137
    %s139 = sphi 0, %s137
    %s140 = sphi 0, %s139
    %s154 = sphi 0, %s140
    %s158 = sphi 0, %s158
    %s160 = sphi 0, %s158
    %s161 = sphi 0, %s160
    %s175 = sphi 0, %s161
    %s179 = sphi 0, %s179
    %s181 = sphi 0, %s179
    %s182 = sphi 0, %s181
    %s196 = sphi 0, %s182
    %s202 = sphi 0, %s204
    %s205 = sphi 0, %s202
    %s206 = sphi 0, %s205
    %s222 = sphi 0, %s206
  $region4: #{planning_decoder_pallas.3} parent=0 // loop_header_branch
    %17 = sbr.rel (%p15) target = $region8
  $region5: #{planning_decoder_pallas.3} parent=0 // loop_body
    %s19 = ssub.s32 %s14, 1
    %s20 = ssub.s32 %s14, 2
    %s21 = sadd.s32 %s14, 1
    %s23 = sadd.s32 %s22, 1
    %p26 = scmp.eq.s32.totalorder %s14, 1
    %p27 = scmp.ne.s32.totalorder %s22, %s24
    %p28 = scmp.eq.s32.totalorder %s14, 0
    %p29 = por %p27, %p28
    %p30 = scmp.ne.s32.totalorder %s22, %s24
    %p31 = scmp.eq.s32.totalorder %s19, 1
    %p32 = por %p30, %p31
    %p33 = scmp.ne.s32.totalorder %s24, %s25
    %p34 = scmp.eq.s32.totalorder %s19, 0
    %p35 = por %p33, %p34
    %p36 = scmp.ne.s32.totalorder %s24, %s25
    %p37 = scmp.eq.s32.totalorder %s20, 1
    %p38 = por %p36, %p37
    %p40 = scmp.ne.s32.totalorder %s25, %s39
    %p41 = scmp.eq.s32.totalorder %s20, 0
    %p42 = por %p40, %p41
    %s43 = ssub.s32 %s14, %s21
    %p44 = scmp.eq.s32.totalorder %s43, 0
    %s46 = sadd.s32 %s45, 1
    %s47 = scalar_select %p44, %s45, %s46
    %p50 = pneg %p44
    %p51 = scmp.eq.s32.totalorder %s14, 1
    %p52 = por %p50, %p51
    %p53 = scmp.ne.s32.totalorder %s45, %s48
    %p54 = scmp.eq.s32.totalorder %s14, 0
    %p55 = por %p53, %p54
    %p56 = scmp.ne.s32.totalorder %s45, %s48
    %p57 = scmp.eq.s32.totalorder %s19, 1
    %p58 = por %p56, %p57
    %p59 = scmp.ne.s32.totalorder %s48, %s49
    %p60 = scmp.eq.s32.totalorder %s19, 0
    %p61 = por %p59, %p60
    %p62 = scmp.ne.s32.totalorder %s48, %s49
    %p63 = scmp.eq.s32.totalorder %s20, 1
    %p64 = por %p62, %p63
    %p66 = scmp.ne.s32.totalorder %s49, %s65
    %p67 = scmp.eq.s32.totalorder %s20, 0
    %p68 = por %p66, %p67
    %s69 = ssub.s32 %s14, %s21
    %p70 = scmp.eq.s32.totalorder %s69, 0
    %s72 = sadd.s32 %s71, 1
    %s73 = scalar_select %p70, %s71, %s72
    %p76 = pneg %p70
    %p77 = scmp.eq.s32.totalorder %s14, 1
    %p78 = por %p76, %p77
    %p79 = scmp.ne.s32.totalorder %s71, %s74
    %p80 = scmp.eq.s32.totalorder %s14, 0
    %p81 = por %p79, %p80
    %p82 = scmp.ne.s32.totalorder %s71, %s74
    %p83 = scmp.eq.s32.totalorder %s19, 1
    %p84 = por %p82, %p83
    %p85 = scmp.ne.s32.totalorder %s74, %s75
    %p86 = scmp.eq.s32.totalorder %s19, 0
    %p87 = por %p85, %p86
    %p88 = scmp.ne.s32.totalorder %s74, %s75
    %p89 = scmp.eq.s32.totalorder %s20, 1
    %p90 = por %p88, %p89
    %p92 = scmp.ne.s32.totalorder %s75, %s91
    %p93 = scmp.eq.s32.totalorder %s20, 0
    %p94 = por %p92, %p93
    %s96 = sadd.s32 %s95, 1
    %p99 = scmp.eq.s32.totalorder %s14, 1
    %p100 = scmp.ne.s32.totalorder %s95, %s97
    %p101 = scmp.eq.s32.totalorder %s14, 0
    %p102 = por %p100, %p101
    %p103 = scmp.ne.s32.totalorder %s95, %s97
    %p104 = scmp.eq.s32.totalorder %s19, 1
    %p105 = por %p103, %p104
    %p106 = scmp.ne.s32.totalorder %s97, %s98
    %p107 = scmp.eq.s32.totalorder %s19, 0
    %p108 = por %p106, %p107
    %p109 = scmp.ne.s32.totalorder %s97, %s98
    %p110 = scmp.eq.s32.totalorder %s20, 1
    %p111 = por %p109, %p110
    %p113 = scmp.ne.s32.totalorder %s98, %s112
    %p114 = scmp.eq.s32.totalorder %s20, 0
    %p115 = por %p113, %p114
    %s117 = sadd.s32 %s116, 1
    %p120 = scmp.eq.s32.totalorder %s14, 1
    %p121 = scmp.ne.s32.totalorder %s116, %s118
    %p122 = scmp.eq.s32.totalorder %s14, 0
    %p123 = por %p121, %p122
    %p124 = scmp.ne.s32.totalorder %s116, %s118
    %p125 = scmp.eq.s32.totalorder %s19, 1
    %p126 = por %p124, %p125
    %p127 = scmp.ne.s32.totalorder %s118, %s119
    %p128 = scmp.eq.s32.totalorder %s19, 0
    %p129 = por %p127, %p128
    %p130 = scmp.ne.s32.totalorder %s118, %s119
    %p131 = scmp.eq.s32.totalorder %s20, 1
    %p132 = por %p130, %p131
    %p134 = scmp.ne.s32.totalorder %s119, %s133
    %p135 = scmp.eq.s32.totalorder %s20, 0
    %p136 = por %p134, %p135
    %s138 = sadd.s32 %s137, 1
    %p141 = scmp.eq.s32.totalorder %s14, 1
    %p142 = scmp.ne.s32.totalorder %s137, %s139
    %p143 = scmp.eq.s32.totalorder %s14, 0
    %p144 = por %p142, %p143
    %p145 = scmp.ne.s32.totalorder %s137, %s139
    %p146 = scmp.eq.s32.totalorder %s19, 1
    %p147 = por %p145, %p146
    %p148 = scmp.ne.s32.totalorder %s139, %s140
    %p149 = scmp.eq.s32.totalorder %s19, 0
    %p150 = por %p148, %p149
    %p151 = scmp.ne.s32.totalorder %s139, %s140
    %p152 = scmp.eq.s32.totalorder %s20, 1
    %p153 = por %p151, %p152
    %p155 = scmp.ne.s32.totalorder %s140, %s154
    %p156 = scmp.eq.s32.totalorder %s20, 0
    %p157 = por %p155, %p156
    %s159 = sadd.s32 %s158, 1
    %p162 = scmp.eq.s32.totalorder %s14, 1
    %p163 = scmp.ne.s32.totalorder %s158, %s160
    %p164 = scmp.eq.s32.totalorder %s14, 0
    %p165 = por %p163, %p164
    %p166 = scmp.ne.s32.totalorder %s158, %s160
    %p167 = scmp.eq.s32.totalorder %s19, 1
    %p168 = por %p166, %p167
    %p169 = scmp.ne.s32.totalorder %s160, %s161
    %p170 = scmp.eq.s32.totalorder %s19, 0
    %p171 = por %p169, %p170
    %p172 = scmp.ne.s32.totalorder %s160, %s161
    %p173 = scmp.eq.s32.totalorder %s20, 1
    %p174 = por %p172, %p173
    %p176 = scmp.ne.s32.totalorder %s161, %s175
    %p177 = scmp.eq.s32.totalorder %s20, 0
    %p178 = por %p176, %p177
    %s180 = sadd.s32 %s179, 1
    %p183 = scmp.eq.s32.totalorder %s14, 1
    %p184 = scmp.ne.s32.totalorder %s179, %s181
    %p185 = scmp.eq.s32.totalorder %s14, 0
    %p186 = por %p184, %p185
    %p187 = scmp.ne.s32.totalorder %s179, %s181
    %p188 = scmp.eq.s32.totalorder %s19, 1
    %p189 = por %p187, %p188
    %p190 = scmp.ne.s32.totalorder %s181, %s182
    %p191 = scmp.eq.s32.totalorder %s19, 0
    %p192 = por %p190, %p191
    %p193 = scmp.ne.s32.totalorder %s181, %s182
    %p194 = scmp.eq.s32.totalorder %s20, 1
    %p195 = por %p193, %p194
    %p197 = scmp.ne.s32.totalorder %s182, %s196
    %p198 = scmp.eq.s32.totalorder %s20, 0
    %p199 = por %p197, %p198
    %s200 = ssub.s32 %s14, %s21
    %p201 = scmp.eq.s32.totalorder %s200, 0
    %s203 = sadd.s32 %s202, 1
    %s204 = scalar_select %p201, %s202, %s203
    %p207 = pneg %p201
    %p208 = scmp.eq.s32.totalorder %s14, 1
    %p209 = por %p207, %p208
    %p210 = scmp.ne.s32.totalorder %s202, %s205
    %p211 = scmp.eq.s32.totalorder %s14, 0
    %p212 = por %p210, %p211
    %p213 = scmp.ne.s32.totalorder %s202, %s205
    %p214 = scmp.eq.s32.totalorder %s19, 1
    %p215 = por %p213, %p214
    %p216 = scmp.ne.s32.totalorder %s205, %s206
    %p217 = scmp.eq.s32.totalorder %s19, 0
    %p218 = por %p216, %p217
    %p219 = scmp.ne.s32.totalorder %s205, %s206
    %p220 = scmp.eq.s32.totalorder %s20, 1
    %p221 = por %p219, %p220
    %p223 = scmp.ne.s32.totalorder %s206, %s222
    %p224 = scmp.eq.s32.totalorder %s20, 0
    %p225 = por %p223, %p224
    %p226 = scmp.le.s32.totalorder 1, %s14
    %p227 = scmp.lt.s32.totalorder %s14, 3
    %p228 = pnand %p226, %p227
    %p229 = pneg %p228
    // Predicated region
    $region9: #{planning_decoder_pallas.3} parent=5 // pred_check
      _
    $region10: #{planning_decoder_pallas.3} parent=5 // pred_check_branch
      %231 = sbr.rel (%p228) target = $region12
    $region11: #{planning_decoder_pallas.3} parent=5 // pred_region
      %s232 = ssub.s32 %s14, 1
      // Predicated region
      $region13: #{planning_decoder_pallas.3} parent=11 // pred_check
        %p233 = pneg %p35
      $region14: #{planning_decoder_pallas.3} parent=11 // pred_check_branch
        %235 = sbr.rel (%p233) target = $region16
      $region15: #{planning_decoder_pallas.3} parent=11 // pred_region
        _
      $region16: #{planning_decoder_pallas.3} parent=11 // pred_fallthru
        _
      // Predicated region
      $region17: #{planning_decoder_pallas.3} parent=11 // pred_check
        %p236 = pneg %p108
      $region18: #{planning_decoder_pallas.3} parent=11 // pred_check_branch
        %238 = sbr.rel (%p236) target = $region20
      $region19: #{planning_decoder_pallas.3} parent=11 // pred_region
        _
      $region20: #{planning_decoder_pallas.3} parent=11 // pred_fallthru
        _
      // Predicated region
      $region21: #{planning_decoder_pallas.3} parent=11 // pred_check
        %p239 = pneg %p129
      $region22: #{planning_decoder_pallas.3} parent=11 // pred_check_branch
        %241 = sbr.rel (%p239) target = $region24
      $region23: #{planning_decoder_pallas.3} parent=11 // pred_region
        _
      $region24: #{planning_decoder_pallas.3} parent=11 // pred_fallthru
        _
      // Predicated region
      $region25: #{planning_decoder_pallas.3} parent=11 // pred_check
        %p242 = pneg %p150
      $region26: #{planning_decoder_pallas.3} parent=11 // pred_check_branch
        %244 = sbr.rel (%p242) target = $region28
      $region27: #{planning_decoder_pallas.3} parent=11 // pred_region
        _
      $region28: #{planning_decoder_pallas.3} parent=11 // pred_fallthru
        _
      // Predicated region
      $region29: #{planning_decoder_pallas.3} parent=11 // pred_check
        %p245 = pneg %p171
      $region30: #{planning_decoder_pallas.3} parent=11 // pred_check_branch
        %247 = sbr.rel (%p245) target = $region32
      $region31: #{planning_decoder_pallas.3} parent=11 // pred_region
        _
      $region32: #{planning_decoder_pallas.3} parent=11 // pred_fallthru
        _
      // Predicated region
      $region33: #{planning_decoder_pallas.3} parent=11 // pred_check
        %p248 = pneg %p192
      $region34: #{planning_decoder_pallas.3} parent=11 // pred_check_branch
        %250 = sbr.rel (%p248) target = $region36
      $region35: #{planning_decoder_pallas.3} parent=11 // pred_region
        _
      $region36: #{planning_decoder_pallas.3} parent=11 // pred_fallthru
        _
    $region12: #{planning_decoder_pallas.3} parent=5 // pred_fallthru
      _
    %p251 = scmp.lt.s32.totalorder %s14, 2
    // Predicated region
    $region37: #{planning_decoder_pallas.3} parent=5 // pred_check
      %p252 = pneg %p251
    $region38: #{planning_decoder_pallas.3} parent=5 // pred_check_branch
      %254 = sbr.rel (%p252) target = $region40
    $region39: #{planning_decoder_pallas.3} parent=5 // pred_region
      // Predicated region
      $region41: #{planning_decoder_pallas.3} parent=39 // pred_check
        %p255 = pneg %p55
      $region42: #{planning_decoder_pallas.3} parent=39 // pred_check_branch
        %257 = sbr.rel (%p255) target = $region44
      $region43: #{planning_decoder_pallas.3} parent=39 // pred_region
        %p258 = scmp.lt.s32.totalorder %s14, 1
        %s259 = scalar_select %p258, %s14, 1
        %s260 = smul.addr %s259, 4
        %s261 = smul.addr %s260, 8
        %s262 = scalar_lea.vmem %s1, %s261
      $region44: #{planning_decoder_pallas.3} parent=39 // pred_fallthru
        _
      // Predicated region
      $region45: #{planning_decoder_pallas.3} parent=39 // pred_check
        %p263 = pneg %p81
      $region46: #{planning_decoder_pallas.3} parent=39 // pred_check_branch
        %265 = sbr.rel (%p263) target = $region48
      $region47: #{planning_decoder_pallas.3} parent=39 // pred_region
        %p266 = scmp.lt.s32.totalorder %s14, 1
        %s267 = scalar_select %p266, %s14, 1
        %s268 = scalar_lea.vmem %s2, %s267
      $region48: #{planning_decoder_pallas.3} parent=39 // pred_fallthru
        _
    $region40: #{planning_decoder_pallas.3} parent=5 // pred_fallthru
      _
    %p269 = scmp.le.s32.totalorder 1, %s14
    %p270 = scmp.lt.s32.totalorder %s14, 3
    %p271 = pnand %p269, %p270
    %p272 = pneg %p271
    // Predicated region
    $region49: #{planning_decoder_pallas.3} parent=5 // pred_check
      _
    $region50: #{planning_decoder_pallas.3} parent=5 // pred_check_branch
      %274 = sbr.rel (%p271) target = $region52
    $region51: #{planning_decoder_pallas.3} parent=5 // pred_region
      %s275 = ssub.s32 %s14, 1
      %p276 = pneg %p35
      %p277 = pneg %p32
      %p278 = scmp.lt.s32.totalorder %s19, 1
      %s279 = scalar_select %p278, %s19, 1
      %s280 = smul.addr %s279, 4
      %s281 = smul.addr %s280, 8
      %s282 = scalar_lea.vmem %s1, %s281
      %p283 = pneg %p61
      %p284 = pneg %p58
      %p285 = scmp.lt.s32.totalorder %s19, 1
      %s286 = scalar_select %p285, %s19, 1
      %s287 = scalar_lea.vmem %s2, %s286
      %p288 = pneg %p87
      %p289 = pneg %p84
      %p290 = pneg %p108
      %p291 = pneg %p105
      %p292 = pneg %p129
      %p293 = pneg %p126
      %p294 = pneg %p150
      %p295 = pneg %p147
      %p296 = pneg %p171
      %p297 = pneg %p168
      %p298 = pneg %p192
      %p299 = pneg %p189
      %p300 = pneg %p218
      %p301 = pneg %p215
      %p302 = scmp.lt.s32.totalorder %s19, 1
      %s303 = scalar_select %p302, %s19, 1
      %s304 = smul.addr %s303, 4
      %s305 = smul.addr %s304, 8
      %s306 = scalar_lea.vmem %s8, %s305
      %p307 = scmp.lt.s32.totalorder %s19, 1
      %s308 = scalar_select %p307, %s19, 1
      %s309 = smul.addr %s308, 4
      %s310 = smul.addr %s309, 8
      %s311 = scalar_lea.vmem %s1, %s310
      %p312 = scmp.lt.s32.totalorder %s19, 1
      %s313 = scalar_select %p312, %s19, 1
      %s314 = scalar_lea.vmem %s2, %s313
      %p315 = scmp.lt.s32.totalorder %s19, 1
      %s316 = scalar_select %p315, %s19, 1
      %s317 = smul.addr %s316, 4
      %s318 = smul.addr %s317, 8
      %s319 = scalar_lea.vmem %s8, %s318
      %v321 = vld [vmem:[%s0] sm:$0xff]
      %v322 = vld [vmem:[%s0 + $0x8] sm:$0xff]
      %v323 = vld [vmem:[%s0 + $0x10] sm:$0x1]
      %v324 = vld [vmem:[%s0 + $0x18] sm:$0x1]
      %v325 = vld [vmem:[%s311] sm:$0xff]
      %v326 = vld [vmem:[%s311 + $0x8] sm:$0xff]
      %v327 = vld [vmem:[%s311 + $0x10] sm:$0xff]
      %v328 = vld [vmem:[%s311 + $0x18] sm:$0xff]
      %v329 = vpack.c.bf16 %v327, %v325
      %v330 = vpack.c.bf16 %v328, %v326
      %v331 = vld [vmem:[%s4] sm:$0xff]
      %v332 = vld [vmem:[%s4 + $0x8] sm:$0xff]
      %v333 = vld [vmem:[%s4 + $0x10] sm:$0xff]
      %v334 = vld [vmem:[%s4 + $0x18] sm:$0xff]
      %v335 = vld [vmem:[%s4 + $0x20] sm:$0xff]
      %v336 = vld [vmem:[%s4 + $0x28] sm:$0xff]
      %v337 = vld [vmem:[%s4 + $0x30] sm:$0xff]
      %v338 = vld [vmem:[%s4 + $0x38] sm:$0xff]
      %v339 = vld [vmem:[%s4 + $0x40] sm:$0xff]
      %v340 = vld [vmem:[%s4 + $0x48] sm:$0xff]
      %v341 = vld [vmem:[%s4 + $0x50] sm:$0xff]
      %v342 = vld [vmem:[%s4 + $0x58] sm:$0xff]
      %v343 = vld [vmem:[%s4 + $0x60] sm:$0xff]
      %v344 = vld [vmem:[%s4 + $0x68] sm:$0xff]
      %v345 = vld [vmem:[%s4 + $0x70] sm:$0xff]
      %v346 = vld [vmem:[%s4 + $0x78] sm:$0xff]
      %v347 = vld [vmem:[%s4 + $0x80] sm:$0xff]
      %v348 = vld [vmem:[%s4 + $0x88] sm:$0xff]
      %v349 = vld [vmem:[%s4 + $0x90] sm:$0xff]
      %v350 = vld [vmem:[%s4 + $0x98] sm:$0xff]
      %v351 = vld [vmem:[%s4 + $0xa0] sm:$0xff]
      %v352 = vld [vmem:[%s4 + $0xa8] sm:$0xff]
      %v353 = vld [vmem:[%s4 + $0xb0] sm:$0xff]
      %v354 = vld [vmem:[%s4 + $0xb8] sm:$0xff]
      %v355 = vld [vmem:[%s4 + $0xc0] sm:$0xff]
      %v356 = vld [vmem:[%s4 + $0xc8] sm:$0xff]
      %v357 = vld [vmem:[%s4 + $0xd0] sm:$0xff]
      %v358 = vld [vmem:[%s4 + $0xd8] sm:$0xff]
      %v359 = vld [vmem:[%s4 + $0xe0] sm:$0xff]
      %v360 = vld [vmem:[%s4 + $0xe8] sm:$0xff]
      %v361 = vld [vmem:[%s4 + $0xf0] sm:$0xff]
      %v362 = vld [vmem:[%s4 + $0xf8] sm:$0xff]
      %v363 = vld [vmem:[%s4 + $0x100] sm:$0xff]
      %v364 = vld [vmem:[%s4 + $0x108] sm:$0xff]
      %v365 = vld [vmem:[%s4 + $0x110] sm:$0xff]
      %v366 = vld [vmem:[%s4 + $0x118] sm:$0xff]
      %v367 = vld [vmem:[%s4 + $0x120] sm:$0xff]
      %v368 = vld [vmem:[%s4 + $0x128] sm:$0xff]
      %v369 = vld [vmem:[%s4 + $0x130] sm:$0xff]
      %v370 = vld [vmem:[%s4 + $0x138] sm:$0xff]
      %v371 = vld [vmem:[%s4 + $0x140] sm:$0xff]
      %v372 = vld [vmem:[%s4 + $0x148] sm:$0xff]
      %v373 = vld [vmem:[%s4 + $0x150] sm:$0xff]
      %v374 = vld [vmem:[%s4 + $0x158] sm:$0xff]
      %v375 = vld [vmem:[%s4 + $0x160] sm:$0xff]
      %v376 = vld [vmem:[%s4 + $0x168] sm:$0xff]
      %v377 = vld [vmem:[%s4 + $0x170] sm:$0xff]
      %v378 = vld [vmem:[%s4 + $0x178] sm:$0xff]
      %v379 = vld [vmem:[%s4 + $0x180] sm:$0xff]
      %v380 = vld [vmem:[%s4 + $0x188] sm:$0xff]
      %v381 = vld [vmem:[%s4 + $0x190] sm:$0xff]
      %v382 = vld [vmem:[%s4 + $0x198] sm:$0xff]
      %v383 = vld [vmem:[%s4 + $0x1a0] sm:$0xff]
      %v384 = vld [vmem:[%s4 + $0x1a8] sm:$0xff]
      %v385 = vld [vmem:[%s4 + $0x1b0] sm:$0xff]
      %v386 = vld [vmem:[%s4 + $0x1b8] sm:$0xff]
      %v387 = vld [vmem:[%s4 + $0x1c0] sm:$0xff]
      %v388 = vld [vmem:[%s4 + $0x1c8] sm:$0xff]
      %v389 = vld [vmem:[%s4 + $0x1d0] sm:$0xff]
      %v390 = vld [vmem:[%s4 + $0x1d8] sm:$0xff]
      %v391 = vld [vmem:[%s4 + $0x1e0] sm:$0xff]
      %v392 = vld [vmem:[%s4 + $0x1e8] sm:$0xff]
      %v393 = vld [vmem:[%s4 + $0x1f0] sm:$0xff]
      %v394 = vld [vmem:[%s4 + $0x1f8] sm:$0xff]
      %v395 = vld [vmem:[%s5] sm:$0xf]
      %v397 = vlaneseq
      %v398 = vshrl.u32 %v397, 7
      %v399 = vsub.s32 0, %v398
      %v400 = vrot.slane %v395, %v399
      %v401 = vlaneseq
      %v402 = vshrl.u32 %v401, 7
      %v403 = vsub.s32 1, %v402
      %v404 = vrot.slane %v395, %v403
      %v405 = vlaneseq
      %v406 = vshrl.u32 %v405, 7
      %v407 = vsub.s32 2, %v406
      %v408 = vrot.slane %v395, %v407
      %v409 = vlaneseq
      %v410 = vshrl.u32 %v409, 7
      %v411 = vsub.s32 3, %v410
      %v412 = vrot.slane %v395, %v411
      %v481 = vunpack.c.l.b16 %v331
      %v482 = vunpack.c.h.b16 %v331
      %v483 = vunpack.c.l.b16 %v332
      %v484 = vunpack.c.h.b16 %v332
      %v485 = vunpack.c.l.b16 %v333
      %v486 = vunpack.c.h.b16 %v333
      %v487 = vunpack.c.l.b16 %v334
      %v488 = vunpack.c.h.b16 %v334
      %v489 = vunpack.c.l.b16 %v335
      %v490 = vunpack.c.h.b16 %v335
      %v491 = vunpack.c.l.b16 %v336
      %v492 = vunpack.c.h.b16 %v336
      %v493 = vunpack.c.l.b16 %v337
      %v494 = vunpack.c.h.b16 %v337
      %v495 = vunpack.c.l.b16 %v338
      %v496 = vunpack.c.h.b16 %v338
      %v497 = vunpack.c.l.b16 %v339
      %v498 = vunpack.c.h.b16 %v339
      %v499 = vunpack.c.l.b16 %v340
      %v500 = vunpack.c.h.b16 %v340
      %v501 = vunpack.c.l.b16 %v341
      %v502 = vunpack.c.h.b16 %v341
      %v503 = vunpack.c.l.b16 %v342
      %v504 = vunpack.c.h.b16 %v342
      %v505 = vunpack.c.l.b16 %v343
      %v506 = vunpack.c.h.b16 %v343
      %v507 = vunpack.c.l.b16 %v344
      %v508 = vunpack.c.h.b16 %v344
      %v509 = vunpack.c.l.b16 %v345
      %v510 = vunpack.c.h.b16 %v345
      %v511 = vunpack.c.l.b16 %v346
      %v512 = vunpack.c.h.b16 %v346
      %v513 = vunpack.c.l.b16 %v347
      %v514 = vunpack.c.h.b16 %v347
      %v515 = vunpack.c.l.b16 %v348
      %v516 = vunpack.c.h.b16 %v348
      %v517 = vunpack.c.l.b16 %v349
      %v518 = vunpack.c.h.b16 %v349
      %v519 = vunpack.c.l.b16 %v350
      %v520 = vunpack.c.h.b16 %v350
      %v521 = vunpack.c.l.b16 %v351
      %v522 = vunpack.c.h.b16 %v351
      %v523 = vunpack.c.l.b16 %v352
      %v524 = vunpack.c.h.b16 %v352
      %v525 = vunpack.c.l.b16 %v353
      %v526 = vunpack.c.h.b16 %v353
      %v527 = vunpack.c.l.b16 %v354
      %v528 = vunpack.c.h.b16 %v354
      %v529 = vunpack.c.l.b16 %v355
      %v530 = vunpack.c.h.b16 %v355
      %v531 = vunpack.c.l.b16 %v356
      %v532 = vunpack.c.h.b16 %v356
      %v533 = vunpack.c.l.b16 %v357
      %v534 = vunpack.c.h.b16 %v357
      %v535 = vunpack.c.l.b16 %v358
      %v536 = vunpack.c.h.b16 %v358
      %v537 = vunpack.c.l.b16 %v359
      %v538 = vunpack.c.h.b16 %v359
      %v539 = vunpack.c.l.b16 %v360
      %v540 = vunpack.c.h.b16 %v360
      %v541 = vunpack.c.l.b16 %v361
      %v542 = vunpack.c.h.b16 %v361
      %v543 = vunpack.c.l.b16 %v362
      %v544 = vunpack.c.h.b16 %v362
      %v545 = vunpack.c.l.b16 %v363
      %v546 = vunpack.c.h.b16 %v363
      %v547 = vunpack.c.l.b16 %v364
      %v548 = vunpack.c.h.b16 %v364
      %v549 = vunpack.c.l.b16 %v365
      %v550 = vunpack.c.h.b16 %v365
      %v551 = vunpack.c.l.b16 %v366
      %v552 = vunpack.c.h.b16 %v366
      %v553 = vunpack.c.l.b16 %v367
      %v554 = vunpack.c.h.b16 %v367
      %v555 = vunpack.c.l.b16 %v368
      %v556 = vunpack.c.h.b16 %v368
      %v557 = vunpack.c.l.b16 %v369
      %v558 = vunpack.c.h.b16 %v369
      %v559 = vunpack.c.l.b16 %v370
      %v560 = vunpack.c.h.b16 %v370
      %v561 = vunpack.c.l.b16 %v371
      %v562 = vunpack.c.h.b16 %v371
      %v563 = vunpack.c.l.b16 %v372
      %v564 = vunpack.c.h.b16 %v372
      %v565 = vunpack.c.l.b16 %v373
      %v566 = vunpack.c.h.b16 %v373
      %v567 = vunpack.c.l.b16 %v374
      %v568 = vunpack.c.h.b16 %v374
      %v569 = vunpack.c.l.b16 %v375
      %v570 = vunpack.c.h.b16 %v375
      %v571 = vunpack.c.l.b16 %v376
      %v572 = vunpack.c.h.b16 %v376
      %v573 = vunpack.c.l.b16 %v377
      %v574 = vunpack.c.h.b16 %v377
      %v575 = vunpack.c.l.b16 %v378
      %v576 = vunpack.c.h.b16 %v378
      %v577 = vunpack.c.l.b16 %v379
      %v578 = vunpack.c.h.b16 %v379
      %v579 = vunpack.c.l.b16 %v380
      %v580 = vunpack.c.h.b16 %v380
      %v581 = vunpack.c.l.b16 %v381
      %v582 = vunpack.c.h.b16 %v381
      %v583 = vunpack.c.l.b16 %v382
      %v584 = vunpack.c.h.b16 %v382
      %v585 = vunpack.c.l.b16 %v383
      %v586 = vunpack.c.h.b16 %v383
      %v587 = vunpack.c.l.b16 %v384
      %v588 = vunpack.c.h.b16 %v384
      %v589 = vunpack.c.l.b16 %v385
      %v590 = vunpack.c.h.b16 %v385
      %v591 = vunpack.c.l.b16 %v386
      %v592 = vunpack.c.h.b16 %v386
      %v593 = vunpack.c.l.b16 %v387
      %v594 = vunpack.c.h.b16 %v387
      %v595 = vunpack.c.l.b16 %v388
      %v596 = vunpack.c.h.b16 %v388
      %v597 = vunpack.c.l.b16 %v389
      %v598 = vunpack.c.h.b16 %v389
      %v599 = vunpack.c.l.b16 %v390
      %v600 = vunpack.c.h.b16 %v390
      %v601 = vunpack.c.l.b16 %v391
      %v602 = vunpack.c.h.b16 %v391
      %v603 = vunpack.c.l.b16 %v392
      %v604 = vunpack.c.h.b16 %v392
      %v605 = vunpack.c.l.b16 %v393
      %v606 = vunpack.c.h.b16 %v393
      %v607 = vunpack.c.l.b16 %v394
      %v608 = vunpack.c.h.b16 %v394
      %v609 = vpack.c.b16 %v485, %v481
      %v610 = vpack.c.b16 %v486, %v482
      %v611 = vpack.c.b16 %v487, %v483
      %v612 = vpack.c.b16 %v488, %v484
      %v613 = vpack.c.b16 %v493, %v489
      %v614 = vpack.c.b16 %v494, %v490
      %v615 = vpack.c.b16 %v495, %v491
      %v616 = vpack.c.b16 %v496, %v492
      %v617 = vpack.c.b16 %v501, %v497
      %v618 = vpack.c.b16 %v502, %v498
      %v619 = vpack.c.b16 %v503, %v499
      %v620 = vpack.c.b16 %v504, %v500
      %v621 = vpack.c.b16 %v509, %v505
      %v622 = vpack.c.b16 %v510, %v506
      %v623 = vpack.c.b16 %v511, %v507
      %v624 = vpack.c.b16 %v512, %v508
      %v625 = vpack.c.b16 %v517, %v513
      %v626 = vpack.c.b16 %v518, %v514
      %v627 = vpack.c.b16 %v519, %v515
      %v628 = vpack.c.b16 %v520, %v516
      %v629 = vpack.c.b16 %v525, %v521
      %v630 = vpack.c.b16 %v526, %v522
      %v631 = vpack.c.b16 %v527, %v523
      %v632 = vpack.c.b16 %v528, %v524
      %v633 = vpack.c.b16 %v533, %v529
      %v634 = vpack.c.b16 %v534, %v530
      %v635 = vpack.c.b16 %v535, %v531
      %v636 = vpack.c.b16 %v536, %v532
      %v637 = vpack.c.b16 %v541, %v537
      %v638 = vpack.c.b16 %v542, %v538
      %v639 = vpack.c.b16 %v543, %v539
      %v640 = vpack.c.b16 %v544, %v540
      %v641 = vpack.c.b16 %v549, %v545
      %v642 = vpack.c.b16 %v550, %v546
      %v643 = vpack.c.b16 %v551, %v547
      %v644 = vpack.c.b16 %v552, %v548
      %v645 = vpack.c.b16 %v557, %v553
      %v646 = vpack.c.b16 %v558, %v554
      %v647 = vpack.c.b16 %v559, %v555
      %v648 = vpack.c.b16 %v560, %v556
      %v649 = vpack.c.b16 %v565, %v561
      %v650 = vpack.c.b16 %v566, %v562
      %v651 = vpack.c.b16 %v567, %v563
      %v652 = vpack.c.b16 %v568, %v564
      %v653 = vpack.c.b16 %v573, %v569
      %v654 = vpack.c.b16 %v574, %v570
      %v655 = vpack.c.b16 %v575, %v571
      %v656 = vpack.c.b16 %v576, %v572
      %v657 = vpack.c.b16 %v581, %v577
      %v658 = vpack.c.b16 %v582, %v578
      %v659 = vpack.c.b16 %v583, %v579
      %v660 = vpack.c.b16 %v584, %v580
      %v661 = vpack.c.b16 %v589, %v585
      %v662 = vpack.c.b16 %v590, %v586
      %v663 = vpack.c.b16 %v591, %v587
      %v664 = vpack.c.b16 %v592, %v588
      %v665 = vpack.c.b16 %v597, %v593
      %v666 = vpack.c.b16 %v598, %v594
      %v667 = vpack.c.b16 %v599, %v595
      %v668 = vpack.c.b16 %v600, %v596
      %v669 = vpack.c.b16 %v605, %v601
      %v670 = vpack.c.b16 %v606, %v602
      %v671 = vpack.c.b16 %v607, %v603
      %v672 = vpack.c.b16 %v608, %v604
      %737 = vmatprep.subr.bf16.mxu0 %v610
      %738 = vmatpush1.bf16.msra.mxu0 %v609
      %739 = vmatprep.subr.bf16.mxu0 %v614
      %740 = vmatpush1.bf16.msra.mxu0 %v613
      %741 = vmatprep.subr.bf16.mxu0 %v618
      %742 = vmatpush1.bf16.msra.mxu0 %v617
      %743 = vmatprep.subr.bf16.mxu0 %v622
      %744 = vmatpush1.bf16.msra.mxu0 %v621
      %745 = vmatprep.subr.bf16.mxu0 %v626
      %746 = vmatpush1.bf16.msra.mxu0 %v625
      %747 = vmatprep.subr.bf16.mxu0 %v630
      %748 = vmatpush1.bf16.msra.mxu0 %v629
      %749 = vmatprep.subr.bf16.mxu0 %v634
      %750 = vmatpush1.bf16.msra.mxu0 %v633
      %751 = vmatprep.subr.bf16.mxu0 %v638
      %752 = vmatpush1.bf16.msra.mxu0 %v637
      %753 = vmatprep.subr.bf16.mxu0 %v642
      %754 = vmatpush1.bf16.msra.mxu0 %v641
      %755 = vmatprep.subr.bf16.mxu0 %v646
      %756 = vmatpush1.bf16.msra.mxu0 %v645
      %757 = vmatprep.subr.bf16.mxu0 %v650
      %758 = vmatpush1.bf16.msra.mxu0 %v649
      %759 = vmatprep.subr.bf16.mxu0 %v654
      %760 = vmatpush1.bf16.msra.mxu0 %v653
      %761 = vmatprep.subr.bf16.mxu0 %v658
      %762 = vmatpush1.bf16.msra.mxu0 %v657
      %763 = vmatprep.subr.bf16.mxu0 %v662
      %764 = vmatpush1.bf16.msra.mxu0 %v661
      %765 = vmatprep.subr.bf16.mxu0 %v666
      %766 = vmatpush1.bf16.msra.mxu0 %v665
      %767 = vmatprep.subr.bf16.mxu0 %v670
      %768 = vmatpush1.bf16.msra.mxu0 %v669
      %769 = vmatprep.mubr.bf16.mxu0 %v330
      %770 = vmatmul.mubr.bf16.gmra.mrb[0].mxu0 %v329
      %v771 = vpop.f32.mrb[0].mxu0
      %v772 = vadd.f32 %v400, %v771
      %v773 = vpop.f32.mrb[0].mxu0
      %v774 = vadd.f32 %v404, %v773
      %v775 = vpop.f32.mrb[0].mxu0
      %v776 = vadd.f32 %v400, %v775
      %v777 = vpop.f32.mrb[0].mxu0
      %v778 = vadd.f32 %v404, %v777
      %779 = vdwg.mxu0
      %780 = vmatprep.subr.bf16.mxu0 %v612
      %781 = vmatpush1.bf16.msra.mxu0 %v611
      %782 = vmatprep.subr.bf16.mxu0 %v616
      %783 = vmatpush1.bf16.msra.mxu0 %v615
      %784 = vmatprep.subr.bf16.mxu0 %v620
      %785 = vmatpush1.bf16.msra.mxu0 %v619
      %786 = vmatprep.subr.bf16.mxu0 %v624
      %787 = vmatpush1.bf16.msra.mxu0 %v623
      %788 = vmatprep.subr.bf16.mxu0 %v628
      %789 = vmatpush1.bf16.msra.mxu0 %v627
      %790 = vmatprep.subr.bf16.mxu0 %v632
      %791 = vmatpush1.bf16.msra.mxu0 %v631
      %792 = vmatprep.subr.bf16.mxu0 %v636
      %793 = vmatpush1.bf16.msra.mxu0 %v635
      %794 = vmatprep.subr.bf16.mxu0 %v640
      %795 = vmatpush1.bf16.msra.mxu0 %v639
      %796 = vmatprep.subr.bf16.mxu0 %v644
      %797 = vmatpush1.bf16.msra.mxu0 %v643
      %798 = vmatprep.subr.bf16.mxu0 %v648
      %799 = vmatpush1.bf16.msra.mxu0 %v647
      %800 = vmatprep.subr.bf16.mxu0 %v652
      %801 = vmatpush1.bf16.msra.mxu0 %v651
      %802 = vmatprep.subr.bf16.mxu0 %v656
      %803 = vmatpush1.bf16.msra.mxu0 %v655
      %804 = vmatprep.subr.bf16.mxu0 %v660
      %805 = vmatpush1.bf16.msra.mxu0 %v659
      %806 = vmatprep.subr.bf16.mxu0 %v664
      %807 = vmatpush1.bf16.msra.mxu0 %v663
      %808 = vmatprep.subr.bf16.mxu0 %v668
      %809 = vmatpush1.bf16.msra.mxu0 %v667
      %810 = vmatprep.subr.bf16.mxu0 %v672
      %811 = vmatpush1.bf16.msra.mxu0 %v671
      %812 = vmatprep.mubr.bf16.mxu0 %v330
      %813 = vmatmul.mubr.bf16.gmra.mrb[0].mxu0 %v329
      %v814 = vpop.f32.mrb[0].mxu0
      %v815 = vadd.f32 %v408, %v814
      %v816 = vpop.f32.mrb[0].mxu0
      %v817 = vadd.f32 %v412, %v816
      %v818 = vpop.f32.mrb[0].mxu0
      %v819 = vadd.f32 %v408, %v818
      %v820 = vpop.f32.mrb[0].mxu0
      %v821 = vadd.f32 %v412, %v820
      %822 = vdwg.mxu0
      %v823 = vpack.c.bf16 %v776, %v772
      %v824 = vpack.c.bf16 %v778, %v774
      %v825 = vpack.c.bf16 %v819, %v815
      %v826 = vpack.c.bf16 %v821, %v817
      %v827 = vld [vmem:[%s314] sm:$0x1]
      %v828 = vpack.c.bf16 %v323, %v321
      %v830 = vlaneseq
      %v831 = vshrl.u32 %v830, 7
      %v832 = vsub.s32 0, %v831
      %v833 = vrot.slane %v827, %v832
      %vm835 = vcmask 261120
      %v837 = vsel %vm835, %v828, 0
      %v840 = vsel %vm835, %v823, 0
      %842 = vmatprep.subr.bf16.mxu0 0
      %843 = vmatpush1.bf16.xpose.msra.mxu0 %v840
      %844 = vmatprep.subr.bf16.mxu0 0
      %845 = vmatpush1.bf16.xpose.msra.mxu0 0
      %846 = vmatprep.subr.bf16.mxu0 0
      %847 = vmatpush1.bf16.xpose.msra.mxu0 0
      %848 = vmatprep.subr.bf16.mxu0 0
      %849 = vmatpush1.bf16.xpose.msra.mxu0 0
      %850 = vmatprep.subr.bf16.mxu0 0
      %851 = vmatpush1.bf16.xpose.msra.mxu0 0
      %852 = vmatprep.subr.bf16.mxu0 0
      %853 = vmatpush1.bf16.xpose.msra.mxu0 0
      %854 = vmatprep.subr.bf16.mxu0 0
      %855 = vmatpush1.bf16.xpose.msra.mxu0 0
      %856 = vmatprep.subr.bf16.mxu0 0
      %857 = vmatpush1.bf16.xpose.msra.mxu0 0
      %858 = vmatprep.subr.bf16.mxu0 0
      %859 = vmatpush1.bf16.xpose.msra.mxu0 0
      %860 = vmatprep.subr.bf16.mxu0 0
      %861 = vmatpush1.bf16.xpose.msra.mxu0 0
      %862 = vmatprep.subr.bf16.mxu0 0
      %863 = vmatpush1.bf16.xpose.msra.mxu0 0
      %864 = vmatprep.subr.bf16.mxu0 0
      %865 = vmatpush1.bf16.xpose.msra.mxu0 0
      %866 = vmatprep.subr.bf16.mxu0 0
      %867 = vmatpush1.bf16.xpose.msra.mxu0 0
      %868 = vmatprep.subr.bf16.mxu0 0
      %869 = vmatpush1.bf16.xpose.msra.mxu0 0
      %870 = vmatprep.subr.bf16.mxu0 0
      %871 = vmatpush1.bf16.xpose.msra.mxu0 0
      %872 = vmatprep.subr.bf16.mxu0 0
      %873 = vmatpush1.bf16.xpose.msra.mxu0 0
      %874 = vmatprep.mubr.bf16.mxu0 0
      %875 = vmatmul.mubr.bf16.gmra.mrb[0].mxu0 %v837
      %v876 = vpop.f32.mrb[0].mxu0
      %v877 = vadd.f32 %v833, %v876
      %v878 = vpop.f32.mrb[0].mxu0
      %v879 = vpop.f32.mrb[0].mxu0
      %v880 = vadd.f32 %v833, %v879
      %v881 = vpop.f32.mrb[0].mxu0
      %882 = vdwg.mxu0
      %vm883 = vcmask 130048
      %v884 = vsel %vm883, %v877, -inf
      %885 = vmax.xlane.f32.xlu0 %v884
      %v886 = vpop.xlane.xlu0 %885
      %vm887 = vcmask 122880
      %v888 = vsel %vm887, %v880, -inf
      %889 = vmax.xlane.f32.xlu0 %v888
      %v890 = vpop.xlane.xlu0 %889
      %v891 = vsub.f32 %v877, %v886
      %v892 = vsub.f32 %v880, %v890
      %v893 = vmul.f32 %v891, 1.442695
      %v894 = vpow.pop %v893
      %v895 = vmul.f32 %v892, 1.442695
      %v896 = vpow.pop %v895
      %v897 = vsel %vm883, %v894, 0.0
      %898 = vadd.xlane.f32.xlu0 %v897
      %v899 = vpop.xlane.xlu0 %898
      %v900 = vsel %vm887, %v896, 0.0
      %901 = vadd.xlane.f32.xlu0 %v900
      %v902 = vpop.xlane.xlu0 %901
      %v903 = vrcp.pop %v899
      %v904 = vrcp.pop %v902
      %v905 = vmul.f32 %v894, %v903
      %v906 = vmul.f32 %v896, %v904
      %v907 = vpack.c.bf16 %v906, %v905
      %v909 = vsel %vm883, %v907, 0
      %911 = vmatprep.subr.bf16.mxu0 0
      %912 = vmatpush1.bf16.msra.mxu0 %v825
      %913 = vmatprep.subr.bf16.mxu0 0
      %914 = vmatpush1.bf16.msra.mxu0 0
      %915 = vmatprep.subr.bf16.mxu0 0
      %916 = vmatpush1.bf16.msra.mxu0 0
      %917 = vmatprep.subr.bf16.mxu0 0
      %918 = vmatpush1.bf16.msra.mxu0 0
      %919 = vmatprep.subr.bf16.mxu0 0
      %920 = vmatpush1.bf16.msra.mxu0 0
      %921 = vmatprep.subr.bf16.mxu0 0
      %922 = vmatpush1.bf16.msra.mxu0 0
      %923 = vmatprep.subr.bf16.mxu0 0
      %924 = vmatpush1.bf16.msra.mxu0 0
      %925 = vmatprep.subr.bf16.mxu0 0
      %926 = vmatpush1.bf16.msra.mxu0 0
      %927 = vmatprep.subr.bf16.mxu0 0
      %928 = vmatpush1.bf16.msra.mxu0 0
      %929 = vmatprep.subr.bf16.mxu0 0
      %930 = vmatpush1.bf16.msra.mxu0 0
      %931 = vmatprep.subr.bf16.mxu0 0
      %932 = vmatpush1.bf16.msra.mxu0 0
      %933 = vmatprep.subr.bf16.mxu0 0
      %934 = vmatpush1.bf16.msra.mxu0 0
      %935 = vmatprep.subr.bf16.mxu0 0
      %936 = vmatpush1.bf16.msra.mxu0 0
      %937 = vmatprep.subr.bf16.mxu0 0
      %938 = vmatpush1.bf16.msra.mxu0 0
      %939 = vmatprep.subr.bf16.mxu0 0
      %940 = vmatpush1.bf16.msra.mxu0 0
      %941 = vmatprep.subr.bf16.mxu0 0
      %942 = vmatpush1.bf16.msra.mxu0 0
      %943 = vmatprep.mubr.bf16.mxu0 0
      %944 = vmatmul.mubr.bf16.gmra.mrb[0].mxu0 %v909
      %v945 = vpop.f32.mrb[0].mxu0
      %v946 = vadd.f32 0.0, %v945
      %v947 = vpop.f32.mrb[0].mxu0
      %v948 = vpop.f32.mrb[0].mxu0
      %v949 = vadd.f32 0.0, %v948
      %v950 = vpop.f32.mrb[0].mxu0
      %951 = vdwg.mxu0
      %953 = vrot.lane.b32.xlu0 %v828, 96
      %v954 = vpop.permute.xlu0 %953
      %956 = vrot.lane.b32.xlu0 %v823, 96
      %v957 = vpop.permute.xlu0 %956
      %v959 = vsel %vm835, %v954, 0
      %v962 = vsel %vm835, %v957, 0
      %964 = vmatprep.subr.bf16.mxu0 0
      %965 = vmatpush1.bf16.xpose.msra.mxu0 %v962
      %966 = vmatprep.subr.bf16.mxu0 0
      %967 = vmatpush1.bf16.xpose.msra.mxu0 0
      %968 = vmatprep.subr.bf16.mxu0 0
      %969 = vmatpush1.bf16.xpose.msra.mxu0 0
      %970 = vmatprep.subr.bf16.mxu0 0
      %971 = vmatpush1.bf16.xpose.msra.mxu0 0
      %972 = vmatprep.subr.bf16.mxu0 0
      %973 = vmatpush1.bf16.xpose.msra.mxu0 0
      %974 = vmatprep.subr.bf16.mxu0 0
      %975 = vmatpush1.bf16.xpose.msra.mxu0 0
      %976 = vmatprep.subr.bf16.mxu0 0
      %977 = vmatpush1.bf16.xpose.msra.mxu0 0
      %978 = vmatprep.subr.bf16.mxu0 0
      %979 = vmatpush1.bf16.xpose.msra.mxu0 0
      %980 = vmatprep.subr.bf16.mxu0 0
      %981 = vmatpush1.bf16.xpose.msra.mxu0 0
      %982 = vmatprep.subr.bf16.mxu0 0
      %983 = vmatpush1.bf16.xpose.msra.mxu0 0
      %984 = vmatprep.subr.bf16.mxu0 0
      %985 = vmatpush1.bf16.xpose.msra.mxu0 0
      %986 = vmatprep.subr.bf16.mxu0 0
      %987 = vmatpush1.bf16.xpose.msra.mxu0 0
      %988 = vmatprep.subr.bf16.mxu0 0
      %989 = vmatpush1.bf16.xpose.msra.mxu0 0
      %990 = vmatprep.subr.bf16.mxu0 0
      %991 = vmatpush1.bf16.xpose.msra.mxu0 0
      %992 = vmatprep.subr.bf16.mxu0 0
      %993 = vmatpush1.bf16.xpose.msra.mxu0 0
      %994 = vmatprep.subr.bf16.mxu0 0
      %995 = vmatpush1.bf16.xpose.msra.mxu0 0
      %996 = vmatprep.mubr.bf16.mxu0 0
      %997 = vmatmul.mubr.bf16.gmra.mrb[0].mxu0 %v959
      %v998 = vpop.f32.mrb[0].mxu0
      %v999 = vadd.f32 %v833, %v998
      %v1000 = vpop.f32.mrb[0].mxu0
      %v1001 = vpop.f32.mrb[0].mxu0
      %v1002 = vadd.f32 %v833, %v1001
      %v1003 = vpop.f32.mrb[0].mxu0
      %1004 = vdwg.mxu0
      %v1005 = vsel %vm883, %v999, -inf
      %1006 = vmax.xlane.f32.xlu0 %v1005
      %v1007 = vpop.xlane.xlu0 %1006
      %v1008 = vsel %vm887, %v1002, -inf
      %1009 = vmax.xlane.f32.xlu0 %v1008
      %v1010 = vpop.xlane.xlu0 %1009
      %v1011 = vsub.f32 %v999, %v1007
      %v1012 = vsub.f32 %v1002, %v1010
      %v1013 = vmul.f32 %v1011, 1.442695
      %v1014 = vpow.pop %v1013
      %v1015 = vmul.f32 %v1012, 1.442695
      %v1016 = vpow.pop %v1015
      %v1017 = vsel %vm883, %v1014, 0.0
      %1018 = vadd.xlane.f32.xlu0 %v1017
      %v1019 = vpop.xlane.xlu0 %1018
      %v1020 = vsel %vm887, %v1016, 0.0
      %1021 = vadd.xlane.f32.xlu0 %v1020
      %v1022 = vpop.xlane.xlu0 %1021
      %v1023 = vrcp.pop %v1019
      %v1024 = vrcp.pop %v1022
      %v1025 = vmul.f32 %v1014, %v1023
      %v1026 = vmul.f32 %v1016, %v1024
      %v1027 = vpack.c.bf16 %v1026, %v1025
      %1029 = vrot.lane.b32.xlu0 %v825, 96
      %v1030 = vpop.permute.xlu0 %1029
      %v1033 = vsel %vm883, %v1027, 0
      %1035 = vmatprep.subr.bf16.mxu0 0
      %1036 = vmatpush1.bf16.msra.mxu0 %v1030
      %1037 = vmatprep.subr.bf16.mxu0 0
      %1038 = vmatpush1.bf16.msra.mxu0 0
      %1039 = vmatprep.subr.bf16.mxu0 0
      %1040 = vmatpush1.bf16.msra.mxu0 0
      %1041 = vmatprep.subr.bf16.mxu0 0
      %1042 = vmatpush1.bf16.msra.mxu0 0
      %1043 = vmatprep.subr.bf16.mxu0 0
      %1044 = vmatpush1.bf16.msra.mxu0 0
      %1045 = vmatprep.subr.bf16.mxu0 0
      %1046 = vmatpush1.bf16.msra.mxu0 0
      %1047 = vmatprep.subr.bf16.mxu0 0
      %1048 = vmatpush1.bf16.msra.mxu0 0
      %1049 = vmatprep.subr.bf16.mxu0 0
      %1050 = vmatpush1.bf16.msra.mxu0 0
      %1051 = vmatprep.subr.bf16.mxu0 0
      %1052 = vmatpush1.bf16.msra.mxu0 0
      %1053 = vmatprep.subr.bf16.mxu0 0
      %1054 = vmatpush1.bf16.msra.mxu0 0
      %1055 = vmatprep.subr.bf16.mxu0 0
      %1056 = vmatpush1.bf16.msra.mxu0 0
      %1057 = vmatprep.subr.bf16.mxu0 0
      %1058 = vmatpush1.bf16.msra.mxu0 0
      %1059 = vmatprep.subr.bf16.mxu0 0
      %1060 = vmatpush1.bf16.msra.mxu0 0
      %1061 = vmatprep.subr.bf16.mxu0 0
      %1062 = vmatpush1.bf16.msra.mxu0 0
      %1063 = vmatprep.subr.bf16.mxu0 0
      %1064 = vmatpush1.bf16.msra.mxu0 0
      %1065 = vmatprep.subr.bf16.mxu0 0
      %1066 = vmatpush1.bf16.msra.mxu0 0
      %1067 = vmatprep.mubr.bf16.mxu0 0
      %1068 = vmatmul.mubr.bf16.gmra.mrb[0].mxu0 %v1033
      %v1069 = vpop.f32.mrb[0].mxu0
      %v1070 = vadd.f32 0.0, %v1069
      %v1071 = vpop.f32.mrb[0].mxu0
      %v1072 = vpop.f32.mrb[0].mxu0
      %v1073 = vadd.f32 0.0, %v1072
      %v1074 = vpop.f32.mrb[0].mxu0
      %1075 = vdwg.mxu0
      %1076 = vrot.lane.b32.xlu0 %v828, 64
      %v1077 = vpop.permute.xlu0 %1076
      %1078 = vrot.lane.b32.xlu0 %v823, 64
      %v1079 = vpop.permute.xlu0 %1078
      %v1081 = vsel %vm835, %v1077, 0
      %v1084 = vsel %vm835, %v1079, 0
      %1086 = vmatprep.subr.bf16.mxu0 0
      %1087 = vmatpush1.bf16.xpose.msra.mxu0 %v1084
      %1088 = vmatprep.subr.bf16.mxu0 0
      %1089 = vmatpush1.bf16.xpose.msra.mxu0 0
      %1090 = vmatprep.subr.bf16.mxu0 0
      %1091 = vmatpush1.bf16.xpose.msra.mxu0 0
      %1092 = vmatprep.subr.bf16.mxu0 0
      %1093 = vmatpush1.bf16.xpose.msra.mxu0 0
      %1094 = vmatprep.subr.bf16.mxu0 0
      %1095 = vmatpush1.bf16.xpose.msra.mxu0 0
      %1096 = vmatprep.subr.bf16.mxu0 0
      %1097 = vmatpush1.bf16.xpose.msra.mxu0 0
      %1098 = vmatprep.subr.bf16.mxu0 0
      %1099 = vmatpush1.bf16.xpose.msra.mxu0 0
      %1100 = vmatprep.subr.bf16.mxu0 0
      %1101 = vmatpush1.bf16.xpose.msra.mxu0 0
      %1102 = vmatprep.subr.bf16.mxu0 0
      %1103 = vmatpush1.bf16.xpose.msra.mxu0 0
      %1104 = vmatprep.subr.bf16.mxu0 0
      %1105 = vmatpush1.bf16.xpose.msra.mxu0 0
      %1106 = vmatprep.subr.bf16.mxu0 0
      %1107 = vmatpush1.bf16.xpose.msra.mxu0 0
      %1108 = vmatprep.subr.bf16.mxu0 0
      %1109 = vmatpush1.bf16.xpose.msra.mxu0 0
      %1110 = vmatprep.subr.bf16.mxu0 0
      %1111 = vmatpush1.bf16.xpose.msra.mxu0 0
      %1112 = vmatprep.subr.bf16.mxu0 0
      %1113 = vmatpush1.bf16.xpose.msra.mxu0 0
      %1114 = vmatprep.subr.bf16.mxu0 0
      %1115 = vmatpush1.bf16.xpose.msra.mxu0 0
      %1116 = vmatprep.subr.bf16.mxu0 0
      %1117 = vmatpush1.bf16.xpose.msra.mxu0 0
      %1118 = vmatprep.mubr.bf16.mxu0 0
      %1119 = vmatmul.mubr.bf16.gmra.mrb[0].mxu0 %v1081
      %v1120 = vpop.f32.mrb[0].mxu0
      %v1121 = vadd.f32 %v833, %v1120
      %v1122 = vpop.f32.mrb[0].mxu0
      %v1123 = vpop.f32.mrb[0].mxu0
      %v1124 = vadd.f32 %v833, %v1123
      %v1125 = vpop.f32.mrb[0].mxu0
      %1126 = vdwg.mxu0
      %v1127 = vsel %vm883, %v1121, -inf
      %1128 = vmax.xlane.f32.xlu0 %v1127
      %v1129 = vpop.xlane.xlu0 %1128
      %v1130 = vsel %vm887, %v1124, -inf
      %1131 = vmax.xlane.f32.xlu0 %v1130
      %v1132 = vpop.xlane.xlu0 %1131
      %v1133 = vsub.f32 %v1121, %v1129
      %v1134 = vsub.f32 %v1124, %v1132
      %v1135 = vmul.f32 %v1133, 1.442695
      %v1136 = vpow.pop %v1135
      %v1137 = vmul.f32 %v1134, 1.442695
      %v1138 = vpow.pop %v1137
      %v1139 = vsel %vm883, %v1136, 0.0
      %1140 = vadd.xlane.f32.xlu0 %v1139
      %v1141 = vpop.xlane.xlu0 %1140
      %v1142 = vsel %vm887, %v1138, 0.0
      %1143 = vadd.xlane.f32.xlu0 %v1142
      %v1144 = vpop.xlane.xlu0 %1143
      %v1145 = vrcp.pop %v1141
      %v1146 = vrcp.pop %v1144
      %v1147 = vmul.f32 %v1136, %v1145
      %v1148 = vmul.f32 %v1138, %v1146
      %v1149 = vpack.c.bf16 %v1148, %v1147
      %1150 = vrot.lane.b32.xlu0 %v825, 64
      %v1151 = vpop.permute.xlu0 %1150
      %v1154 = vsel %vm883, %v1149, 0
      %1156 = vmatprep.subr.bf16.mxu0 0
      %1157 = vmatpush1.bf16.msra.mxu0 %v1151
      %1158 = vmatprep.subr.bf16.mxu0 0
      %1159 = vmatpush1.bf16.msra.mxu0 0
      %1160 = vmatprep.subr.bf16.mxu0 0
      %1161 = vmatpush1.bf16.msra.mxu0 0
      %1162 = vmatprep.subr.bf16.mxu0 0
      %1163 = vmatpush1.bf16.msra.mxu0 0
      %1164 = vmatprep.subr.bf16.mxu0 0
      %1165 = vmatpush1.bf16.msra.mxu0 0
      %1166 = vmatprep.subr.bf16.mxu0 0
      %1167 = vmatpush1.bf16.msra.mxu0 0
      %1168 = vmatprep.subr.bf16.mxu0 0
      %1169 = vmatpush1.bf16.msra.mxu0 0
      %1170 = vmatprep.subr.bf16.mxu0 0
      %1171 = vmatpush1.bf16.msra.mxu0 0
      %1172 = vmatprep.subr.bf16.mxu0 0
      %1173 = vmatpush1.bf16.msra.mxu0 0
      %1174 = vmatprep.subr.bf16.mxu0 0
      %1175 = vmatpush1.bf16.msra.mxu0 0
      %1176 = vmatprep.subr.bf16.mxu0 0
      %1177 = vmatpush1.bf16.msra.mxu0 0
      %1178 = vmatprep.subr.bf16.mxu0 0
      %1179 = vmatpush1.bf16.msra.mxu0 0
      %1180 = vmatprep.subr.bf16.mxu0 0
      %1181 = vmatpush1.bf16.msra.mxu0 0
      %1182 = vmatprep.subr.bf16.mxu0 0
      %1183 = vmatpush1.bf16.msra.mxu0 0
      %1184 = vmatprep.subr.bf16.mxu0 0
      %1185 = vmatpush1.bf16.msra.mxu0 0
      %1186 = vmatprep.subr.bf16.mxu0 0
      %1187 = vmatpush1.bf16.msra.mxu0 0
      %1188 = vmatprep.mubr.bf16.mxu0 0
      %1189 = vmatmul.mubr.bf16.gmra.mrb[0].mxu0 %v1154
      %v1190 = vpop.f32.mrb[0].mxu0
      %v1191 = vadd.f32 0.0, %v1190
      %v1192 = vpop.f32.mrb[0].mxu0
      %v1193 = vpop.f32.mrb[0].mxu0
      %v1194 = vadd.f32 0.0, %v1193
      %v1195 = vpop.f32.mrb[0].mxu0
      %1196 = vdwg.mxu0
      %1197 = vrot.lane.b32.xlu0 %v828, 32
      %v1198 = vpop.permute.xlu0 %1197
      %1199 = vrot.lane.b32.xlu0 %v823, 32
      %v1200 = vpop.permute.xlu0 %1199
      %v1202 = vsel %vm835, %v1198, 0
      %v1205 = vsel %vm835, %v1200, 0
      %1207 = vmatprep.subr.bf16.mxu0 0
      %1208 = vmatpush1.bf16.xpose.msra.mxu0 %v1205
      %1209 = vmatprep.subr.bf16.mxu0 0
      %1210 = vmatpush1.bf16.xpose.msra.mxu0 0
      %1211 = vmatprep.subr.bf16.mxu0 0
      %1212 = vmatpush1.bf16.xpose.msra.mxu0 0
      %1213 = vmatprep.subr.bf16.mxu0 0
      %1214 = vmatpush1.bf16.xpose.msra.mxu0 0
      %1215 = vmatprep.subr.bf16.mxu0 0
      %1216 = vmatpush1.bf16.xpose.msra.mxu0 0
      %1217 = vmatprep.subr.bf16.mxu0 0
      %1218 = vmatpush1.bf16.xpose.msra.mxu0 0
      %1219 = vmatprep.subr.bf16.mxu0 0
      %1220 = vmatpush1.bf16.xpose.msra.mxu0 0
      %1221 = vmatprep.subr.bf16.mxu0 0
      %1222 = vmatpush1.bf16.xpose.msra.mxu0 0
      %1223 = vmatprep.subr.bf16.mxu0 0
      %1224 = vmatpush1.bf16.xpose.msra.mxu0 0
      %1225 = vmatprep.subr.bf16.mxu0 0
      %1226 = vmatpush1.bf16.xpose.msra.mxu0 0
      %1227 = vmatprep.subr.bf16.mxu0 0
      %1228 = vmatpush1.bf16.xpose.msra.mxu0 0
      %1229 = vmatprep.subr.bf16.mxu0 0
      %1230 = vmatpush1.bf16.xpose.msra.mxu0 0
      %1231 = vmatprep.subr.bf16.mxu0 0
      %1232 = vmatpush1.bf16.xpose.msra.mxu0 0
      %1233 = vmatprep.subr.bf16.mxu0 0
      %1234 = vmatpush1.bf16.xpose.msra.mxu0 0
      %1235 = vmatprep.subr.bf16.mxu0 0
      %1236 = vmatpush1.bf16.xpose.msra.mxu0 0
      %1237 = vmatprep.subr.bf16.mxu0 0
      %1238 = vmatpush1.bf16.xpose.msra.mxu0 0
      %1239 = vmatprep.mubr.bf16.mxu0 0
      %1240 = vmatmul.mubr.bf16.gmra.mrb[0].mxu0 %v1202
      %v1241 = vpop.f32.mrb[0].mxu0
      %v1242 = vadd.f32 %v833, %v1241
      %v1243 = vpop.f32.mrb[0].mxu0
      %v1244 = vpop.f32.mrb[0].mxu0
      %v1245 = vadd.f32 %v833, %v1244
      %v1246 = vpop.f32.mrb[0].mxu0
      %1247 = vdwg.mxu0
      %v1248 = vsel %vm883, %v1242, -inf
      %1249 = vmax.xlane.f32.xlu0 %v1248
      %v1250 = vpop.xlane.xlu0 %1249
      %v1251 = vsel %vm887, %v1245, -inf
      %1252 = vmax.xlane.f32.xlu0 %v1251
      %v1253 = vpop.xlane.xlu0 %1252
      %v1254 = vsub.f32 %v1242, %v1250
      %v1255 = vsub.f32 %v1245, %v1253
      %v1256 = vmul.f32 %v1254, 1.442695
      %v1257 = vpow.pop %v1256
      %v1258 = vmul.f32 %v1255, 1.442695
      %v1259 = vpow.pop %v1258
      %v1260 = vsel %vm883, %v1257, 0.0
      %1261 = vadd.xlane.f32.xlu0 %v1260
      %v1262 = vpop.xlane.xlu0 %1261
      %v1263 = vsel %vm887, %v1259, 0.0
      %1264 = vadd.xlane.f32.xlu0 %v1263
      %v1265 = vpop.xlane.xlu0 %1264
      %v1266 = vrcp.pop %v1262
      %v1267 = vrcp.pop %v1265
      %v1268 = vmul.f32 %v1257, %v1266
      %v1269 = vmul.f32 %v1259, %v1267
      %v1270 = vpack.c.bf16 %v1269, %v1268
      %1271 = vrot.lane.b32.xlu0 %v825, 32
      %v1272 = vpop.permute.xlu0 %1271
      %v1275 = vsel %vm883, %v1270, 0
      %1277 = vmatprep.subr.bf16.mxu0 0
      %1278 = vmatpush1.bf16.msra.mxu0 %v1272
      %1279 = vmatprep.subr.bf16.mxu0 0
      %1280 = vmatpush1.bf16.msra.mxu0 0
      %1281 = vmatprep.subr.bf16.mxu0 0
      %1282 = vmatpush1.bf16.msra.mxu0 0
      %1283 = vmatprep.subr.bf16.mxu0 0
      %1284 = vmatpush1.bf16.msra.mxu0 0
      %1285 = vmatprep.subr.bf16.mxu0 0
      %1286 = vmatpush1.bf16.msra.mxu0 0
      %1287 = vmatprep.subr.bf16.mxu0 0
      %1288 = vmatpush1.bf16.msra.mxu0 0
      %1289 = vmatprep.subr.bf16.mxu0 0
      %1290 = vmatpush1.bf16.msra.mxu0 0
      %1291 = vmatprep.subr.bf16.mxu0 0
      %1292 = vmatpush1.bf16.msra.mxu0 0
      %1293 = vmatprep.subr.bf16.mxu0 0
      %1294 = vmatpush1.bf16.msra.mxu0 0
      %1295 = vmatprep.subr.bf16.mxu0 0
      %1296 = vmatpush1.bf16.msra.mxu0 0
      %1297 = vmatprep.subr.bf16.mxu0 0
      %1298 = vmatpush1.bf16.msra.mxu0 0
      %1299 = vmatprep.subr.bf16.mxu0 0
      %1300 = vmatpush1.bf16.msra.mxu0 0
      %1301 = vmatprep.subr.bf16.mxu0 0
      %1302 = vmatpush1.bf16.msra.mxu0 0
      %1303 = vmatprep.subr.bf16.mxu0 0
      %1304 = vmatpush1.bf16.msra.mxu0 0
      %1305 = vmatprep.subr.bf16.mxu0 0
      %1306 = vmatpush1.bf16.msra.mxu0 0
      %1307 = vmatprep.subr.bf16.mxu0 0
      %1308 = vmatpush1.bf16.msra.mxu0 0
      %1309 = vmatprep.mubr.bf16.mxu0 0
      %1310 = vmatmul.mubr.bf16.gmra.mrb[0].mxu0 %v1275
      %v1311 = vpop.f32.mrb[0].mxu0
      %v1312 = vadd.f32 0.0, %v1311
      %v1313 = vpop.f32.mrb[0].mxu0
      %v1314 = vpop.f32.mrb[0].mxu0
      %v1315 = vadd.f32 0.0, %v1314
      %v1316 = vpop.f32.mrb[0].mxu0
      %1317 = vdwg.mxu0
      %v1318 = vpack.c.bf16 %v324, %v322
      %v1320 = vsel %vm835, %v1318, 0
      %v1323 = vsel %vm835, %v824, 0
      %1325 = vmatprep.subr.bf16.mxu0 0
      %1326 = vmatpush1.bf16.xpose.msra.mxu0 %v1323
      %1327 = vmatprep.subr.bf16.mxu0 0
      %1328 = vmatpush1.bf16.xpose.msra.mxu0 0
      %1329 = vmatprep.subr.bf16.mxu0 0
      %1330 = vmatpush1.bf16.xpose.msra.mxu0 0
      %1331 = vmatprep.subr.bf16.mxu0 0
      %1332 = vmatpush1.bf16.xpose.msra.mxu0 0
      %1333 = vmatprep.subr.bf16.mxu0 0
      %1334 = vmatpush1.bf16.xpose.msra.mxu0 0
      %1335 = vmatprep.subr.bf16.mxu0 0
      %1336 = vmatpush1.bf16.xpose.msra.mxu0 0
      %1337 = vmatprep.subr.bf16.mxu0 0
      %1338 = vmatpush1.bf16.xpose.msra.mxu0 0
      %1339 = vmatprep.subr.bf16.mxu0 0
      %1340 = vmatpush1.bf16.xpose.msra.mxu0 0
      %1341 = vmatprep.subr.bf16.mxu0 0
      %1342 = vmatpush1.bf16.xpose.msra.mxu0 0
      %1343 = vmatprep.subr.bf16.mxu0 0
      %1344 = vmatpush1.bf16.xpose.msra.mxu0 0
      %1345 = vmatprep.subr.bf16.mxu0 0
      %1346 = vmatpush1.bf16.xpose.msra.mxu0 0
      %1347 = vmatprep.subr.bf16.mxu0 0
      %1348 = vmatpush1.bf16.xpose.msra.mxu0 0
      %1349 = vmatprep.subr.bf16.mxu0 0
      %1350 = vmatpush1.bf16.xpose.msra.mxu0 0
      %1351 = vmatprep.subr.bf16.mxu0 0
      %1352 = vmatpush1.bf16.xpose.msra.mxu0 0
      %1353 = vmatprep.subr.bf16.mxu0 0
      %1354 = vmatpush1.bf16.xpose.msra.mxu0 0
      %1355 = vmatprep.subr.bf16.mxu0 0
      %1356 = vmatpush1.bf16.xpose.msra.mxu0 0
      %1357 = vmatprep.mubr.bf16.mxu0 0
      %1358 = vmatmul.mubr.bf16.gmra.mrb[0].mxu0 %v1320
      %v1359 = vpop.f32.mrb[0].mxu0
      %v1360 = vadd.f32 %v833, %v1359
      %v1361 = vpop.f32.mrb[0].mxu0
      %v1362 = vpop.f32.mrb[0].mxu0
      %v1363 = vadd.f32 %v833, %v1362
      %v1364 = vpop.f32.mrb[0].mxu0
      %1365 = vdwg.mxu0
      %v1366 = vsel %vm883, %v1360, -inf
      %1367 = vmax.xlane.f32.xlu0 %v1366
      %v1368 = vpop.xlane.xlu0 %1367
      %v1369 = vsel %vm887, %v1363, -inf
      %1370 = vmax.xlane.f32.xlu0 %v1369
      %v1371 = vpop.xlane.xlu0 %1370
      %v1372 = vsub.f32 %v1360, %v1368
      %v1373 = vsub.f32 %v1363, %v1371
      %v1374 = vmul.f32 %v1372, 1.442695
      %v1375 = vpow.pop %v1374
      %v1376 = vmul.f32 %v1373, 1.442695
      %v1377 = vpow.pop %v1376
      %v1378 = vsel %vm883, %v1375, 0.0
      %1379 = vadd.xlane.f32.xlu0 %v1378
      %v1380 = vpop.xlane.xlu0 %1379
      %v1381 = vsel %vm887, %v1377, 0.0
      %1382 = vadd.xlane.f32.xlu0 %v1381
      %v1383 = vpop.xlane.xlu0 %1382
      %v1384 = vrcp.pop %v1380
      %v1385 = vrcp.pop %v1383
      %v1386 = vmul.f32 %v1375, %v1384
      %v1387 = vmul.f32 %v1377, %v1385
      %v1388 = vpack.c.bf16 %v1387, %v1386
      %v1390 = vsel %vm883, %v1388, 0
      %1392 = vmatprep.subr.bf16.mxu0 0
      %1393 = vmatpush1.bf16.msra.mxu0 %v826
      %1394 = vmatprep.subr.bf16.mxu0 0
      %1395 = vmatpush1.bf16.msra.mxu0 0
      %1396 = vmatprep.subr.bf16.mxu0 0
      %1397 = vmatpush1.bf16.msra.mxu0 0
      %1398 = vmatprep.subr.bf16.mxu0 0
      %1399 = vmatpush1.bf16.msra.mxu0 0
      %1400 = vmatprep.subr.bf16.mxu0 0
      %1401 = vmatpush1.bf16.msra.mxu0 0
      %1402 = vmatprep.subr.bf16.mxu0 0
      %1403 = vmatpush1.bf16.msra.mxu0 0
      %1404 = vmatprep.subr.bf16.mxu0 0
      %1405 = vmatpush1.bf16.msra.mxu0 0
      %1406 = vmatprep.subr.bf16.mxu0 0
      %1407 = vmatpush1.bf16.msra.mxu0 0
      %1408 = vmatprep.subr.bf16.mxu0 0
      %1409 = vmatpush1.bf16.msra.mxu0 0
      %1410 = vmatprep.subr.bf16.mxu0 0
      %1411 = vmatpush1.bf16.msra.mxu0 0
      %1412 = vmatprep.subr.bf16.mxu0 0
      %1413 = vmatpush1.bf16.msra.mxu0 0
      %1414 = vmatprep.subr.bf16.mxu0 0
      %1415 = vmatpush1.bf16.msra.mxu0 0
      %1416 = vmatprep.subr.bf16.mxu0 0
      %1417 = vmatpush1.bf16.msra.mxu0 0
      %1418 = vmatprep.subr.bf16.mxu0 0
      %1419 = vmatpush1.bf16.msra.mxu0 0
      %1420 = vmatprep.subr.bf16.mxu0 0
      %1421 = vmatpush1.bf16.msra.mxu0 0
      %1422 = vmatprep.subr.bf16.mxu0 0
      %1423 = vmatpush1.bf16.msra.mxu0 0
      %1424 = vmatprep.mubr.bf16.mxu0 0
      %1425 = vmatmul.mubr.bf16.gmra.mrb[0].mxu0 %v1390
      %v1426 = vpop.f32.mrb[0].mxu0
      %v1427 = vadd.f32 0.0, %v1426
      %v1428 = vpop.f32.mrb[0].mxu0
      %v1429 = vpop.f32.mrb[0].mxu0
      %v1430 = vadd.f32 0.0, %v1429
      %v1431 = vpop.f32.mrb[0].mxu0
      %1432 = vdwg.mxu0
      %1434 = vrot.lane.b32.xlu0 %v1318, 96
      %v1435 = vpop.permute.xlu0 %1434
      %1437 = vrot.lane.b32.xlu0 %v824, 96
      %v1438 = vpop.permute.xlu0 %1437
      %v1440 = vsel %vm835, %v1435, 0
      %v1443 = vsel %vm835, %v1438, 0
      %1445 = vmatprep.subr.bf16.mxu0 0
      %1446 = vmatpush1.bf16.xpose.msra.mxu0 %v1443
      %1447 = vmatprep.subr.bf16.mxu0 0
      %1448 = vmatpush1.bf16.xpose.msra.mxu0 0
      %1449 = vmatprep.subr.bf16.mxu0 0
      %1450 = vmatpush1.bf16.xpose.msra.mxu0 0
      %1451 = vmatprep.subr.bf16.mxu0 0
      %1452 = vmatpush1.bf16.xpose.msra.mxu0 0
      %1453 = vmatprep.subr.bf16.mxu0 0
      %1454 = vmatpush1.bf16.xpose.msra.mxu0 0
      %1455 = vmatprep.subr.bf16.mxu0 0
      %1456 = vmatpush1.bf16.xpose.msra.mxu0 0
      %1457 = vmatprep.subr.bf16.mxu0 0
      %1458 = vmatpush1.bf16.xpose.msra.mxu0 0
      %1459 = vmatprep.subr.bf16.mxu0 0
      %1460 = vmatpush1.bf16.xpose.msra.mxu0 0
      %1461 = vmatprep.subr.bf16.mxu0 0
      %1462 = vmatpush1.bf16.xpose.msra.mxu0 0
      %1463 = vmatprep.subr.bf16.mxu0 0
      %1464 = vmatpush1.bf16.xpose.msra.mxu0 0
      %1465 = vmatprep.subr.bf16.mxu0 0
      %1466 = vmatpush1.bf16.xpose.msra.mxu0 0
      %1467 = vmatprep.subr.bf16.mxu0 0
      %1468 = vmatpush1.bf16.xpose.msra.mxu0 0
      %1469 = vmatprep.subr.bf16.mxu0 0
      %1470 = vmatpush1.bf16.xpose.msra.mxu0 0
      %1471 = vmatprep.subr.bf16.mxu0 0
      %1472 = vmatpush1.bf16.xpose.msra.mxu0 0
      %1473 = vmatprep.subr.bf16.mxu0 0
      %1474 = vmatpush1.bf16.xpose.msra.mxu0 0
      %1475 = vmatprep.subr.bf16.mxu0 0
      %1476 = vmatpush1.bf16.xpose.msra.mxu0 0
      %1477 = vmatprep.mubr.bf16.mxu0 0
      %1478 = vmatmul.mubr.bf16.gmra.mrb[0].mxu0 %v1440
      %v1479 = vpop.f32.mrb[0].mxu0
      %v1480 = vadd.f32 %v833, %v1479
      %v1481 = vpop.f32.mrb[0].mxu0
      %v1482 = vpop.f32.mrb[0].mxu0
      %v1483 = vadd.f32 %v833, %v1482
      %v1484 = vpop.f32.mrb[0].mxu0
      %1485 = vdwg.mxu0
      %v1486 = vsel %vm883, %v1480, -inf
      %1487 = vmax.xlane.f32.xlu0 %v1486
      %v1488 = vpop.xlane.xlu0 %1487
      %v1489 = vsel %vm887, %v1483, -inf
      %1490 = vmax.xlane.f32.xlu0 %v1489
      %v1491 = vpop.xlane.xlu0 %1490
      %v1492 = vsub.f32 %v1480, %v1488
      %v1493 = vsub.f32 %v1483, %v1491
      %v1494 = vmul.f32 %v1492, 1.442695
      %v1495 = vpow.pop %v1494
      %v1496 = vmul.f32 %v1493, 1.442695
      %v1497 = vpow.pop %v1496
      %v1498 = vsel %vm883, %v1495, 0.0
      %1499 = vadd.xlane.f32.xlu0 %v1498
      %v1500 = vpop.xlane.xlu0 %1499
      %v1501 = vsel %vm887, %v1497, 0.0
      %1502 = vadd.xlane.f32.xlu0 %v1501
      %v1503 = vpop.xlane.xlu0 %1502
      %v1504 = vrcp.pop %v1500
      %v1505 = vrcp.pop %v1503
      %v1506 = vmul.f32 %v1495, %v1504
      %v1507 = vmul.f32 %v1497, %v1505
      %v1508 = vpack.c.bf16 %v1507, %v1506
      %1510 = vrot.lane.b32.xlu0 %v826, 96
      %v1511 = vpop.permute.xlu0 %1510
      %v1514 = vsel %vm883, %v1508, 0
      %1516 = vmatprep.subr.bf16.mxu0 0
      %1517 = vmatpush1.bf16.msra.mxu0 %v1511
      %1518 = vmatprep.subr.bf16.mxu0 0
      %1519 = vmatpush1.bf16.msra.mxu0 0
      %1520 = vmatprep.subr.bf16.mxu0 0
      %1521 = vmatpush1.bf16.msra.mxu0 0
      %1522 = vmatprep.subr.bf16.mxu0 0
      %1523 = vmatpush1.bf16.msra.mxu0 0
      %1524 = vmatprep.subr.bf16.mxu0 0
      %1525 = vmatpush1.bf16.msra.mxu0 0
      %1526 = vmatprep.subr.bf16.mxu0 0
      %1527 = vmatpush1.bf16.msra.mxu0 0
      %1528 = vmatprep.subr.bf16.mxu0 0
      %1529 = vmatpush1.bf16.msra.mxu0 0
      %1530 = vmatprep.subr.bf16.mxu0 0
      %1531 = vmatpush1.bf16.msra.mxu0 0
      %1532 = vmatprep.subr.bf16.mxu0 0
      %1533 = vmatpush1.bf16.msra.mxu0 0
      %1534 = vmatprep.subr.bf16.mxu0 0
      %1535 = vmatpush1.bf16.msra.mxu0 0
      %1536 = vmatprep.subr.bf16.mxu0 0
      %1537 = vmatpush1.bf16.msra.mxu0 0
      %1538 = vmatprep.subr.bf16.mxu0 0
      %1539 = vmatpush1.bf16.msra.mxu0 0
      %1540 = vmatprep.subr.bf16.mxu0 0
      %1541 = vmatpush1.bf16.msra.mxu0 0
      %1542 = vmatprep.subr.bf16.mxu0 0
      %1543 = vmatpush1.bf16.msra.mxu0 0
      %1544 = vmatprep.subr.bf16.mxu0 0
      %1545 = vmatpush1.bf16.msra.mxu0 0
      %1546 = vmatprep.subr.bf16.mxu0 0
      %1547 = vmatpush1.bf16.msra.mxu0 0
      %1548 = vmatprep.mubr.bf16.mxu0 0
      %1549 = vmatmul.mubr.bf16.gmra.mrb[0].mxu0 %v1514
      %v1550 = vpop.f32.mrb[0].mxu0
      %v1551 = vadd.f32 0.0, %v1550
      %v1552 = vpop.f32.mrb[0].mxu0
      %v1553 = vpop.f32.mrb[0].mxu0
      %v1554 = vadd.f32 0.0, %v1553
      %v1555 = vpop.f32.mrb[0].mxu0
      %1556 = vdwg.mxu0
      %1557 = vrot.lane.b32.xlu0 %v1318, 64
      %v1558 = vpop.permute.xlu0 %1557
      %1559 = vrot.lane.b32.xlu0 %v824, 64
      %v1560 = vpop.permute.xlu0 %1559
      %v1562 = vsel %vm835, %v1558, 0
      %v1565 = vsel %vm835, %v1560, 0
      %1567 = vmatprep.subr.bf16.mxu0 0
      %1568 = vmatpush1.bf16.xpose.msra.mxu0 %v1565
      %1569 = vmatprep.subr.bf16.mxu0 0
      %1570 = vmatpush1.bf16.xpose.msra.mxu0 0
      %1571 = vmatprep.subr.bf16.mxu0 0
      %1572 = vmatpush1.bf16.xpose.msra.mxu0 0
      %1573 = vmatprep.subr.bf16.mxu0 0
      %1574 = vmatpush1.bf16.xpose.msra.mxu0 0
      %1575 = vmatprep.subr.bf16.mxu0 0
      %1576 = vmatpush1.bf16.xpose.msra.mxu0 0
      %1577 = vmatprep.subr.bf16.mxu0 0
      %1578 = vmatpush1.bf16.xpose.msra.mxu0 0
      %1579 = vmatprep.subr.bf16.mxu0 0
      %1580 = vmatpush1.bf16.xpose.msra.mxu0 0
      %1581 = vmatprep.subr.bf16.mxu0 0
      %1582 = vmatpush1.bf16.xpose.msra.mxu0 0
      %1583 = vmatprep.subr.bf16.mxu0 0
      %1584 = vmatpush1.bf16.xpose.msra.mxu0 0
      %1585 = vmatprep.subr.bf16.mxu0 0
      %1586 = vmatpush1.bf16.xpose.msra.mxu0 0
      %1587 = vmatprep.subr.bf16.mxu0 0
      %1588 = vmatpush1.bf16.xpose.msra.mxu0 0
      %1589 = vmatprep.subr.bf16.mxu0 0
      %1590 = vmatpush1.bf16.xpose.msra.mxu0 0
      %1591 = vmatprep.subr.bf16.mxu0 0
      %1592 = vmatpush1.bf16.xpose.msra.mxu0 0
      %1593 = vmatprep.subr.bf16.mxu0 0
      %1594 = vmatpush1.bf16.xpose.msra.mxu0 0
      %1595 = vmatprep.subr.bf16.mxu0 0
      %1596 = vmatpush1.bf16.xpose.msra.mxu0 0
      %1597 = vmatprep.subr.bf16.mxu0 0
      %1598 = vmatpush1.bf16.xpose.msra.mxu0 0
      %1599 = vmatprep.mubr.bf16.mxu0 0
      %1600 = vmatmul.mubr.bf16.gmra.mrb[0].mxu0 %v1562
      %v1601 = vpop.f32.mrb[0].mxu0
      %v1602 = vadd.f32 %v833, %v1601
      %v1603 = vpop.f32.mrb[0].mxu0
      %v1604 = vpop.f32.mrb[0].mxu0
      %v1605 = vadd.f32 %v833, %v1604
      %v1606 = vpop.f32.mrb[0].mxu0
      %1607 = vdwg.mxu0
      %v1608 = vsel %vm883, %v1602, -inf
      %1609 = vmax.xlane.f32.xlu0 %v1608
      %v1610 = vpop.xlane.xlu0 %1609
      %v1611 = vsel %vm887, %v1605, -inf
      %1612 = vmax.xlane.f32.xlu0 %v1611
      %v1613 = vpop.xlane.xlu0 %1612
      %v1614 = vsub.f32 %v1602, %v1610
      %v1615 = vsub.f32 %v1605, %v1613
      %v1616 = vmul.f32 %v1614, 1.442695
      %v1617 = vpow.pop %v1616
      %v1618 = vmul.f32 %v1615, 1.442695
      %v1619 = vpow.pop %v1618
      %v1620 = vsel %vm883, %v1617, 0.0
      %1621 = vadd.xlane.f32.xlu0 %v1620
      %v1622 = vpop.xlane.xlu0 %1621
      %v1623 = vsel %vm887, %v1619, 0.0
      %1624 = vadd.xlane.f32.xlu0 %v1623
      %v1625 = vpop.xlane.xlu0 %1624
      %v1626 = vrcp.pop %v1622
      %v1627 = vrcp.pop %v1625
      %v1628 = vmul.f32 %v1617, %v1626
      %v1629 = vmul.f32 %v1619, %v1627
      %v1630 = vpack.c.bf16 %v1629, %v1628
      %1631 = vrot.lane.b32.xlu0 %v826, 64
      %v1632 = vpop.permute.xlu0 %1631
      %v1635 = vsel %vm883, %v1630, 0
      %1637 = vmatprep.subr.bf16.mxu0 0
      %1638 = vmatpush1.bf16.msra.mxu0 %v1632
      %1639 = vmatprep.subr.bf16.mxu0 0
      %1640 = vmatpush1.bf16.msra.mxu0 0
      %1641 = vmatprep.subr.bf16.mxu0 0
      %1642 = vmatpush1.bf16.msra.mxu0 0
      %1643 = vmatprep.subr.bf16.mxu0 0
      %1644 = vmatpush1.bf16.msra.mxu0 0
      %1645 = vmatprep.subr.bf16.mxu0 0
      %1646 = vmatpush1.bf16.msra.mxu0 0
      %1647 = vmatprep.subr.bf16.mxu0 0
      %1648 = vmatpush1.bf16.msra.mxu0 0
      %1649 = vmatprep.subr.bf16.mxu0 0
      %1650 = vmatpush1.bf16.msra.mxu0 0
      %1651 = vmatprep.subr.bf16.mxu0 0
      %1652 = vmatpush1.bf16.msra.mxu0 0
      %1653 = vmatprep.subr.bf16.mxu0 0
      %1654 = vmatpush1.bf16.msra.mxu0 0
      %1655 = vmatprep.subr.bf16.mxu0 0
      %1656 = vmatpush1.bf16.msra.mxu0 0
      %1657 = vmatprep.subr.bf16.mxu0 0
      %1658 = vmatpush1.bf16.msra.mxu0 0
      %1659 = vmatprep.subr.bf16.mxu0 0
      %1660 = vmatpush1.bf16.msra.mxu0 0
      %1661 = vmatprep.subr.bf16.mxu0 0
      %1662 = vmatpush1.bf16.msra.mxu0 0
      %1663 = vmatprep.subr.bf16.mxu0 0
      %1664 = vmatpush1.bf16.msra.mxu0 0
      %1665 = vmatprep.subr.bf16.mxu0 0
      %1666 = vmatpush1.bf16.msra.mxu0 0
      %1667 = vmatprep.subr.bf16.mxu0 0
      %1668 = vmatpush1.bf16.msra.mxu0 0
      %1669 = vmatprep.mubr.bf16.mxu0 0
      %1670 = vmatmul.mubr.bf16.gmra.mrb[0].mxu0 %v1635
      %v1671 = vpop.f32.mrb[0].mxu0
      %v1672 = vadd.f32 0.0, %v1671
      %v1673 = vpop.f32.mrb[0].mxu0
      %v1674 = vpop.f32.mrb[0].mxu0
      %v1675 = vadd.f32 0.0, %v1674
      %v1676 = vpop.f32.mrb[0].mxu0
      %1677 = vdwg.mxu0
      %1678 = vrot.lane.b32.xlu0 %v1318, 32
      %v1679 = vpop.permute.xlu0 %1678
      %1680 = vrot.lane.b32.xlu0 %v824, 32
      %v1681 = vpop.permute.xlu0 %1680
      %v1683 = vsel %vm835, %v1679, 0
      %v1686 = vsel %vm835, %v1681, 0
      %1688 = vmatprep.subr.bf16.mxu0 0
      %1689 = vmatpush1.bf16.xpose.msra.mxu0 %v1686
      %1690 = vmatprep.subr.bf16.mxu0 0
      %1691 = vmatpush1.bf16.xpose.msra.mxu0 0
      %1692 = vmatprep.subr.bf16.mxu0 0
      %1693 = vmatpush1.bf16.xpose.msra.mxu0 0
      %1694 = vmatprep.subr.bf16.mxu0 0
      %1695 = vmatpush1.bf16.xpose.msra.mxu0 0
      %1696 = vmatprep.subr.bf16.mxu0 0
      %1697 = vmatpush1.bf16.xpose.msra.mxu0 0
      %1698 = vmatprep.subr.bf16.mxu0 0
      %1699 = vmatpush1.bf16.xpose.msra.mxu0 0
      %1700 = vmatprep.subr.bf16.mxu0 0
      %1701 = vmatpush1.bf16.xpose.msra.mxu0 0
      %1702 = vmatprep.subr.bf16.mxu0 0
      %1703 = vmatpush1.bf16.xpose.msra.mxu0 0
      %1704 = vmatprep.subr.bf16.mxu0 0
      %1705 = vmatpush1.bf16.xpose.msra.mxu0 0
      %1706 = vmatprep.subr.bf16.mxu0 0
      %1707 = vmatpush1.bf16.xpose.msra.mxu0 0
      %1708 = vmatprep.subr.bf16.mxu0 0
      %1709 = vmatpush1.bf16.xpose.msra.mxu0 0
      %1710 = vmatprep.subr.bf16.mxu0 0
      %1711 = vmatpush1.bf16.xpose.msra.mxu0 0
      %1712 = vmatprep.subr.bf16.mxu0 0
      %1713 = vmatpush1.bf16.xpose.msra.mxu0 0
      %1714 = vmatprep.subr.bf16.mxu0 0
      %1715 = vmatpush1.bf16.xpose.msra.mxu0 0
      %1716 = vmatprep.subr.bf16.mxu0 0
      %1717 = vmatpush1.bf16.xpose.msra.mxu0 0
      %1718 = vmatprep.subr.bf16.mxu0 0
      %1719 = vmatpush1.bf16.xpose.msra.mxu0 0
      %1720 = vmatprep.mubr.bf16.mxu0 0
      %1721 = vmatmul.mubr.bf16.gmra.mrb[0].mxu0 %v1683
      %v1722 = vpop.f32.mrb[0].mxu0
      %v1723 = vadd.f32 %v833, %v1722
      %v1724 = vpop.f32.mrb[0].mxu0
      %v1725 = vpop.f32.mrb[0].mxu0
      %v1726 = vadd.f32 %v833, %v1725
      %v1727 = vpop.f32.mrb[0].mxu0
      %1728 = vdwg.mxu0
      %v1729 = vsel %vm883, %v1723, -inf
      %1730 = vmax.xlane.f32.xlu0 %v1729
      %v1731 = vpop.xlane.xlu0 %1730
      %v1732 = vsel %vm887, %v1726, -inf
      %1733 = vmax.xlane.f32.xlu0 %v1732
      %v1734 = vpop.xlane.xlu0 %1733
      %v1735 = vsub.f32 %v1723, %v1731
      %v1736 = vsub.f32 %v1726, %v1734
      %v1737 = vmul.f32 %v1735, 1.442695
      %v1738 = vpow.pop %v1737
      %v1739 = vmul.f32 %v1736, 1.442695
      %v1740 = vpow.pop %v1739
      %v1741 = vsel %vm883, %v1738, 0.0
      %1742 = vadd.xlane.f32.xlu0 %v1741
      %v1743 = vpop.xlane.xlu0 %1742
      %v1744 = vsel %vm887, %v1740, 0.0
      %1745 = vadd.xlane.f32.xlu0 %v1744
      %v1746 = vpop.xlane.xlu0 %1745
      %v1747 = vrcp.pop %v1743
      %v1748 = vrcp.pop %v1746
      %v1749 = vmul.f32 %v1738, %v1747
      %v1750 = vmul.f32 %v1740, %v1748
      %v1751 = vpack.c.bf16 %v1750, %v1749
      %1752 = vrot.lane.b32.xlu0 %v826, 32
      %v1753 = vpop.permute.xlu0 %1752
      %v1756 = vsel %vm883, %v1751, 0
      %1758 = vmatprep.subr.bf16.mxu0 0
      %1759 = vmatpush1.bf16.msra.mxu0 %v1753
      %1760 = vmatprep.subr.bf16.mxu0 0
      %1761 = vmatpush1.bf16.msra.mxu0 0
      %1762 = vmatprep.subr.bf16.mxu0 0
      %1763 = vmatpush1.bf16.msra.mxu0 0
      %1764 = vmatprep.subr.bf16.mxu0 0
      %1765 = vmatpush1.bf16.msra.mxu0 0
      %1766 = vmatprep.subr.bf16.mxu0 0
      %1767 = vmatpush1.bf16.msra.mxu0 0
      %1768 = vmatprep.subr.bf16.mxu0 0
      %1769 = vmatpush1.bf16.msra.mxu0 0
      %1770 = vmatprep.subr.bf16.mxu0 0
      %1771 = vmatpush1.bf16.msra.mxu0 0
      %1772 = vmatprep.subr.bf16.mxu0 0
      %1773 = vmatpush1.bf16.msra.mxu0 0
      %1774 = vmatprep.subr.bf16.mxu0 0
      %1775 = vmatpush1.bf16.msra.mxu0 0
      %1776 = vmatprep.subr.bf16.mxu0 0
      %1777 = vmatpush1.bf16.msra.mxu0 0
      %1778 = vmatprep.subr.bf16.mxu0 0
      %1779 = vmatpush1.bf16.msra.mxu0 0
      %1780 = vmatprep.subr.bf16.mxu0 0
      %1781 = vmatpush1.bf16.msra.mxu0 0
      %1782 = vmatprep.subr.bf16.mxu0 0
      %1783 = vmatpush1.bf16.msra.mxu0 0
      %1784 = vmatprep.subr.bf16.mxu0 0
      %1785 = vmatpush1.bf16.msra.mxu0 0
      %1786 = vmatprep.subr.bf16.mxu0 0
      %1787 = vmatpush1.bf16.msra.mxu0 0
      %1788 = vmatprep.subr.bf16.mxu0 0
      %1789 = vmatpush1.bf16.msra.mxu0 0
      %1790 = vmatprep.mubr.bf16.mxu0 0
      %1791 = vmatmul.mubr.bf16.gmra.mrb[0].mxu0 %v1756
      %v1792 = vpop.f32.mrb[0].mxu0
      %v1793 = vadd.f32 0.0, %v1792
      %v1794 = vpop.f32.mrb[0].mxu0
      %v1795 = vpop.f32.mrb[0].mxu0
      %v1796 = vadd.f32 0.0, %v1795
      %v1797 = vpop.f32.mrb[0].mxu0
      %1798 = vdwg.mxu0
      %1801 = vrot.lane.b32.xlu0 %v1070, 32
      %v1802 = vpop.permute.xlu0 %1801
      %1803 = vrot.lane.b32.xlu0 %v1073, 32
      %v1804 = vpop.permute.xlu0 %1803
      %1809 = vrot.lane.b32.xlu0 %v1191, 64
      %v1810 = vpop.permute.xlu0 %1809
      %1811 = vrot.lane.b32.xlu0 %v1194, 64
      %v1812 = vpop.permute.xlu0 %1811
      %1817 = vrot.lane.b32.xlu0 %v1312, 96
      %v1818 = vpop.permute.xlu0 %1817
      %1819 = vrot.lane.b32.xlu0 %v1315, 96
      %v1820 = vpop.permute.xlu0 %1819
      %1825 = vrot.lane.b32.xlu0 %v1551, 32
      %v1826 = vpop.permute.xlu0 %1825
      %1827 = vrot.lane.b32.xlu0 %v1554, 32
      %v1828 = vpop.permute.xlu0 %1827
      %1833 = vrot.lane.b32.xlu0 %v1672, 64
      %v1834 = vpop.permute.xlu0 %1833
      %1835 = vrot.lane.b32.xlu0 %v1675, 64
      %v1836 = vpop.permute.xlu0 %1835
      %1841 = vrot.lane.b32.xlu0 %v1793, 96
      %v1842 = vpop.permute.xlu0 %1841
      %1843 = vrot.lane.b32.xlu0 %v1796, 96
      %v1844 = vpop.permute.xlu0 %1843
      %v1847 = vsel %vm835, %v946, %v1802
      %v1848 = vsel %vm835, %v949, %v1804
      %vm1849 = vcmask 523264
      %v1850 = vsel %vm1849, %v1847, %v1810
      %v1851 = vsel %vm1849, %v1848, %v1812
      %vm1852 = vcmask 785408
      %v1853 = vsel %vm1852, %v1850, %v1818
      %v1854 = vsel %vm1852, %v1851, %v1820
      %v1855 = vsel %vm835, %v1427, %v1826
      %v1856 = vsel %vm835, %v1430, %v1828
      %v1857 = vsel %vm1849, %v1855, %v1834
      %v1858 = vsel %vm1849, %v1856, %v1836
      %v1859 = vsel %vm1852, %v1857, %v1842
      %v1860 = vsel %vm1852, %v1858, %v1844
      %v1861 = vpack.c.bf16 %v1854, %v1853
      %v1862 = vpack.c.bf16 %v1860, %v1859
      %v1863 = vld [vmem:[%s6] sm:$0xff]
      %v1864 = vld [vmem:[%s6 + $0x8] sm:$0xff]
      %v1865 = vld [vmem:[%s6 + $0x10] sm:$0xff]
      %v1866 = vld [vmem:[%s6 + $0x18] sm:$0xff]
      %v1867 = vld [vmem:[%s6 + $0x20] sm:$0xff]
      %v1868 = vld [vmem:[%s6 + $0x28] sm:$0xff]
      %v1869 = vld [vmem:[%s6 + $0x30] sm:$0xff]
      %v1870 = vld [vmem:[%s6 + $0x38] sm:$0xff]
      %v1871 = vld [vmem:[%s6 + $0x40] sm:$0xff]
      %v1872 = vld [vmem:[%s6 + $0x48] sm:$0xff]
      %v1873 = vld [vmem:[%s6 + $0x50] sm:$0xff]
      %v1874 = vld [vmem:[%s6 + $0x58] sm:$0xff]
      %v1875 = vld [vmem:[%s6 + $0x60] sm:$0xff]
      %v1876 = vld [vmem:[%s6 + $0x68] sm:$0xff]
      %v1877 = vld [vmem:[%s6 + $0x70] sm:$0xff]
      %v1878 = vld [vmem:[%s6 + $0x78] sm:$0xff]
      %v1879 = vld [vmem:[%s6 + $0x80] sm:$0xff]
      %v1880 = vld [vmem:[%s6 + $0x88] sm:$0xff]
      %v1881 = vld [vmem:[%s6 + $0x90] sm:$0xff]
      %v1882 = vld [vmem:[%s6 + $0x98] sm:$0xff]
      %v1883 = vld [vmem:[%s6 + $0xa0] sm:$0xff]
      %v1884 = vld [vmem:[%s6 + $0xa8] sm:$0xff]
      %v1885 = vld [vmem:[%s6 + $0xb0] sm:$0xff]
      %v1886 = vld [vmem:[%s6 + $0xb8] sm:$0xff]
      %v1887 = vld [vmem:[%s6 + $0xc0] sm:$0xff]
      %v1888 = vld [vmem:[%s6 + $0xc8] sm:$0xff]
      %v1889 = vld [vmem:[%s6 + $0xd0] sm:$0xff]
      %v1890 = vld [vmem:[%s6 + $0xd8] sm:$0xff]
      %v1891 = vld [vmem:[%s6 + $0xe0] sm:$0xff]
      %v1892 = vld [vmem:[%s6 + $0xe8] sm:$0xff]
      %v1893 = vld [vmem:[%s6 + $0xf0] sm:$0xff]
      %v1894 = vld [vmem:[%s6 + $0xf8] sm:$0xff]
      %v1895 = vld [vmem:[%s7] sm:$0x3]
      %v1897 = vlaneseq
      %v1898 = vshrl.u32 %v1897, 7
      %v1899 = vsub.s32 0, %v1898
      %v1900 = vrot.slane %v1895, %v1899
      %v1901 = vlaneseq
      %v1902 = vshrl.u32 %v1901, 7
      %v1903 = vsub.s32 1, %v1902
      %v1904 = vrot.slane %v1895, %v1903
      %v1939 = vunpack.c.l.b16 %v1863
      %v1940 = vunpack.c.h.b16 %v1863
      %v1941 = vunpack.c.l.b16 %v1864
      %v1942 = vunpack.c.h.b16 %v1864
      %v1943 = vunpack.c.l.b16 %v1865
      %v1944 = vunpack.c.h.b16 %v1865
      %v1945 = vunpack.c.l.b16 %v1866
      %v1946 = vunpack.c.h.b16 %v1866
      %v1947 = vunpack.c.l.b16 %v1867
      %v1948 = vunpack.c.h.b16 %v1867
      %v1949 = vunpack.c.l.b16 %v1868
      %v1950 = vunpack.c.h.b16 %v1868
      %v1951 = vunpack.c.l.b16 %v1869
      %v1952 = vunpack.c.h.b16 %v1869
      %v1953 = vunpack.c.l.b16 %v1870
      %v1954 = vunpack.c.h.b16 %v1870
      %v1955 = vunpack.c.l.b16 %v1871
      %v1956 = vunpack.c.h.b16 %v1871
      %v1957 = vunpack.c.l.b16 %v1872
      %v1958 = vunpack.c.h.b16 %v1872
      %v1959 = vunpack.c.l.b16 %v1873
      %v1960 = vunpack.c.h.b16 %v1873
      %v1961 = vunpack.c.l.b16 %v1874
      %v1962 = vunpack.c.h.b16 %v1874
      %v1963 = vunpack.c.l.b16 %v1875
      %v1964 = vunpack.c.h.b16 %v1875
      %v1965 = vunpack.c.l.b16 %v1876
      %v1966 = vunpack.c.h.b16 %v1876
      %v1967 = vunpack.c.l.b16 %v1877
      %v1968 = vunpack.c.h.b16 %v1877
      %v1969 = vunpack.c.l.b16 %v1878
      %v1970 = vunpack.c.h.b16 %v1878
      %v1971 = vunpack.c.l.b16 %v1879
      %v1972 = vunpack.c.h.b16 %v1879
      %v1973 = vunpack.c.l.b16 %v1880
      %v1974 = vunpack.c.h.b16 %v1880
      %v1975 = vunpack.c.l.b16 %v1881
      %v1976 = vunpack.c.h.b16 %v1881
      %v1977 = vunpack.c.l.b16 %v1882
      %v1978 = vunpack.c.h.b16 %v1882
      %v1979 = vunpack.c.l.b16 %v1883
      %v1980 = vunpack.c.h.b16 %v1883
      %v1981 = vunpack.c.l.b16 %v1884
      %v1982 = vunpack.c.h.b16 %v1884
      %v1983 = vunpack.c.l.b16 %v1885
      %v1984 = vunpack.c.h.b16 %v1885
      %v1985 = vunpack.c.l.b16 %v1886
      %v1986 = vunpack.c.h.b16 %v1886
      %v1987 = vunpack.c.l.b16 %v1887
      %v1988 = vunpack.c.h.b16 %v1887
      %v1989 = vunpack.c.l.b16 %v1888
      %v1990 = vunpack.c.h.b16 %v1888
      %v1991 = vunpack.c.l.b16 %v1889
      %v1992 = vunpack.c.h.b16 %v1889
      %v1993 = vunpack.c.l.b16 %v1890
      %v1994 = vunpack.c.h.b16 %v1890
      %v1995 = vunpack.c.l.b16 %v1891
      %v1996 = vunpack.c.h.b16 %v1891
      %v1997 = vunpack.c.l.b16 %v1892
      %v1998 = vunpack.c.h.b16 %v1892
      %v1999 = vunpack.c.l.b16 %v1893
      %v2000 = vunpack.c.h.b16 %v1893
      %v2001 = vunpack.c.l.b16 %v1894
      %v2002 = vunpack.c.h.b16 %v1894
      %v2003 = vpack.c.b16 %v1941, %v1939
      %v2004 = vpack.c.b16 %v1942, %v1940
      %v2005 = vpack.c.b16 %v1945, %v1943
      %v2006 = vpack.c.b16 %v1946, %v1944
      %v2007 = vpack.c.b16 %v1949, %v1947
      %v2008 = vpack.c.b16 %v1950, %v1948
      %v2009 = vpack.c.b16 %v1953, %v1951
      %v2010 = vpack.c.b16 %v1954, %v1952
      %v2011 = vpack.c.b16 %v1957, %v1955
      %v2012 = vpack.c.b16 %v1958, %v1956
      %v2013 = vpack.c.b16 %v1961, %v1959
      %v2014 = vpack.c.b16 %v1962, %v1960
      %v2015 = vpack.c.b16 %v1965, %v1963
      %v2016 = vpack.c.b16 %v1966, %v1964
      %v2017 = vpack.c.b16 %v1969, %v1967
      %v2018 = vpack.c.b16 %v1970, %v1968
      %v2019 = vpack.c.b16 %v1973, %v1971
      %v2020 = vpack.c.b16 %v1974, %v1972
      %v2021 = vpack.c.b16 %v1977, %v1975
      %v2022 = vpack.c.b16 %v1978, %v1976
      %v2023 = vpack.c.b16 %v1981, %v1979
      %v2024 = vpack.c.b16 %v1982, %v1980
      %v2025 = vpack.c.b16 %v1985, %v1983
      %v2026 = vpack.c.b16 %v1986, %v1984
      %v2027 = vpack.c.b16 %v1989, %v1987
      %v2028 = vpack.c.b16 %v1990, %v1988
      %v2029 = vpack.c.b16 %v1993, %v1991
      %v2030 = vpack.c.b16 %v1994, %v1992
      %v2031 = vpack.c.b16 %v1997, %v1995
      %v2032 = vpack.c.b16 %v1998, %v1996
      %v2033 = vpack.c.b16 %v2001, %v1999
      %v2034 = vpack.c.b16 %v2002, %v2000
      %2067 = vmatprep.subr.bf16.mxu0 %v2004
      %2068 = vmatpush1.bf16.msra.mxu0 %v2003
      %2069 = vmatprep.subr.bf16.mxu0 %v2006
      %2070 = vmatpush1.bf16.msra.mxu0 %v2005
      %2071 = vmatprep.subr.bf16.mxu0 %v2008
      %2072 = vmatpush1.bf16.msra.mxu0 %v2007
      %2073 = vmatprep.subr.bf16.mxu0 %v2010
      %2074 = vmatpush1.bf16.msra.mxu0 %v2009
      %2075 = vmatprep.subr.bf16.mxu0 %v2012
      %2076 = vmatpush1.bf16.msra.mxu0 %v2011
      %2077 = vmatprep.subr.bf16.mxu0 %v2014
      %2078 = vmatpush1.bf16.msra.mxu0 %v2013
      %2079 = vmatprep.subr.bf16.mxu0 %v2016
      %2080 = vmatpush1.bf16.msra.mxu0 %v2015
      %2081 = vmatprep.subr.bf16.mxu0 %v2018
      %2082 = vmatpush1.bf16.msra.mxu0 %v2017
      %2083 = vmatprep.subr.bf16.mxu0 %v2020
      %2084 = vmatpush1.bf16.msra.mxu0 %v2019
      %2085 = vmatprep.subr.bf16.mxu0 %v2022
      %2086 = vmatpush1.bf16.msra.mxu0 %v2021
      %2087 = vmatprep.subr.bf16.mxu0 %v2024
      %2088 = vmatpush1.bf16.msra.mxu0 %v2023
      %2089 = vmatprep.subr.bf16.mxu0 %v2026
      %2090 = vmatpush1.bf16.msra.mxu0 %v2025
      %2091 = vmatprep.subr.bf16.mxu0 %v2028
      %2092 = vmatpush1.bf16.msra.mxu0 %v2027
      %2093 = vmatprep.subr.bf16.mxu0 %v2030
      %2094 = vmatpush1.bf16.msra.mxu0 %v2029
      %2095 = vmatprep.subr.bf16.mxu0 %v2032
      %2096 = vmatpush1.bf16.msra.mxu0 %v2031
      %2097 = vmatprep.subr.bf16.mxu0 %v2034
      %2098 = vmatpush1.bf16.msra.mxu0 %v2033
      %2099 = vmatprep.mubr.bf16.mxu0 %v1862
      %2100 = vmatmul.mubr.bf16.gmra.mrb[0].mxu0 %v1861
      %v2101 = vpop.f32.mrb[0].mxu0
      %v2102 = vadd.f32 %v1900, %v2101
      %v2103 = vpop.f32.mrb[0].mxu0
      %v2104 = vadd.f32 %v1904, %v2103
      %v2105 = vpop.f32.mrb[0].mxu0
      %v2106 = vadd.f32 %v1900, %v2105
      %v2107 = vpop.f32.mrb[0].mxu0
      %v2108 = vadd.f32 %v1904, %v2107
      %2109 = vdwg.mxu0
      %v2110 = vld [vmem:[%s3] sm:$0xff]
      %v2111 = vld [vmem:[%s3 + $0x8] sm:$0xff]
      %v2112 = vld [vmem:[%s3 + $0x10] sm:$0x1]
      %v2113 = vld [vmem:[%s3 + $0x18] sm:$0x1]
      %v2114 = vadd.f32 %v2102, %v2110
      %v2115 = vadd.f32 %v2104, %v2111
      %v2116 = vadd.f32 %v2106, %v2112
      %v2117 = vadd.f32 %v2108, %v2113
      %2118 = vst [vmem:[%s319] sm:$0xff] %v2114
      %2119 = vst [vmem:[%s319 + $0x8] sm:$0xff] %v2115
      %2120 = vst [vmem:[%s319 + $0x10] sm:$0x1] %v2116
      %2121 = vst [vmem:[%s319 + $0x18] sm:$0x1] %v2117
      %p2122 = scmp.lt.s32.totalorder %s19, 1
      %s2123 = scalar_select %p2122, %s19, 1
      %s2124 = smul.addr %s2123, 4
      %s2125 = smul.addr %s2124, 8
      %s2126 = scalar_lea.vmem %s8, %s2125
      // Predicated region
      $region53: #{planning_decoder_pallas.3} parent=51 // pred_check
        %p2127 = pneg %p215
      $region54: #{planning_decoder_pallas.3} parent=51 // pred_check_branch
        %2129 = sbr.rel (%p2127) target = $region56
      $region55: #{planning_decoder_pallas.3} parent=51 // pred_region
        _
      $region56: #{planning_decoder_pallas.3} parent=51 // pred_fallthru
        _
    $region52: #{planning_decoder_pallas.3} parent=5 // pred_fallthru
      _
    %p2130 = scmp.le.s32.totalorder 2, %s14
    // Predicated region
    $region57: #{planning_decoder_pallas.3} parent=5 // pred_check
      %p2131 = pneg %p2130
    $region58: #{planning_decoder_pallas.3} parent=5 // pred_check_branch
      %2133 = sbr.rel (%p2131) target = $region60
    $region59: #{planning_decoder_pallas.3} parent=5 // pred_region
      %s2134 = ssub.s32 %s14, 2
      // Predicated region
      $region61: #{planning_decoder_pallas.3} parent=59 // pred_check
        %p2135 = pneg %p221
      $region62: #{planning_decoder_pallas.3} parent=59 // pred_check_branch
        %2137 = sbr.rel (%p2135) target = $region64
      $region63: #{planning_decoder_pallas.3} parent=59 // pred_region
        %p2138 = scmp.lt.s32.totalorder %s20, 1
        %s2139 = scalar_select %p2138, %s20, 1
        %s2140 = smul.addr %s2139, 4
        %s2141 = smul.addr %s2140, 8
        %s2142 = scalar_lea.vmem %s8, %s2141
      $region64: #{planning_decoder_pallas.3} parent=59 // pred_fallthru
        _
    $region60: #{planning_decoder_pallas.3} parent=5 // pred_fallthru
      _
  $region6: #{planning_decoder_pallas.3} parent=0 // loop_footer
    %s18 = sadd.s32 1, %s14
  $region7: #{planning_decoder_pallas.3} parent=0 // loop_footer_branch
    %13 = sbr.rel target = $region3
  $region8: #{planning_decoder_pallas.3} parent=0 // loop_exit
    _

// kernel: planning_decoder_pallas.4
$region0: #{planning_decoder_pallas.4}
  #allocation0 [shape = 'u32[]', space=smem, size = 0x4, offset = 0x4, fixed_abs, tag = 'smem constant byte address 0x4 - core index']
  #allocation1 [shape = 'u32[144,128]{1,0:T(1,128)}', space=vmem, size = 0x12000, scoped, tag = 'internal scratch']
  #allocation2 [shape = 'f32[9,8]{1,0:T(8,128)}', space=vmem, size = 0x2000, scoped, tag = 'scratch operand']
  #allocation3 [shape = 'f32[9,8]{1,0:T(8,128)}', space=vmem, size = 0x2000, scoped, tag = 'scratch operand']
  #allocation4 [shape = 'f32[9,256]{1,0:T(8,128)}', space=vmem, size = 0x4000, scoped, tag = 'scratch operand']
  %s0 = inlined_call_operand.vmem [shape: f32[9,256], index: 0, kind: input, shape index: {}]
  %s1 = inlined_call_operand.vmem [shape: bf16[2,384,384], index: 1, kind: input, shape index: {}]
  %s2 = inlined_call_operand.vmem [shape: bf16[256,384], index: 2, kind: input, shape index: {}]
  %s3 = inlined_call_operand.vmem [shape: f32[256,1], index: 3, kind: input, shape index: {}]
  %s4 = inlined_call_operand.vmem [shape: bf16[512,256], index: 4, kind: input, shape index: {}]
  %s5 = inlined_call_operand.vmem [shape: f32[512,1], index: 5, kind: input, shape index: {}]
  %s6 = inlined_call_operand.vmem [shape: bf16[256,256], index: 6, kind: input, shape index: {}]
  %s7 = inlined_call_operand.vmem [shape: f32[1,256], index: 7, kind: input, shape index: {}]
  %s8 = inlined_call_operand.vmem [shape: f32[2,9,256], index: 8, kind: output, shape index: {}]
  %s9 = sld [smem:[#allocation0]]
  $region114: #{planning_decoder_pallas.4} parent=0
    _
  %s11 = ssub.s32 1, %s9
  %s12 = scalar_select 0, %s11, %s9
  $region1: #{planning_decoder_pallas.4} parent=0
    #allocation5 [shape = 'u8[196608]{0}', space=vmem, size = 0x30000, scoped, tag = 'input window, operand 1']
    loop: start=0, step=1, limit=8
    $region2: #{planning_decoder_pallas.4} parent=1 // loop_pre_header
      _
    $region3: #{planning_decoder_pallas.4} parent=1 // loop_header
      %s14 = sphi 0, %s18
      %p15 = scmp.ge.s32.totalorder %s14, 8
      %s21 = sphi 0, %s33
      %s22 = sphi 0, %s29
      %s23 = sphi 0, %s21
      %s24 = sphi 0, %s22
      %s25 = sphi 0, %s23
      %s26 = sphi 0, %s24
      %s34 = sphi 0, %s34
      %s36 = sphi 0, %s34
      %s37 = sphi 0, %s36
      %s51 = sphi 0, %s37
      %s59 = sphi 0, %s61
      %s62 = sphi 0, %s59
      %s63 = sphi 0, %s62
      %s79 = sphi 0, %s63
      %s83 = sphi 0, %s83
      %s85 = sphi 0, %s83
      %s86 = sphi 0, %s85
      %s100 = sphi 0, %s86
      %s104 = sphi 0, %s104
      %s106 = sphi 0, %s104
      %s107 = sphi 0, %s106
      %s121 = sphi 0, %s107
      %s125 = sphi 0, %s125
      %s127 = sphi 0, %s125
      %s128 = sphi 0, %s127
      %s142 = sphi 0, %s128
      %s146 = sphi 0, %s146
      %s148 = sphi 0, %s146
      %s149 = sphi 0, %s148
      %s163 = sphi 0, %s149
      %s167 = sphi 0, %s167
      %s169 = sphi 0, %s167
      %s170 = sphi 0, %s169
      %s184 = sphi 0, %s170
      %s188 = sphi 0, %s188
      %s190 = sphi 0, %s188
      %s191 = sphi 0, %s190
      %s205 = sphi 0, %s191
      %s211 = sphi 0, %s213
      %s214 = sphi 0, %s211
      %s215 = sphi 0, %s214
      %s231 = sphi 0, %s215
    $region4: #{planning_decoder_pallas.4} parent=1 // loop_header_branch
      %17 = sbr.rel (%p15) target = $region8
    $region5: #{planning_decoder_pallas.4} parent=1 // loop_body
      %s19 = ssub.s32 %s14, 1
      %s20 = ssub.s32 %s14, 2
      %s27 = sadd.s32 1, %s22
      %p28 = scmp.ge.s32.totalorder %s27, 3
      %s29 = scalar_select %p28, 0, %s27
      %s30 = sadd.s32 1, %s21
      %s31 = scalar_select %p28, %s30, %s21
      %p32 = scmp.ge.s32.totalorder %s31, 2
      %s33 = scalar_select %p32, 0, %s31
      %s35 = sadd.s32 %s34, 1
      %p38 = scmp.eq.s32.totalorder %s14, 5
      %p39 = scmp.ne.s32.totalorder %s34, %s36
      %p40 = scmp.eq.s32.totalorder %s14, 0
      %p41 = por %p39, %p40
      %p42 = scmp.ne.s32.totalorder %s34, %s36
      %p43 = scmp.eq.s32.totalorder %s19, 5
      %p44 = por %p42, %p43
      %p45 = scmp.ne.s32.totalorder %s36, %s37
      %p46 = scmp.eq.s32.totalorder %s19, 0
      %p47 = por %p45, %p46
      %p48 = scmp.ne.s32.totalorder %s36, %s37
      %p49 = scmp.eq.s32.totalorder %s20, 5
      %p50 = por %p48, %p49
      %p52 = scmp.ne.s32.totalorder %s37, %s51
      %p53 = scmp.eq.s32.totalorder %s20, 0
      %p54 = por %p52, %p53
      %s55 = ssub.s32 %s21, %s33
      %s56 = ssub.s32 %s22, %s29
      %s57 = sor.u32 %s55, %s56
      %p58 = scmp.eq.s32.totalorder %s57, 0
      %s60 = sadd.s32 %s59, 1
      %s61 = scalar_select %p58, %s59, %s60
      %p64 = pneg %p58
      %p65 = scmp.eq.s32.totalorder %s14, 5
      %p66 = por %p64, %p65
      %p67 = scmp.ne.s32.totalorder %s59, %s62
      %p68 = scmp.eq.s32.totalorder %s14, 0
      %p69 = por %p67, %p68
      %p70 = scmp.ne.s32.totalorder %s59, %s62
      %p71 = scmp.eq.s32.totalorder %s19, 5
      %p72 = por %p70, %p71
      %p73 = scmp.ne.s32.totalorder %s62, %s63
      %p74 = scmp.eq.s32.totalorder %s19, 0
      %p75 = por %p73, %p74
      %p76 = scmp.ne.s32.totalorder %s62, %s63
      %p77 = scmp.eq.s32.totalorder %s20, 5
      %p78 = por %p76, %p77
      %p80 = scmp.ne.s32.totalorder %s63, %s79
      %p81 = scmp.eq.s32.totalorder %s20, 0
      %p82 = por %p80, %p81
      %s84 = sadd.s32 %s83, 1
      %p87 = scmp.eq.s32.totalorder %s14, 5
      %p88 = scmp.ne.s32.totalorder %s83, %s85
      %p89 = scmp.eq.s32.totalorder %s14, 0
      %p90 = por %p88, %p89
      %p91 = scmp.ne.s32.totalorder %s83, %s85
      %p92 = scmp.eq.s32.totalorder %s19, 5
      %p93 = por %p91, %p92
      %p94 = scmp.ne.s32.totalorder %s85, %s86
      %p95 = scmp.eq.s32.totalorder %s19, 0
      %p96 = por %p94, %p95
      %p97 = scmp.ne.s32.totalorder %s85, %s86
      %p98 = scmp.eq.s32.totalorder %s20, 5
      %p99 = por %p97, %p98
      %p101 = scmp.ne.s32.totalorder %s86, %s100
      %p102 = scmp.eq.s32.totalorder %s20, 0
      %p103 = por %p101, %p102
      %s105 = sadd.s32 %s104, 1
      %p108 = scmp.eq.s32.totalorder %s14, 5
      %p109 = scmp.ne.s32.totalorder %s104, %s106
      %p110 = scmp.eq.s32.totalorder %s14, 0
      %p111 = por %p109, %p110
      %p112 = scmp.ne.s32.totalorder %s104, %s106
      %p113 = scmp.eq.s32.totalorder %s19, 5
      %p114 = por %p112, %p113
      %p115 = scmp.ne.s32.totalorder %s106, %s107
      %p116 = scmp.eq.s32.totalorder %s19, 0
      %p117 = por %p115, %p116
      %p118 = scmp.ne.s32.totalorder %s106, %s107
      %p119 = scmp.eq.s32.totalorder %s20, 5
      %p120 = por %p118, %p119
      %p122 = scmp.ne.s32.totalorder %s107, %s121
      %p123 = scmp.eq.s32.totalorder %s20, 0
      %p124 = por %p122, %p123
      %s126 = sadd.s32 %s125, 1
      %p129 = scmp.eq.s32.totalorder %s14, 5
      %p130 = scmp.ne.s32.totalorder %s125, %s127
      %p131 = scmp.eq.s32.totalorder %s14, 0
      %p132 = por %p130, %p131
      %p133 = scmp.ne.s32.totalorder %s125, %s127
      %p134 = scmp.eq.s32.totalorder %s19, 5
      %p135 = por %p133, %p134
      %p136 = scmp.ne.s32.totalorder %s127, %s128
      %p137 = scmp.eq.s32.totalorder %s19, 0
      %p138 = por %p136, %p137
      %p139 = scmp.ne.s32.totalorder %s127, %s128
      %p140 = scmp.eq.s32.totalorder %s20, 5
      %p141 = por %p139, %p140
      %p143 = scmp.ne.s32.totalorder %s128, %s142
      %p144 = scmp.eq.s32.totalorder %s20, 0
      %p145 = por %p143, %p144
      %s147 = sadd.s32 %s146, 1
      %p150 = scmp.eq.s32.totalorder %s14, 5
      %p151 = scmp.ne.s32.totalorder %s146, %s148
      %p152 = scmp.eq.s32.totalorder %s14, 0
      %p153 = por %p151, %p152
      %p154 = scmp.ne.s32.totalorder %s146, %s148
      %p155 = scmp.eq.s32.totalorder %s19, 5
      %p156 = por %p154, %p155
      %p157 = scmp.ne.s32.totalorder %s148, %s149
      %p158 = scmp.eq.s32.totalorder %s19, 0
      %p159 = por %p157, %p158
      %p160 = scmp.ne.s32.totalorder %s148, %s149
      %p161 = scmp.eq.s32.totalorder %s20, 5
      %p162 = por %p160, %p161
      %p164 = scmp.ne.s32.totalorder %s149, %s163
      %p165 = scmp.eq.s32.totalorder %s20, 0
      %p166 = por %p164, %p165
      %s168 = sadd.s32 %s167, 1
      %p171 = scmp.eq.s32.totalorder %s14, 5
      %p172 = scmp.ne.s32.totalorder %s167, %s169
      %p173 = scmp.eq.s32.totalorder %s14, 0
      %p174 = por %p172, %p173
      %p175 = scmp.ne.s32.totalorder %s167, %s169
      %p176 = scmp.eq.s32.totalorder %s19, 5
      %p177 = por %p175, %p176
      %p178 = scmp.ne.s32.totalorder %s169, %s170
      %p179 = scmp.eq.s32.totalorder %s19, 0
      %p180 = por %p178, %p179
      %p181 = scmp.ne.s32.totalorder %s169, %s170
      %p182 = scmp.eq.s32.totalorder %s20, 5
      %p183 = por %p181, %p182
      %p185 = scmp.ne.s32.totalorder %s170, %s184
      %p186 = scmp.eq.s32.totalorder %s20, 0
      %p187 = por %p185, %p186
      %s189 = sadd.s32 %s188, 1
      %p192 = scmp.eq.s32.totalorder %s14, 5
      %p193 = scmp.ne.s32.totalorder %s188, %s190
      %p194 = scmp.eq.s32.totalorder %s14, 0
      %p195 = por %p193, %p194
      %p196 = scmp.ne.s32.totalorder %s188, %s190
      %p197 = scmp.eq.s32.totalorder %s19, 5
      %p198 = por %p196, %p197
      %p199 = scmp.ne.s32.totalorder %s190, %s191
      %p200 = scmp.eq.s32.totalorder %s19, 0
      %p201 = por %p199, %p200
      %p202 = scmp.ne.s32.totalorder %s190, %s191
      %p203 = scmp.eq.s32.totalorder %s20, 5
      %p204 = por %p202, %p203
      %p206 = scmp.ne.s32.totalorder %s191, %s205
      %p207 = scmp.eq.s32.totalorder %s20, 0
      %p208 = por %p206, %p207
      %s209 = ssub.s32 %s21, %s33
      %p210 = scmp.eq.s32.totalorder %s209, 0
      %s212 = sadd.s32 %s211, 1
      %s213 = scalar_select %p210, %s211, %s212
      %p216 = pneg %p210
      %p217 = scmp.eq.s32.totalorder %s14, 5
      %p218 = por %p216, %p217
      %p219 = scmp.ne.s32.totalorder %s211, %s214
      %p220 = scmp.eq.s32.totalorder %s14, 0
      %p221 = por %p219, %p220
      %p222 = scmp.ne.s32.totalorder %s211, %s214
      %p223 = scmp.eq.s32.totalorder %s19, 5
      %p224 = por %p222, %p223
      %p225 = scmp.ne.s32.totalorder %s214, %s215
      %p226 = scmp.eq.s32.totalorder %s19, 0
      %p227 = por %p225, %p226
      %p228 = scmp.ne.s32.totalorder %s214, %s215
      %p229 = scmp.eq.s32.totalorder %s20, 5
      %p230 = por %p228, %p229
      %p232 = scmp.ne.s32.totalorder %s215, %s231
      %p233 = scmp.eq.s32.totalorder %s20, 0
      %p234 = por %p232, %p233
      %p235 = scmp.le.s32.totalorder 1, %s14
      %p236 = scmp.lt.s32.totalorder %s14, 7
      %p237 = pnand %p235, %p236
      %p238 = pneg %p237
      // Predicated region
      $region9: #{planning_decoder_pallas.4} parent=5 // pred_check
        _
      $region10: #{planning_decoder_pallas.4} parent=5 // pred_check_branch
        %240 = sbr.rel (%p237) target = $region12
      $region11: #{planning_decoder_pallas.4} parent=5 // pred_region
        %s241 = ssub.s32 %s14, 1
        // Predicated region
        $region13: #{planning_decoder_pallas.4} parent=11 // pred_check
          %p242 = pneg %p47
        $region14: #{planning_decoder_pallas.4} parent=11 // pred_check_branch
          %244 = sbr.rel (%p242) target = $region16
        $region15: #{planning_decoder_pallas.4} parent=11 // pred_region
          _
        $region16: #{planning_decoder_pallas.4} parent=11 // pred_fallthru
          _
        // Predicated region
        $region17: #{planning_decoder_pallas.4} parent=11 // pred_check
          %p245 = pneg %p96
        $region18: #{planning_decoder_pallas.4} parent=11 // pred_check_branch
          %247 = sbr.rel (%p245) target = $region20
        $region19: #{planning_decoder_pallas.4} parent=11 // pred_region
          _
        $region20: #{planning_decoder_pallas.4} parent=11 // pred_fallthru
          _
        // Predicated region
        $region21: #{planning_decoder_pallas.4} parent=11 // pred_check
          %p248 = pneg %p117
        $region22: #{planning_decoder_pallas.4} parent=11 // pred_check_branch
          %250 = sbr.rel (%p248) target = $region24
        $region23: #{planning_decoder_pallas.4} parent=11 // pred_region
          _
        $region24: #{planning_decoder_pallas.4} parent=11 // pred_fallthru
          _
        // Predicated region
        $region25: #{planning_decoder_pallas.4} parent=11 // pred_check
          %p251 = pneg %p138
        $region26: #{planning_decoder_pallas.4} parent=11 // pred_check_branch
          %253 = sbr.rel (%p251) target = $region28
        $region27: #{planning_decoder_pallas.4} parent=11 // pred_region
          _
        $region28: #{planning_decoder_pallas.4} parent=11 // pred_fallthru
          _
        // Predicated region
        $region29: #{planning_decoder_pallas.4} parent=11 // pred_check
          %p254 = pneg %p159
        $region30: #{planning_decoder_pallas.4} parent=11 // pred_check_branch
          %256 = sbr.rel (%p254) target = $region32
        $region31: #{planning_decoder_pallas.4} parent=11 // pred_region
          _
        $region32: #{planning_decoder_pallas.4} parent=11 // pred_fallthru
          _
        // Predicated region
        $region33: #{planning_decoder_pallas.4} parent=11 // pred_check
          %p257 = pneg %p180
        $region34: #{planning_decoder_pallas.4} parent=11 // pred_check_branch
          %259 = sbr.rel (%p257) target = $region36
        $region35: #{planning_decoder_pallas.4} parent=11 // pred_region
          _
        $region36: #{planning_decoder_pallas.4} parent=11 // pred_fallthru
          _
        // Predicated region
        $region37: #{planning_decoder_pallas.4} parent=11 // pred_check
          %p260 = pneg %p201
        $region38: #{planning_decoder_pallas.4} parent=11 // pred_check_branch
          %262 = sbr.rel (%p260) target = $region40
        $region39: #{planning_decoder_pallas.4} parent=11 // pred_region
          _
        $region40: #{planning_decoder_pallas.4} parent=11 // pred_fallthru
          _
      $region12: #{planning_decoder_pallas.4} parent=5 // pred_fallthru
        _
      %p263 = scmp.lt.s32.totalorder %s14, 6
      // Predicated region
      $region41: #{planning_decoder_pallas.4} parent=5 // pred_check
        %p264 = pneg %p263
      $region42: #{planning_decoder_pallas.4} parent=5 // pred_check_branch
        %266 = sbr.rel (%p264) target = $region44
      $region43: #{planning_decoder_pallas.4} parent=5 // pred_region
        // Predicated region
        $region45: #{planning_decoder_pallas.4} parent=43 // pred_check
          %p267 = pneg %p69
        $region46: #{planning_decoder_pallas.4} parent=43 // pred_check_branch
          %269 = sbr.rel (%p267) target = $region48
        $region47: #{planning_decoder_pallas.4} parent=43 // pred_region
          %s270 = sand.u32 %s59, 1
          %s271 = sand.u32 %s59, 1
          %s272 = smul.addr %s271, 192
          %s273 = scalar_lea.vmem [#allocation5], %s272
          %s274 = smul.addr %s21, 144
          %s275 = sadd.s32 %s22, %s274
          %s276 = smul.addr %s275, 4
          %s277 = scalar_lea.vmem %s1, %s276
          // Predicated region
          $region49: #{planning_decoder_pallas.4} parent=47 // pred_check
            _
          $region50: #{planning_decoder_pallas.4} parent=47 // pred_check_branch
            %279 = sbr.rel (0) target = $region52
          $region51: #{planning_decoder_pallas.4} parent=47 // pred_region
            // Predicated region
            $region53: #{planning_decoder_pallas.4} parent=51 // pred_check
              _
            $region54: #{planning_decoder_pallas.4} parent=51 // pred_check_branch
              %281 = sbr.rel target = $region56
            $region55: #{planning_decoder_pallas.4} parent=51 // pred_region
              // Predicated region
              $region68: #{planning_decoder_pallas.4} parent=55 // pred_check
                _
              $region69: #{planning_decoder_pallas.4} parent=55 // pred_check_branch
                %390 = sbr.rel (0) target = $region71
              $region70: #{planning_decoder_pallas.4} parent=55 // pred_region
                loop: start=0, step=1, limit=1
                $region72: #{planning_decoder_pallas.4} parent=70 // loop_pre_header
                  _
                $region73: #{planning_decoder_pallas.4} parent=70 // loop_header
                  %s392 = sphi 0, %s396
                  %p393 = scmp.ge.s32.totalorder %s392, 1
                  %s397 = sphi %s277, %s277
                  %s398 = sphi %s273, %s273
                $region74: #{planning_decoder_pallas.4} parent=70 // loop_header_branch
                  %395 = sbr.rel (%p393) target = $region78
                $region75: #{planning_decoder_pallas.4} parent=70 // loop_body
                  _
                $region76: #{planning_decoder_pallas.4} parent=70 // loop_footer
                  %s396 = sadd.s32 1, %s392
                $region77: #{planning_decoder_pallas.4} parent=70 // loop_footer_branch
                  %391 = sbr.rel target = $region73
                $region78: #{planning_decoder_pallas.4} parent=70 // loop_exit
                  _
                loop: start=0, step=1, limit=1
                $region79: #{planning_decoder_pallas.4} parent=70 // loop_pre_header
                  _
                $region80: #{planning_decoder_pallas.4} parent=70 // loop_header
                  %s401 = sphi 0, %s405
                  %p402 = scmp.ge.s32.totalorder %s401, 1
                  %s406 = sphi %s277, %s277
                  %s407 = sphi %s273, %s273
                $region81: #{planning_decoder_pallas.4} parent=70 // loop_header_branch
                  %404 = sbr.rel (%p402) target = $region85
                $region82: #{planning_decoder_pallas.4} parent=70 // loop_body
                  %v408 = vld [vmem:[%s406] sm:$0xf]
                  %409 = vst [vmem:[%s407] sm:$0xf] %v408
                  %v410 = vld [vmem:[%s406 + $0xc] sm:$0xf]
                  %411 = vst [vmem:[%s407 + $0x4] sm:$0xf] %v410
                  %v412 = vld [vmem:[%s406 + $0x18] sm:$0xf]
                  %413 = vst [vmem:[%s407 + $0x8] sm:$0xf] %v412
                  %v414 = vld [vmem:[%s406 + $0x24] sm:$0xf]
                  %415 = vst [vmem:[%s407 + $0xc] sm:$0xf] %v414
                  %v416 = vld [vmem:[%s406 + $0x30] sm:$0xf]
                  %417 = vst [vmem:[%s407 + $0x10] sm:$0xf] %v416
                  %v418 = vld [vmem:[%s406 + $0x3c] sm:$0xf]
                  %419 = vst [vmem:[%s407 + $0x14] sm:$0xf] %v418
                  %v420 = vld [vmem:[%s406 + $0x48] sm:$0xf]
                  %421 = vst [vmem:[%s407 + $0x18] sm:$0xf] %v420
                  %v422 = vld [vmem:[%s406 + $0x54] sm:$0xf]
                  %423 = vst [vmem:[%s407 + $0x1c] sm:$0xf] %v422
                  %v424 = vld [vmem:[%s406 + $0x60] sm:$0xf]
                  %425 = vst [vmem:[%s407 + $0x20] sm:$0xf] %v424
                  %v426 = vld [vmem:[%s406 + $0x6c] sm:$0xf]
                  %427 = vst [vmem:[%s407 + $0x24] sm:$0xf] %v426
                  %v428 = vld [vmem:[%s406 + $0x78] sm:$0xf]
                  %429 = vst [vmem:[%s407 + $0x28] sm:$0xf] %v428
                  %v430 = vld [vmem:[%s406 + $0x84] sm:$0xf]
                  %431 = vst [vmem:[%s407 + $0x2c] sm:$0xf] %v430
                  %v432 = vld [vmem:[%s406 + $0x90] sm:$0xf]
                  %433 = vst [vmem:[%s407 + $0x30] sm:$0xf] %v432
                  %v434 = vld [vmem:[%s406 + $0x9c] sm:$0xf]
                  %435 = vst [vmem:[%s407 + $0x34] sm:$0xf] %v434
                  %v436 = vld [vmem:[%s406 + $0xa8] sm:$0xf]
                  %437 = vst [vmem:[%s407 + $0x38] sm:$0xf] %v436
                  %v438 = vld [vmem:[%s406 + $0xb4] sm:$0xf]
                  %439 = vst [vmem:[%s407 + $0x3c] sm:$0xf] %v438
                  %v440 = vld [vmem:[%s406 + $0xc0] sm:$0xf]
                  %441 = vst [vmem:[%s407 + $0x40] sm:$0xf] %v440
                  %v442 = vld [vmem:[%s406 + $0xcc] sm:$0xf]
                  %443 = vst [vmem:[%s407 + $0x44] sm:$0xf] %v442
                  %v444 = vld [vmem:[%s406 + $0xd8] sm:$0xf]
                  %445 = vst [vmem:[%s407 + $0x48] sm:$0xf] %v444
                  %v446 = vld [vmem:[%s406 + $0xe4] sm:$0xf]
                  %447 = vst [vmem:[%s407 + $0x4c] sm:$0xf] %v446
                  %v448 = vld [vmem:[%s406 + $0xf0] sm:$0xf]
                  %449 = vst [vmem:[%s407 + $0x50] sm:$0xf] %v448
                  %v450 = vld [vmem:[%s406 + $0xfc] sm:$0xf]
                  %451 = vst [vmem:[%s407 + $0x54] sm:$0xf] %v450
                  %v452 = vld [vmem:[%s406 + $0x108] sm:$0xf]
                  %453 = vst [vmem:[%s407 + $0x58] sm:$0xf] %v452
                  %v454 = vld [vmem:[%s406 + $0x114] sm:$0xf]
                  %455 = vst [vmem:[%s407 + $0x5c] sm:$0xf] %v454
                  %v456 = vld [vmem:[%s406 + $0x120] sm:$0xf]
                  %457 = vst [vmem:[%s407 + $0x60] sm:$0xf] %v456
                  %v458 = vld [vmem:[%s406 + $0x12c] sm:$0xf]
                  %459 = vst [vmem:[%s407 + $0x64] sm:$0xf] %v458
                  %v460 = vld [vmem:[%s406 + $0x138] sm:$0xf]
                  %461 = vst [vmem:[%s407 + $0x68] sm:$0xf] %v460
                  %v462 = vld [vmem:[%s406 + $0x144] sm:$0xf]
                  %463 = vst [vmem:[%s407 + $0x6c] sm:$0xf] %v462
                  %v464 = vld [vmem:[%s406 + $0x150] sm:$0xf]
                  %465 = vst [vmem:[%s407 + $0x70] sm:$0xf] %v464
                  %v466 = vld [vmem:[%s406 + $0x15c] sm:$0xf]
                  %467 = vst [vmem:[%s407 + $0x74] sm:$0xf] %v466
                  %v468 = vld [vmem:[%s406 + $0x168] sm:$0xf]
                  %469 = vst [vmem:[%s407 + $0x78] sm:$0xf] %v468
                  %v470 = vld [vmem:[%s406 + $0x174] sm:$0xf]
                  %471 = vst [vmem:[%s407 + $0x7c] sm:$0xf] %v470
                  %v472 = vld [vmem:[%s406 + $0x180] sm:$0xf]
                  %473 = vst [vmem:[%s407 + $0x80] sm:$0xf] %v472
                  %v474 = vld [vmem:[%s406 + $0x18c] sm:$0xf]
                  %475 = vst [vmem:[%s407 + $0x84] sm:$0xf] %v474
                  %v476 = vld [vmem:[%s406 + $0x198] sm:$0xf]
                  %477 = vst [vmem:[%s407 + $0x88] sm:$0xf] %v476
                  %v478 = vld [vmem:[%s406 + $0x1a4] sm:$0xf]
                  %479 = vst [vmem:[%s407 + $0x8c] sm:$0xf] %v478
                  %v480 = vld [vmem:[%s406 + $0x1b0] sm:$0xf]
                  %481 = vst [vmem:[%s407 + $0x90] sm:$0xf] %v480
                  %v482 = vld [vmem:[%s406 + $0x1bc] sm:$0xf]
                  %483 = vst [vmem:[%s407 + $0x94] sm:$0xf] %v482
                  %v484 = vld [vmem:[%s406 + $0x1c8] sm:$0xf]
                  %485 = vst [vmem:[%s407 + $0x98] sm:$0xf] %v484
                  %v486 = vld [vmem:[%s406 + $0x1d4] sm:$0xf]
                  %487 = vst [vmem:[%s407 + $0x9c] sm:$0xf] %v486
                  %v488 = vld [vmem:[%s406 + $0x1e0] sm:$0xf]
                  %489 = vst [vmem:[%s407 + $0xa0] sm:$0xf] %v488
                  %v490 = vld [vmem:[%s406 + $0x1ec] sm:$0xf]
                  %491 = vst [vmem:[%s407 + $0xa4] sm:$0xf] %v490
                  %v492 = vld [vmem:[%s406 + $0x1f8] sm:$0xf]
                  %493 = vst [vmem:[%s407 + $0xa8] sm:$0xf] %v492
                  %v494 = vld [vmem:[%s406 + $0x204] sm:$0xf]
                  %495 = vst [vmem:[%s407 + $0xac] sm:$0xf] %v494
                  %v496 = vld [vmem:[%s406 + $0x210] sm:$0xf]
                  %497 = vst [vmem:[%s407 + $0xb0] sm:$0xf] %v496
                  %v498 = vld [vmem:[%s406 + $0x21c] sm:$0xf]
                  %499 = vst [vmem:[%s407 + $0xb4] sm:$0xf] %v498
                  %v500 = vld [vmem:[%s406 + $0x228] sm:$0xf]
                  %501 = vst [vmem:[%s407 + $0xb8] sm:$0xf] %v500
                  %v502 = vld [vmem:[%s406 + $0x234] sm:$0xf]
                  %503 = vst [vmem:[%s407 + $0xbc] sm:$0xf] %v502
                $region83: #{planning_decoder_pallas.4} parent=70 // loop_footer
                  %s405 = sadd.s32 1, %s401
                $region84: #{planning_decoder_pallas.4} parent=70 // loop_footer_branch
                  %400 = sbr.rel target = $region80
                $region85: #{planning_decoder_pallas.4} parent=70 // loop_exit
                  _
              $region71: #{planning_decoder_pallas.4} parent=55 // pred_fallthru
                _
            $region56: #{planning_decoder_pallas.4} parent=51 // pred_fallthru
              _
            // Predicated region
            $region57: #{planning_decoder_pallas.4} parent=51 // pred_check
              _
            $region58: #{planning_decoder_pallas.4} parent=51 // pred_check_branch
              %283 = sbr.rel (0) target = $region60
            $region59: #{planning_decoder_pallas.4} parent=51 // pred_region
              loop: start=0, step=1, limit=1
              $region61: #{planning_decoder_pallas.4} parent=59 // loop_pre_header
                _
              $region62: #{planning_decoder_pallas.4} parent=59 // loop_header
                %s286 = sphi 0, %s290
                %p287 = scmp.ge.s32.totalorder %s286, 1
                %s291 = sphi %s277, %s277
                %s292 = sphi %s273, %s273
              $region63: #{planning_decoder_pallas.4} parent=59 // loop_header_branch
                %289 = sbr.rel (%p287) target = $region67
              $region64: #{planning_decoder_pallas.4} parent=59 // loop_body
                %v293 = vld [vmem:[%s291] sm:$0xf]
                %294 = vst [vmem:[%s292] sm:$0xf] %v293
                %v295 = vld [vmem:[%s291 + $0xc] sm:$0xf]
                %296 = vst [vmem:[%s292 + $0x4] sm:$0xf] %v295
                %v297 = vld [vmem:[%s291 + $0x18] sm:$0xf]
                %298 = vst [vmem:[%s292 + $0x8] sm:$0xf] %v297
                %v299 = vld [vmem:[%s291 + $0x24] sm:$0xf]
                %300 = vst [vmem:[%s292 + $0xc] sm:$0xf] %v299
                %v301 = vld [vmem:[%s291 + $0x30] sm:$0xf]
                %302 = vst [vmem:[%s292 + $0x10] sm:$0xf] %v301
                %v303 = vld [vmem:[%s291 + $0x3c] sm:$0xf]
                %304 = vst [vmem:[%s292 + $0x14] sm:$0xf] %v303
                %v305 = vld [vmem:[%s291 + $0x48] sm:$0xf]
                %306 = vst [vmem:[%s292 + $0x18] sm:$0xf] %v305
                %v307 = vld [vmem:[%s291 + $0x54] sm:$0xf]
                %308 = vst [vmem:[%s292 + $0x1c] sm:$0xf] %v307
                %v309 = vld [vmem:[%s291 + $0x60] sm:$0xf]
                %310 = vst [vmem:[%s292 + $0x20] sm:$0xf] %v309
                %v311 = vld [vmem:[%s291 + $0x6c] sm:$0xf]
                %312 = vst [vmem:[%s292 + $0x24] sm:$0xf] %v311
                %v313 = vld [vmem:[%s291 + $0x78] sm:$0xf]
                %314 = vst [vmem:[%s292 + $0x28] sm:$0xf] %v313
                %v315 = vld [vmem:[%s291 + $0x84] sm:$0xf]
                %316 = vst [vmem:[%s292 + $0x2c] sm:$0xf] %v315
                %v317 = vld [vmem:[%s291 + $0x90] sm:$0xf]
                %318 = vst [vmem:[%s292 + $0x30] sm:$0xf] %v317
                %v319 = vld [vmem:[%s291 + $0x9c] sm:$0xf]
                %320 = vst [vmem:[%s292 + $0x34] sm:$0xf] %v319
                %v321 = vld [vmem:[%s291 + $0xa8] sm:$0xf]
                %322 = vst [vmem:[%s292 + $0x38] sm:$0xf] %v321
                %v323 = vld [vmem:[%s291 + $0xb4] sm:$0xf]
                %324 = vst [vmem:[%s292 + $0x3c] sm:$0xf] %v323
                %v325 = vld [vmem:[%s291 + $0xc0] sm:$0xf]
                %326 = vst [vmem:[%s292 + $0x40] sm:$0xf] %v325
                %v327 = vld [vmem:[%s291 + $0xcc] sm:$0xf]
                %328 = vst [vmem:[%s292 + $0x44] sm:$0xf] %v327
                %v329 = vld [vmem:[%s291 + $0xd8] sm:$0xf]
                %330 = vst [vmem:[%s292 + $0x48] sm:$0xf] %v329
                %v331 = vld [vmem:[%s291 + $0xe4] sm:$0xf]
                %332 = vst [vmem:[%s292 + $0x4c] sm:$0xf] %v331
                %v333 = vld [vmem:[%s291 + $0xf0] sm:$0xf]
                %334 = vst [vmem:[%s292 + $0x50] sm:$0xf] %v333
                %v335 = vld [vmem:[%s291 + $0xfc] sm:$0xf]
                %336 = vst [vmem:[%s292 + $0x54] sm:$0xf] %v335
                %v337 = vld [vmem:[%s291 + $0x108] sm:$0xf]
                %338 = vst [vmem:[%s292 + $0x58] sm:$0xf] %v337
                %v339 = vld [vmem:[%s291 + $0x114] sm:$0xf]
                %340 = vst [vmem:[%s292 + $0x5c] sm:$0xf] %v339
                %v341 = vld [vmem:[%s291 + $0x120] sm:$0xf]
                %342 = vst [vmem:[%s292 + $0x60] sm:$0xf] %v341
                %v343 = vld [vmem:[%s291 + $0x12c] sm:$0xf]
                %344 = vst [vmem:[%s292 + $0x64] sm:$0xf] %v343
                %v345 = vld [vmem:[%s291 + $0x138] sm:$0xf]
                %346 = vst [vmem:[%s292 + $0x68] sm:$0xf] %v345
                %v347 = vld [vmem:[%s291 + $0x144] sm:$0xf]
                %348 = vst [vmem:[%s292 + $0x6c] sm:$0xf] %v347
                %v349 = vld [vmem:[%s291 + $0x150] sm:$0xf]
                %350 = vst [vmem:[%s292 + $0x70] sm:$0xf] %v349
                %v351 = vld [vmem:[%s291 + $0x15c] sm:$0xf]
                %352 = vst [vmem:[%s292 + $0x74] sm:$0xf] %v351
                %v353 = vld [vmem:[%s291 + $0x168] sm:$0xf]
                %354 = vst [vmem:[%s292 + $0x78] sm:$0xf] %v353
                %v355 = vld [vmem:[%s291 + $0x174] sm:$0xf]
                %356 = vst [vmem:[%s292 + $0x7c] sm:$0xf] %v355
                %v357 = vld [vmem:[%s291 + $0x180] sm:$0xf]
                %358 = vst [vmem:[%s292 + $0x80] sm:$0xf] %v357
                %v359 = vld [vmem:[%s291 + $0x18c] sm:$0xf]
                %360 = vst [vmem:[%s292 + $0x84] sm:$0xf] %v359
                %v361 = vld [vmem:[%s291 + $0x198] sm:$0xf]
                %362 = vst [vmem:[%s292 + $0x88] sm:$0xf] %v361
                %v363 = vld [vmem:[%s291 + $0x1a4] sm:$0xf]
                %364 = vst [vmem:[%s292 + $0x8c] sm:$0xf] %v363
                %v365 = vld [vmem:[%s291 + $0x1b0] sm:$0xf]
                %366 = vst [vmem:[%s292 + $0x90] sm:$0xf] %v365
                %v367 = vld [vmem:[%s291 + $0x1bc] sm:$0xf]
                %368 = vst [vmem:[%s292 + $0x94] sm:$0xf] %v367
                %v369 = vld [vmem:[%s291 + $0x1c8] sm:$0xf]
                %370 = vst [vmem:[%s292 + $0x98] sm:$0xf] %v369
                %v371 = vld [vmem:[%s291 + $0x1d4] sm:$0xf]
                %372 = vst [vmem:[%s292 + $0x9c] sm:$0xf] %v371
                %v373 = vld [vmem:[%s291 + $0x1e0] sm:$0xf]
                %374 = vst [vmem:[%s292 + $0xa0] sm:$0xf] %v373
                %v375 = vld [vmem:[%s291 + $0x1ec] sm:$0xf]
                %376 = vst [vmem:[%s292 + $0xa4] sm:$0xf] %v375
                %v377 = vld [vmem:[%s291 + $0x1f8] sm:$0xf]
                %378 = vst [vmem:[%s292 + $0xa8] sm:$0xf] %v377
                %v379 = vld [vmem:[%s291 + $0x204] sm:$0xf]
                %380 = vst [vmem:[%s292 + $0xac] sm:$0xf] %v379
                %v381 = vld [vmem:[%s291 + $0x210] sm:$0xf]
                %382 = vst [vmem:[%s292 + $0xb0] sm:$0xf] %v381
                %v383 = vld [vmem:[%s291 + $0x21c] sm:$0xf]
                %384 = vst [vmem:[%s292 + $0xb4] sm:$0xf] %v383
                %v385 = vld [vmem:[%s291 + $0x228] sm:$0xf]
                %386 = vst [vmem:[%s292 + $0xb8] sm:$0xf] %v385
                %v387 = vld [vmem:[%s291 + $0x234] sm:$0xf]
                %388 = vst [vmem:[%s292 + $0xbc] sm:$0xf] %v387
              $region65: #{planning_decoder_pallas.4} parent=59 // loop_footer
                %s290 = sadd.s32 1, %s286
              $region66: #{planning_decoder_pallas.4} parent=59 // loop_footer_branch
                %285 = sbr.rel target = $region62
              $region67: #{planning_decoder_pallas.4} parent=59 // loop_exit
                _
            $region60: #{planning_decoder_pallas.4} parent=51 // pred_fallthru
              _
          $region52: #{planning_decoder_pallas.4} parent=47 // pred_fallthru
            _
          %504 = vnop
        $region48: #{planning_decoder_pallas.4} parent=43 // pred_fallthru
          _
      $region44: #{planning_decoder_pallas.4} parent=5 // pred_fallthru
        _
      %p505 = scmp.le.s32.totalorder 1, %s14
      %p506 = scmp.lt.s32.totalorder %s14, 7
      %p507 = pnand %p505, %p506
      %p508 = pneg %p507
      // Predicated region
      $region86: #{planning_decoder_pallas.4} parent=5 // pred_check
        _
      $region87: #{planning_decoder_pallas.4} parent=5 // pred_check_branch
        %510 = sbr.rel (%p507) target = $region89
      $region88: #{planning_decoder_pallas.4} parent=5 // pred_region
        %s511 = ssub.s32 %s14, 1
        %s512 = sand.u32 %s62, 1
        %s513 = sand.u32 %s62, 1
        %s514 = smul.addr %s513, 192
        %s515 = scalar_lea.vmem [#allocation5], %s514
        // Predicated region
        $region90: #{planning_decoder_pallas.4} parent=88 // pred_check
          %p516 = pneg %p75
        $region91: #{planning_decoder_pallas.4} parent=88 // pred_check_branch
          %518 = sbr.rel (%p516) target = $region93
        $region92: #{planning_decoder_pallas.4} parent=88 // pred_region
          _
        $region93: #{planning_decoder_pallas.4} parent=88 // pred_fallthru
          _
        %p519 = pneg %p47
        %p520 = pneg %p44
        %s521 = sand.u32 %s62, 1
        %s522 = sand.u32 %s62, 1
        %s523 = smul.addr %s522, 192
        %s524 = scalar_lea.vmem [#allocation5], %s523
        %p525 = pneg %p75
        %p526 = pneg %p72
        %p527 = pneg %p96
        %p528 = pneg %p93
        %p529 = pneg %p117
        %p530 = pneg %p114
        %p531 = pneg %p138
        %p532 = pneg %p135
        %p533 = pneg %p159
        %p534 = pneg %p156
        %p535 = pneg %p180
        %p536 = pneg %p177
        %p537 = pneg %p201
        %p538 = pneg %p198
        %p539 = pneg %p227
        %p540 = pneg %p224
        %p541 = scmp.lt.s32.totalorder %s23, 1
        %s542 = scalar_select %p541, %s23, 1
        %s543 = smul.addr %s542, 4
        %s544 = smul.addr %s543, 8
        %s545 = scalar_lea.vmem %s8, %s544
        %p546 = scmp.lt.s32.totalorder %s23, 1
        %s547 = scalar_select %p546, %s23, 1
        %s548 = smul.addr %s547, 4
        %s549 = smul.addr %s548, 8
        %s550 = scalar_lea.vmem %s8, %s549
        %p556 = scmp.eq.s32.totalorder %s24, 0
        // Predicated region
        $region94: #{planning_decoder_pallas.4} parent=88 // pred_check
          %p557 = pneg %p556
        $region95: #{planning_decoder_pallas.4} parent=88 // pred_check_branch
          %559 = sbr.rel (%p557) target = $region97
        $region96: #{planning_decoder_pallas.4} parent=88 // pred_region
          %vm560 = vcmask 64512
          %561 = vst.msk [vmem:[#allocation2] sm:$0xff] %vm560, -1e+30
          %vm562 = vcmask 57344
          %563 = vst.msk [vmem:[#allocation2 + $0x8] sm:$0x1] %vm562, -1e+30
          %564 = vst.msk [vmem:[#allocation3] sm:$0xff] %vm560, 0.0
          %565 = vst.msk [vmem:[#allocation3 + $0x8] sm:$0x1] %vm562, 0.0
          %566 = vst [vmem:[#allocation4] sm:$0xff] 0.0
          %567 = vst [vmem:[#allocation4 + $0x8] sm:$0xff] 0.0
          %568 = vst [vmem:[#allocation4 + $0x10] sm:$0x1] 0.0
          %569 = vst [vmem:[#allocation4 + $0x18] sm:$0x1] 0.0
        $region97: #{planning_decoder_pallas.4} parent=88 // pred_fallthru
          _
        %v570 = vld [vmem:[%s515] sm:$0xf]
        %v571 = vld [vmem:[%s515 + $0x4] sm:$0xf]
        %v572 = vld [vmem:[%s515 + $0x8] sm:$0xf]
        %v573 = vld [vmem:[%s515 + $0xc] sm:$0xf]
        %v574 = vld [vmem:[%s515 + $0x10] sm:$0xf]
        %v575 = vld [vmem:[%s515 + $0x14] sm:$0xf]
        %v576 = vld [vmem:[%s515 + $0x18] sm:$0xf]
        %v577 = vld [vmem:[%s515 + $0x1c] sm:$0xf]
        %v578 = vld [vmem:[%s515 + $0x20] sm:$0xf]
        %v579 = vld [vmem:[%s515 + $0x24] sm:$0xf]
        %v580 = vld [vmem:[%s515 + $0x28] sm:$0xf]
        %v581 = vld [vmem:[%s515 + $0x2c] sm:$0xf]
        %v582 = vld [vmem:[%s515 + $0x30] sm:$0xf]
        %v583 = vld [vmem:[%s515 + $0x34] sm:$0xf]
        %v584 = vld [vmem:[%s515 + $0x38] sm:$0xf]
        %v585 = vld [vmem:[%s515 + $0x3c] sm:$0xf]
        %v586 = vld [vmem:[%s515 + $0x40] sm:$0xf]
        %v587 = vld [vmem:[%s515 + $0x44] sm:$0xf]
        %v588 = vld [vmem:[%s515 + $0x48] sm:$0xf]
        %v589 = vld [vmem:[%s515 + $0x4c] sm:$0xf]
        %v590 = vld [vmem:[%s515 + $0x50] sm:$0xf]
        %v591 = vld [vmem:[%s515 + $0x54] sm:$0xf]
        %v592 = vld [vmem:[%s515 + $0x58] sm:$0xf]
        %v593 = vld [vmem:[%s515 + $0x5c] sm:$0xf]
        %v594 = vld [vmem:[%s515 + $0x60] sm:$0xf]
        %v595 = vld [vmem:[%s515 + $0x64] sm:$0xf]
        %v596 = vld [vmem:[%s515 + $0x68] sm:$0xf]
        %v597 = vld [vmem:[%s515 + $0x6c] sm:$0xf]
        %v598 = vld [vmem:[%s515 + $0x70] sm:$0xf]
        %v599 = vld [vmem:[%s515 + $0x74] sm:$0xf]
        %v600 = vld [vmem:[%s515 + $0x78] sm:$0xf]
        %v601 = vld [vmem:[%s515 + $0x7c] sm:$0xf]
        %v602 = vld [vmem:[%s515 + $0x80] sm:$0xf]
        %v603 = vld [vmem:[%s515 + $0x84] sm:$0xf]
        %v604 = vld [vmem:[%s515 + $0x88] sm:$0xf]
        %v605 = vld [vmem:[%s515 + $0x8c] sm:$0xf]
        %v606 = vld [vmem:[%s515 + $0x90] sm:$0xf]
        %v607 = vld [vmem:[%s515 + $0x94] sm:$0xf]
        %v608 = vld [vmem:[%s515 + $0x98] sm:$0xf]
        %v609 = vld [vmem:[%s515 + $0x9c] sm:$0xf]
        %v610 = vld [vmem:[%s515 + $0xa0] sm:$0xf]
        %v611 = vld [vmem:[%s515 + $0xa4] sm:$0xf]
        %v612 = vld [vmem:[%s515 + $0xa8] sm:$0xf]
        %v613 = vld [vmem:[%s515 + $0xac] sm:$0xf]
        %v614 = vld [vmem:[%s515 + $0xb0] sm:$0xf]
        %v615 = vld [vmem:[%s515 + $0xb4] sm:$0xf]
        %v616 = vld [vmem:[%s515 + $0xb8] sm:$0xf]
        %v617 = vld [vmem:[%s515 + $0xbc] sm:$0xf]
        %v618 = vld [vmem:[%s2] sm:$0xff]
        %v619 = vld [vmem:[%s2 + $0x8] sm:$0xf]
        %v620 = vld [vmem:[%s2 + $0xc] sm:$0xff]
        %v621 = vld [vmem:[%s2 + $0x14] sm:$0xf]
        %v622 = vld [vmem:[%s2 + $0x18] sm:$0xff]
        %v623 = vld [vmem:[%s2 + $0x20] sm:$0xf]
        %v624 = vld [vmem:[%s2 + $0x24] sm:$0xff]
        %v625 = vld [vmem:[%s2 + $0x2c] sm:$0xf]
        %v626 = vld [vmem:[%s2 + $0x30] sm:$0xff]
        %v627 = vld [vmem:[%s2 + $0x38] sm:$0xf]
        %v628 = vld [vmem:[%s2 + $0x3c] sm:$0xff]
        %v629 = vld [vmem:[%s2 + $0x44] sm:$0xf]
        %v630 = vld [vmem:[%s2 + $0x48] sm:$0xff]
        %v631 = vld [vmem:[%s2 + $0x50] sm:$0xf]
        %v632 = vld [vmem:[%s2 + $0x54] sm:$0xff]
        %v633 = vld [vmem:[%s2 + $0x5c] sm:$0xf]
        %v634 = vld [vmem:[%s2 + $0x60] sm:$0xff]
        %v635 = vld [vmem:[%s2 + $0x68] sm:$0xf]
        %v636 = vld [vmem:[%s2 + $0x6c] sm:$0xff]
        %v637 = vld [vmem:[%s2 + $0x74] sm:$0xf]
        %v638 = vld [vmem:[%s2 + $0x78] sm:$0xff]
        %v639 = vld [vmem:[%s2 + $0x80] sm:$0xf]
        %v640 = vld [vmem:[%s2 + $0x84] sm:$0xff]
        %v641 = vld [vmem:[%s2 + $0x8c] sm:$0xf]
        %v642 = vld [vmem:[%s2 + $0x90] sm:$0xff]
        %v643 = vld [vmem:[%s2 + $0x98] sm:$0xf]
        %v644 = vld [vmem:[%s2 + $0x9c] sm:$0xff]
        %v645 = vld [vmem:[%s2 + $0xa4] sm:$0xf]
        %v646 = vld [vmem:[%s2 + $0xa8] sm:$0xff]
        %v647 = vld [vmem:[%s2 + $0xb0] sm:$0xf]
        %v648 = vld [vmem:[%s2 + $0xb4] sm:$0xff]
        %v649 = vld [vmem:[%s2 + $0xbc] sm:$0xf]
        %v650 = vld [vmem:[%s2 + $0xc0] sm:$0xff]
        %v651 = vld [vmem:[%s2 + $0xc8] sm:$0xf]
        %v652 = vld [vmem:[%s2 + $0xcc] sm:$0xff]
        %v653 = vld [vmem:[%s2 + $0xd4] sm:$0xf]
        %v654 = vld [vmem:[%s2 + $0xd8] sm:$0xff]
        %v655 = vld [vmem:[%s2 + $0xe0] sm:$0xf]
        %v656 = vld [vmem:[%s2 + $0xe4] sm:$0xff]
        %v657 = vld [vmem:[%s2 + $0xec] sm:$0xf]
        %v658 = vld [vmem:[%s2 + $0xf0] sm:$0xff]
        %v659 = vld [vmem:[%s2 + $0xf8] sm:$0xf]
        %v660 = vld [vmem:[%s2 + $0xfc] sm:$0xff]
        %v661 = vld [vmem:[%s2 + $0x104] sm:$0xf]
        %v662 = vld [vmem:[%s2 + $0x108] sm:$0xff]
        %v663 = vld [vmem:[%s2 + $0x110] sm:$0xf]
        %v664 = vld [vmem:[%s2 + $0x114] sm:$0xff]
        %v665 = vld [vmem:[%s2 + $0x11c] sm:$0xf]
        %v666 = vld [vmem:[%s2 + $0x120] sm:$0xff]
        %v667 = vld [vmem:[%s2 + $0x128] sm:$0xf]
        %v668 = vld [vmem:[%s2 + $0x12c] sm:$0xff]
        %v669 = vld [vmem:[%s2 + $0x134] sm:$0xf]
        %v670 = vld [vmem:[%s2 + $0x138] sm:$0xff]
        %v671 = vld [vmem:[%s2 + $0x140] sm:$0xf]
        %v672 = vld [vmem:[%s2 + $0x144] sm:$0xff]
        %v673 = vld [vmem:[%s2 + $0x14c] sm:$0xf]
        %v674 = vld [vmem:[%s2 + $0x150] sm:$0xff]
        %v675 = vld [vmem:[%s2 + $0x158] sm:$0xf]
        %v676 = vld [vmem:[%s2 + $0x15c] sm:$0xff]
        %v677 = vld [vmem:[%s2 + $0x164] sm:$0xf]
        %v678 = vld [vmem:[%s2 + $0x168] sm:$0xff]
        %v679 = vld [vmem:[%s2 + $0x170] sm:$0xf]
        %v680 = vld [vmem:[%s2 + $0x174] sm:$0xff]
        %v681 = vld [vmem:[%s2 + $0x17c] sm:$0xf]
        %v682 = vld [vmem:[%s3] sm:$0xff]
        %v683 = vld [vmem:[%s3 + $0x8] sm:$0xff]
        %v684 = vld [vmem:[%s3 + $0x10] sm:$0xff]
        %v685 = vld [vmem:[%s3 + $0x18] sm:$0xff]
        %v686 = vld [vmem:[%s3 + $0x20] sm:$0xff]
        %v687 = vld [vmem:[%s3 + $0x28] sm:$0xff]
        %v688 = vld [vmem:[%s3 + $0x30] sm:$0xff]
        %v689 = vld [vmem:[%s3 + $0x38] sm:$0xff]
        %v690 = vld [vmem:[%s3 + $0x40] sm:$0xff]
        %v691 = vld [vmem:[%s3 + $0x48] sm:$0xff]
        %v692 = vld [vmem:[%s3 + $0x50] sm:$0xff]
        %v693 = vld [vmem:[%s3 + $0x58] sm:$0xff]
        %v694 = vld [vmem:[%s3 + $0x60] sm:$0xff]
        %v695 = vld [vmem:[%s3 + $0x68] sm:$0xff]
        %v696 = vld [vmem:[%s3 + $0x70] sm:$0xff]
        %v697 = vld [vmem:[%s3 + $0x78] sm:$0xff]
        %v698 = vld [vmem:[%s3 + $0x80] sm:$0xff]
        %v699 = vld [vmem:[%s3 + $0x88] sm:$0xff]
        %v700 = vld [vmem:[%s3 + $0x90] sm:$0xff]
        %v701 = vld [vmem:[%s3 + $0x98] sm:$0xff]
        %v702 = vld [vmem:[%s3 + $0xa0] sm:$0xff]
        %v703 = vld [vmem:[%s3 + $0xa8] sm:$0xff]
        %v704 = vld [vmem:[%s3 + $0xb0] sm:$0xff]
        %v705 = vld [vmem:[%s3 + $0xb8] sm:$0xff]
        %v706 = vld [vmem:[%s3 + $0xc0] sm:$0xff]
        %v707 = vld [vmem:[%s3 + $0xc8] sm:$0xff]
        %v708 = vld [vmem:[%s3 + $0xd0] sm:$0xff]
        %v709 = vld [vmem:[%s3 + $0xd8] sm:$0xff]
        %v710 = vld [vmem:[%s3 + $0xe0] sm:$0xff]
        %v711 = vld [vmem:[%s3 + $0xe8] sm:$0xff]
        %v712 = vld [vmem:[%s3 + $0xf0] sm:$0xff]
        %v713 = vld [vmem:[%s3 + $0xf8] sm:$0xff]
        %715 = vset.pattern.permute.xlu0 0
        %716 = vperm.xlu0 %715, %v682
        %v717 = vpop.permute.xlu0 %716
        %720 = vset.pattern.permute.xlu0 0
        %721 = vperm.xlu0 %720, %v683
        %v722 = vpop.permute.xlu0 %721
        %725 = vset.pattern.permute.xlu0 0
        %726 = vperm.xlu0 %725, %v684
        %v727 = vpop.permute.xlu0 %726
        %730 = vset.pattern.permute.xlu0 0
        %731 = vperm.xlu0 %730, %v685
        %v732 = vpop.permute.xlu0 %731
        %735 = vset.pattern.permute.xlu0 0
        %736 = vperm.xlu0 %735, %v686
        %v737 = vpop.permute.xlu0 %736
        %740 = vset.pattern.permute.xlu0 0
        %741 = vperm.xlu0 %740, %v687
        %v742 = vpop.permute.xlu0 %741
        %745 = vset.pattern.permute.xlu0 0
        %746 = vperm.xlu0 %745, %v688
        %v747 = vpop.permute.xlu0 %746
        %750 = vset.pattern.permute.xlu0 0
        %751 = vperm.xlu0 %750, %v689
        %v752 = vpop.permute.xlu0 %751
        %755 = vset.pattern.permute.xlu0 0
        %756 = vperm.xlu0 %755, %v690
        %v757 = vpop.permute.xlu0 %756
        %760 = vset.pattern.permute.xlu0 0
        %761 = vperm.xlu0 %760, %v691
        %v762 = vpop.permute.xlu0 %761
        %765 = vset.pattern.permute.xlu0 0
        %766 = vperm.xlu0 %765, %v692
        %v767 = vpop.permute.xlu0 %766
        %770 = vset.pattern.permute.xlu0 0
        %771 = vperm.xlu0 %770, %v693
        %v772 = vpop.permute.xlu0 %771
        %775 = vset.pattern.permute.xlu0 0
        %776 = vperm.xlu0 %775, %v694
        %v777 = vpop.permute.xlu0 %776
        %780 = vset.pattern.permute.xlu0 0
        %781 = vperm.xlu0 %780, %v695
        %v782 = vpop.permute.xlu0 %781
        %785 = vset.pattern.permute.xlu0 0
        %786 = vperm.xlu0 %785, %v696
        %v787 = vpop.permute.xlu0 %786
        %790 = vset.pattern.permute.xlu0 0
        %791 = vperm.xlu0 %790, %v697
        %v792 = vpop.permute.xlu0 %791
        %795 = vset.pattern.permute.xlu0 0
        %796 = vperm.xlu0 %795, %v698
        %v797 = vpop.permute.xlu0 %796
        %800 = vset.pattern.permute.xlu0 0
        %801 = vperm.xlu0 %800, %v699
        %v802 = vpop.permute.xlu0 %801
        %805 = vset.pattern.permute.xlu0 0
        %806 = vperm.xlu0 %805, %v700
        %v807 = vpop.permute.xlu0 %806
        %810 = vset.pattern.permute.xlu0 0
        %811 = vperm.xlu0 %810, %v701
        %v812 = vpop.permute.xlu0 %811
        %815 = vset.pattern.permute.xlu0 0
        %816 = vperm.xlu0 %815, %v702
        %v817 = vpop.permute.xlu0 %816
        %820 = vset.pattern.permute.xlu0 0
        %821 = vperm.xlu0 %820, %v703
        %v822 = vpop.permute.xlu0 %821
        %825 = vset.pattern.permute.xlu0 0
        %826 = vperm.xlu0 %825, %v704
        %v827 = vpop.permute.xlu0 %826
        %830 = vset.pattern.permute.xlu0 0
        %831 = vperm.xlu0 %830, %v705
        %v832 = vpop.permute.xlu0 %831
        %835 = vset.pattern.permute.xlu0 0
        %836 = vperm.xlu0 %835, %v706
        %v837 = vpop.permute.xlu0 %836
        %840 = vset.pattern.permute.xlu0 0
        %841 = vperm.xlu0 %840, %v707
        %v842 = vpop.permute.xlu0 %841
        %845 = vset.pattern.permute.xlu0 0
        %846 = vperm.xlu0 %845, %v708
        %v847 = vpop.permute.xlu0 %846
        %850 = vset.pattern.permute.xlu0 0
        %851 = vperm.xlu0 %850, %v709
        %v852 = vpop.permute.xlu0 %851
        %855 = vset.pattern.permute.xlu0 0
        %856 = vperm.xlu0 %855, %v710
        %v857 = vpop.permute.xlu0 %856
        %860 = vset.pattern.permute.xlu0 0
        %861 = vperm.xlu0 %860, %v711
        %v862 = vpop.permute.xlu0 %861
        %865 = vset.pattern.permute.xlu0 0
        %866 = vperm.xlu0 %865, %v712
        %v867 = vpop.permute.xlu0 %866
        %870 = vset.pattern.permute.xlu0 0
        %871 = vperm.xlu0 %870, %v713
        %v872 = vpop.permute.xlu0 %871
        %v938 = vunpack.c.l.b16 %v618
        %v939 = vunpack.c.h.b16 %v618
        %v940 = vunpack.c.l.b16 %v619
        %v941 = vunpack.c.l.b16 %v620
        %v942 = vunpack.c.h.b16 %v620
        %v943 = vunpack.c.l.b16 %v621
        %v944 = vunpack.c.l.b16 %v622
        %v945 = vunpack.c.h.b16 %v622
        %v946 = vunpack.c.l.b16 %v623
        %v947 = vunpack.c.l.b16 %v624
        %v948 = vunpack.c.h.b16 %v624
        %v949 = vunpack.c.l.b16 %v625
        %v950 = vunpack.c.l.b16 %v626
        %v951 = vunpack.c.h.b16 %v626
        %v952 = vunpack.c.l.b16 %v627
        %v953 = vunpack.c.l.b16 %v628
        %v954 = vunpack.c.h.b16 %v628
        %v955 = vunpack.c.l.b16 %v629
        %v956 = vunpack.c.l.b16 %v630
        %v957 = vunpack.c.h.b16 %v630
        %v958 = vunpack.c.l.b16 %v631
        %v959 = vunpack.c.l.b16 %v632
        %v960 = vunpack.c.h.b16 %v632
        %v961 = vunpack.c.l.b16 %v633
        %v962 = vunpack.c.l.b16 %v634
        %v963 = vunpack.c.h.b16 %v634
        %v964 = vunpack.c.l.b16 %v635
        %v965 = vunpack.c.l.b16 %v636
        %v966 = vunpack.c.h.b16 %v636
        %v967 = vunpack.c.l.b16 %v637
        %v968 = vunpack.c.l.b16 %v638
        %v969 = vunpack.c.h.b16 %v638
        %v970 = vunpack.c.l.b16 %v639
        %v971 = vunpack.c.l.b16 %v640
        %v972 = vunpack.c.h.b16 %v640
        %v973 = vunpack.c.l.b16 %v641
        %v974 = vunpack.c.l.b16 %v642
        %v975 = vunpack.c.h.b16 %v642
        %v976 = vunpack.c.l.b16 %v643
        %v977 = vunpack.c.l.b16 %v644
        %v978 = vunpack.c.h.b16 %v644
        %v979 = vunpack.c.l.b16 %v645
        %v980 = vunpack.c.l.b16 %v646
        %v981 = vunpack.c.h.b16 %v646
        %v982 = vunpack.c.l.b16 %v647
        %v983 = vunpack.c.l.b16 %v648
        %v984 = vunpack.c.h.b16 %v648
        %v985 = vunpack.c.l.b16 %v649
        %v986 = vunpack.c.l.b16 %v650
        %v987 = vunpack.c.h.b16 %v650
        %v988 = vunpack.c.l.b16 %v651
        %v989 = vunpack.c.l.b16 %v652
        %v990 = vunpack.c.h.b16 %v652
        %v991 = vunpack.c.l.b16 %v653
        %v992 = vunpack.c.l.b16 %v654
        %v993 = vunpack.c.h.b16 %v654
        %v994 = vunpack.c.l.b16 %v655
        %v995 = vunpack.c.l.b16 %v656
        %v996 = vunpack.c.h.b16 %v656
        %v997 = vunpack.c.l.b16 %v657
        %v998 = vunpack.c.l.b16 %v658
        %v999 = vunpack.c.h.b16 %v658
        %v1000 = vunpack.c.l.b16 %v659
        %v1001 = vunpack.c.l.b16 %v660
        %v1002 = vunpack.c.h.b16 %v660
        %v1003 = vunpack.c.l.b16 %v661
        %v1004 = vunpack.c.l.b16 %v662
        %v1005 = vunpack.c.h.b16 %v662
        %v1006 = vunpack.c.l.b16 %v663
        %v1007 = vunpack.c.l.b16 %v664
        %v1008 = vunpack.c.h.b16 %v664
        %v1009 = vunpack.c.l.b16 %v665
        %v1010 = vunpack.c.l.b16 %v666
        %v1011 = vunpack.c.h.b16 %v666
        %v1012 = vunpack.c.l.b16 %v667
        %v1013 = vunpack.c.l.b16 %v668
        %v1014 = vunpack.c.h.b16 %v668
        %v1015 = vunpack.c.l.b16 %v669
        %v1016 = vunpack.c.l.b16 %v670
        %v1017 = vunpack.c.h.b16 %v670
        %v1018 = vunpack.c.l.b16 %v671
        %v1019 = vunpack.c.l.b16 %v672
        %v1020 = vunpack.c.h.b16 %v672
        %v1021 = vunpack.c.l.b16 %v673
        %v1022 = vunpack.c.l.b16 %v674
        %v1023 = vunpack.c.h.b16 %v674
        %v1024 = vunpack.c.l.b16 %v675
        %v1025 = vunpack.c.l.b16 %v676
        %v1026 = vunpack.c.h.b16 %v676
        %v1027 = vunpack.c.l.b16 %v677
        %v1028 = vunpack.c.l.b16 %v678
        %v1029 = vunpack.c.h.b16 %v678
        %v1030 = vunpack.c.l.b16 %v679
        %v1031 = vunpack.c.l.b16 %v680
        %v1032 = vunpack.c.h.b16 %v680
        %v1033 = vunpack.c.l.b16 %v681
        %v1034 = vpack.c.b16 %v941, %v938
        %v1035 = vpack.c.b16 %v942, %v939
        %v1036 = vpack.c.b16 %v943, %v940
        %v1037 = vpack.c.b16 %v947, %v944
        %v1038 = vpack.c.b16 %v948, %v945
        %v1039 = vpack.c.b16 %v949, %v946
        %v1040 = vpack.c.b16 %v953, %v950
        %v1041 = vpack.c.b16 %v954, %v951
        %v1042 = vpack.c.b16 %v955, %v952
        %v1043 = vpack.c.b16 %v959, %v956
        %v1044 = vpack.c.b16 %v960, %v957
        %v1045 = vpack.c.b16 %v961, %v958
        %v1046 = vpack.c.b16 %v965, %v962
        %v1047 = vpack.c.b16 %v966, %v963
        %v1048 = vpack.c.b16 %v967, %v964
        %v1049 = vpack.c.b16 %v971, %v968
        %v1050 = vpack.c.b16 %v972, %v969
        %v1051 = vpack.c.b16 %v973, %v970
        %v1052 = vpack.c.b16 %v977, %v974
        %v1053 = vpack.c.b16 %v978, %v975
        %v1054 = vpack.c.b16 %v979, %v976
        %v1055 = vpack.c.b16 %v983, %v980
        %v1056 = vpack.c.b16 %v984, %v981
        %v1057 = vpack.c.b16 %v985, %v982
        %v1058 = vpack.c.b16 %v989, %v986
        %v1059 = vpack.c.b16 %v990, %v987
        %v1060 = vpack.c.b16 %v991, %v988
        %v1061 = vpack.c.b16 %v995, %v992
        %v1062 = vpack.c.b16 %v996, %v993
        %v1063 = vpack.c.b16 %v997, %v994
        %v1064 = vpack.c.b16 %v1001, %v998
        %v1065 = vpack.c.b16 %v1002, %v999
        %v1066 = vpack.c.b16 %v1003, %v1000
        %v1067 = vpack.c.b16 %v1007, %v1004
        %v1068 = vpack.c.b16 %v1008, %v1005
        %v1069 = vpack.c.b16 %v1009, %v1006
        %v1070 = vpack.c.b16 %v1013, %v1010
        %v1071 = vpack.c.b16 %v1014, %v1011
        %v1072 = vpack.c.b16 %v1015, %v1012
        %v1073 = vpack.c.b16 %v1019, %v1016
        %v1074 = vpack.c.b16 %v1020, %v1017
        %v1075 = vpack.c.b16 %v1021, %v1018
        %v1076 = vpack.c.b16 %v1025, %v1022
        %v1077 = vpack.c.b16 %v1026, %v1023
        %v1078 = vpack.c.b16 %v1027, %v1024
        %v1079 = vpack.c.b16 %v1031, %v1028
        %v1080 = vpack.c.b16 %v1032, %v1029
        %v1081 = vpack.c.b16 %v1033, %v1030
        %v1178 = vunpack.c.l.b16 %v570
        %v1179 = vunpack.c.l.b16 %v571
        %v1180 = vunpack.c.l.b16 %v572
        %v1181 = vunpack.c.l.b16 %v573
        %v1182 = vunpack.c.l.b16 %v574
        %v1183 = vunpack.c.l.b16 %v575
        %v1184 = vunpack.c.l.b16 %v576
        %v1185 = vunpack.c.l.b16 %v577
        %v1186 = vunpack.c.l.b16 %v578
        %v1187 = vunpack.c.l.b16 %v579
        %v1188 = vunpack.c.l.b16 %v580
        %v1189 = vunpack.c.l.b16 %v581
        %v1190 = vunpack.c.l.b16 %v582
        %v1191 = vunpack.c.l.b16 %v583
        %v1192 = vunpack.c.l.b16 %v584
        %v1193 = vunpack.c.l.b16 %v585
        %v1194 = vunpack.c.l.b16 %v586
        %v1195 = vunpack.c.l.b16 %v587
        %v1196 = vunpack.c.l.b16 %v588
        %v1197 = vunpack.c.l.b16 %v589
        %v1198 = vunpack.c.l.b16 %v590
        %v1199 = vunpack.c.l.b16 %v591
        %v1200 = vunpack.c.l.b16 %v592
        %v1201 = vunpack.c.l.b16 %v593
        %v1202 = vunpack.c.l.b16 %v594
        %v1203 = vunpack.c.l.b16 %v595
        %v1204 = vunpack.c.l.b16 %v596
        %v1205 = vunpack.c.l.b16 %v597
        %v1206 = vunpack.c.l.b16 %v598
        %v1207 = vunpack.c.l.b16 %v599
        %v1208 = vunpack.c.l.b16 %v600
        %v1209 = vunpack.c.l.b16 %v601
        %v1210 = vunpack.c.l.b16 %v602
        %v1211 = vunpack.c.l.b16 %v603
        %v1212 = vunpack.c.l.b16 %v604
        %v1213 = vunpack.c.l.b16 %v605
        %v1214 = vunpack.c.l.b16 %v606
        %v1215 = vunpack.c.l.b16 %v607
        %v1216 = vunpack.c.l.b16 %v608
        %v1217 = vunpack.c.l.b16 %v609
        %v1218 = vunpack.c.l.b16 %v610
        %v1219 = vunpack.c.l.b16 %v611
        %v1220 = vunpack.c.l.b16 %v612
        %v1221 = vunpack.c.l.b16 %v613
        %v1222 = vunpack.c.l.b16 %v614
        %v1223 = vunpack.c.l.b16 %v615
        %v1224 = vunpack.c.l.b16 %v616
        %v1225 = vunpack.c.l.b16 %v617
        %v1226 = vpack.c.b16 %v1179, %v1178
        %v1227 = vpack.c.b16 %v1181, %v1180
        %v1228 = vpack.c.b16 %v1183, %v1182
        %v1229 = vpack.c.b16 %v1185, %v1184
        %v1230 = vpack.c.b16 %v1187, %v1186
        %v1231 = vpack.c.b16 %v1189, %v1188
        %v1232 = vpack.c.b16 %v1191, %v1190
        %v1233 = vpack.c.b16 %v1193, %v1192
        %v1234 = vpack.c.b16 %v1195, %v1194
        %v1235 = vpack.c.b16 %v1197, %v1196
        %v1236 = vpack.c.b16 %v1199, %v1198
        %v1237 = vpack.c.b16 %v1201, %v1200
        %v1238 = vpack.c.b16 %v1203, %v1202
        %v1239 = vpack.c.b16 %v1205, %v1204
        %v1240 = vpack.c.b16 %v1207, %v1206
        %v1241 = vpack.c.b16 %v1209, %v1208
        %v1242 = vpack.c.b16 %v1211, %v1210
        %v1243 = vpack.c.b16 %v1213, %v1212
        %v1244 = vpack.c.b16 %v1215, %v1214
        %v1245 = vpack.c.b16 %v1217, %v1216
        %v1246 = vpack.c.b16 %v1219, %v1218
        %v1247 = vpack.c.b16 %v1221, %v1220
        %v1248 = vpack.c.b16 %v1223, %v1222
        %v1249 = vpack.c.b16 %v1225, %v1224
        %1274 = vmatprep.subr.bf16.mxu0 0
        %1275 = vmatpush1.bf16.msra.mxu0 %v1226
        %1276 = vmatprep.subr.bf16.mxu0 0
        %1277 = vmatpush1.bf16.msra.mxu0 %v1227
        %1278 = vmatprep.subr.bf16.mxu0 0
        %1279 = vmatpush1.bf16.msra.mxu0 %v1228
        %1280 = vmatprep.subr.bf16.mxu0 0
        %1281 = vmatpush1.bf16.msra.mxu0 %v1229
        %1282 = vmatprep.subr.bf16.mxu0 0
        %1283 = vmatpush1.bf16.msra.mxu0 %v1230
        %1284 = vmatprep.subr.bf16.mxu0 0
        %1285 = vmatpush1.bf16.msra.mxu0 %v1231
        %1286 = vmatprep.subr.bf16.mxu0 0
        %1287 = vmatpush1.bf16.msra.mxu0 %v1232
        %1288 = vmatprep.subr.bf16.mxu0 0
        %1289 = vmatpush1.bf16.msra.mxu0 %v1233
        %1290 = vmatprep.subr.bf16.mxu0 0
        %1291 = vmatpush1.bf16.msra.mxu0 %v1234
        %1292 = vmatprep.subr.bf16.mxu0 0
        %1293 = vmatpush1.bf16.msra.mxu0 %v1235
        %1294 = vmatprep.subr.bf16.mxu0 0
        %1295 = vmatpush1.bf16.msra.mxu0 %v1236
        %1296 = vmatprep.subr.bf16.mxu0 0
        %1297 = vmatpush1.bf16.msra.mxu0 %v1237
        %1298 = vmatprep.subr.bf16.mxu0 0
        %1299 = vmatpush1.bf16.msra.mxu0 %v1238
        %1300 = vmatprep.subr.bf16.mxu0 0
        %1301 = vmatpush1.bf16.msra.mxu0 %v1239
        %1302 = vmatprep.subr.bf16.mxu0 0
        %1303 = vmatpush1.bf16.msra.mxu0 %v1240
        %1304 = vmatprep.subr.bf16.mxu0 0
        %1305 = vmatpush1.bf16.msra.mxu0 %v1241
        %1306 = vmatprep.mubr.bf16.mxu0 %v1035
        %1307 = vmatmul.mubr.bf16.gmra.mrb[0].mxu0 %v1034
        %v1308 = vpop.f32.mrb[0].mxu0
        %v1309 = vadd.f32 %v717, %v1308
        %v1310 = vpop.f32.mrb[0].mxu0
        %v1311 = vpop.f32.mrb[0].mxu0
        %v1312 = vadd.f32 %v722, %v1311
        %v1313 = vpop.f32.mrb[0].mxu0
        %1314 = vmatprep.mubr.bf16.mxu0 %v1038
        %1315 = vmatmul.mubr.bf16.gmra.mrb[0].mxu0 %v1037
        %v1316 = vpop.f32.mrb[0].mxu0
        %v1317 = vadd.f32 %v727, %v1316
        %v1318 = vpop.f32.mrb[0].mxu0
        %v1319 = vpop.f32.mrb[0].mxu0
        %v1320 = vadd.f32 %v732, %v1319
        %v1321 = vpop.f32.mrb[0].mxu0
        %1322 = vmatprep.mubr.bf16.mxu0 %v1041
        %1323 = vmatmul.mubr.bf16.gmra.mrb[0].mxu0 %v1040
        %v1324 = vpop.f32.mrb[0].mxu0
        %v1325 = vadd.f32 %v737, %v1324
        %v1326 = vpop.f32.mrb[0].mxu0
        %v1327 = vpop.f32.mrb[0].mxu0
        %v1328 = vadd.f32 %v742, %v1327
        %v1329 = vpop.f32.mrb[0].mxu0
        %1330 = vmatprep.mubr.bf16.mxu0 %v1044
        %1331 = vmatmul.mubr.bf16.gmra.mrb[0].mxu0 %v1043
        %v1332 = vpop.f32.mrb[0].mxu0
        %v1333 = vadd.f32 %v747, %v1332
        %v1334 = vpop.f32.mrb[0].mxu0
        %v1335 = vpop.f32.mrb[0].mxu0
        %v1336 = vadd.f32 %v752, %v1335
        %v1337 = vpop.f32.mrb[0].mxu0
        %1338 = vmatprep.mubr.bf16.mxu0 %v1047
        %1339 = vmatmul.mubr.bf16.gmra.mrb[0].mxu0 %v1046
        %v1340 = vpop.f32.mrb[0].mxu0
        %v1341 = vadd.f32 %v757, %v1340
        %v1342 = vpop.f32.mrb[0].mxu0
        %v1343 = vpop.f32.mrb[0].mxu0
        %v1344 = vadd.f32 %v762, %v1343
        %v1345 = vpop.f32.mrb[0].mxu0
        %1346 = vmatprep.mubr.bf16.mxu0 %v1050
        %1347 = vmatmul.mubr.bf16.gmra.mrb[0].mxu0 %v1049
        %v1348 = vpop.f32.mrb[0].mxu0
        %v1349 = vadd.f32 %v767, %v1348
        %v1350 = vpop.f32.mrb[0].mxu0
        %v1351 = vpop.f32.mrb[0].mxu0
        %v1352 = vadd.f32 %v772, %v1351
        %v1353 = vpop.f32.mrb[0].mxu0
        %1354 = vmatprep.mubr.bf16.mxu0 %v1053
        %1355 = vmatmul.mubr.bf16.gmra.mrb[0].mxu0 %v1052
        %v1356 = vpop.f32.mrb[0].mxu0
        %v1357 = vadd.f32 %v777, %v1356
        %v1358 = vpop.f32.mrb[0].mxu0
        %v1359 = vpop.f32.mrb[0].mxu0
        %v1360 = vadd.f32 %v782, %v1359
        %v1361 = vpop.f32.mrb[0].mxu0
        %1362 = vmatprep.mubr.bf16.mxu0 %v1056
        %1363 = vmatmul.mubr.bf16.gmra.mrb[0].mxu0 %v1055
        %v1364 = vpop.f32.mrb[0].mxu0
        %v1365 = vadd.f32 %v787, %v1364
        %v1366 = vpop.f32.mrb[0].mxu0
        %v1367 = vpop.f32.mrb[0].mxu0
        %v1368 = vadd.f32 %v792, %v1367
        %v1369 = vpop.f32.mrb[0].mxu0
        %1370 = vmatprep.mubr.bf16.mxu0 %v1059
        %1371 = vmatmul.mubr.bf16.gmra.mrb[0].mxu0 %v1058
        %v1372 = vpop.f32.mrb[0].mxu0
        %v1373 = vadd.f32 %v797, %v1372
        %v1374 = vpop.f32.mrb[0].mxu0
        %v1375 = vpop.f32.mrb[0].mxu0
        %v1376 = vadd.f32 %v802, %v1375
        %v1377 = vpop.f32.mrb[0].mxu0
        %1378 = vmatprep.mubr.bf16.mxu0 %v1062
        %1379 = vmatmul.mubr.bf16.gmra.mrb[0].mxu0 %v1061
        %v1380 = vpop.f32.mrb[0].mxu0
        %v1381 = vadd.f32 %v807, %v1380
        %v1382 = vpop.f32.mrb[0].mxu0
        %v1383 = vpop.f32.mrb[0].mxu0
        %v1384 = vadd.f32 %v812, %v1383
        %v1385 = vpop.f32.mrb[0].mxu0
        %1386 = vmatprep.mubr.bf16.mxu0 %v1065
        %1387 = vmatmul.mubr.bf16.gmra.mrb[0].mxu0 %v1064
        %v1388 = vpop.f32.mrb[0].mxu0
        %v1389 = vadd.f32 %v817, %v1388
        %v1390 = vpop.f32.mrb[0].mxu0
        %v1391 = vpop.f32.mrb[0].mxu0
        %v1392 = vadd.f32 %v822, %v1391
        %v1393 = vpop.f32.mrb[0].mxu0
        %1394 = vmatprep.mubr.bf16.mxu0 %v1068
        %1395 = vmatmul.mubr.bf16.gmra.mrb[0].mxu0 %v1067
        %v1396 = vpop.f32.mrb[0].mxu0
        %v1397 = vadd.f32 %v827, %v1396
        %v1398 = vpop.f32.mrb[0].mxu0
        %v1399 = vpop.f32.mrb[0].mxu0
        %v1400 = vadd.f32 %v832, %v1399
        %v1401 = vpop.f32.mrb[0].mxu0
        %1402 = vmatprep.mubr.bf16.mxu0 %v1071
        %1403 = vmatmul.mubr.bf16.gmra.mrb[0].mxu0 %v1070
        %v1404 = vpop.f32.mrb[0].mxu0
        %v1405 = vadd.f32 %v837, %v1404
        %v1406 = vpop.f32.mrb[0].mxu0
        %v1407 = vpop.f32.mrb[0].mxu0
        %v1408 = vadd.f32 %v842, %v1407
        %v1409 = vpop.f32.mrb[0].mxu0
        %1410 = vmatprep.mubr.bf16.mxu0 %v1074
        %1411 = vmatmul.mubr.bf16.gmra.mrb[0].mxu0 %v1073
        %v1412 = vpop.f32.mrb[0].mxu0
        %v1413 = vadd.f32 %v847, %v1412
        %v1414 = vpop.f32.mrb[0].mxu0
        %v1415 = vpop.f32.mrb[0].mxu0
        %v1416 = vadd.f32 %v852, %v1415
        %v1417 = vpop.f32.mrb[0].mxu0
        %1418 = vmatprep.mubr.bf16.mxu0 %v1077
        %1419 = vmatmul.mubr.bf16.gmra.mrb[0].mxu0 %v1076
        %v1420 = vpop.f32.mrb[0].mxu0
        %v1421 = vadd.f32 %v857, %v1420
        %v1422 = vpop.f32.mrb[0].mxu0
        %v1423 = vpop.f32.mrb[0].mxu0
        %v1424 = vadd.f32 %v862, %v1423
        %v1425 = vpop.f32.mrb[0].mxu0
        %1426 = vmatprep.mubr.bf16.mxu0 %v1080
        %1427 = vmatmul.mubr.bf16.gmra.mrb[0].mxu0 %v1079
        %v1428 = vpop.f32.mrb[0].mxu0
        %v1429 = vadd.f32 %v867, %v1428
        %v1430 = vpop.f32.mrb[0].mxu0
        %v1431 = vpop.f32.mrb[0].mxu0
        %v1432 = vadd.f32 %v872, %v1431
        %v1433 = vpop.f32.mrb[0].mxu0
        %1434 = vdwg.mxu0
        %1435 = vmatprep.subr.bf16.mxu0 0
        %1436 = vmatpush1.bf16.msra.mxu0 %v1242
        %1437 = vmatprep.subr.bf16.mxu0 0
        %1438 = vmatpush1.bf16.msra.mxu0 %v1243
        %1439 = vmatprep.subr.bf16.mxu0 0
        %1440 = vmatpush1.bf16.msra.mxu0 %v1244
        %1441 = vmatprep.subr.bf16.mxu0 0
        %1442 = vmatpush1.bf16.msra.mxu0 %v1245
        %1443 = vmatprep.subr.bf16.mxu0 0
        %1444 = vmatpush1.bf16.msra.mxu0 %v1246
        %1445 = vmatprep.subr.bf16.mxu0 0
        %1446 = vmatpush1.bf16.msra.mxu0 %v1247
        %1447 = vmatprep.subr.bf16.mxu0 0
        %1448 = vmatpush1.bf16.msra.mxu0 %v1248
        %1449 = vmatprep.subr.bf16.mxu0 0
        %1450 = vmatpush1.bf16.msra.mxu0 %v1249
        %1451 = vmatprep.subr.bf16.mxu0 0
        %1452 = vmatpush1.bf16.msra.mxu0 0
        %1453 = vmatprep.subr.bf16.mxu0 0
        %1454 = vmatpush1.bf16.msra.mxu0 0
        %1455 = vmatprep.subr.bf16.mxu0 0
        %1456 = vmatpush1.bf16.msra.mxu0 0
        %1457 = vmatprep.subr.bf16.mxu0 0
        %1458 = vmatpush1.bf16.msra.mxu0 0
        %1459 = vmatprep.subr.bf16.mxu0 0
        %1460 = vmatpush1.bf16.msra.mxu0 0
        %1461 = vmatprep.subr.bf16.mxu0 0
        %1462 = vmatpush1.bf16.msra.mxu0 0
        %1463 = vmatprep.subr.bf16.mxu0 0
        %1464 = vmatpush1.bf16.msra.mxu0 0
        %1465 = vmatprep.subr.bf16.mxu0 0
        %1466 = vmatpush1.bf16.msra.mxu0 0
        %1467 = vmatprep.mubr.bf16.mxu0 0
        %1468 = vmatmul.mubr.bf16.gmra.mrb[0].mxu0 %v1036
        %v1469 = vpop.f32.mrb[0].mxu0
        %v1470 = vadd.f32 %v1309, %v1469
        %v1471 = vpop.f32.mrb[0].mxu0
        %v1472 = vpop.f32.mrb[0].mxu0
        %v1473 = vadd.f32 %v1312, %v1472
        %v1474 = vpop.f32.mrb[0].mxu0
        %1475 = vmatprep.mubr.bf16.mxu0 0
        %1476 = vmatmul.mubr.bf16.gmra.mrb[0].mxu0 %v1039
        %v1477 = vpop.f32.mrb[0].mxu0
        %v1478 = vadd.f32 %v1317, %v1477
        %v1479 = vpop.f32.mrb[0].mxu0
        %v1480 = vpop.f32.mrb[0].mxu0
        %v1481 = vadd.f32 %v1320, %v1480
        %v1482 = vpop.f32.mrb[0].mxu0
        %1483 = vmatprep.mubr.bf16.mxu0 0
        %1484 = vmatmul.mubr.bf16.gmra.mrb[0].mxu0 %v1042
        %v1485 = vpop.f32.mrb[0].mxu0
        %v1486 = vadd.f32 %v1325, %v1485
        %v1487 = vpop.f32.mrb[0].mxu0
        %v1488 = vpop.f32.mrb[0].mxu0
        %v1489 = vadd.f32 %v1328, %v1488
        %v1490 = vpop.f32.mrb[0].mxu0
        %1491 = vmatprep.mubr.bf16.mxu0 0
        %1492 = vmatmul.mubr.bf16.gmra.mrb[0].mxu0 %v1045
        %v1493 = vpop.f32.mrb[0].mxu0
        %v1494 = vadd.f32 %v1333, %v1493
        %v1495 = vpop.f32.mrb[0].mxu0
        %v1496 = vpop.f32.mrb[0].mxu0
        %v1497 = vadd.f32 %v1336, %v1496
        %v1498 = vpop.f32.mrb[0].mxu0
        %1499 = vmatprep.mubr.bf16.mxu0 0
        %1500 = vmatmul.mubr.bf16.gmra.mrb[0].mxu0 %v1048
        %v1501 = vpop.f32.mrb[0].mxu0
        %v1502 = vadd.f32 %v1341, %v1501
        %v1503 = vpop.f32.mrb[0].mxu0
        %v1504 = vpop.f32.mrb[0].mxu0
        %v1505 = vadd.f32 %v1344, %v1504
        %v1506 = vpop.f32.mrb[0].mxu0
        %1507 = vmatprep.mubr.bf16.mxu0 0
        %1508 = vmatmul.mubr.bf16.gmra.mrb[0].mxu0 %v1051
        %v1509 = vpop.f32.mrb[0].mxu0
        %v1510 = vadd.f32 %v1349, %v1509
        %v1511 = vpop.f32.mrb[0].mxu0
        %v1512 = vpop.f32.mrb[0].mxu0
        %v1513 = vadd.f32 %v1352, %v1512
        %v1514 = vpop.f32.mrb[0].mxu0
        %1515 = vmatprep.mubr.bf16.mxu0 0
        %1516 = vmatmul.mubr.bf16.gmra.mrb[0].mxu0 %v1054
        %v1517 = vpop.f32.mrb[0].mxu0
        %v1518 = vadd.f32 %v1357, %v1517
        %v1519 = vpop.f32.mrb[0].mxu0
        %v1520 = vpop.f32.mrb[0].mxu0
        %v1521 = vadd.f32 %v1360, %v1520
        %v1522 = vpop.f32.mrb[0].mxu0
        %1523 = vmatprep.mubr.bf16.mxu0 0
        %1524 = vmatmul.mubr.bf16.gmra.mrb[0].mxu0 %v1057
        %v1525 = vpop.f32.mrb[0].mxu0
        %v1526 = vadd.f32 %v1365, %v1525
        %v1527 = vpop.f32.mrb[0].mxu0
        %v1528 = vpop.f32.mrb[0].mxu0
        %v1529 = vadd.f32 %v1368, %v1528
        %v1530 = vpop.f32.mrb[0].mxu0
        %1531 = vmatprep.mubr.bf16.mxu0 0
        %1532 = vmatmul.mubr.bf16.gmra.mrb[0].mxu0 %v1060
        %v1533 = vpop.f32.mrb[0].mxu0
        %v1534 = vadd.f32 %v1373, %v1533
        %v1535 = vpop.f32.mrb[0].mxu0
        %v1536 = vpop.f32.mrb[0].mxu0
        %v1537 = vadd.f32 %v1376, %v1536
        %v1538 = vpop.f32.mrb[0].mxu0
        %1539 = vmatprep.mubr.bf16.mxu0 0
        %1540 = vmatmul.mubr.bf16.gmra.mrb[0].mxu0 %v1063
        %v1541 = vpop.f32.mrb[0].mxu0
        %v1542 = vadd.f32 %v1381, %v1541
        %v1543 = vpop.f32.mrb[0].mxu0
        %v1544 = vpop.f32.mrb[0].mxu0
        %v1545 = vadd.f32 %v1384, %v1544
        %v1546 = vpop.f32.mrb[0].mxu0
        %1547 = vmatprep.mubr.bf16.mxu0 0
        %1548 = vmatmul.mubr.bf16.gmra.mrb[0].mxu0 %v1066
        %v1549 = vpop.f32.mrb[0].mxu0
        %v1550 = vadd.f32 %v1389, %v1549
        %v1551 = vpop.f32.mrb[0].mxu0
        %v1552 = vpop.f32.mrb[0].mxu0
        %v1553 = vadd.f32 %v1392, %v1552
        %v1554 = vpop.f32.mrb[0].mxu0
        %1555 = vmatprep.mubr.bf16.mxu0 0
        %1556 = vmatmul.mubr.bf16.gmra.mrb[0].mxu0 %v1069
        %v1557 = vpop.f32.mrb[0].mxu0
        %v1558 = vadd.f32 %v1397, %v1557
        %v1559 = vpop.f32.mrb[0].mxu0
        %v1560 = vpop.f32.mrb[0].mxu0
        %v1561 = vadd.f32 %v1400, %v1560
        %v1562 = vpop.f32.mrb[0].mxu0
        %1563 = vmatprep.mubr.bf16.mxu0 0
        %1564 = vmatmul.mubr.bf16.gmra.mrb[0].mxu0 %v1072
        %v1565 = vpop.f32.mrb[0].mxu0
        %v1566 = vadd.f32 %v1405, %v1565
        %v1567 = vpop.f32.mrb[0].mxu0
        %v1568 = vpop.f32.mrb[0].mxu0
        %v1569 = vadd.f32 %v1408, %v1568
        %v1570 = vpop.f32.mrb[0].mxu0
        %1571 = vmatprep.mubr.bf16.mxu0 0
        %1572 = vmatmul.mubr.bf16.gmra.mrb[0].mxu0 %v1075
        %v1573 = vpop.f32.mrb[0].mxu0
        %v1574 = vadd.f32 %v1413, %v1573
        %v1575 = vpop.f32.mrb[0].mxu0
        %v1576 = vpop.f32.mrb[0].mxu0
        %v1577 = vadd.f32 %v1416, %v1576
        %v1578 = vpop.f32.mrb[0].mxu0
        %1579 = vmatprep.mubr.bf16.mxu0 0
        %1580 = vmatmul.mubr.bf16.gmra.mrb[0].mxu0 %v1078
        %v1581 = vpop.f32.mrb[0].mxu0
        %v1582 = vadd.f32 %v1421, %v1581
        %v1583 = vpop.f32.mrb[0].mxu0
        %v1584 = vpop.f32.mrb[0].mxu0
        %v1585 = vadd.f32 %v1424, %v1584
        %v1586 = vpop.f32.mrb[0].mxu0
        %1587 = vmatprep.mubr.bf16.mxu0 0
        %1588 = vmatmul.mubr.bf16.gmra.mrb[0].mxu0 %v1081
        %v1589 = vpop.f32.mrb[0].mxu0
        %v1590 = vadd.f32 %v1429, %v1589
        %v1591 = vpop.f32.mrb[0].mxu0
        %v1592 = vpop.f32.mrb[0].mxu0
        %v1593 = vadd.f32 %v1432, %v1592
        %v1594 = vpop.f32.mrb[0].mxu0
        %1595 = vdwg.mxu0
        %v1596 = vpack.c.bf16 %v1473, %v1470
        %v1597 = vpack.c.bf16 %v1481, %v1478
        %v1598 = vpack.c.bf16 %v1489, %v1486
        %v1599 = vpack.c.bf16 %v1497, %v1494
        %v1600 = vpack.c.bf16 %v1505, %v1502
        %v1601 = vpack.c.bf16 %v1513, %v1510
        %v1602 = vpack.c.bf16 %v1521, %v1518
        %v1603 = vpack.c.bf16 %v1529, %v1526
        %v1604 = vpack.c.bf16 %v1537, %v1534
        %v1605 = vpack.c.bf16 %v1545, %v1542
        %v1606 = vpack.c.bf16 %v1553, %v1550
        %v1607 = vpack.c.bf16 %v1561, %v1558
        %v1608 = vpack.c.bf16 %v1569, %v1566
        %v1609 = vpack.c.bf16 %v1577, %v1574
        %v1610 = vpack.c.bf16 %v1585, %v1582
        %v1611 = vpack.c.bf16 %v1593, %v1590
        %v1612 = vmul.bf16 %v1596, 1056980736
        %v1613 = vmul.bf16 %v1597, 1056980736
        %v1614 = vmul.bf16 %v1598, 1056980736
        %v1615 = vmul.bf16 %v1599, 1056980736
        %v1616 = vmul.bf16 %v1600, 1056980736
        %v1617 = vmul.bf16 %v1601, 1056980736
        %v1618 = vmul.bf16 %v1602, 1056980736
        %v1619 = vmul.bf16 %v1603, 1056980736
        %v1620 = vmul.bf16 %v1604, 1056980736
        %v1621 = vmul.bf16 %v1605, 1056980736
        %v1622 = vmul.bf16 %v1606, 1056980736
        %v1623 = vmul.bf16 %v1607, 1056980736
        %v1624 = vmul.bf16 %v1608, 1056980736
        %v1625 = vmul.bf16 %v1609, 1056980736
        %v1626 = vmul.bf16 %v1610, 1056980736
        %v1627 = vmul.bf16 %v1611, 1056980736
        %v1628 = vmul.bf16 %v1596, 1027030327
        %v1629 = vmul.bf16 %v1597, 1027030327
        %v1630 = vmul.bf16 %v1598, 1027030327
        %v1631 = vmul.bf16 %v1599, 1027030327
        %v1632 = vmul.bf16 %v1600, 1027030327
        %v1633 = vmul.bf16 %v1601, 1027030327
        %v1634 = vmul.bf16 %v1602, 1027030327
        %v1635 = vmul.bf16 %v1603, 1027030327
        %v1636 = vmul.bf16 %v1604, 1027030327
        %v1637 = vmul.bf16 %v1605, 1027030327
        %v1638 = vmul.bf16 %v1606, 1027030327
        %v1639 = vmul.bf16 %v1607, 1027030327
        %v1640 = vmul.bf16 %v1608, 1027030327
        %v1641 = vmul.bf16 %v1609, 1027030327
        %v1642 = vmul.bf16 %v1610, 1027030327
        %v1643 = vmul.bf16 %v1611, 1027030327
        %v1644 = vmul.bf16 %v1628, %v1596
        %v1645 = vmul.bf16 %v1629, %v1597
        %v1646 = vmul.bf16 %v1630, %v1598
        %v1647 = vmul.bf16 %v1631, %v1599
        %v1648 = vmul.bf16 %v1632, %v1600
        %v1649 = vmul.bf16 %v1633, %v1601
        %v1650 = vmul.bf16 %v1634, %v1602
        %v1651 = vmul.bf16 %v1635, %v1603
        %v1652 = vmul.bf16 %v1636, %v1604
        %v1653 = vmul.bf16 %v1637, %v1605
        %v1654 = vmul.bf16 %v1638, %v1606
        %v1655 = vmul.bf16 %v1639, %v1607
        %v1656 = vmul.bf16 %v1640, %v1608
        %v1657 = vmul.bf16 %v1641, %v1609
        %v1658 = vmul.bf16 %v1642, %v1610
        %v1659 = vmul.bf16 %v1643, %v1611
        %v1660 = vmul.bf16 %v1644, %v1596
        %v1661 = vmul.bf16 %v1645, %v1597
        %v1662 = vmul.bf16 %v1646, %v1598
        %v1663 = vmul.bf16 %v1647, %v1599
        %v1664 = vmul.bf16 %v1648, %v1600
        %v1665 = vmul.bf16 %v1649, %v1601
        %v1666 = vmul.bf16 %v1650, %v1602
        %v1667 = vmul.bf16 %v1651, %v1603
        %v1668 = vmul.bf16 %v1652, %v1604
        %v1669 = vmul.bf16 %v1653, %v1605
        %v1670 = vmul.bf16 %v1654, %v1606
        %v1671 = vmul.bf16 %v1655, %v1607
        %v1672 = vmul.bf16 %v1656, %v1608
        %v1673 = vmul.bf16 %v1657, %v1609
        %v1674 = vmul.bf16 %v1658, %v1610
        %v1675 = vmul.bf16 %v1659, %v1611
        %v1676 = vadd.bf16 %v1596, %v1660
        %v1677 = vadd.bf16 %v1597, %v1661
        %v1678 = vadd.bf16 %v1598, %v1662
        %v1679 = vadd.bf16 %v1599, %v1663
        %v1680 = vadd.bf16 %v1600, %v1664
        %v1681 = vadd.bf16 %v1601, %v1665
        %v1682 = vadd.bf16 %v1602, %v1666
        %v1683 = vadd.bf16 %v1603, %v1667
        %v1684 = vadd.bf16 %v1604, %v1668
        %v1685 = vadd.bf16 %v1605, %v1669
        %v1686 = vadd.bf16 %v1606, %v1670
        %v1687 = vadd.bf16 %v1607, %v1671
        %v1688 = vadd.bf16 %v1608, %v1672
        %v1689 = vadd.bf16 %v1609, %v1673
        %v1690 = vadd.bf16 %v1610, %v1674
        %v1691 = vadd.bf16 %v1611, %v1675
        %v1692 = vmul.bf16 %v1676, 1061961548
        %v1693 = vmul.bf16 %v1677, 1061961548
        %v1694 = vmul.bf16 %v1678, 1061961548
        %v1695 = vmul.bf16 %v1679, 1061961548
        %v1696 = vmul.bf16 %v1680, 1061961548
        %v1697 = vmul.bf16 %v1681, 1061961548
        %v1698 = vmul.bf16 %v1682, 1061961548
        %v1699 = vmul.bf16 %v1683, 1061961548
        %v1700 = vmul.bf16 %v1684, 1061961548
        %v1701 = vmul.bf16 %v1685, 1061961548
        %v1702 = vmul.bf16 %v1686, 1061961548
        %v1703 = vmul.bf16 %v1687, 1061961548
        %v1704 = vmul.bf16 %v1688, 1061961548
        %v1705 = vmul.bf16 %v1689, 1061961548
        %v1706 = vmul.bf16 %v1690, 1061961548
        %v1707 = vmul.bf16 %v1691, 1061961548
        %v1708 = vtanh.bf16.pop %v1692
        %v1709 = vtanh.bf16.pop %v1693
        %v1710 = vtanh.bf16.pop %v1694
        %v1711 = vtanh.bf16.pop %v1695
        %v1712 = vtanh.bf16.pop %v1696
        %v1713 = vtanh.bf16.pop %v1697
        %v1714 = vtanh.bf16.pop %v1698
        %v1715 = vtanh.bf16.pop %v1699
        %v1716 = vtanh.bf16.pop %v1700
        %v1717 = vtanh.bf16.pop %v1701
        %v1718 = vtanh.bf16.pop %v1702
        %v1719 = vtanh.bf16.pop %v1703
        %v1720 = vtanh.bf16.pop %v1704
        %v1721 = vtanh.bf16.pop %v1705
        %v1722 = vtanh.bf16.pop %v1706
        %v1723 = vtanh.bf16.pop %v1707
        %v1724 = vadd.bf16 %v1708, 1065369472
        %v1725 = vadd.bf16 %v1709, 1065369472
        %v1726 = vadd.bf16 %v1710, 1065369472
        %v1727 = vadd.bf16 %v1711, 1065369472
        %v1728 = vadd.bf16 %v1712, 1065369472
        %v1729 = vadd.bf16 %v1713, 1065369472
        %v1730 = vadd.bf16 %v1714, 1065369472
        %v1731 = vadd.bf16 %v1715, 1065369472
        %v1732 = vadd.bf16 %v1716, 1065369472
        %v1733 = vadd.bf16 %v1717, 1065369472
        %v1734 = vadd.bf16 %v1718, 1065369472
        %v1735 = vadd.bf16 %v1719, 1065369472
        %v1736 = vadd.bf16 %v1720, 1065369472
        %v1737 = vadd.bf16 %v1721, 1065369472
        %v1738 = vadd.bf16 %v1722, 1065369472
        %v1739 = vadd.bf16 %v1723, 1065369472
        %v1740 = vmul.bf16 %v1612, %v1724
        %v1741 = vmul.bf16 %v1613, %v1725
        %v1742 = vmul.bf16 %v1614, %v1726
        %v1743 = vmul.bf16 %v1615, %v1727
        %v1744 = vmul.bf16 %v1616, %v1728
        %v1745 = vmul.bf16 %v1617, %v1729
        %v1746 = vmul.bf16 %v1618, %v1730
        %v1747 = vmul.bf16 %v1619, %v1731
        %v1748 = vmul.bf16 %v1620, %v1732
        %v1749 = vmul.bf16 %v1621, %v1733
        %v1750 = vmul.bf16 %v1622, %v1734
        %v1751 = vmul.bf16 %v1623, %v1735
        %v1752 = vmul.bf16 %v1624, %v1736
        %v1753 = vmul.bf16 %v1625, %v1737
        %v1754 = vmul.bf16 %v1626, %v1738
        %v1755 = vmul.bf16 %v1627, %v1739
        %v1756 = vld [vmem:[%s4] sm:$0xff]
        %v1757 = vld [vmem:[%s4 + $0x8] sm:$0xff]
        %v1758 = vld [vmem:[%s4 + $0x10] sm:$0xff]
        %v1759 = vld [vmem:[%s4 + $0x18] sm:$0xff]
        %v1760 = vld [vmem:[%s4 + $0x20] sm:$0xff]
        %v1761 = vld [vmem:[%s4 + $0x28] sm:$0xff]
        %v1762 = vld [vmem:[%s4 + $0x30] sm:$0xff]
        %v1763 = vld [vmem:[%s4 + $0x38] sm:$0xff]
        %v1764 = vld [vmem:[%s4 + $0x40] sm:$0xff]
        %v1765 = vld [vmem:[%s4 + $0x48] sm:$0xff]
        %v1766 = vld [vmem:[%s4 + $0x50] sm:$0xff]
        %v1767 = vld [vmem:[%s4 + $0x58] sm:$0xff]
        %v1768 = vld [vmem:[%s4 + $0x60] sm:$0xff]
        %v1769 = vld [vmem:[%s4 + $0x68] sm:$0xff]
        %v1770 = vld [vmem:[%s4 + $0x70] sm:$0xff]
        %v1771 = vld [vmem:[%s4 + $0x78] sm:$0xff]
        %v1772 = vld [vmem:[%s4 + $0x80] sm:$0xff]
        %v1773 = vld [vmem:[%s4 + $0x88] sm:$0xff]
        %v1774 = vld [vmem:[%s4 + $0x90] sm:$0xff]
        %v1775 = vld [vmem:[%s4 + $0x98] sm:$0xff]
        %v1776 = vld [vmem:[%s4 + $0xa0] sm:$0xff]
        %v1777 = vld [vmem:[%s4 + $0xa8] sm:$0xff]
        %v1778 = vld [vmem:[%s4 + $0xb0] sm:$0xff]
        %v1779 = vld [vmem:[%s4 + $0xb8] sm:$0xff]
        %v1780 = vld [vmem:[%s4 + $0xc0] sm:$0xff]
        %v1781 = vld [vmem:[%s4 + $0xc8] sm:$0xff]
        %v1782 = vld [vmem:[%s4 + $0xd0] sm:$0xff]
        %v1783 = vld [vmem:[%s4 + $0xd8] sm:$0xff]
        %v1784 = vld [vmem:[%s4 + $0xe0] sm:$0xff]
        %v1785 = vld [vmem:[%s4 + $0xe8] sm:$0xff]
        %v1786 = vld [vmem:[%s4 + $0xf0] sm:$0xff]
        %v1787 = vld [vmem:[%s4 + $0xf8] sm:$0xff]
        %v1788 = vld [vmem:[%s4 + $0x100] sm:$0xff]
        %v1789 = vld [vmem:[%s4 + $0x108] sm:$0xff]
        %v1790 = vld [vmem:[%s4 + $0x110] sm:$0xff]
        %v1791 = vld [vmem:[%s4 + $0x118] sm:$0xff]
        %v1792 = vld [vmem:[%s4 + $0x120] sm:$0xff]
        %v1793 = vld [vmem:[%s4 + $0x128] sm:$0xff]
        %v1794 = vld [vmem:[%s4 + $0x130] sm:$0xff]
        %v1795 = vld [vmem:[%s4 + $0x138] sm:$0xff]
        %v1796 = vld [vmem:[%s4 + $0x140] sm:$0xff]
        %v1797 = vld [vmem:[%s4 + $0x148] sm:$0xff]
        %v1798 = vld [vmem:[%s4 + $0x150] sm:$0xff]
        %v1799 = vld [vmem:[%s4 + $0x158] sm:$0xff]
        %v1800 = vld [vmem:[%s4 + $0x160] sm:$0xff]
        %v1801 = vld [vmem:[%s4 + $0x168] sm:$0xff]
        %v1802 = vld [vmem:[%s4 + $0x170] sm:$0xff]
        %v1803 = vld [vmem:[%s4 + $0x178] sm:$0xff]
        %v1804 = vld [vmem:[%s4 + $0x180] sm:$0xff]
        %v1805 = vld [vmem:[%s4 + $0x188] sm:$0xff]
        %v1806 = vld [vmem:[%s4 + $0x190] sm:$0xff]
        %v1807 = vld [vmem:[%s4 + $0x198] sm:$0xff]
        %v1808 = vld [vmem:[%s4 + $0x1a0] sm:$0xff]
        %v1809 = vld [vmem:[%s4 + $0x1a8] sm:$0xff]
        %v1810 = vld [vmem:[%s4 + $0x1b0] sm:$0xff]
        %v1811 = vld [vmem:[%s4 + $0x1b8] sm:$0xff]
        %v1812 = vld [vmem:[%s4 + $0x1c0] sm:$0xff]
        %v1813 = vld [vmem:[%s4 + $0x1c8] sm:$0xff]
        %v1814 = vld [vmem:[%s4 + $0x1d0] sm:$0xff]
        %v1815 = vld [vmem:[%s4 + $0x1d8] sm:$0xff]
        %v1816 = vld [vmem:[%s4 + $0x1e0] sm:$0xff]
        %v1817 = vld [vmem:[%s4 + $0x1e8] sm:$0xff]
        %v1818 = vld [vmem:[%s4 + $0x1f0] sm:$0xff]
        %v1819 = vld [vmem:[%s4 + $0x1f8] sm:$0xff]
        %v1820 = vld [vmem:[%s5] sm:$0xff]
        %v1821 = vld [vmem:[%s5 + $0x8] sm:$0xff]
        %v1822 = vld [vmem:[%s5 + $0x10] sm:$0xff]
        %v1823 = vld [vmem:[%s5 + $0x18] sm:$0xff]
        %v1824 = vld [vmem:[%s5 + $0x20] sm:$0xff]
        %v1825 = vld [vmem:[%s5 + $0x28] sm:$0xff]
        %v1826 = vld [vmem:[%s5 + $0x30] sm:$0xff]
        %v1827 = vld [vmem:[%s5 + $0x38] sm:$0xff]
        %v1828 = vld [vmem:[%s5 + $0x40] sm:$0xff]
        %v1829 = vld [vmem:[%s5 + $0x48] sm:$0xff]
        %v1830 = vld [vmem:[%s5 + $0x50] sm:$0xff]
        %v1831 = vld [vmem:[%s5 + $0x58] sm:$0xff]
        %v1832 = vld [vmem:[%s5 + $0x60] sm:$0xff]
        %v1833 = vld [vmem:[%s5 + $0x68] sm:$0xff]
        %v1834 = vld [vmem:[%s5 + $0x70] sm:$0xff]
        %v1835 = vld [vmem:[%s5 + $0x78] sm:$0xff]
        %v1836 = vld [vmem:[%s5 + $0x80] sm:$0xff]
        %v1837 = vld [vmem:[%s5 + $0x88] sm:$0xff]
        %v1838 = vld [vmem:[%s5 + $0x90] sm:$0xff]
        %v1839 = vld [vmem:[%s5 + $0x98] sm:$0xff]
        %v1840 = vld [vmem:[%s5 + $0xa0] sm:$0xff]
        %v1841 = vld [vmem:[%s5 + $0xa8] sm:$0xff]
        %v1842 = vld [vmem:[%s5 + $0xb0] sm:$0xff]
        %v1843 = vld [vmem:[%s5 + $0xb8] sm:$0xff]
        %v1844 = vld [vmem:[%s5 + $0xc0] sm:$0xff]
        %v1845 = vld [vmem:[%s5 + $0xc8] sm:$0xff]
        %v1846 = vld [vmem:[%s5 + $0xd0] sm:$0xff]
        %v1847 = vld [vmem:[%s5 + $0xd8] sm:$0xff]
        %v1848 = vld [vmem:[%s5 + $0xe0] sm:$0xff]
        %v1849 = vld [vmem:[%s5 + $0xe8] sm:$0xff]
        %v1850 = vld [vmem:[%s5 + $0xf0] sm:$0xff]
        %v1851 = vld [vmem:[%s5 + $0xf8] sm:$0xff]
        %v1852 = vld [vmem:[%s5 + $0x100] sm:$0xff]
        %v1853 = vld [vmem:[%s5 + $0x108] sm:$0xff]
        %v1854 = vld [vmem:[%s5 + $0x110] sm:$0xff]
        %v1855 = vld [vmem:[%s5 + $0x118] sm:$0xff]
        %v1856 = vld [vmem:[%s5 + $0x120] sm:$0xff]
        %v1857 = vld [vmem:[%s5 + $0x128] sm:$0xff]
        %v1858 = vld [vmem:[%s5 + $0x130] sm:$0xff]
        %v1859 = vld [vmem:[%s5 + $0x138] sm:$0xff]
        %v1860 = vld [vmem:[%s5 + $0x140] sm:$0xff]
        %v1861 = vld [vmem:[%s5 + $0x148] sm:$0xff]
        %v1862 = vld [vmem:[%s5 + $0x150] sm:$0xff]
        %v1863 = vld [vmem:[%s5 + $0x158] sm:$0xff]
        %v1864 = vld [vmem:[%s5 + $0x160] sm:$0xff]
        %v1865 = vld [vmem:[%s5 + $0x168] sm:$0xff]
        %v1866 = vld [vmem:[%s5 + $0x170] sm:$0xff]
        %v1867 = vld [vmem:[%s5 + $0x178] sm:$0xff]
        %v1868 = vld [vmem:[%s5 + $0x180] sm:$0xff]
        %v1869 = vld [vmem:[%s5 + $0x188] sm:$0xff]
        %v1870 = vld [vmem:[%s5 + $0x190] sm:$0xff]
        %v1871 = vld [vmem:[%s5 + $0x198] sm:$0xff]
        %v1872 = vld [vmem:[%s5 + $0x1a0] sm:$0xff]
        %v1873 = vld [vmem:[%s5 + $0x1a8] sm:$0xff]
        %v1874 = vld [vmem:[%s5 + $0x1b0] sm:$0xff]
        %v1875 = vld [vmem:[%s5 + $0x1b8] sm:$0xff]
        %v1876 = vld [vmem:[%s5 + $0x1c0] sm:$0xff]
        %v1877 = vld [vmem:[%s5 + $0x1c8] sm:$0xff]
        %v1878 = vld [vmem:[%s5 + $0x1d0] sm:$0xff]
        %v1879 = vld [vmem:[%s5 + $0x1d8] sm:$0xff]
        %v1880 = vld [vmem:[%s5 + $0x1e0] sm:$0xff]
        %v1881 = vld [vmem:[%s5 + $0x1e8] sm:$0xff]
        %v1882 = vld [vmem:[%s5 + $0x1f0] sm:$0xff]
        %v1883 = vld [vmem:[%s5 + $0x1f8] sm:$0xff]
        %1885 = vset.pattern.permute.xlu0 0
        %1886 = vperm.xlu0 %1885, %v1820
        %v1887 = vpop.permute.xlu0 %1886
        %1890 = vset.pattern.permute.xlu0 0
        %1891 = vperm.xlu0 %1890, %v1821
        %v1892 = vpop.permute.xlu0 %1891
        %1895 = vset.pattern.permute.xlu0 0
        %1896 = vperm.xlu0 %1895, %v1822
        %v1897 = vpop.permute.xlu0 %1896
        %1900 = vset.pattern.permute.xlu0 0
        %1901 = vperm.xlu0 %1900, %v1823
        %v1902 = vpop.permute.xlu0 %1901
        %1905 = vset.pattern.permute.xlu0 0
        %1906 = vperm.xlu0 %1905, %v1824
        %v1907 = vpop.permute.xlu0 %1906
        %1910 = vset.pattern.permute.xlu0 0
        %1911 = vperm.xlu0 %1910, %v1825
        %v1912 = vpop.permute.xlu0 %1911
        %1915 = vset.pattern.permute.xlu0 0
        %1916 = vperm.xlu0 %1915, %v1826
        %v1917 = vpop.permute.xlu0 %1916
        %1920 = vset.pattern.permute.xlu0 0
        %1921 = vperm.xlu0 %1920, %v1827
        %v1922 = vpop.permute.xlu0 %1921
        %1925 = vset.pattern.permute.xlu0 0
        %1926 = vperm.xlu0 %1925, %v1828
        %v1927 = vpop.permute.xlu0 %1926
        %1930 = vset.pattern.permute.xlu0 0
        %1931 = vperm.xlu0 %1930, %v1829
        %v1932 = vpop.permute.xlu0 %1931
        %1935 = vset.pattern.permute.xlu0 0
        %1936 = vperm.xlu0 %1935, %v1830
        %v1937 = vpop.permute.xlu0 %1936
        %1940 = vset.pattern.permute.xlu0 0
        %1941 = vperm.xlu0 %1940, %v1831
        %v1942 = vpop.permute.xlu0 %1941
        %1945 = vset.pattern.permute.xlu0 0
        %1946 = vperm.xlu0 %1945, %v1832
        %v1947 = vpop.permute.xlu0 %1946
        %1950 = vset.pattern.permute.xlu0 0
        %1951 = vperm.xlu0 %1950, %v1833
        %v1952 = vpop.permute.xlu0 %1951
        %1955 = vset.pattern.permute.xlu0 0
        %1956 = vperm.xlu0 %1955, %v1834
        %v1957 = vpop.permute.xlu0 %1956
        %1960 = vset.pattern.permute.xlu0 0
        %1961 = vperm.xlu0 %1960, %v1835
        %v1962 = vpop.permute.xlu0 %1961
        %1965 = vset.pattern.permute.xlu0 0
        %1966 = vperm.xlu0 %1965, %v1836
        %v1967 = vpop.permute.xlu0 %1966
        %1970 = vset.pattern.permute.xlu0 0
        %1971 = vperm.xlu0 %1970, %v1837
        %v1972 = vpop.permute.xlu0 %1971
        %1975 = vset.pattern.permute.xlu0 0
        %1976 = vperm.xlu0 %1975, %v1838
        %v1977 = vpop.permute.xlu0 %1976
        %1980 = vset.pattern.permute.xlu0 0
        %1981 = vperm.xlu0 %1980, %v1839
        %v1982 = vpop.permute.xlu0 %1981
        %1985 = vset.pattern.permute.xlu0 0
        %1986 = vperm.xlu0 %1985, %v1840
        %v1987 = vpop.permute.xlu0 %1986
        %1990 = vset.pattern.permute.xlu0 0
        %1991 = vperm.xlu0 %1990, %v1841
        %v1992 = vpop.permute.xlu0 %1991
        %1995 = vset.pattern.permute.xlu0 0
        %1996 = vperm.xlu0 %1995, %v1842
        %v1997 = vpop.permute.xlu0 %1996
        %2000 = vset.pattern.permute.xlu0 0
        %2001 = vperm.xlu0 %2000, %v1843
        %v2002 = vpop.permute.xlu0 %2001
        %2005 = vset.pattern.permute.xlu0 0
        %2006 = vperm.xlu0 %2005, %v1844
        %v2007 = vpop.permute.xlu0 %2006
        %2010 = vset.pattern.permute.xlu0 0
        %2011 = vperm.xlu0 %2010, %v1845
        %v2012 = vpop.permute.xlu0 %2011
        %2015 = vset.pattern.permute.xlu0 0
        %2016 = vperm.xlu0 %2015, %v1846
        %v2017 = vpop.permute.xlu0 %2016
        %2020 = vset.pattern.permute.xlu0 0
        %2021 = vperm.xlu0 %2020, %v1847
        %v2022 = vpop.permute.xlu0 %2021
        %2025 = vset.pattern.permute.xlu0 0
        %2026 = vperm.xlu0 %2025, %v1848
        %v2027 = vpop.permute.xlu0 %2026
        %2030 = vset.pattern.permute.xlu0 0
        %2031 = vperm.xlu0 %2030, %v1849
        %v2032 = vpop.permute.xlu0 %2031
        %2035 = vset.pattern.permute.xlu0 0
        %2036 = vperm.xlu0 %2035, %v1850
        %v2037 = vpop.permute.xlu0 %2036
        %2040 = vset.pattern.permute.xlu0 0
        %2041 = vperm.xlu0 %2040, %v1851
        %v2042 = vpop.permute.xlu0 %2041
        %2045 = vset.pattern.permute.xlu0 0
        %2046 = vperm.xlu0 %2045, %v1852
        %v2047 = vpop.permute.xlu0 %2046
        %2050 = vset.pattern.permute.xlu0 0
        %2051 = vperm.xlu0 %2050, %v1853
        %v2052 = vpop.permute.xlu0 %2051
        %2055 = vset.pattern.permute.xlu0 0
        %2056 = vperm.xlu0 %2055, %v1854
        %v2057 = vpop.permute.xlu0 %2056
        %2060 = vset.pattern.permute.xlu0 0
        %2061 = vperm.xlu0 %2060, %v1855
        %v2062 = vpop.permute.xlu0 %2061
        %2065 = vset.pattern.permute.xlu0 0
        %2066 = vperm.xlu0 %2065, %v1856
        %v2067 = vpop.permute.xlu0 %2066
        %2070 = vset.pattern.permute.xlu0 0
        %2071 = vperm.xlu0 %2070, %v1857
        %v2072 = vpop.permute.xlu0 %2071
        %2075 = vset.pattern.permute.xlu0 0
        %2076 = vperm.xlu0 %2075, %v1858
        %v2077 = vpop.permute.xlu0 %2076
        %2080 = vset.pattern.permute.xlu0 0
        %2081 = vperm.xlu0 %2080, %v1859
        %v2082 = vpop.permute.xlu0 %2081
        %2085 = vset.pattern.permute.xlu0 0
        %2086 = vperm.xlu0 %2085, %v1860
        %v2087 = vpop.permute.xlu0 %2086
        %2090 = vset.pattern.permute.xlu0 0
        %2091 = vperm.xlu0 %2090, %v1861
        %v2092 = vpop.permute.xlu0 %2091
        %2095 = vset.pattern.permute.xlu0 0
        %2096 = vperm.xlu0 %2095, %v1862
        %v2097 = vpop.permute.xlu0 %2096
        %2100 = vset.pattern.permute.xlu0 0
        %2101 = vperm.xlu0 %2100, %v1863
        %v2102 = vpop.permute.xlu0 %2101
        %2105 = vset.pattern.permute.xlu0 0
        %2106 = vperm.xlu0 %2105, %v1864
        %v2107 = vpop.permute.xlu0 %2106
        %2110 = vset.pattern.permute.xlu0 0
        %2111 = vperm.xlu0 %2110, %v1865
        %v2112 = vpop.permute.xlu0 %2111
        %2115 = vset.pattern.permute.xlu0 0
        %2116 = vperm.xlu0 %2115, %v1866
        %v2117 = vpop.permute.xlu0 %2116
        %2120 = vset.pattern.permute.xlu0 0
        %2121 = vperm.xlu0 %2120, %v1867
        %v2122 = vpop.permute.xlu0 %2121
        %2125 = vset.pattern.permute.xlu0 0
        %2126 = vperm.xlu0 %2125, %v1868
        %v2127 = vpop.permute.xlu0 %2126
        %2130 = vset.pattern.permute.xlu0 0
        %2131 = vperm.xlu0 %2130, %v1869
        %v2132 = vpop.permute.xlu0 %2131
        %2135 = vset.pattern.permute.xlu0 0
        %2136 = vperm.xlu0 %2135, %v1870
        %v2137 = vpop.permute.xlu0 %2136
        %2140 = vset.pattern.permute.xlu0 0
        %2141 = vperm.xlu0 %2140, %v1871
        %v2142 = vpop.permute.xlu0 %2141
        %2145 = vset.pattern.permute.xlu0 0
        %2146 = vperm.xlu0 %2145, %v1872
        %v2147 = vpop.permute.xlu0 %2146
        %2150 = vset.pattern.permute.xlu0 0
        %2151 = vperm.xlu0 %2150, %v1873
        %v2152 = vpop.permute.xlu0 %2151
        %2155 = vset.pattern.permute.xlu0 0
        %2156 = vperm.xlu0 %2155, %v1874
        %v2157 = vpop.permute.xlu0 %2156
        %2160 = vset.pattern.permute.xlu0 0
        %2161 = vperm.xlu0 %2160, %v1875
        %v2162 = vpop.permute.xlu0 %2161
        %2165 = vset.pattern.permute.xlu0 0
        %2166 = vperm.xlu0 %2165, %v1876
        %v2167 = vpop.permute.xlu0 %2166
        %2170 = vset.pattern.permute.xlu0 0
        %2171 = vperm.xlu0 %2170, %v1877
        %v2172 = vpop.permute.xlu0 %2171
        %2175 = vset.pattern.permute.xlu0 0
        %2176 = vperm.xlu0 %2175, %v1878
        %v2177 = vpop.permute.xlu0 %2176
        %2180 = vset.pattern.permute.xlu0 0
        %2181 = vperm.xlu0 %2180, %v1879
        %v2182 = vpop.permute.xlu0 %2181
        %2185 = vset.pattern.permute.xlu0 0
        %2186 = vperm.xlu0 %2185, %v1880
        %v2187 = vpop.permute.xlu0 %2186
        %2190 = vset.pattern.permute.xlu0 0
        %2191 = vperm.xlu0 %2190, %v1881
        %v2192 = vpop.permute.xlu0 %2191
        %2195 = vset.pattern.permute.xlu0 0
        %2196 = vperm.xlu0 %2195, %v1882
        %v2197 = vpop.permute.xlu0 %2196
        %2200 = vset.pattern.permute.xlu0 0
        %2201 = vperm.xlu0 %2200, %v1883
        %v2202 = vpop.permute.xlu0 %2201
        %v2268 = vunpack.c.l.b16 %v1756
        %v2269 = vunpack.c.h.b16 %v1756
        %v2270 = vunpack.c.l.b16 %v1757
        %v2271 = vunpack.c.h.b16 %v1757
        %v2272 = vunpack.c.l.b16 %v1758
        %v2273 = vunpack.c.h.b16 %v1758
        %v2274 = vunpack.c.l.b16 %v1759
        %v2275 = vunpack.c.h.b16 %v1759
        %v2276 = vunpack.c.l.b16 %v1760
        %v2277 = vunpack.c.h.b16 %v1760
        %v2278 = vunpack.c.l.b16 %v1761
        %v2279 = vunpack.c.h.b16 %v1761
        %v2280 = vunpack.c.l.b16 %v1762
        %v2281 = vunpack.c.h.b16 %v1762
        %v2282 = vunpack.c.l.b16 %v1763
        %v2283 = vunpack.c.h.b16 %v1763
        %v2284 = vunpack.c.l.b16 %v1764
        %v2285 = vunpack.c.h.b16 %v1764
        %v2286 = vunpack.c.l.b16 %v1765
        %v2287 = vunpack.c.h.b16 %v1765
        %v2288 = vunpack.c.l.b16 %v1766
        %v2289 = vunpack.c.h.b16 %v1766
        %v2290 = vunpack.c.l.b16 %v1767
        %v2291 = vunpack.c.h.b16 %v1767
        %v2292 = vunpack.c.l.b16 %v1768
        %v2293 = vunpack.c.h.b16 %v1768
        %v2294 = vunpack.c.l.b16 %v1769
        %v2295 = vunpack.c.h.b16 %v1769
        %v2296 = vunpack.c.l.b16 %v1770
        %v2297 = vunpack.c.h.b16 %v1770
        %v2298 = vunpack.c.l.b16 %v1771
        %v2299 = vunpack.c.h.b16 %v1771
        %v2300 = vunpack.c.l.b16 %v1772
        %v2301 = vunpack.c.h.b16 %v1772
        %v2302 = vunpack.c.l.b16 %v1773
        %v2303 = vunpack.c.h.b16 %v1773
        %v2304 = vunpack.c.l.b16 %v1774
        %v2305 = vunpack.c.h.b16 %v1774
        %v2306 = vunpack.c.l.b16 %v1775
        %v2307 = vunpack.c.h.b16 %v1775
        %v2308 = vunpack.c.l.b16 %v1776
        %v2309 = vunpack.c.h.b16 %v1776
        %v2310 = vunpack.c.l.b16 %v1777
        %v2311 = vunpack.c.h.b16 %v1777
        %v2312 = vunpack.c.l.b16 %v1778
        %v2313 = vunpack.c.h.b16 %v1778
        %v2314 = vunpack.c.l.b16 %v1779
        %v2315 = vunpack.c.h.b16 %v1779
        %v2316 = vunpack.c.l.b16 %v1780
        %v2317 = vunpack.c.h.b16 %v1780
        %v2318 = vunpack.c.l.b16 %v1781
        %v2319 = vunpack.c.h.b16 %v1781
        %v2320 = vunpack.c.l.b16 %v1782
        %v2321 = vunpack.c.h.b16 %v1782
        %v2322 = vunpack.c.l.b16 %v1783
        %v2323 = vunpack.c.h.b16 %v1783
        %v2324 = vunpack.c.l.b16 %v1784
        %v2325 = vunpack.c.h.b16 %v1784
        %v2326 = vunpack.c.l.b16 %v1785
        %v2327 = vunpack.c.h.b16 %v1785
        %v2328 = vunpack.c.l.b16 %v1786
        %v2329 = vunpack.c.h.b16 %v1786
        %v2330 = vunpack.c.l.b16 %v1787
        %v2331 = vunpack.c.h.b16 %v1787
        %v2332 = vunpack.c.l.b16 %v1788
        %v2333 = vunpack.c.h.b16 %v1788
        %v2334 = vunpack.c.l.b16 %v1789
        %v2335 = vunpack.c.h.b16 %v1789
        %v2336 = vunpack.c.l.b16 %v1790
        %v2337 = vunpack.c.h.b16 %v1790
        %v2338 = vunpack.c.l.b16 %v1791
        %v2339 = vunpack.c.h.b16 %v1791
        %v2340 = vunpack.c.l.b16 %v1792
        %v2341 = vunpack.c.h.b16 %v1792
        %v2342 = vunpack.c.l.b16 %v1793
        %v2343 = vunpack.c.h.b16 %v1793
        %v2344 = vunpack.c.l.b16 %v1794
        %v2345 = vunpack.c.h.b16 %v1794
        %v2346 = vunpack.c.l.b16 %v1795
        %v2347 = vunpack.c.h.b16 %v1795
        %v2348 = vunpack.c.l.b16 %v1796
        %v2349 = vunpack.c.h.b16 %v1796
        %v2350 = vunpack.c.l.b16 %v1797
        %v2351 = vunpack.c.h.b16 %v1797
        %v2352 = vunpack.c.l.b16 %v1798
        %v2353 = vunpack.c.h.b16 %v1798
        %v2354 = vunpack.c.l.b16 %v1799
        %v2355 = vunpack.c.h.b16 %v1799
        %v2356 = vunpack.c.l.b16 %v1800
        %v2357 = vunpack.c.h.b16 %v1800
        %v2358 = vunpack.c.l.b16 %v1801
        %v2359 = vunpack.c.h.b16 %v1801
        %v2360 = vunpack.c.l.b16 %v1802
        %v2361 = vunpack.c.h.b16 %v1802
        %v2362 = vunpack.c.l.b16 %v1803
        %v2363 = vunpack.c.h.b16 %v1803
        %v2364 = vunpack.c.l.b16 %v1804
        %v2365 = vunpack.c.h.b16 %v1804
        %v2366 = vunpack.c.l.b16 %v1805
        %v2367 = vunpack.c.h.b16 %v1805
        %v2368 = vunpack.c.l.b16 %v1806
        %v2369 = vunpack.c.h.b16 %v1806
        %v2370 = vunpack.c.l.b16 %v1807
        %v2371 = vunpack.c.h.b16 %v1807
        %v2372 = vunpack.c.l.b16 %v1808
        %v2373 = vunpack.c.h.b16 %v1808
        %v2374 = vunpack.c.l.b16 %v1809
        %v2375 = vunpack.c.h.b16 %v1809
        %v2376 = vunpack.c.l.b16 %v1810
        %v2377 = vunpack.c.h.b16 %v1810
        %v2378 = vunpack.c.l.b16 %v1811
        %v2379 = vunpack.c.h.b16 %v1811
        %v2380 = vunpack.c.l.b16 %v1812
        %v2381 = vunpack.c.h.b16 %v1812
        %v2382 = vunpack.c.l.b16 %v1813
        %v2383 = vunpack.c.h.b16 %v1813
        %v2384 = vunpack.c.l.b16 %v1814
        %v2385 = vunpack.c.h.b16 %v1814
        %v2386 = vunpack.c.l.b16 %v1815
        %v2387 = vunpack.c.h.b16 %v1815
        %v2388 = vunpack.c.l.b16 %v1816
        %v2389 = vunpack.c.h.b16 %v1816
        %v2390 = vunpack.c.l.b16 %v1817
        %v2391 = vunpack.c.h.b16 %v1817
        %v2392 = vunpack.c.l.b16 %v1818
        %v2393 = vunpack.c.h.b16 %v1818
        %v2394 = vunpack.c.l.b16 %v1819
        %v2395 = vunpack.c.h.b16 %v1819
        %v2396 = vpack.c.b16 %v2270, %v2268
        %v2397 = vpack.c.b16 %v2271, %v2269
        %v2398 = vpack.c.b16 %v2274, %v2272
        %v2399 = vpack.c.b16 %v2275, %v2273
        %v2400 = vpack.c.b16 %v2278, %v2276
        %v2401 = vpack.c.b16 %v2279, %v2277
        %v2402 = vpack.c.b16 %v2282, %v2280
        %v2403 = vpack.c.b16 %v2283, %v2281
        %v2404 = vpack.c.b16 %v2286, %v2284
        %v2405 = vpack.c.b16 %v2287, %v2285
        %v2406 = vpack.c.b16 %v2290, %v2288
        %v2407 = vpack.c.b16 %v2291, %v2289
        %v2408 = vpack.c.b16 %v2294, %v2292
        %v2409 = vpack.c.b16 %v2295, %v2293
        %v2410 = vpack.c.b16 %v2298, %v2296
        %v2411 = vpack.c.b16 %v2299, %v2297
        %v2412 = vpack.c.b16 %v2302, %v2300
        %v2413 = vpack.c.b16 %v2303, %v2301
        %v2414 = vpack.c.b16 %v2306, %v2304
        %v2415 = vpack.c.b16 %v2307, %v2305
        %v2416 = vpack.c.b16 %v2310, %v2308
        %v2417 = vpack.c.b16 %v2311, %v2309
        %v2418 = vpack.c.b16 %v2314, %v2312
        %v2419 = vpack.c.b16 %v2315, %v2313
        %v2420 = vpack.c.b16 %v2318, %v2316
        %v2421 = vpack.c.b16 %v2319, %v2317
        %v2422 = vpack.c.b16 %v2322, %v2320
        %v2423 = vpack.c.b16 %v2323, %v2321
        %v2424 = vpack.c.b16 %v2326, %v2324
        %v2425 = vpack.c.b16 %v2327, %v2325
        %v2426 = vpack.c.b16 %v2330, %v2328
        %v2427 = vpack.c.b16 %v2331, %v2329
        %v2428 = vpack.c.b16 %v2334, %v2332
        %v2429 = vpack.c.b16 %v2335, %v2333
        %v2430 = vpack.c.b16 %v2338, %v2336
        %v2431 = vpack.c.b16 %v2339, %v2337
        %v2432 = vpack.c.b16 %v2342, %v2340
        %v2433 = vpack.c.b16 %v2343, %v2341
        %v2434 = vpack.c.b16 %v2346, %v2344
        %v2435 = vpack.c.b16 %v2347, %v2345
        %v2436 = vpack.c.b16 %v2350, %v2348
        %v2437 = vpack.c.b16 %v2351, %v2349
        %v2438 = vpack.c.b16 %v2354, %v2352
        %v2439 = vpack.c.b16 %v2355, %v2353
        %v2440 = vpack.c.b16 %v2358, %v2356
        %v2441 = vpack.c.b16 %v2359, %v2357
        %v2442 = vpack.c.b16 %v2362, %v2360
        %v2443 = vpack.c.b16 %v2363, %v2361
        %v2444 = vpack.c.b16 %v2366, %v2364
        %v2445 = vpack.c.b16 %v2367, %v2365
        %v2446 = vpack.c.b16 %v2370, %v2368
        %v2447 = vpack.c.b16 %v2371, %v2369
        %v2448 = vpack.c.b16 %v2374, %v2372
        %v2449 = vpack.c.b16 %v2375, %v2373
        %v2450 = vpack.c.b16 %v2378, %v2376
        %v2451 = vpack.c.b16 %v2379, %v2377
        %v2452 = vpack.c.b16 %v2382, %v2380
        %v2453 = vpack.c.b16 %v2383, %v2381
        %v2454 = vpack.c.b16 %v2386, %v2384
        %v2455 = vpack.c.b16 %v2387, %v2385
        %v2456 = vpack.c.b16 %v2390, %v2388
        %v2457 = vpack.c.b16 %v2391, %v2389
        %v2458 = vpack.c.b16 %v2394, %v2392
        %v2459 = vpack.c.b16 %v2395, %v2393
        %2524 = vmatprep.subr.bf16.mxu0 0
        %2525 = vmatpush1.bf16.msra.mxu0 %v1740
        %2526 = vmatprep.subr.bf16.mxu0 0
        %2527 = vmatpush1.bf16.msra.mxu0 %v1741
        %2528 = vmatprep.subr.bf16.mxu0 0
        %2529 = vmatpush1.bf16.msra.mxu0 %v1742
        %2530 = vmatprep.subr.bf16.mxu0 0
        %2531 = vmatpush1.bf16.msra.mxu0 %v1743
        %2532 = vmatprep.subr.bf16.mxu0 0
        %2533 = vmatpush1.bf16.msra.mxu0 %v1744
        %2534 = vmatprep.subr.bf16.mxu0 0
        %2535 = vmatpush1.bf16.msra.mxu0 %v1745
        %2536 = vmatprep.subr.bf16.mxu0 0
        %2537 = vmatpush1.bf16.msra.mxu0 %v1746
        %2538 = vmatprep.subr.bf16.mxu0 0
        %2539 = vmatpush1.bf16.msra.mxu0 %v1747
        %2540 = vmatprep.subr.bf16.mxu0 0
        %2541 = vmatpush1.bf16.msra.mxu0 %v1748
        %2542 = vmatprep.subr.bf16.mxu0 0
        %2543 = vmatpush1.bf16.msra.mxu0 %v1749
        %2544 = vmatprep.subr.bf16.mxu0 0
        %2545 = vmatpush1.bf16.msra.mxu0 %v1750
        %2546 = vmatprep.subr.bf16.mxu0 0
        %2547 = vmatpush1.bf16.msra.mxu0 %v1751
        %2548 = vmatprep.subr.bf16.mxu0 0
        %2549 = vmatpush1.bf16.msra.mxu0 %v1752
        %2550 = vmatprep.subr.bf16.mxu0 0
        %2551 = vmatpush1.bf16.msra.mxu0 %v1753
        %2552 = vmatprep.subr.bf16.mxu0 0
        %2553 = vmatpush1.bf16.msra.mxu0 %v1754
        %2554 = vmatprep.subr.bf16.mxu0 0
        %2555 = vmatpush1.bf16.msra.mxu0 %v1755
        %2556 = vmatprep.mubr.bf16.mxu0 %v2397
        %2557 = vmatmul.mubr.bf16.gmra.mrb[0].mxu0 %v2396
        %v2558 = vpop.f32.mrb[0].mxu0
        %v2559 = vadd.f32 %v1887, %v2558
        %v2560 = vpop.f32.mrb[0].mxu0
        %v2561 = vpop.f32.mrb[0].mxu0
        %v2562 = vadd.f32 %v1892, %v2561
        %v2563 = vpop.f32.mrb[0].mxu0
        %2564 = vmatprep.mubr.bf16.mxu0 %v2399
        %2565 = vmatmul.mubr.bf16.gmra.mrb[0].mxu0 %v2398
        %v2566 = vpop.f32.mrb[0].mxu0
        %v2567 = vadd.f32 %v1897, %v2566
        %v2568 = vpop.f32.mrb[0].mxu0
        %v2569 = vpop.f32.mrb[0].mxu0
        %v2570 = vadd.f32 %v1902, %v2569
        %v2571 = vpop.f32.mrb[0].mxu0
        %2572 = vmatprep.mubr.bf16.mxu0 %v2401
        %2573 = vmatmul.mubr.bf16.gmra.mrb[0].mxu0 %v2400
        %v2574 = vpop.f32.mrb[0].mxu0
        %v2575 = vadd.f32 %v1907, %v2574
        %v2576 = vpop.f32.mrb[0].mxu0
        %v2577 = vpop.f32.mrb[0].mxu0
        %v2578 = vadd.f32 %v1912, %v2577
        %v2579 = vpop.f32.mrb[0].mxu0
        %2580 = vmatprep.mubr.bf16.mxu0 %v2403
        %2581 = vmatmul.mubr.bf16.gmra.mrb[0].mxu0 %v2402
        %v2582 = vpop.f32.mrb[0].mxu0
        %v2583 = vadd.f32 %v1917, %v2582
        %v2584 = vpop.f32.mrb[0].mxu0
        %v2585 = vpop.f32.mrb[0].mxu0
        %v2586 = vadd.f32 %v1922, %v2585
        %v2587 = vpop.f32.mrb[0].mxu0
        %2588 = vmatprep.mubr.bf16.mxu0 %v2405
        %2589 = vmatmul.mubr.bf16.gmra.mrb[0].mxu0 %v2404
        %v2590 = vpop.f32.mrb[0].mxu0
        %v2591 = vadd.f32 %v1927, %v2590
        %v2592 = vpop.f32.mrb[0].mxu0
        %v2593 = vpop.f32.mrb[0].mxu0
        %v2594 = vadd.f32 %v1932, %v2593
        %v2595 = vpop.f32.mrb[0].mxu0
        %2596 = vmatprep.mubr.bf16.mxu0 %v2407
        %2597 = vmatmul.mubr.bf16.gmra.mrb[0].mxu0 %v2406
        %v2598 = vpop.f32.mrb[0].mxu0
        %v2599 = vadd.f32 %v1937, %v2598
        %v2600 = vpop.f32.mrb[0].mxu0
        %v2601 = vpop.f32.mrb[0].mxu0
        %v2602 = vadd.f32 %v1942, %v2601
        %v2603 = vpop.f32.mrb[0].mxu0
        %2604 = vmatprep.mubr.bf16.mxu0 %v2409
        %2605 = vmatmul.mubr.bf16.gmra.mrb[0].mxu0 %v2408
        %v2606 = vpop.f32.mrb[0].mxu0
        %v2607 = vadd.f32 %v1947, %v2606
        %v2608 = vpop.f32.mrb[0].mxu0
        %v2609 = vpop.f32.mrb[0].mxu0
        %v2610 = vadd.f32 %v1952, %v2609
        %v2611 = vpop.f32.mrb[0].mxu0
        %2612 = vmatprep.mubr.bf16.mxu0 %v2411
        %2613 = vmatmul.mubr.bf16.gmra.mrb[0].mxu0 %v2410
        %v2614 = vpop.f32.mrb[0].mxu0
        %v2615 = vadd.f32 %v1957, %v2614
        %v2616 = vpop.f32.mrb[0].mxu0
        %v2617 = vpop.f32.mrb[0].mxu0
        %v2618 = vadd.f32 %v1962, %v2617
        %v2619 = vpop.f32.mrb[0].mxu0
        %2620 = vmatprep.mubr.bf16.mxu0 %v2413
        %2621 = vmatmul.mubr.bf16.gmra.mrb[0].mxu0 %v2412
        %v2622 = vpop.f32.mrb[0].mxu0
        %v2623 = vadd.f32 %v1967, %v2622
        %v2624 = vpop.f32.mrb[0].mxu0
        %v2625 = vpop.f32.mrb[0].mxu0
        %v2626 = vadd.f32 %v1972, %v2625
        %v2627 = vpop.f32.mrb[0].mxu0
        %2628 = vmatprep.mubr.bf16.mxu0 %v2415
        %2629 = vmatmul.mubr.bf16.gmra.mrb[0].mxu0 %v2414
        %v2630 = vpop.f32.mrb[0].mxu0
        %v2631 = vadd.f32 %v1977, %v2630
        %v2632 = vpop.f32.mrb[0].mxu0
        %v2633 = vpop.f32.mrb[0].mxu0
        %v2634 = vadd.f32 %v1982, %v2633
        %v2635 = vpop.f32.mrb[0].mxu0
        %2636 = vmatprep.mubr.bf16.mxu0 %v2417
        %2637 = vmatmul.mubr.bf16.gmra.mrb[0].mxu0 %v2416
        %v2638 = vpop.f32.mrb[0].mxu0
        %v2639 = vadd.f32 %v1987, %v2638
        %v2640 = vpop.f32.mrb[0].mxu0
        %v2641 = vpop.f32.mrb[0].mxu0
        %v2642 = vadd.f32 %v1992, %v2641
        %v2643 = vpop.f32.mrb[0].mxu0
        %2644 = vmatprep.mubr.bf16.mxu0 %v2419
        %2645 = vmatmul.mubr.bf16.gmra.mrb[0].mxu0 %v2418
        %v2646 = vpop.f32.mrb[0].mxu0
        %v2647 = vadd.f32 %v1997, %v2646
        %v2648 = vpop.f32.mrb[0].mxu0
        %v2649 = vpop.f32.mrb[0].mxu0
        %v2650 = vadd.f32 %v2002, %v2649
        %v2651 = vpop.f32.mrb[0].mxu0
        %2652 = vmatprep.mubr.bf16.mxu0 %v2421
        %2653 = vmatmul.mubr.bf16.gmra.mrb[0].mxu0 %v2420
        %v2654 = vpop.f32.mrb[0].mxu0
        %v2655 = vadd.f32 %v2007, %v2654
        %v2656 = vpop.f32.mrb[0].mxu0
        %v2657 = vpop.f32.mrb[0].mxu0
        %v2658 = vadd.f32 %v2012, %v2657
        %v2659 = vpop.f32.mrb[0].mxu0
        %2660 = vmatprep.mubr.bf16.mxu0 %v2423
        %2661 = vmatmul.mubr.bf16.gmra.mrb[0].mxu0 %v2422
        %v2662 = vpop.f32.mrb[0].mxu0
        %v2663 = vadd.f32 %v2017, %v2662
        %v2664 = vpop.f32.mrb[0].mxu0
        %v2665 = vpop.f32.mrb[0].mxu0
        %v2666 = vadd.f32 %v2022, %v2665
        %v2667 = vpop.f32.mrb[0].mxu0
        %2668 = vmatprep.mubr.bf16.mxu0 %v2425
        %2669 = vmatmul.mubr.bf16.gmra.mrb[0].mxu0 %v2424
        %v2670 = vpop.f32.mrb[0].mxu0
        %v2671 = vadd.f32 %v2027, %v2670
        %v2672 = vpop.f32.mrb[0].mxu0
        %v2673 = vpop.f32.mrb[0].mxu0
        %v2674 = vadd.f32 %v2032, %v2673
        %v2675 = vpop.f32.mrb[0].mxu0
        %2676 = vmatprep.mubr.bf16.mxu0 %v2427
        %2677 = vmatmul.mubr.bf16.gmra.mrb[0].mxu0 %v2426
        %v2678 = vpop.f32.mrb[0].mxu0
        %v2679 = vadd.f32 %v2037, %v2678
        %v2680 = vpop.f32.mrb[0].mxu0
        %v2681 = vpop.f32.mrb[0].mxu0
        %v2682 = vadd.f32 %v2042, %v2681
        %v2683 = vpop.f32.mrb[0].mxu0
        %2684 = vmatprep.mubr.bf16.mxu0 %v2429
        %2685 = vmatmul.mubr.bf16.gmra.mrb[0].mxu0 %v2428
        %v2686 = vpop.f32.mrb[0].mxu0
        %v2687 = vadd.f32 %v2047, %v2686
        %v2688 = vpop.f32.mrb[0].mxu0
        %v2689 = vpop.f32.mrb[0].mxu0
        %v2690 = vadd.f32 %v2052, %v2689
        %v2691 = vpop.f32.mrb[0].mxu0
        %2692 = vmatprep.mubr.bf16.mxu0 %v2431
        %2693 = vmatmul.mubr.bf16.gmra.mrb[0].mxu0 %v2430
        %v2694 = vpop.f32.mrb[0].mxu0
        %v2695 = vadd.f32 %v2057, %v2694
        %v2696 = vpop.f32.mrb[0].mxu0
        %v2697 = vpop.f32.mrb[0].mxu0
        %v2698 = vadd.f32 %v2062, %v2697
        %v2699 = vpop.f32.mrb[0].mxu0
        %2700 = vmatprep.mubr.bf16.mxu0 %v2433
        %2701 = vmatmul.mubr.bf16.gmra.mrb[0].mxu0 %v2432
        %v2702 = vpop.f32.mrb[0].mxu0
        %v2703 = vadd.f32 %v2067, %v2702
        %v2704 = vpop.f32.mrb[0].mxu0
        %v2705 = vpop.f32.mrb[0].mxu0
        %v2706 = vadd.f32 %v2072, %v2705
        %v2707 = vpop.f32.mrb[0].mxu0
        %2708 = vmatprep.mubr.bf16.mxu0 %v2435
        %2709 = vmatmul.mubr.bf16.gmra.mrb[0].mxu0 %v2434
        %v2710 = vpop.f32.mrb[0].mxu0
        %v2711 = vadd.f32 %v2077, %v2710
        %v2712 = vpop.f32.mrb[0].mxu0
        %v2713 = vpop.f32.mrb[0].mxu0
        %v2714 = vadd.f32 %v2082, %v2713
        %v2715 = vpop.f32.mrb[0].mxu0
        %2716 = vmatprep.mubr.bf16.mxu0 %v2437
        %2717 = vmatmul.mubr.bf16.gmra.mrb[0].mxu0 %v2436
        %v2718 = vpop.f32.mrb[0].mxu0
        %v2719 = vadd.f32 %v2087, %v2718
        %v2720 = vpop.f32.mrb[0].mxu0
        %v2721 = vpop.f32.mrb[0].mxu0
        %v2722 = vadd.f32 %v2092, %v2721
        %v2723 = vpop.f32.mrb[0].mxu0
        %2724 = vmatprep.mubr.bf16.mxu0 %v2439
        %2725 = vmatmul.mubr.bf16.gmra.mrb[0].mxu0 %v2438
        %v2726 = vpop.f32.mrb[0].mxu0
        %v2727 = vadd.f32 %v2097, %v2726
        %v2728 = vpop.f32.mrb[0].mxu0
        %v2729 = vpop.f32.mrb[0].mxu0
        %v2730 = vadd.f32 %v2102, %v2729
        %v2731 = vpop.f32.mrb[0].mxu0
        %2732 = vmatprep.mubr.bf16.mxu0 %v2441
        %2733 = vmatmul.mubr.bf16.gmra.mrb[0].mxu0 %v2440
        %v2734 = vpop.f32.mrb[0].mxu0
        %v2735 = vadd.f32 %v2107, %v2734
        %v2736 = vpop.f32.mrb[0].mxu0
        %v2737 = vpop.f32.mrb[0].mxu0
        %v2738 = vadd.f32 %v2112, %v2737
        %v2739 = vpop.f32.mrb[0].mxu0
        %2740 = vmatprep.mubr.bf16.mxu0 %v2443
        %2741 = vmatmul.mubr.bf16.gmra.mrb[0].mxu0 %v2442
        %v2742 = vpop.f32.mrb[0].mxu0
        %v2743 = vadd.f32 %v2117, %v2742
        %v2744 = vpop.f32.mrb[0].mxu0
        %v2745 = vpop.f32.mrb[0].mxu0
        %v2746 = vadd.f32 %v2122, %v2745
        %v2747 = vpop.f32.mrb[0].mxu0
        %2748 = vmatprep.mubr.bf16.mxu0 %v2445
        %2749 = vmatmul.mubr.bf16.gmra.mrb[0].mxu0 %v2444
        %v2750 = vpop.f32.mrb[0].mxu0
        %v2751 = vadd.f32 %v2127, %v2750
        %v2752 = vpop.f32.mrb[0].mxu0
        %v2753 = vpop.f32.mrb[0].mxu0
        %v2754 = vadd.f32 %v2132, %v2753
        %v2755 = vpop.f32.mrb[0].mxu0
        %2756 = vmatprep.mubr.bf16.mxu0 %v2447
        %2757 = vmatmul.mubr.bf16.gmra.mrb[0].mxu0 %v2446
        %v2758 = vpop.f32.mrb[0].mxu0
        %v2759 = vadd.f32 %v2137, %v2758
        %v2760 = vpop.f32.mrb[0].mxu0
        %v2761 = vpop.f32.mrb[0].mxu0
        %v2762 = vadd.f32 %v2142, %v2761
        %v2763 = vpop.f32.mrb[0].mxu0
        %2764 = vmatprep.mubr.bf16.mxu0 %v2449
        %2765 = vmatmul.mubr.bf16.gmra.mrb[0].mxu0 %v2448
        %v2766 = vpop.f32.mrb[0].mxu0
        %v2767 = vadd.f32 %v2147, %v2766
        %v2768 = vpop.f32.mrb[0].mxu0
        %v2769 = vpop.f32.mrb[0].mxu0
        %v2770 = vadd.f32 %v2152, %v2769
        %v2771 = vpop.f32.mrb[0].mxu0
        %2772 = vmatprep.mubr.bf16.mxu0 %v2451
        %2773 = vmatmul.mubr.bf16.gmra.mrb[0].mxu0 %v2450
        %v2774 = vpop.f32.mrb[0].mxu0
        %v2775 = vadd.f32 %v2157, %v2774
        %v2776 = vpop.f32.mrb[0].mxu0
        %v2777 = vpop.f32.mrb[0].mxu0
        %v2778 = vadd.f32 %v2162, %v2777
        %v2779 = vpop.f32.mrb[0].mxu0
        %2780 = vmatprep.mubr.bf16.mxu0 %v2453
        %2781 = vmatmul.mubr.bf16.gmra.mrb[0].mxu0 %v2452
        %v2782 = vpop.f32.mrb[0].mxu0
        %v2783 = vadd.f32 %v2167, %v2782
        %v2784 = vpop.f32.mrb[0].mxu0
        %v2785 = vpop.f32.mrb[0].mxu0
        %v2786 = vadd.f32 %v2172, %v2785
        %v2787 = vpop.f32.mrb[0].mxu0
        %2788 = vmatprep.mubr.bf16.mxu0 %v2455
        %2789 = vmatmul.mubr.bf16.gmra.mrb[0].mxu0 %v2454
        %v2790 = vpop.f32.mrb[0].mxu0
        %v2791 = vadd.f32 %v2177, %v2790
        %v2792 = vpop.f32.mrb[0].mxu0
        %v2793 = vpop.f32.mrb[0].mxu0
        %v2794 = vadd.f32 %v2182, %v2793
        %v2795 = vpop.f32.mrb[0].mxu0
        %2796 = vmatprep.mubr.bf16.mxu0 %v2457
        %2797 = vmatmul.mubr.bf16.gmra.mrb[0].mxu0 %v2456
        %v2798 = vpop.f32.mrb[0].mxu0
        %v2799 = vadd.f32 %v2187, %v2798
        %v2800 = vpop.f32.mrb[0].mxu0
        %v2801 = vpop.f32.mrb[0].mxu0
        %v2802 = vadd.f32 %v2192, %v2801
        %v2803 = vpop.f32.mrb[0].mxu0
        %2804 = vmatprep.mubr.bf16.mxu0 %v2459
        %2805 = vmatmul.mubr.bf16.gmra.mrb[0].mxu0 %v2458
        %v2806 = vpop.f32.mrb[0].mxu0
        %v2807 = vadd.f32 %v2197, %v2806
        %v2808 = vpop.f32.mrb[0].mxu0
        %v2809 = vpop.f32.mrb[0].mxu0
        %v2810 = vadd.f32 %v2202, %v2809
        %v2811 = vpop.f32.mrb[0].mxu0
        %2812 = vdwg.mxu0
        %v2813 = vpack.c.bf16 %v2562, %v2559
        %v2814 = vpack.c.bf16 %v2570, %v2567
        %v2815 = vpack.c.bf16 %v2578, %v2575
        %v2816 = vpack.c.bf16 %v2586, %v2583
        %v2817 = vpack.c.bf16 %v2594, %v2591
        %v2818 = vpack.c.bf16 %v2602, %v2599
        %v2819 = vpack.c.bf16 %v2610, %v2607
        %v2820 = vpack.c.bf16 %v2618, %v2615
        %v2821 = vpack.c.bf16 %v2626, %v2623
        %v2822 = vpack.c.bf16 %v2634, %v2631
        %v2823 = vpack.c.bf16 %v2642, %v2639
        %v2824 = vpack.c.bf16 %v2650, %v2647
        %v2825 = vpack.c.bf16 %v2658, %v2655
        %v2826 = vpack.c.bf16 %v2666, %v2663
        %v2827 = vpack.c.bf16 %v2674, %v2671
        %v2828 = vpack.c.bf16 %v2682, %v2679
        %v2829 = vpack.c.bf16 %v2690, %v2687
        %v2830 = vpack.c.bf16 %v2698, %v2695
        %v2831 = vpack.c.bf16 %v2706, %v2703
        %v2832 = vpack.c.bf16 %v2714, %v2711
        %v2833 = vpack.c.bf16 %v2722, %v2719
        %v2834 = vpack.c.bf16 %v2730, %v2727
        %v2835 = vpack.c.bf16 %v2738, %v2735
        %v2836 = vpack.c.bf16 %v2746, %v2743
        %v2837 = vpack.c.bf16 %v2754, %v2751
        %v2838 = vpack.c.bf16 %v2762, %v2759
        %v2839 = vpack.c.bf16 %v2770, %v2767
        %v2840 = vpack.c.bf16 %v2778, %v2775
        %v2841 = vpack.c.bf16 %v2786, %v2783
        %v2842 = vpack.c.bf16 %v2794, %v2791
        %v2843 = vpack.c.bf16 %v2802, %v2799
        %v2844 = vpack.c.bf16 %v2810, %v2807
        %v2845 = vld [vmem:[%s0] sm:$0xff]
        %v2846 = vld [vmem:[%s0 + $0x8] sm:$0xff]
        %v2847 = vld [vmem:[%s0 + $0x10] sm:$0x1]
        %v2848 = vld [vmem:[%s0 + $0x18] sm:$0x1]
        %v2849 = vld [vmem:[#allocation2] sm:$0xff]
        %v2850 = vld [vmem:[#allocation2 + $0x8] sm:$0x1]
        %v2851 = vld [vmem:[#allocation3] sm:$0xff]
        %v2852 = vld [vmem:[#allocation3 + $0x8] sm:$0x1]
        %s2853 = smul.u32 %s24, 128
        %v2854 = vlaneseq
        %v2855 = vand.u32 %v2854, 127
        %v2856 = vstv %s2853
        %v2857 = vadd.s32 %v2856, %v2855
        %vm2858 = vcmp.lt.s32.totalorder %v2857, 288
        %v2859 = vpack.c.bf16 %v2847, %v2845
        %vm2860 = vcmask 261120
        %v2862 = vsel %vm2860, %v2859, 0
        %2864 = vmatprep.subr.bf16.mxu0 0
        %2865 = vmatpush1.bf16.msra.mxu0 %v2813
        %2866 = vmatprep.subr.bf16.mxu0 0
        %2867 = vmatpush1.bf16.msra.mxu0 %v2814
        %2868 = vmatprep.subr.bf16.mxu0 0
        %2869 = vmatpush1.bf16.msra.mxu0 0
        %2870 = vmatprep.subr.bf16.mxu0 0
        %2871 = vmatpush1.bf16.msra.mxu0 0
        %2872 = vmatprep.subr.bf16.mxu0 0
        %2873 = vmatpush1.bf16.msra.mxu0 0
        %2874 = vmatprep.subr.bf16.mxu0 0
        %2875 = vmatpush1.bf16.msra.mxu0 0
        %2876 = vmatprep.subr.bf16.mxu0 0
        %2877 = vmatpush1.bf16.msra.mxu0 0
        %2878 = vmatprep.subr.bf16.mxu0 0
        %2879 = vmatpush1.bf16.msra.mxu0 0
        %2880 = vmatprep.subr.bf16.mxu0 0
        %2881 = vmatpush1.bf16.msra.mxu0 0
        %2882 = vmatprep.subr.bf16.mxu0 0
        %2883 = vmatpush1.bf16.msra.mxu0 0
        %2884 = vmatprep.subr.bf16.mxu0 0
        %2885 = vmatpush1.bf16.msra.mxu0 0
        %2886 = vmatprep.subr.bf16.mxu0 0
        %2887 = vmatpush1.bf16.msra.mxu0 0
        %2888 = vmatprep.subr.bf16.mxu0 0
        %2889 = vmatpush1.bf16.msra.mxu0 0
        %2890 = vmatprep.subr.bf16.mxu0 0
        %2891 = vmatpush1.bf16.msra.mxu0 0
        %2892 = vmatprep.subr.bf16.mxu0 0
        %2893 = vmatpush1.bf16.msra.mxu0 0
        %2894 = vmatprep.subr.bf16.mxu0 0
        %2895 = vmatpush1.bf16.msra.mxu0 0
        %2896 = vmatprep.mubr.bf16.mxu0 0
        %2897 = vmatmul.mubr.bf16.gmra.mrb[0].mxu0 %v2862
        %v2898 = vpop.f32.mrb[0].mxu0
        %v2899 = vadd.f32 0.0, %v2898
        %v2900 = vpop.f32.mrb[0].mxu0
        %v2901 = vpop.f32.mrb[0].mxu0
        %v2902 = vadd.f32 0.0, %v2901
        %v2903 = vpop.f32.mrb[0].mxu0
        %2904 = vdwg.mxu0
        %v2905 = vsel %vm2858, 1, 0
        %vm2906 = vcmp.eq.s32.totalorder %v2905, 1
        %v2907 = vsel %vm2906, %v2899, -1e+30
        %v2908 = vsel %vm2906, %v2902, -1e+30
        %2909 = vmax.xlane.f32.xlu0 %v2907
        %v2910 = vpop.xlane.xlu0 %2909
        %vm2911 = vcmask 1040384
        %v2912 = vsel %vm2911, %v2908, -inf
        %2913 = vmax.xlane.f32.xlu0 %v2912
        %v2914 = vpop.xlane.xlu0 %2913
        %v2915 = vmax.f32 %v2849, %v2910
        %v2916 = vmax.f32 %v2850, %v2914
        %v2917 = vsub.f32 %v2849, %v2915
        %v2918 = vsub.f32 %v2850, %v2916
        %v2919 = vmul.f32 %v2917, 1.442695
        %v2920 = vpow.pop %v2919
        %v2921 = vmul.f32 %v2918, 1.442695
        %v2922 = vpow.pop %v2921
        %2924 = vset.pattern.permute.xlu0 0
        %2925 = vperm.xlu0 %2924, %v2915
        %v2926 = vpop.permute.xlu0 %2925
        %2929 = vset.pattern.permute.xlu0 0
        %2930 = vperm.xlu0 %2929, %v2916
        %v2931 = vpop.permute.xlu0 %2930
        %v2933 = vsub.f32 %v2907, %v2926
        %v2934 = vsub.f32 %v2908, %v2931
        %v2935 = vmul.f32 %v2933, 1.442695
        %v2936 = vpow.pop %v2935
        %v2937 = vmul.f32 %v2934, 1.442695
        %v2938 = vpow.pop %v2937
        %v2939 = vpack.c.bf16 %v2938, %v2936
        %2940 = vmatprep.subr.bf16.mxu0 0
        %2941 = vmatpush1.bf16.xpose.msra.mxu0 %v2829
        %2942 = vmatprep.subr.bf16.mxu0 0
        %2943 = vmatpush1.bf16.xpose.msra.mxu0 %v2830
        %2944 = vmatprep.subr.bf16.mxu0 0
        %2945 = vmatpush1.bf16.xpose.msra.mxu0 0
        %2946 = vmatprep.subr.bf16.mxu0 0
        %2947 = vmatpush1.bf16.xpose.msra.mxu0 0
        %2948 = vmatprep.subr.bf16.mxu0 0
        %2949 = vmatpush1.bf16.xpose.msra.mxu0 0
        %2950 = vmatprep.subr.bf16.mxu0 0
        %2951 = vmatpush1.bf16.xpose.msra.mxu0 0
        %2952 = vmatprep.subr.bf16.mxu0 0
        %2953 = vmatpush1.bf16.xpose.msra.mxu0 0
        %2954 = vmatprep.subr.bf16.mxu0 0
        %2955 = vmatpush1.bf16.xpose.msra.mxu0 0
        %2956 = vmatprep.subr.bf16.mxu0 0
        %2957 = vmatpush1.bf16.xpose.msra.mxu0 0
        %2958 = vmatprep.subr.bf16.mxu0 0
        %2959 = vmatpush1.bf16.xpose.msra.mxu0 0
        %2960 = vmatprep.subr.bf16.mxu0 0
        %2961 = vmatpush1.bf16.xpose.msra.mxu0 0
        %2962 = vmatprep.subr.bf16.mxu0 0
        %2963 = vmatpush1.bf16.xpose.msra.mxu0 0
        %2964 = vmatprep.subr.bf16.mxu0 0
        %2965 = vmatpush1.bf16.xpose.msra.mxu0 0
        %2966 = vmatprep.subr.bf16.mxu0 0
        %2967 = vmatpush1.bf16.xpose.msra.mxu0 0
        %2968 = vmatprep.subr.bf16.mxu0 0
        %2969 = vmatpush1.bf16.xpose.msra.mxu0 0
        %2970 = vmatprep.subr.bf16.mxu0 0
        %2971 = vmatpush1.bf16.xpose.msra.mxu0 0
        %2972 = vmatprep.mubr.bf16.mxu0 0
        %2973 = vmatmul.mubr.bf16.gmra.mrb[0].mxu0 %v2939
        %v2974 = vpop.f32.mrb[0].mxu0
        %v2975 = vadd.f32 0.0, %v2974
        %v2976 = vpop.f32.mrb[0].mxu0
        %v2977 = vpop.f32.mrb[0].mxu0
        %v2978 = vadd.f32 0.0, %v2977
        %v2979 = vpop.f32.mrb[0].mxu0
        %2980 = vdwg.mxu0
        %2981 = vadd.xlane.f32.xlu0 %v2936
        %v2982 = vpop.xlane.xlu0 %2981
        %v2983 = vsel %vm2911, %v2938, 0.0
        %2984 = vadd.xlane.f32.xlu0 %v2983
        %v2985 = vpop.xlane.xlu0 %2984
        %2987 = vset.pattern.permute.xlu0 0
        %2988 = vperm.xlu0 %2987, %v2920
        %v2989 = vpop.permute.xlu0 %2988
        %2992 = vset.pattern.permute.xlu0 0
        %2993 = vperm.xlu0 %2992, %v2922
        %v2994 = vpop.permute.xlu0 %2993
        %2997 = vrot.lane.b32.xlu0 %v2859, 96
        %v2998 = vpop.permute.xlu0 %2997
        %v3000 = vsel %vm2860, %v2998, 0
        %3002 = vmatprep.subr.bf16.mxu0 0
        %3003 = vmatpush1.bf16.msra.mxu0 %v2815
        %3004 = vmatprep.subr.bf16.mxu0 0
        %3005 = vmatpush1.bf16.msra.mxu0 %v2816
        %3006 = vmatprep.subr.bf16.mxu0 0
        %3007 = vmatpush1.bf16.msra.mxu0 0
        %3008 = vmatprep.subr.bf16.mxu0 0
        %3009 = vmatpush1.bf16.msra.mxu0 0
        %3010 = vmatprep.subr.bf16.mxu0 0
        %3011 = vmatpush1.bf16.msra.mxu0 0
        %3012 = vmatprep.subr.bf16.mxu0 0
        %3013 = vmatpush1.bf16.msra.mxu0 0
        %3014 = vmatprep.subr.bf16.mxu0 0
        %3015 = vmatpush1.bf16.msra.mxu0 0
        %3016 = vmatprep.subr.bf16.mxu0 0
        %3017 = vmatpush1.bf16.msra.mxu0 0
        %3018 = vmatprep.subr.bf16.mxu0 0
        %3019 = vmatpush1.bf16.msra.mxu0 0
        %3020 = vmatprep.subr.bf16.mxu0 0
        %3021 = vmatpush1.bf16.msra.mxu0 0
        %3022 = vmatprep.subr.bf16.mxu0 0
        %3023 = vmatpush1.bf16.msra.mxu0 0
        %3024 = vmatprep.subr.bf16.mxu0 0
        %3025 = vmatpush1.bf16.msra.mxu0 0
        %3026 = vmatprep.subr.bf16.mxu0 0
        %3027 = vmatpush1.bf16.msra.mxu0 0
        %3028 = vmatprep.subr.bf16.mxu0 0
        %3029 = vmatpush1.bf16.msra.mxu0 0
        %3030 = vmatprep.subr.bf16.mxu0 0
        %3031 = vmatpush1.bf16.msra.mxu0 0
        %3032 = vmatprep.subr.bf16.mxu0 0
        %3033 = vmatpush1.bf16.msra.mxu0 0
        %3034 = vmatprep.mubr.bf16.mxu0 0
        %3035 = vmatmul.mubr.bf16.gmra.mrb[0].mxu0 %v3000
        %v3036 = vpop.f32.mrb[0].mxu0
        %v3037 = vadd.f32 0.0, %v3036
        %v3038 = vpop.f32.mrb[0].mxu0
        %v3039 = vpop.f32.mrb[0].mxu0
        %v3040 = vadd.f32 0.0, %v3039
        %v3041 = vpop.f32.mrb[0].mxu0
        %3042 = vdwg.mxu0
        %v3043 = vsel %vm2906, %v3037, -1e+30
        %v3044 = vsel %vm2906, %v3040, -1e+30
        %3045 = vmax.xlane.f32.xlu0 %v3043
        %v3046 = vpop.xlane.xlu0 %3045
        %v3047 = vsel %vm2911, %v3044, -inf
        %3048 = vmax.xlane.f32.xlu0 %v3047
        %v3049 = vpop.xlane.xlu0 %3048
        %v3050 = vmax.f32 %v2849, %v3046
        %v3051 = vmax.f32 %v2850, %v3049
        %v3052 = vsub.f32 %v2849, %v3050
        %v3053 = vsub.f32 %v2850, %v3051
        %v3054 = vmul.f32 %v3052, 1.442695
        %v3055 = vpow.pop %v3054
        %v3056 = vmul.f32 %v3053, 1.442695
        %v3057 = vpow.pop %v3056
        %3059 = vset.pattern.permute.xlu0 1
        %3060 = vperm.xlu0 %3059, %v3050
        %v3061 = vpop.permute.xlu0 %3060
        %3064 = vset.pattern.permute.xlu0 1
        %3065 = vperm.xlu0 %3064, %v3051
        %v3066 = vpop.permute.xlu0 %3065
        %v3068 = vsub.f32 %v3043, %v3061
        %v3069 = vsub.f32 %v3044, %v3066
        %v3070 = vmul.f32 %v3068, 1.442695
        %v3071 = vpow.pop %v3070
        %v3072 = vmul.f32 %v3069, 1.442695
        %v3073 = vpow.pop %v3072
        %v3074 = vpack.c.bf16 %v3073, %v3071
        %3075 = vmatprep.subr.bf16.mxu0 0
        %3076 = vmatpush1.bf16.xpose.msra.mxu0 %v2831
        %3077 = vmatprep.subr.bf16.mxu0 0
        %3078 = vmatpush1.bf16.xpose.msra.mxu0 %v2832
        %3079 = vmatprep.subr.bf16.mxu0 0
        %3080 = vmatpush1.bf16.xpose.msra.mxu0 0
        %3081 = vmatprep.subr.bf16.mxu0 0
        %3082 = vmatpush1.bf16.xpose.msra.mxu0 0
        %3083 = vmatprep.subr.bf16.mxu0 0
        %3084 = vmatpush1.bf16.xpose.msra.mxu0 0
        %3085 = vmatprep.subr.bf16.mxu0 0
        %3086 = vmatpush1.bf16.xpose.msra.mxu0 0
        %3087 = vmatprep.subr.bf16.mxu0 0
        %3088 = vmatpush1.bf16.xpose.msra.mxu0 0
        %3089 = vmatprep.subr.bf16.mxu0 0
        %3090 = vmatpush1.bf16.xpose.msra.mxu0 0
        %3091 = vmatprep.subr.bf16.mxu0 0
        %3092 = vmatpush1.bf16.xpose.msra.mxu0 0
        %3093 = vmatprep.subr.bf16.mxu0 0
        %3094 = vmatpush1.bf16.xpose.msra.mxu0 0
        %3095 = vmatprep.subr.bf16.mxu0 0
        %3096 = vmatpush1.bf16.xpose.msra.mxu0 0
        %3097 = vmatprep.subr.bf16.mxu0 0
        %3098 = vmatpush1.bf16.xpose.msra.mxu0 0
        %3099 = vmatprep.subr.bf16.mxu0 0
        %3100 = vmatpush1.bf16.xpose.msra.mxu0 0
        %3101 = vmatprep.subr.bf16.mxu0 0
        %3102 = vmatpush1.bf16.xpose.msra.mxu0 0
        %3103 = vmatprep.subr.bf16.mxu0 0
        %3104 = vmatpush1.bf16.xpose.msra.mxu0 0
        %3105 = vmatprep.subr.bf16.mxu0 0
        %3106 = vmatpush1.bf16.xpose.msra.mxu0 0
        %3107 = vmatprep.mubr.bf16.mxu0 0
        %3108 = vmatmul.mubr.bf16.gmra.mrb[0].mxu0 %v3074
        %v3109 = vpop.f32.mrb[0].mxu0
        %v3110 = vadd.f32 0.0, %v3109
        %v3111 = vpop.f32.mrb[0].mxu0
        %v3112 = vpop.f32.mrb[0].mxu0
        %v3113 = vadd.f32 0.0, %v3112
        %v3114 = vpop.f32.mrb[0].mxu0
        %3115 = vdwg.mxu0
        %3116 = vadd.xlane.f32.xlu0 %v3071
        %v3117 = vpop.xlane.xlu0 %3116
        %v3118 = vsel %vm2911, %v3073, 0.0
        %3119 = vadd.xlane.f32.xlu0 %v3118
        %v3120 = vpop.xlane.xlu0 %3119
        %3122 = vset.pattern.permute.xlu0 1
        %3123 = vperm.xlu0 %3122, %v3055
        %v3124 = vpop.permute.xlu0 %3123
        %3127 = vset.pattern.permute.xlu0 1
        %3128 = vperm.xlu0 %3127, %v3057
        %v3129 = vpop.permute.xlu0 %3128
        %3131 = vrot.lane.b32.xlu0 %v2859, 64
        %v3132 = vpop.permute.xlu0 %3131
        %v3134 = vsel %vm2860, %v3132, 0
        %3136 = vmatprep.subr.bf16.mxu0 0
        %3137 = vmatpush1.bf16.msra.mxu0 %v2817
        %3138 = vmatprep.subr.bf16.mxu0 0
        %3139 = vmatpush1.bf16.msra.mxu0 %v2818
        %3140 = vmatprep.subr.bf16.mxu0 0
        %3141 = vmatpush1.bf16.msra.mxu0 0
        %3142 = vmatprep.subr.bf16.mxu0 0
        %3143 = vmatpush1.bf16.msra.mxu0 0
        %3144 = vmatprep.subr.bf16.mxu0 0
        %3145 = vmatpush1.bf16.msra.mxu0 0
        %3146 = vmatprep.subr.bf16.mxu0 0
        %3147 = vmatpush1.bf16.msra.mxu0 0
        %3148 = vmatprep.subr.bf16.mxu0 0
        %3149 = vmatpush1.bf16.msra.mxu0 0
        %3150 = vmatprep.subr.bf16.mxu0 0
        %3151 = vmatpush1.bf16.msra.mxu0 0
        %3152 = vmatprep.subr.bf16.mxu0 0
        %3153 = vmatpush1.bf16.msra.mxu0 0
        %3154 = vmatprep.subr.bf16.mxu0 0
        %3155 = vmatpush1.bf16.msra.mxu0 0
        %3156 = vmatprep.subr.bf16.mxu0 0
        %3157 = vmatpush1.bf16.msra.mxu0 0
        %3158 = vmatprep.subr.bf16.mxu0 0
        %3159 = vmatpush1.bf16.msra.mxu0 0
        %3160 = vmatprep.subr.bf16.mxu0 0
        %3161 = vmatpush1.bf16.msra.mxu0 0
        %3162 = vmatprep.subr.bf16.mxu0 0
        %3163 = vmatpush1.bf16.msra.mxu0 0
        %3164 = vmatprep.subr.bf16.mxu0 0
        %3165 = vmatpush1.bf16.msra.mxu0 0
        %3166 = vmatprep.subr.bf16.mxu0 0
        %3167 = vmatpush1.bf16.msra.mxu0 0
        %3168 = vmatprep.mubr.bf16.mxu0 0
        %3169 = vmatmul.mubr.bf16.gmra.mrb[0].mxu0 %v3134
        %v3170 = vpop.f32.mrb[0].mxu0
        %v3171 = vadd.f32 0.0, %v3170
        %v3172 = vpop.f32.mrb[0].mxu0
        %v3173 = vpop.f32.mrb[0].mxu0
        %v3174 = vadd.f32 0.0, %v3173
        %v3175 = vpop.f32.mrb[0].mxu0
        %3176 = vdwg.mxu0
        %v3177 = vsel %vm2906, %v3171, -1e+30
        %v3178 = vsel %vm2906, %v3174, -1e+30
        %3179 = vmax.xlane.f32.xlu0 %v3177
        %v3180 = vpop.xlane.xlu0 %3179
        %v3181 = vsel %vm2911, %v3178, -inf
        %3182 = vmax.xlane.f32.xlu0 %v3181
        %v3183 = vpop.xlane.xlu0 %3182
        %v3184 = vmax.f32 %v2849, %v3180
        %v3185 = vmax.f32 %v2850, %v3183
        %v3186 = vsub.f32 %v2849, %v3184
        %v3187 = vsub.f32 %v2850, %v3185
        %v3188 = vmul.f32 %v3186, 1.442695
        %v3189 = vpow.pop %v3188
        %v3190 = vmul.f32 %v3187, 1.442695
        %v3191 = vpow.pop %v3190
        %3193 = vset.pattern.permute.xlu0 2
        %3194 = vperm.xlu0 %3193, %v3184
        %v3195 = vpop.permute.xlu0 %3194
        %3198 = vset.pattern.permute.xlu0 2
        %3199 = vperm.xlu0 %3198, %v3185
        %v3200 = vpop.permute.xlu0 %3199
        %v3202 = vsub.f32 %v3177, %v3195
        %v3203 = vsub.f32 %v3178, %v3200
        %v3204 = vmul.f32 %v3202, 1.442695
        %v3205 = vpow.pop %v3204
        %v3206 = vmul.f32 %v3203, 1.442695
        %v3207 = vpow.pop %v3206
        %v3208 = vpack.c.bf16 %v3207, %v3205
        %3209 = vmatprep.subr.bf16.mxu0 0
        %3210 = vmatpush1.bf16.xpose.msra.mxu0 %v2833
        %3211 = vmatprep.subr.bf16.mxu0 0
        %3212 = vmatpush1.bf16.xpose.msra.mxu0 %v2834
        %3213 = vmatprep.subr.bf16.mxu0 0
        %3214 = vmatpush1.bf16.xpose.msra.mxu0 0
        %3215 = vmatprep.subr.bf16.mxu0 0
        %3216 = vmatpush1.bf16.xpose.msra.mxu0 0
        %3217 = vmatprep.subr.bf16.mxu0 0
        %3218 = vmatpush1.bf16.xpose.msra.mxu0 0
        %3219 = vmatprep.subr.bf16.mxu0 0
        %3220 = vmatpush1.bf16.xpose.msra.mxu0 0
        %3221 = vmatprep.subr.bf16.mxu0 0
        %3222 = vmatpush1.bf16.xpose.msra.mxu0 0
        %3223 = vmatprep.subr.bf16.mxu0 0
        %3224 = vmatpush1.bf16.xpose.msra.mxu0 0
        %3225 = vmatprep.subr.bf16.mxu0 0
        %3226 = vmatpush1.bf16.xpose.msra.mxu0 0
        %3227 = vmatprep.subr.bf16.mxu0 0
        %3228 = vmatpush1.bf16.xpose.msra.mxu0 0
        %3229 = vmatprep.subr.bf16.mxu0 0
        %3230 = vmatpush1.bf16.xpose.msra.mxu0 0
        %3231 = vmatprep.subr.bf16.mxu0 0
        %3232 = vmatpush1.bf16.xpose.msra.mxu0 0
        %3233 = vmatprep.subr.bf16.mxu0 0
        %3234 = vmatpush1.bf16.xpose.msra.mxu0 0
        %3235 = vmatprep.subr.bf16.mxu0 0
        %3236 = vmatpush1.bf16.xpose.msra.mxu0 0
        %3237 = vmatprep.subr.bf16.mxu0 0
        %3238 = vmatpush1.bf16.xpose.msra.mxu0 0
        %3239 = vmatprep.subr.bf16.mxu0 0
        %3240 = vmatpush1.bf16.xpose.msra.mxu0 0
        %3241 = vmatprep.mubr.bf16.mxu0 0
        %3242 = vmatmul.mubr.bf16.gmra.mrb[0].mxu0 %v3208
        %v3243 = vpop.f32.mrb[0].mxu0
        %v3244 = vadd.f32 0.0, %v3243
        %v3245 = vpop.f32.mrb[0].mxu0
        %v3246 = vpop.f32.mrb[0].mxu0
        %v3247 = vadd.f32 0.0, %v3246
        %v3248 = vpop.f32.mrb[0].mxu0
        %3249 = vdwg.mxu0
        %3250 = vadd.xlane.f32.xlu0 %v3205
        %v3251 = vpop.xlane.xlu0 %3250
        %v3252 = vsel %vm2911, %v3207, 0.0
        %3253 = vadd.xlane.f32.xlu0 %v3252
        %v3254 = vpop.xlane.xlu0 %3253
        %3256 = vset.pattern.permute.xlu0 2
        %3257 = vperm.xlu0 %3256, %v3189
        %v3258 = vpop.permute.xlu0 %3257
        %3261 = vset.pattern.permute.xlu0 2
        %3262 = vperm.xlu0 %3261, %v3191
        %v3263 = vpop.permute.xlu0 %3262
        %3265 = vrot.lane.b32.xlu0 %v2859, 32
        %v3266 = vpop.permute.xlu0 %3265
        %v3268 = vsel %vm2860, %v3266, 0
        %3270 = vmatprep.subr.bf16.mxu0 0
        %3271 = vmatpush1.bf16.msra.mxu0 %v2819
        %3272 = vmatprep.subr.bf16.mxu0 0
        %3273 = vmatpush1.bf16.msra.mxu0 %v2820
        %3274 = vmatprep.subr.bf16.mxu0 0
        %3275 = vmatpush1.bf16.msra.mxu0 0
        %3276 = vmatprep.subr.bf16.mxu0 0
        %3277 = vmatpush1.bf16.msra.mxu0 0
        %3278 = vmatprep.subr.bf16.mxu0 0
        %3279 = vmatpush1.bf16.msra.mxu0 0
        %3280 = vmatprep.subr.bf16.mxu0 0
        %3281 = vmatpush1.bf16.msra.mxu0 0
        %3282 = vmatprep.subr.bf16.mxu0 0
        %3283 = vmatpush1.bf16.msra.mxu0 0
        %3284 = vmatprep.subr.bf16.mxu0 0
        %3285 = vmatpush1.bf16.msra.mxu0 0
        %3286 = vmatprep.subr.bf16.mxu0 0
        %3287 = vmatpush1.bf16.msra.mxu0 0
        %3288 = vmatprep.subr.bf16.mxu0 0
        %3289 = vmatpush1.bf16.msra.mxu0 0
        %3290 = vmatprep.subr.bf16.mxu0 0
        %3291 = vmatpush1.bf16.msra.mxu0 0
        %3292 = vmatprep.subr.bf16.mxu0 0
        %3293 = vmatpush1.bf16.msra.mxu0 0
        %3294 = vmatprep.subr.bf16.mxu0 0
        %3295 = vmatpush1.bf16.msra.mxu0 0
        %3296 = vmatprep.subr.bf16.mxu0 0
        %3297 = vmatpush1.bf16.msra.mxu0 0
        %3298 = vmatprep.subr.bf16.mxu0 0
        %3299 = vmatpush1.bf16.msra.mxu0 0
        %3300 = vmatprep.subr.bf16.mxu0 0
        %3301 = vmatpush1.bf16.msra.mxu0 0
        %3302 = vmatprep.mubr.bf16.mxu0 0
        %3303 = vmatmul.mubr.bf16.gmra.mrb[0].mxu0 %v3268
        %v3304 = vpop.f32.mrb[0].mxu0
        %v3305 = vadd.f32 0.0, %v3304
        %v3306 = vpop.f32.mrb[0].mxu0
        %v3307 = vpop.f32.mrb[0].mxu0
        %v3308 = vadd.f32 0.0, %v3307
        %v3309 = vpop.f32.mrb[0].mxu0
        %3310 = vdwg.mxu0
        %v3311 = vsel %vm2906, %v3305, -1e+30
        %v3312 = vsel %vm2906, %v3308, -1e+30
        %3313 = vmax.xlane.f32.xlu0 %v3311
        %v3314 = vpop.xlane.xlu0 %3313
        %v3315 = vsel %vm2911, %v3312, -inf
        %3316 = vmax.xlane.f32.xlu0 %v3315
        %v3317 = vpop.xlane.xlu0 %3316
        %v3318 = vmax.f32 %v2849, %v3314
        %v3319 = vmax.f32 %v2850, %v3317
        %v3320 = vsub.f32 %v2849, %v3318
        %v3321 = vsub.f32 %v2850, %v3319
        %v3322 = vmul.f32 %v3320, 1.442695
        %v3323 = vpow.pop %v3322
        %v3324 = vmul.f32 %v3321, 1.442695
        %v3325 = vpow.pop %v3324
        %3327 = vset.pattern.permute.xlu0 3
        %3328 = vperm.xlu0 %3327, %v3318
        %v3329 = vpop.permute.xlu0 %3328
        %3332 = vset.pattern.permute.xlu0 3
        %3333 = vperm.xlu0 %3332, %v3319
        %v3334 = vpop.permute.xlu0 %3333
        %v3336 = vsub.f32 %v3311, %v3329
        %v3337 = vsub.f32 %v3312, %v3334
        %v3338 = vmul.f32 %v3336, 1.442695
        %v3339 = vpow.pop %v3338
        %v3340 = vmul.f32 %v3337, 1.442695
        %v3341 = vpow.pop %v3340
        %v3342 = vpack.c.bf16 %v3341, %v3339
        %3343 = vmatprep.subr.bf16.mxu0 0
        %3344 = vmatpush1.bf16.xpose.msra.mxu0 %v2835
        %3345 = vmatprep.subr.bf16.mxu0 0
        %3346 = vmatpush1.bf16.xpose.msra.mxu0 %v2836
        %3347 = vmatprep.subr.bf16.mxu0 0
        %3348 = vmatpush1.bf16.xpose.msra.mxu0 0
        %3349 = vmatprep.subr.bf16.mxu0 0
        %3350 = vmatpush1.bf16.xpose.msra.mxu0 0
        %3351 = vmatprep.subr.bf16.mxu0 0
        %3352 = vmatpush1.bf16.xpose.msra.mxu0 0
        %3353 = vmatprep.subr.bf16.mxu0 0
        %3354 = vmatpush1.bf16.xpose.msra.mxu0 0
        %3355 = vmatprep.subr.bf16.mxu0 0
        %3356 = vmatpush1.bf16.xpose.msra.mxu0 0
        %3357 = vmatprep.subr.bf16.mxu0 0
        %3358 = vmatpush1.bf16.xpose.msra.mxu0 0
        %3359 = vmatprep.subr.bf16.mxu0 0
        %3360 = vmatpush1.bf16.xpose.msra.mxu0 0
        %3361 = vmatprep.subr.bf16.mxu0 0
        %3362 = vmatpush1.bf16.xpose.msra.mxu0 0
        %3363 = vmatprep.subr.bf16.mxu0 0
        %3364 = vmatpush1.bf16.xpose.msra.mxu0 0
        %3365 = vmatprep.subr.bf16.mxu0 0
        %3366 = vmatpush1.bf16.xpose.msra.mxu0 0
        %3367 = vmatprep.subr.bf16.mxu0 0
        %3368 = vmatpush1.bf16.xpose.msra.mxu0 0
        %3369 = vmatprep.subr.bf16.mxu0 0
        %3370 = vmatpush1.bf16.xpose.msra.mxu0 0
        %3371 = vmatprep.subr.bf16.mxu0 0
        %3372 = vmatpush1.bf16.xpose.msra.mxu0 0
        %3373 = vmatprep.subr.bf16.mxu0 0
        %3374 = vmatpush1.bf16.xpose.msra.mxu0 0
        %3375 = vmatprep.mubr.bf16.mxu0 0
        %3376 = vmatmul.mubr.bf16.gmra.mrb[0].mxu0 %v3342
        %v3377 = vpop.f32.mrb[0].mxu0
        %v3378 = vadd.f32 0.0, %v3377
        %v3379 = vpop.f32.mrb[0].mxu0
        %v3380 = vpop.f32.mrb[0].mxu0
        %v3381 = vadd.f32 0.0, %v3380
        %v3382 = vpop.f32.mrb[0].mxu0
        %3383 = vdwg.mxu0
        %3384 = vadd.xlane.f32.xlu0 %v3339
        %v3385 = vpop.xlane.xlu0 %3384
        %v3386 = vsel %vm2911, %v3341, 0.0
        %3387 = vadd.xlane.f32.xlu0 %v3386
        %v3388 = vpop.xlane.xlu0 %3387
        %3390 = vset.pattern.permute.xlu0 3
        %3391 = vperm.xlu0 %3390, %v3323
        %v3392 = vpop.permute.xlu0 %3391
        %3395 = vset.pattern.permute.xlu0 3
        %3396 = vperm.xlu0 %3395, %v3325
        %v3397 = vpop.permute.xlu0 %3396
        %v3399 = vpack.c.bf16 %v2848, %v2846
        %v3401 = vsel %vm2860, %v3399, 0
        %3403 = vmatprep.subr.bf16.mxu0 0
        %3404 = vmatpush1.bf16.msra.mxu0 %v2821
        %3405 = vmatprep.subr.bf16.mxu0 0
        %3406 = vmatpush1.bf16.msra.mxu0 %v2822
        %3407 = vmatprep.subr.bf16.mxu0 0
        %3408 = vmatpush1.bf16.msra.mxu0 0
        %3409 = vmatprep.subr.bf16.mxu0 0
        %3410 = vmatpush1.bf16.msra.mxu0 0
        %3411 = vmatprep.subr.bf16.mxu0 0
        %3412 = vmatpush1.bf16.msra.mxu0 0
        %3413 = vmatprep.subr.bf16.mxu0 0
        %3414 = vmatpush1.bf16.msra.mxu0 0
        %3415 = vmatprep.subr.bf16.mxu0 0
        %3416 = vmatpush1.bf16.msra.mxu0 0
        %3417 = vmatprep.subr.bf16.mxu0 0
        %3418 = vmatpush1.bf16.msra.mxu0 0
        %3419 = vmatprep.subr.bf16.mxu0 0
        %3420 = vmatpush1.bf16.msra.mxu0 0
        %3421 = vmatprep.subr.bf16.mxu0 0
        %3422 = vmatpush1.bf16.msra.mxu0 0
        %3423 = vmatprep.subr.bf16.mxu0 0
        %3424 = vmatpush1.bf16.msra.mxu0 0
        %3425 = vmatprep.subr.bf16.mxu0 0
        %3426 = vmatpush1.bf16.msra.mxu0 0
        %3427 = vmatprep.subr.bf16.mxu0 0
        %3428 = vmatpush1.bf16.msra.mxu0 0
        %3429 = vmatprep.subr.bf16.mxu0 0
        %3430 = vmatpush1.bf16.msra.mxu0 0
        %3431 = vmatprep.subr.bf16.mxu0 0
        %3432 = vmatpush1.bf16.msra.mxu0 0
        %3433 = vmatprep.subr.bf16.mxu0 0
        %3434 = vmatpush1.bf16.msra.mxu0 0
        %3435 = vmatprep.mubr.bf16.mxu0 0
        %3436 = vmatmul.mubr.bf16.gmra.mrb[0].mxu0 %v3401
        %v3437 = vpop.f32.mrb[0].mxu0
        %v3438 = vadd.f32 0.0, %v3437
        %v3439 = vpop.f32.mrb[0].mxu0
        %v3440 = vpop.f32.mrb[0].mxu0
        %v3441 = vadd.f32 0.0, %v3440
        %v3442 = vpop.f32.mrb[0].mxu0
        %3443 = vdwg.mxu0
        %v3444 = vsel %vm2906, %v3438, -1e+30
        %v3445 = vsel %vm2906, %v3441, -1e+30
        %3446 = vmax.xlane.f32.xlu0 %v3444
        %v3447 = vpop.xlane.xlu0 %3446
        %v3448 = vsel %vm2911, %v3445, -inf
        %3449 = vmax.xlane.f32.xlu0 %v3448
        %v3450 = vpop.xlane.xlu0 %3449
        %v3451 = vmax.f32 %v2849, %v3447
        %v3452 = vmax.f32 %v2850, %v3450
        %v3453 = vsub.f32 %v2849, %v3451
        %v3454 = vsub.f32 %v2850, %v3452
        %v3455 = vmul.f32 %v3453, 1.442695
        %v3456 = vpow.pop %v3455
        %v3457 = vmul.f32 %v3454, 1.442695
        %v3458 = vpow.pop %v3457
        %3460 = vset.pattern.permute.xlu0 4
        %3461 = vperm.xlu0 %3460, %v3451
        %v3462 = vpop.permute.xlu0 %3461
        %3465 = vset.pattern.permute.xlu0 4
        %3466 = vperm.xlu0 %3465, %v3452
        %v3467 = vpop.permute.xlu0 %3466
        %v3469 = vsub.f32 %v3444, %v3462
        %v3470 = vsub.f32 %v3445, %v3467
        %v3471 = vmul.f32 %v3469, 1.442695
        %v3472 = vpow.pop %v3471
        %v3473 = vmul.f32 %v3470, 1.442695
        %v3474 = vpow.pop %v3473
        %v3475 = vpack.c.bf16 %v3474, %v3472
        %3476 = vmatprep.subr.bf16.mxu0 0
        %3477 = vmatpush1.bf16.xpose.msra.mxu0 %v2837
        %3478 = vmatprep.subr.bf16.mxu0 0
        %3479 = vmatpush1.bf16.xpose.msra.mxu0 %v2838
        %3480 = vmatprep.subr.bf16.mxu0 0
        %3481 = vmatpush1.bf16.xpose.msra.mxu0 0
        %3482 = vmatprep.subr.bf16.mxu0 0
        %3483 = vmatpush1.bf16.xpose.msra.mxu0 0
        %3484 = vmatprep.subr.bf16.mxu0 0
        %3485 = vmatpush1.bf16.xpose.msra.mxu0 0
        %3486 = vmatprep.subr.bf16.mxu0 0
        %3487 = vmatpush1.bf16.xpose.msra.mxu0 0
        %3488 = vmatprep.subr.bf16.mxu0 0
        %3489 = vmatpush1.bf16.xpose.msra.mxu0 0
        %3490 = vmatprep.subr.bf16.mxu0 0
        %3491 = vmatpush1.bf16.xpose.msra.mxu0 0
        %3492 = vmatprep.subr.bf16.mxu0 0
        %3493 = vmatpush1.bf16.xpose.msra.mxu0 0
        %3494 = vmatprep.subr.bf16.mxu0 0
        %3495 = vmatpush1.bf16.xpose.msra.mxu0 0
        %3496 = vmatprep.subr.bf16.mxu0 0
        %3497 = vmatpush1.bf16.xpose.msra.mxu0 0
        %3498 = vmatprep.subr.bf16.mxu0 0
        %3499 = vmatpush1.bf16.xpose.msra.mxu0 0
        %3500 = vmatprep.subr.bf16.mxu0 0
        %3501 = vmatpush1.bf16.xpose.msra.mxu0 0
        %3502 = vmatprep.subr.bf16.mxu0 0
        %3503 = vmatpush1.bf16.xpose.msra.mxu0 0
        %3504 = vmatprep.subr.bf16.mxu0 0
        %3505 = vmatpush1.bf16.xpose.msra.mxu0 0
        %3506 = vmatprep.subr.bf16.mxu0 0
        %3507 = vmatpush1.bf16.xpose.msra.mxu0 0
        %3508 = vmatprep.mubr.bf16.mxu0 0
        %3509 = vmatmul.mubr.bf16.gmra.mrb[0].mxu0 %v3475
        %v3510 = vpop.f32.mrb[0].mxu0
        %v3511 = vadd.f32 0.0, %v3510
        %v3512 = vpop.f32.mrb[0].mxu0
        %v3513 = vpop.f32.mrb[0].mxu0
        %v3514 = vadd.f32 0.0, %v3513
        %v3515 = vpop.f32.mrb[0].mxu0
        %3516 = vdwg.mxu0
        %3517 = vadd.xlane.f32.xlu0 %v3472
        %v3518 = vpop.xlane.xlu0 %3517
        %v3519 = vsel %vm2911, %v3474, 0.0
        %3520 = vadd.xlane.f32.xlu0 %v3519
        %v3521 = vpop.xlane.xlu0 %3520
        %3523 = vset.pattern.permute.xlu0 4
        %3524 = vperm.xlu0 %3523, %v3456
        %v3525 = vpop.permute.xlu0 %3524
        %3528 = vset.pattern.permute.xlu0 4
        %3529 = vperm.xlu0 %3528, %v3458
        %v3530 = vpop.permute.xlu0 %3529
        %3533 = vrot.lane.b32.xlu0 %v3399, 96
        %v3534 = vpop.permute.xlu0 %3533
        %v3536 = vsel %vm2860, %v3534, 0
        %3538 = vmatprep.subr.bf16.mxu0 0
        %3539 = vmatpush1.bf16.msra.mxu0 %v2823
        %3540 = vmatprep.subr.bf16.mxu0 0
        %3541 = vmatpush1.bf16.msra.mxu0 %v2824
        %3542 = vmatprep.subr.bf16.mxu0 0
        %3543 = vmatpush1.bf16.msra.mxu0 0
        %3544 = vmatprep.subr.bf16.mxu0 0
        %3545 = vmatpush1.bf16.msra.mxu0 0
        %3546 = vmatprep.subr.bf16.mxu0 0
        %3547 = vmatpush1.bf16.msra.mxu0 0
        %3548 = vmatprep.subr.bf16.mxu0 0
        %3549 = vmatpush1.bf16.msra.mxu0 0
        %3550 = vmatprep.subr.bf16.mxu0 0
        %3551 = vmatpush1.bf16.msra.mxu0 0
        %3552 = vmatprep.subr.bf16.mxu0 0
        %3553 = vmatpush1.bf16.msra.mxu0 0
        %3554 = vmatprep.subr.bf16.mxu0 0
        %3555 = vmatpush1.bf16.msra.mxu0 0
        %3556 = vmatprep.subr.bf16.mxu0 0
        %3557 = vmatpush1.bf16.msra.mxu0 0
        %3558 = vmatprep.subr.bf16.mxu0 0
        %3559 = vmatpush1.bf16.msra.mxu0 0
        %3560 = vmatprep.subr.bf16.mxu0 0
        %3561 = vmatpush1.bf16.msra.mxu0 0
        %3562 = vmatprep.subr.bf16.mxu0 0
        %3563 = vmatpush1.bf16.msra.mxu0 0
        %3564 = vmatprep.subr.bf16.mxu0 0
        %3565 = vmatpush1.bf16.msra.mxu0 0
        %3566 = vmatprep.subr.bf16.mxu0 0
        %3567 = vmatpush1.bf16.msra.mxu0 0
        %3568 = vmatprep.subr.bf16.mxu0 0
        %3569 = vmatpush1.bf16.msra.mxu0 0
        %3570 = vmatprep.mubr.bf16.mxu0 0
        %3571 = vmatmul.mubr.bf16.gmra.mrb[0].mxu0 %v3536
        %v3572 = vpop.f32.mrb[0].mxu0
        %v3573 = vadd.f32 0.0, %v3572
        %v3574 = vpop.f32.mrb[0].mxu0
        %v3575 = vpop.f32.mrb[0].mxu0
        %v3576 = vadd.f32 0.0, %v3575
        %v3577 = vpop.f32.mrb[0].mxu0
        %3578 = vdwg.mxu0
        %v3579 = vsel %vm2906, %v3573, -1e+30
        %v3580 = vsel %vm2906, %v3576, -1e+30
        %3581 = vmax.xlane.f32.xlu0 %v3579
        %v3582 = vpop.xlane.xlu0 %3581
        %v3583 = vsel %vm2911, %v3580, -inf
        %3584 = vmax.xlane.f32.xlu0 %v3583
        %v3585 = vpop.xlane.xlu0 %3584
        %v3586 = vmax.f32 %v2849, %v3582
        %v3587 = vmax.f32 %v2850, %v3585
        %v3588 = vsub.f32 %v2849, %v3586
        %v3589 = vsub.f32 %v2850, %v3587
        %v3590 = vmul.f32 %v3588, 1.442695
        %v3591 = vpow.pop %v3590
        %v3592 = vmul.f32 %v3589, 1.442695
        %v3593 = vpow.pop %v3592
        %3595 = vset.pattern.permute.xlu0 5
        %3596 = vperm.xlu0 %3595, %v3586
        %v3597 = vpop.permute.xlu0 %3596
        %3600 = vset.pattern.permute.xlu0 5
        %3601 = vperm.xlu0 %3600, %v3587
        %v3602 = vpop.permute.xlu0 %3601
        %v3604 = vsub.f32 %v3579, %v3597
        %v3605 = vsub.f32 %v3580, %v3602
        %v3606 = vmul.f32 %v3604, 1.442695
        %v3607 = vpow.pop %v3606
        %v3608 = vmul.f32 %v3605, 1.442695
        %v3609 = vpow.pop %v3608
        %v3610 = vpack.c.bf16 %v3609, %v3607
        %3611 = vmatprep.subr.bf16.mxu0 0
        %3612 = vmatpush1.bf16.xpose.msra.mxu0 %v2839
        %3613 = vmatprep.subr.bf16.mxu0 0
        %3614 = vmatpush1.bf16.xpose.msra.mxu0 %v2840
        %3615 = vmatprep.subr.bf16.mxu0 0
        %3616 = vmatpush1.bf16.xpose.msra.mxu0 0
        %3617 = vmatprep.subr.bf16.mxu0 0
        %3618 = vmatpush1.bf16.xpose.msra.mxu0 0
        %3619 = vmatprep.subr.bf16.mxu0 0
        %3620 = vmatpush1.bf16.xpose.msra.mxu0 0
        %3621 = vmatprep.subr.bf16.mxu0 0
        %3622 = vmatpush1.bf16.xpose.msra.mxu0 0
        %3623 = vmatprep.subr.bf16.mxu0 0
        %3624 = vmatpush1.bf16.xpose.msra.mxu0 0
        %3625 = vmatprep.subr.bf16.mxu0 0
        %3626 = vmatpush1.bf16.xpose.msra.mxu0 0
        %3627 = vmatprep.subr.bf16.mxu0 0
        %3628 = vmatpush1.bf16.xpose.msra.mxu0 0
        %3629 = vmatprep.subr.bf16.mxu0 0
        %3630 = vmatpush1.bf16.xpose.msra.mxu0 0
        %3631 = vmatprep.subr.bf16.mxu0 0
        %3632 = vmatpush1.bf16.xpose.msra.mxu0 0
        %3633 = vmatprep.subr.bf16.mxu0 0
        %3634 = vmatpush1.bf16.xpose.msra.mxu0 0
        %3635 = vmatprep.subr.bf16.mxu0 0
        %3636 = vmatpush1.bf16.xpose.msra.mxu0 0
        %3637 = vmatprep.subr.bf16.mxu0 0
        %3638 = vmatpush1.bf16.xpose.msra.mxu0 0
        %3639 = vmatprep.subr.bf16.mxu0 0
        %3640 = vmatpush1.bf16.xpose.msra.mxu0 0
        %3641 = vmatprep.subr.bf16.mxu0 0
        %3642 = vmatpush1.bf16.xpose.msra.mxu0 0
        %3643 = vmatprep.mubr.bf16.mxu0 0
        %3644 = vmatmul.mubr.bf16.gmra.mrb[0].mxu0 %v3610
        %v3645 = vpop.f32.mrb[0].mxu0
        %v3646 = vadd.f32 0.0, %v3645
        %v3647 = vpop.f32.mrb[0].mxu0
        %v3648 = vpop.f32.mrb[0].mxu0
        %v3649 = vadd.f32 0.0, %v3648
        %v3650 = vpop.f32.mrb[0].mxu0
        %3651 = vdwg.mxu0
        %3652 = vadd.xlane.f32.xlu0 %v3607
        %v3653 = vpop.xlane.xlu0 %3652
        %v3654 = vsel %vm2911, %v3609, 0.0
        %3655 = vadd.xlane.f32.xlu0 %v3654
        %v3656 = vpop.xlane.xlu0 %3655
        %3658 = vset.pattern.permute.xlu0 5
        %3659 = vperm.xlu0 %3658, %v3591
        %v3660 = vpop.permute.xlu0 %3659
        %3663 = vset.pattern.permute.xlu0 5
        %3664 = vperm.xlu0 %3663, %v3593
        %v3665 = vpop.permute.xlu0 %3664
        %3667 = vrot.lane.b32.xlu0 %v3399, 64
        %v3668 = vpop.permute.xlu0 %3667
        %v3670 = vsel %vm2860, %v3668, 0
        %3672 = vmatprep.subr.bf16.mxu0 0
        %3673 = vmatpush1.bf16.msra.mxu0 %v2825
        %3674 = vmatprep.subr.bf16.mxu0 0
        %3675 = vmatpush1.bf16.msra.mxu0 %v2826
        %3676 = vmatprep.subr.bf16.mxu0 0
        %3677 = vmatpush1.bf16.msra.mxu0 0
        %3678 = vmatprep.subr.bf16.mxu0 0
        %3679 = vmatpush1.bf16.msra.mxu0 0
        %3680 = vmatprep.subr.bf16.mxu0 0
        %3681 = vmatpush1.bf16.msra.mxu0 0
        %3682 = vmatprep.subr.bf16.mxu0 0
        %3683 = vmatpush1.bf16.msra.mxu0 0
        %3684 = vmatprep.subr.bf16.mxu0 0
        %3685 = vmatpush1.bf16.msra.mxu0 0
        %3686 = vmatprep.subr.bf16.mxu0 0
        %3687 = vmatpush1.bf16.msra.mxu0 0
        %3688 = vmatprep.subr.bf16.mxu0 0
        %3689 = vmatpush1.bf16.msra.mxu0 0
        %3690 = vmatprep.subr.bf16.mxu0 0
        %3691 = vmatpush1.bf16.msra.mxu0 0
        %3692 = vmatprep.subr.bf16.mxu0 0
        %3693 = vmatpush1.bf16.msra.mxu0 0
        %3694 = vmatprep.subr.bf16.mxu0 0
        %3695 = vmatpush1.bf16.msra.mxu0 0
        %3696 = vmatprep.subr.bf16.mxu0 0
        %3697 = vmatpush1.bf16.msra.mxu0 0
        %3698 = vmatprep.subr.bf16.mxu0 0
        %3699 = vmatpush1.bf16.msra.mxu0 0
        %3700 = vmatprep.subr.bf16.mxu0 0
        %3701 = vmatpush1.bf16.msra.mxu0 0
        %3702 = vmatprep.subr.bf16.mxu0 0
        %3703 = vmatpush1.bf16.msra.mxu0 0
        %3704 = vmatprep.mubr.bf16.mxu0 0
        %3705 = vmatmul.mubr.bf16.gmra.mrb[0].mxu0 %v3670
        %v3706 = vpop.f32.mrb[0].mxu0
        %v3707 = vadd.f32 0.0, %v3706
        %v3708 = vpop.f32.mrb[0].mxu0
        %v3709 = vpop.f32.mrb[0].mxu0
        %v3710 = vadd.f32 0.0, %v3709
        %v3711 = vpop.f32.mrb[0].mxu0
        %3712 = vdwg.mxu0
        %v3713 = vsel %vm2906, %v3707, -1e+30
        %v3714 = vsel %vm2906, %v3710, -1e+30
        %3715 = vmax.xlane.f32.xlu0 %v3713
        %v3716 = vpop.xlane.xlu0 %3715
        %v3717 = vsel %vm2911, %v3714, -inf
        %3718 = vmax.xlane.f32.xlu0 %v3717
        %v3719 = vpop.xlane.xlu0 %3718
        %v3720 = vmax.f32 %v2849, %v3716
        %v3721 = vmax.f32 %v2850, %v3719
        %v3722 = vsub.f32 %v2849, %v3720
        %v3723 = vsub.f32 %v2850, %v3721
        %v3724 = vmul.f32 %v3722, 1.442695
        %v3725 = vpow.pop %v3724
        %v3726 = vmul.f32 %v3723, 1.442695
        %v3727 = vpow.pop %v3726
        %3729 = vset.pattern.permute.xlu0 6
        %3730 = vperm.xlu0 %3729, %v3720
        %v3731 = vpop.permute.xlu0 %3730
        %3734 = vset.pattern.permute.xlu0 6
        %3735 = vperm.xlu0 %3734, %v3721
        %v3736 = vpop.permute.xlu0 %3735
        %v3738 = vsub.f32 %v3713, %v3731
        %v3739 = vsub.f32 %v3714, %v3736
        %v3740 = vmul.f32 %v3738, 1.442695
        %v3741 = vpow.pop %v3740
        %v3742 = vmul.f32 %v3739, 1.442695
        %v3743 = vpow.pop %v3742
        %v3744 = vpack.c.bf16 %v3743, %v3741
        %3745 = vmatprep.subr.bf16.mxu0 0
        %3746 = vmatpush1.bf16.xpose.msra.mxu0 %v2841
        %3747 = vmatprep.subr.bf16.mxu0 0
        %3748 = vmatpush1.bf16.xpose.msra.mxu0 %v2842
        %3749 = vmatprep.subr.bf16.mxu0 0
        %3750 = vmatpush1.bf16.xpose.msra.mxu0 0
        %3751 = vmatprep.subr.bf16.mxu0 0
        %3752 = vmatpush1.bf16.xpose.msra.mxu0 0
        %3753 = vmatprep.subr.bf16.mxu0 0
        %3754 = vmatpush1.bf16.xpose.msra.mxu0 0
        %3755 = vmatprep.subr.bf16.mxu0 0
        %3756 = vmatpush1.bf16.xpose.msra.mxu0 0
        %3757 = vmatprep.subr.bf16.mxu0 0
        %3758 = vmatpush1.bf16.xpose.msra.mxu0 0
        %3759 = vmatprep.subr.bf16.mxu0 0
        %3760 = vmatpush1.bf16.xpose.msra.mxu0 0
        %3761 = vmatprep.subr.bf16.mxu0 0
        %3762 = vmatpush1.bf16.xpose.msra.mxu0 0
        %3763 = vmatprep.subr.bf16.mxu0 0
        %3764 = vmatpush1.bf16.xpose.msra.mxu0 0
        %3765 = vmatprep.subr.bf16.mxu0 0
        %3766 = vmatpush1.bf16.xpose.msra.mxu0 0
        %3767 = vmatprep.subr.bf16.mxu0 0
        %3768 = vmatpush1.bf16.xpose.msra.mxu0 0
        %3769 = vmatprep.subr.bf16.mxu0 0
        %3770 = vmatpush1.bf16.xpose.msra.mxu0 0
        %3771 = vmatprep.subr.bf16.mxu0 0
        %3772 = vmatpush1.bf16.xpose.msra.mxu0 0
        %3773 = vmatprep.subr.bf16.mxu0 0
        %3774 = vmatpush1.bf16.xpose.msra.mxu0 0
        %3775 = vmatprep.subr.bf16.mxu0 0
        %3776 = vmatpush1.bf16.xpose.msra.mxu0 0
        %3777 = vmatprep.mubr.bf16.mxu0 0
        %3778 = vmatmul.mubr.bf16.gmra.mrb[0].mxu0 %v3744
        %v3779 = vpop.f32.mrb[0].mxu0
        %v3780 = vadd.f32 0.0, %v3779
        %v3781 = vpop.f32.mrb[0].mxu0
        %v3782 = vpop.f32.mrb[0].mxu0
        %v3783 = vadd.f32 0.0, %v3782
        %v3784 = vpop.f32.mrb[0].mxu0
        %3785 = vdwg.mxu0
        %3786 = vadd.xlane.f32.xlu0 %v3741
        %v3787 = vpop.xlane.xlu0 %3786
        %v3788 = vsel %vm2911, %v3743, 0.0
        %3789 = vadd.xlane.f32.xlu0 %v3788
        %v3790 = vpop.xlane.xlu0 %3789
        %3792 = vset.pattern.permute.xlu0 6
        %3793 = vperm.xlu0 %3792, %v3725
        %v3794 = vpop.permute.xlu0 %3793
        %3797 = vset.pattern.permute.xlu0 6
        %3798 = vperm.xlu0 %3797, %v3727
        %v3799 = vpop.permute.xlu0 %3798
        %3801 = vrot.lane.b32.xlu0 %v3399, 32
        %v3802 = vpop.permute.xlu0 %3801
        %v3804 = vsel %vm2860, %v3802, 0
        %3806 = vmatprep.subr.bf16.mxu0 0
        %3807 = vmatpush1.bf16.msra.mxu0 %v2827
        %3808 = vmatprep.subr.bf16.mxu0 0
        %3809 = vmatpush1.bf16.msra.mxu0 %v2828
        %3810 = vmatprep.subr.bf16.mxu0 0
        %3811 = vmatpush1.bf16.msra.mxu0 0
        %3812 = vmatprep.subr.bf16.mxu0 0
        %3813 = vmatpush1.bf16.msra.mxu0 0
        %3814 = vmatprep.subr.bf16.mxu0 0
        %3815 = vmatpush1.bf16.msra.mxu0 0
        %3816 = vmatprep.subr.bf16.mxu0 0
        %3817 = vmatpush1.bf16.msra.mxu0 0
        %3818 = vmatprep.subr.bf16.mxu0 0
        %3819 = vmatpush1.bf16.msra.mxu0 0
        %3820 = vmatprep.subr.bf16.mxu0 0
        %3821 = vmatpush1.bf16.msra.mxu0 0
        %3822 = vmatprep.subr.bf16.mxu0 0
        %3823 = vmatpush1.bf16.msra.mxu0 0
        %3824 = vmatprep.subr.bf16.mxu0 0
        %3825 = vmatpush1.bf16.msra.mxu0 0
        %3826 = vmatprep.subr.bf16.mxu0 0
        %3827 = vmatpush1.bf16.msra.mxu0 0
        %3828 = vmatprep.subr.bf16.mxu0 0
        %3829 = vmatpush1.bf16.msra.mxu0 0
        %3830 = vmatprep.subr.bf16.mxu0 0
        %3831 = vmatpush1.bf16.msra.mxu0 0
        %3832 = vmatprep.subr.bf16.mxu0 0
        %3833 = vmatpush1.bf16.msra.mxu0 0
        %3834 = vmatprep.subr.bf16.mxu0 0
        %3835 = vmatpush1.bf16.msra.mxu0 0
        %3836 = vmatprep.subr.bf16.mxu0 0
        %3837 = vmatpush1.bf16.msra.mxu0 0
        %3838 = vmatprep.mubr.bf16.mxu0 0
        %3839 = vmatmul.mubr.bf16.gmra.mrb[0].mxu0 %v3804
        %v3840 = vpop.f32.mrb[0].mxu0
        %v3841 = vadd.f32 0.0, %v3840
        %v3842 = vpop.f32.mrb[0].mxu0
        %v3843 = vpop.f32.mrb[0].mxu0
        %v3844 = vadd.f32 0.0, %v3843
        %v3845 = vpop.f32.mrb[0].mxu0
        %3846 = vdwg.mxu0
        %v3847 = vsel %vm2906, %v3841, -1e+30
        %v3848 = vsel %vm2906, %v3844, -1e+30
        %3849 = vmax.xlane.f32.xlu0 %v3847
        %v3850 = vpop.xlane.xlu0 %3849
        %v3851 = vsel %vm2911, %v3848, -inf
        %3852 = vmax.xlane.f32.xlu0 %v3851
        %v3853 = vpop.xlane.xlu0 %3852
        %v3854 = vmax.f32 %v2849, %v3850
        %v3855 = vmax.f32 %v2850, %v3853
        %v3856 = vsub.f32 %v2849, %v3854
        %v3857 = vsub.f32 %v2850, %v3855
        %v3858 = vmul.f32 %v3856, 1.442695
        %v3859 = vpow.pop %v3858
        %v3860 = vmul.f32 %v3857, 1.442695
        %v3861 = vpow.pop %v3860
        %3863 = vset.pattern.permute.xlu0 7
        %3864 = vperm.xlu0 %3863, %v3854
        %v3865 = vpop.permute.xlu0 %3864
        %3868 = vset.pattern.permute.xlu0 7
        %3869 = vperm.xlu0 %3868, %v3855
        %v3870 = vpop.permute.xlu0 %3869
        %v3872 = vsub.f32 %v3847, %v3865
        %v3873 = vsub.f32 %v3848, %v3870
        %v3874 = vmul.f32 %v3872, 1.442695
        %v3875 = vpow.pop %v3874
        %v3876 = vmul.f32 %v3873, 1.442695
        %v3877 = vpow.pop %v3876
        %v3878 = vpack.c.bf16 %v3877, %v3875
        %3879 = vmatprep.subr.bf16.mxu0 0
        %3880 = vmatpush1.bf16.xpose.msra.mxu0 %v2843
        %3881 = vmatprep.subr.bf16.mxu0 0
        %3882 = vmatpush1.bf16.xpose.msra.mxu0 %v2844
        %3883 = vmatprep.subr.bf16.mxu0 0
        %3884 = vmatpush1.bf16.xpose.msra.mxu0 0
        %3885 = vmatprep.subr.bf16.mxu0 0
        %3886 = vmatpush1.bf16.xpose.msra.mxu0 0
        %3887 = vmatprep.subr.bf16.mxu0 0
        %3888 = vmatpush1.bf16.xpose.msra.mxu0 0
        %3889 = vmatprep.subr.bf16.mxu0 0
        %3890 = vmatpush1.bf16.xpose.msra.mxu0 0
        %3891 = vmatprep.subr.bf16.mxu0 0
        %3892 = vmatpush1.bf16.xpose.msra.mxu0 0
        %3893 = vmatprep.subr.bf16.mxu0 0
        %3894 = vmatpush1.bf16.xpose.msra.mxu0 0
        %3895 = vmatprep.subr.bf16.mxu0 0
        %3896 = vmatpush1.bf16.xpose.msra.mxu0 0
        %3897 = vmatprep.subr.bf16.mxu0 0
        %3898 = vmatpush1.bf16.xpose.msra.mxu0 0
        %3899 = vmatprep.subr.bf16.mxu0 0
        %3900 = vmatpush1.bf16.xpose.msra.mxu0 0
        %3901 = vmatprep.subr.bf16.mxu0 0
        %3902 = vmatpush1.bf16.xpose.msra.mxu0 0
        %3903 = vmatprep.subr.bf16.mxu0 0
        %3904 = vmatpush1.bf16.xpose.msra.mxu0 0
        %3905 = vmatprep.subr.bf16.mxu0 0
        %3906 = vmatpush1.bf16.xpose.msra.mxu0 0
        %3907 = vmatprep.subr.bf16.mxu0 0
        %3908 = vmatpush1.bf16.xpose.msra.mxu0 0
        %3909 = vmatprep.subr.bf16.mxu0 0
        %3910 = vmatpush1.bf16.xpose.msra.mxu0 0
        %3911 = vmatprep.mubr.bf16.mxu0 0
        %3912 = vmatmul.mubr.bf16.gmra.mrb[0].mxu0 %v3878
        %v3913 = vpop.f32.mrb[0].mxu0
        %v3914 = vadd.f32 0.0, %v3913
        %v3915 = vpop.f32.mrb[0].mxu0
        %v3916 = vpop.f32.mrb[0].mxu0
        %v3917 = vadd.f32 0.0, %v3916
        %v3918 = vpop.f32.mrb[0].mxu0
        %3919 = vdwg.mxu0
        %3920 = vadd.xlane.f32.xlu0 %v3875
        %v3921 = vpop.xlane.xlu0 %3920
        %v3922 = vsel %vm2911, %v3877, 0.0
        %3923 = vadd.xlane.f32.xlu0 %v3922
        %v3924 = vpop.xlane.xlu0 %3923
        %3926 = vset.pattern.permute.xlu0 7
        %3927 = vperm.xlu0 %3926, %v3859
        %v3928 = vpop.permute.xlu0 %3927
        %3931 = vset.pattern.permute.xlu0 7
        %3932 = vperm.xlu0 %3931, %v3861
        %v3933 = vpop.permute.xlu0 %3932
        %v3935 = vsel %vm2860, %v2989, %v3124
        %v3936 = vsel %vm2860, %v2994, %v3129
        %vm3937 = vcmask 523264
        %v3938 = vsel %vm3937, %v3935, %v3258
        %v3939 = vsel %vm3937, %v3936, %v3263
        %vm3940 = vcmask 785408
        %v3941 = vsel %vm3940, %v3938, %v3392
        %v3942 = vsel %vm3940, %v3939, %v3397
        %v3943 = vsel %vm2860, %v3525, %v3660
        %v3944 = vsel %vm2860, %v3530, %v3665
        %v3945 = vsel %vm3937, %v3943, %v3794
        %v3946 = vsel %vm3937, %v3944, %v3799
        %v3947 = vsel %vm3940, %v3945, %v3928
        %v3948 = vsel %vm3940, %v3946, %v3933
        %v3949 = vld [vmem:[#allocation4] sm:$0xff]
        %v3950 = vld [vmem:[#allocation4 + $0x8] sm:$0xff]
        %v3951 = vld [vmem:[#allocation4 + $0x10] sm:$0x1]
        %v3952 = vld [vmem:[#allocation4 + $0x18] sm:$0x1]
        %v3953 = vmul.f32 %v3941, %v3949
        %v3954 = vmul.f32 %v3947, %v3950
        %v3955 = vmul.f32 %v3942, %v3951
        %v3956 = vmul.f32 %v3948, %v3952
        %3959 = vrot.lane.b32.xlu0 %v3110, 32
        %v3960 = vpop.permute.xlu0 %3959
        %3961 = vrot.lane.b32.xlu0 %v3113, 32
        %v3962 = vpop.permute.xlu0 %3961
        %3967 = vrot.lane.b32.xlu0 %v3244, 64
        %v3968 = vpop.permute.xlu0 %3967
        %3969 = vrot.lane.b32.xlu0 %v3247, 64
        %v3970 = vpop.permute.xlu0 %3969
        %3975 = vrot.lane.b32.xlu0 %v3378, 96
        %v3976 = vpop.permute.xlu0 %3975
        %3977 = vrot.lane.b32.xlu0 %v3381, 96
        %v3978 = vpop.permute.xlu0 %3977
        %3983 = vrot.lane.b32.xlu0 %v3646, 32
        %v3984 = vpop.permute.xlu0 %3983
        %3985 = vrot.lane.b32.xlu0 %v3649, 32
        %v3986 = vpop.permute.xlu0 %3985
        %3991 = vrot.lane.b32.xlu0 %v3780, 64
        %v3992 = vpop.permute.xlu0 %3991
        %3993 = vrot.lane.b32.xlu0 %v3783, 64
        %v3994 = vpop.permute.xlu0 %3993
        %3999 = vrot.lane.b32.xlu0 %v3914, 96
        %v4000 = vpop.permute.xlu0 %3999
        %4001 = vrot.lane.b32.xlu0 %v3917, 96
        %v4002 = vpop.permute.xlu0 %4001
        %v4005 = vsel %vm2860, %v2975, %v3960
        %v4006 = vsel %vm2860, %v2978, %v3962
        %v4007 = vsel %vm3937, %v4005, %v3968
        %v4008 = vsel %vm3937, %v4006, %v3970
        %v4009 = vsel %vm3940, %v4007, %v3976
        %v4010 = vsel %vm3940, %v4008, %v3978
        %v4011 = vsel %vm2860, %v3511, %v3984
        %v4012 = vsel %vm2860, %v3514, %v3986
        %v4013 = vsel %vm3937, %v4011, %v3992
        %v4014 = vsel %vm3937, %v4012, %v3994
        %v4015 = vsel %vm3940, %v4013, %v4000
        %v4016 = vsel %vm3940, %v4014, %v4002
        %v4017 = vadd.f32 %v3953, %v4009
        %v4018 = vadd.f32 %v3954, %v4015
        %v4019 = vadd.f32 %v3955, %v4010
        %v4020 = vadd.f32 %v3956, %v4016
        %4021 = vst [vmem:[#allocation4] sm:$0xff] %v4017
        %4022 = vst [vmem:[#allocation4 + $0x8] sm:$0xff] %v4018
        %4023 = vst [vmem:[#allocation4 + $0x10] sm:$0x1] %v4019
        %4024 = vst [vmem:[#allocation4 + $0x18] sm:$0x1] %v4020
        %vm4025 = vcmask 7168
        %v4026 = vsel %vm4025, %v2915, %v3050
        %v4027 = vsel %vm4025, %v2916, %v3051
        %vm4028 = vcmask 15360
        %v4029 = vsel %vm4028, %v4026, %v3184
        %v4030 = vsel %vm4028, %v4027, %v3185
        %vm4031 = vcmask 23552
        %v4032 = vsel %vm4031, %v4029, %v3318
        %v4033 = vsel %vm4031, %v4030, %v3319
        %vm4034 = vcmask 31744
        %v4035 = vsel %vm4034, %v4032, %v3451
        %v4036 = vsel %vm4034, %v4033, %v3452
        %vm4037 = vcmask 39936
        %v4038 = vsel %vm4037, %v4035, %v3586
        %v4039 = vsel %vm4037, %v4036, %v3587
        %vm4040 = vcmask 48128
        %v4041 = vsel %vm4040, %v4038, %v3720
        %v4042 = vsel %vm4040, %v4039, %v3721
        %vm4043 = vcmask 56320
        %v4044 = vsel %vm4043, %v4041, %v3854
        %v4045 = vsel %vm4043, %v4042, %v3855
        %vm4046 = vcmask 64512
        %4047 = vst.msk [vmem:[#allocation2] sm:$0xff] %vm4046, %v4044
        %vm4048 = vcmask 57344
        %4049 = vst.msk [vmem:[#allocation2 + $0x8] sm:$0x1] %vm4048, %v4045
        %v4050 = vsel %vm4025, %v2920, %v3055
        %v4051 = vsel %vm4025, %v2922, %v3057
        %v4052 = vsel %vm4028, %v4050, %v3189
        %v4053 = vsel %vm4028, %v4051, %v3191
        %v4054 = vsel %vm4031, %v4052, %v3323
        %v4055 = vsel %vm4031, %v4053, %v3325
        %v4056 = vsel %vm4034, %v4054, %v3456
        %v4057 = vsel %vm4034, %v4055, %v3458
        %v4058 = vsel %vm4037, %v4056, %v3591
        %v4059 = vsel %vm4037, %v4057, %v3593
        %v4060 = vsel %vm4040, %v4058, %v3725
        %v4061 = vsel %vm4040, %v4059, %v3727
        %v4062 = vsel %vm4043, %v4060, %v3859
        %v4063 = vsel %vm4043, %v4061, %v3861
        %v4064 = vmul.f32 %v4062, %v2851
        %v4065 = vmul.f32 %v4063, %v2852
        %v4066 = vsel %vm4025, %v2982, %v3117
        %v4067 = vsel %vm4025, %v2985, %v3120
        %v4068 = vsel %vm4028, %v4066, %v3251
        %v4069 = vsel %vm4028, %v4067, %v3254
        %v4070 = vsel %vm4031, %v4068, %v3385
        %v4071 = vsel %vm4031, %v4069, %v3388
        %v4072 = vsel %vm4034, %v4070, %v3518
        %v4073 = vsel %vm4034, %v4071, %v3521
        %v4074 = vsel %vm4037, %v4072, %v3653
        %v4075 = vsel %vm4037, %v4073, %v3656
        %v4076 = vsel %vm4040, %v4074, %v3787
        %v4077 = vsel %vm4040, %v4075, %v3790
        %v4078 = vsel %vm4043, %v4076, %v3921
        %v4079 = vsel %vm4043, %v4077, %v3924
        %v4080 = vadd.f32 %v4064, %v4078
        %v4081 = vadd.f32 %v4065, %v4079
        %4082 = vst.msk [vmem:[#allocation3] sm:$0xff] %vm4046, %v4080
        %4083 = vst.msk [vmem:[#allocation3 + $0x8] sm:$0x1] %vm4048, %v4081
        %p4084 = scmp.eq.s32.totalorder %s24, 2
        // Predicated region
        $region98: #{planning_decoder_pallas.4} parent=88 // pred_check
          %p4085 = pneg %p4084
        $region99: #{planning_decoder_pallas.4} parent=88 // pred_check_branch
          %4087 = sbr.rel (%p4085) target = $region101
        $region100: #{planning_decoder_pallas.4} parent=88 // pred_region
          %v4088 = vld [vmem:[#allocation3] sm:$0xff]
          %v4089 = vld [vmem:[#allocation3 + $0x8] sm:$0x1]
          %v4090 = vrcp.pop %v4088
          %v4091 = vrcp.pop %v4089
          %4093 = vset.pattern.permute.xlu0 0
          %4094 = vperm.xlu0 %4093, %v4090
          %v4095 = vpop.permute.xlu0 %4094
          %4098 = vset.pattern.permute.xlu0 0
          %4099 = vperm.xlu0 %4098, %v4091
          %v4100 = vpop.permute.xlu0 %4099
          %4102 = vset.pattern.permute.xlu0 1
          %4103 = vperm.xlu0 %4102, %v4090
          %v4104 = vpop.permute.xlu0 %4103
          %4106 = vset.pattern.permute.xlu0 1
          %4107 = vperm.xlu0 %4106, %v4091
          %v4108 = vpop.permute.xlu0 %4107
          %4110 = vset.pattern.permute.xlu0 2
          %4111 = vperm.xlu0 %4110, %v4090
          %v4112 = vpop.permute.xlu0 %4111
          %4114 = vset.pattern.permute.xlu0 2
          %4115 = vperm.xlu0 %4114, %v4091
          %v4116 = vpop.permute.xlu0 %4115
          %4118 = vset.pattern.permute.xlu0 3
          %4119 = vperm.xlu0 %4118, %v4090
          %v4120 = vpop.permute.xlu0 %4119
          %4122 = vset.pattern.permute.xlu0 3
          %4123 = vperm.xlu0 %4122, %v4091
          %v4124 = vpop.permute.xlu0 %4123
          %4126 = vset.pattern.permute.xlu0 4
          %4127 = vperm.xlu0 %4126, %v4090
          %v4128 = vpop.permute.xlu0 %4127
          %4130 = vset.pattern.permute.xlu0 4
          %4131 = vperm.xlu0 %4130, %v4091
          %v4132 = vpop.permute.xlu0 %4131
          %4134 = vset.pattern.permute.xlu0 5
          %4135 = vperm.xlu0 %4134, %v4090
          %v4136 = vpop.permute.xlu0 %4135
          %4138 = vset.pattern.permute.xlu0 5
          %4139 = vperm.xlu0 %4138, %v4091
          %v4140 = vpop.permute.xlu0 %4139
          %4142 = vset.pattern.permute.xlu0 6
          %4143 = vperm.xlu0 %4142, %v4090
          %v4144 = vpop.permute.xlu0 %4143
          %4146 = vset.pattern.permute.xlu0 6
          %4147 = vperm.xlu0 %4146, %v4091
          %v4148 = vpop.permute.xlu0 %4147
          %4150 = vset.pattern.permute.xlu0 7
          %4151 = vperm.xlu0 %4150, %v4090
          %v4152 = vpop.permute.xlu0 %4151
          %4154 = vset.pattern.permute.xlu0 7
          %4155 = vperm.xlu0 %4154, %v4091
          %v4156 = vpop.permute.xlu0 %4155
          %v4158 = vsel %vm2860, %v4095, %v4104
          %v4159 = vsel %vm2860, %v4100, %v4108
          %v4160 = vsel %vm3937, %v4158, %v4112
          %v4161 = vsel %vm3937, %v4159, %v4116
          %v4162 = vsel %vm3940, %v4160, %v4120
          %v4163 = vsel %vm3940, %v4161, %v4124
          %v4164 = vsel %vm2860, %v4128, %v4136
          %v4165 = vsel %vm2860, %v4132, %v4140
          %v4166 = vsel %vm3937, %v4164, %v4144
          %v4167 = vsel %vm3937, %v4165, %v4148
          %v4168 = vsel %vm3940, %v4166, %v4152
          %v4169 = vsel %vm3940, %v4167, %v4156
          %v4170 = vld [vmem:[#allocation4] sm:$0xff]
          %v4171 = vld [vmem:[#allocation4 + $0x8] sm:$0xff]
          %v4172 = vld [vmem:[#allocation4 + $0x10] sm:$0x1]
          %v4173 = vld [vmem:[#allocation4 + $0x18] sm:$0x1]
          %v4174 = vmul.f32 %v4170, %v4162
          %v4175 = vmul.f32 %v4171, %v4168
          %v4176 = vmul.f32 %v4172, %v4163
          %v4177 = vmul.f32 %v4173, %v4169
          %v4178 = vpack.c.bf16 %v4176, %v4174
          %v4179 = vpack.c.bf16 %v4177, %v4175
          %v4180 = vld [vmem:[%s6] sm:$0xff]
          %v4181 = vld [vmem:[%s6 + $0x8] sm:$0xff]
          %v4182 = vld [vmem:[%s6 + $0x10] sm:$0xff]
          %v4183 = vld [vmem:[%s6 + $0x18] sm:$0xff]
          %v4184 = vld [vmem:[%s6 + $0x20] sm:$0xff]
          %v4185 = vld [vmem:[%s6 + $0x28] sm:$0xff]
          %v4186 = vld [vmem:[%s6 + $0x30] sm:$0xff]
          %v4187 = vld [vmem:[%s6 + $0x38] sm:$0xff]
          %v4188 = vld [vmem:[%s6 + $0x40] sm:$0xff]
          %v4189 = vld [vmem:[%s6 + $0x48] sm:$0xff]
          %v4190 = vld [vmem:[%s6 + $0x50] sm:$0xff]
          %v4191 = vld [vmem:[%s6 + $0x58] sm:$0xff]
          %v4192 = vld [vmem:[%s6 + $0x60] sm:$0xff]
          %v4193 = vld [vmem:[%s6 + $0x68] sm:$0xff]
          %v4194 = vld [vmem:[%s6 + $0x70] sm:$0xff]
          %v4195 = vld [vmem:[%s6 + $0x78] sm:$0xff]
          %v4196 = vld [vmem:[%s6 + $0x80] sm:$0xff]
          %v4197 = vld [vmem:[%s6 + $0x88] sm:$0xff]
          %v4198 = vld [vmem:[%s6 + $0x90] sm:$0xff]
          %v4199 = vld [vmem:[%s6 + $0x98] sm:$0xff]
          %v4200 = vld [vmem:[%s6 + $0xa0] sm:$0xff]
          %v4201 = vld [vmem:[%s6 + $0xa8] sm:$0xff]
          %v4202 = vld [vmem:[%s6 + $0xb0] sm:$0xff]
          %v4203 = vld [vmem:[%s6 + $0xb8] sm:$0xff]
          %v4204 = vld [vmem:[%s6 + $0xc0] sm:$0xff]
          %v4205 = vld [vmem:[%s6 + $0xc8] sm:$0xff]
          %v4206 = vld [vmem:[%s6 + $0xd0] sm:$0xff]
          %v4207 = vld [vmem:[%s6 + $0xd8] sm:$0xff]
          %v4208 = vld [vmem:[%s6 + $0xe0] sm:$0xff]
          %v4209 = vld [vmem:[%s6 + $0xe8] sm:$0xff]
          %v4210 = vld [vmem:[%s6 + $0xf0] sm:$0xff]
          %v4211 = vld [vmem:[%s6 + $0xf8] sm:$0xff]
          %v4212 = vld [vmem:[%s7] sm:$0x3]
          %v4214 = vlaneseq
          %v4215 = vshrl.u32 %v4214, 7
          %v4216 = vsub.s32 0, %v4215
          %v4217 = vrot.slane %v4212, %v4216
          %v4218 = vlaneseq
          %v4219 = vshrl.u32 %v4218, 7
          %v4220 = vsub.s32 1, %v4219
          %v4221 = vrot.slane %v4212, %v4220
          %v4256 = vunpack.c.l.b16 %v4180
          %v4257 = vunpack.c.h.b16 %v4180
          %v4258 = vunpack.c.l.b16 %v4181
          %v4259 = vunpack.c.h.b16 %v4181
          %v4260 = vunpack.c.l.b16 %v4182
          %v4261 = vunpack.c.h.b16 %v4182
          %v4262 = vunpack.c.l.b16 %v4183
          %v4263 = vunpack.c.h.b16 %v4183
          %v4264 = vunpack.c.l.b16 %v4184
          %v4265 = vunpack.c.h.b16 %v4184
          %v4266 = vunpack.c.l.b16 %v4185
          %v4267 = vunpack.c.h.b16 %v4185
          %v4268 = vunpack.c.l.b16 %v4186
          %v4269 = vunpack.c.h.b16 %v4186
          %v4270 = vunpack.c.l.b16 %v4187
          %v4271 = vunpack.c.h.b16 %v4187
          %v4272 = vunpack.c.l.b16 %v4188
          %v4273 = vunpack.c.h.b16 %v4188
          %v4274 = vunpack.c.l.b16 %v4189
          %v4275 = vunpack.c.h.b16 %v4189
          %v4276 = vunpack.c.l.b16 %v4190
          %v4277 = vunpack.c.h.b16 %v4190
          %v4278 = vunpack.c.l.b16 %v4191
          %v4279 = vunpack.c.h.b16 %v4191
          %v4280 = vunpack.c.l.b16 %v4192
          %v4281 = vunpack.c.h.b16 %v4192
          %v4282 = vunpack.c.l.b16 %v4193
          %v4283 = vunpack.c.h.b16 %v4193
          %v4284 = vunpack.c.l.b16 %v4194
          %v4285 = vunpack.c.h.b16 %v4194
          %v4286 = vunpack.c.l.b16 %v4195
          %v4287 = vunpack.c.h.b16 %v4195
          %v4288 = vunpack.c.l.b16 %v4196
          %v4289 = vunpack.c.h.b16 %v4196
          %v4290 = vunpack.c.l.b16 %v4197
          %v4291 = vunpack.c.h.b16 %v4197
          %v4292 = vunpack.c.l.b16 %v4198
          %v4293 = vunpack.c.h.b16 %v4198
          %v4294 = vunpack.c.l.b16 %v4199
          %v4295 = vunpack.c.h.b16 %v4199
          %v4296 = vunpack.c.l.b16 %v4200
          %v4297 = vunpack.c.h.b16 %v4200
          %v4298 = vunpack.c.l.b16 %v4201
          %v4299 = vunpack.c.h.b16 %v4201
          %v4300 = vunpack.c.l.b16 %v4202
          %v4301 = vunpack.c.h.b16 %v4202
          %v4302 = vunpack.c.l.b16 %v4203
          %v4303 = vunpack.c.h.b16 %v4203
          %v4304 = vunpack.c.l.b16 %v4204
          %v4305 = vunpack.c.h.b16 %v4204
          %v4306 = vunpack.c.l.b16 %v4205
          %v4307 = vunpack.c.h.b16 %v4205
          %v4308 = vunpack.c.l.b16 %v4206
          %v4309 = vunpack.c.h.b16 %v4206
          %v4310 = vunpack.c.l.b16 %v4207
          %v4311 = vunpack.c.h.b16 %v4207
          %v4312 = vunpack.c.l.b16 %v4208
          %v4313 = vunpack.c.h.b16 %v4208
          %v4314 = vunpack.c.l.b16 %v4209
          %v4315 = vunpack.c.h.b16 %v4209
          %v4316 = vunpack.c.l.b16 %v4210
          %v4317 = vunpack.c.h.b16 %v4210
          %v4318 = vunpack.c.l.b16 %v4211
          %v4319 = vunpack.c.h.b16 %v4211
          %v4320 = vpack.c.b16 %v4258, %v4256
          %v4321 = vpack.c.b16 %v4259, %v4257
          %v4322 = vpack.c.b16 %v4262, %v4260
          %v4323 = vpack.c.b16 %v4263, %v4261
          %v4324 = vpack.c.b16 %v4266, %v4264
          %v4325 = vpack.c.b16 %v4267, %v4265
          %v4326 = vpack.c.b16 %v4270, %v4268
          %v4327 = vpack.c.b16 %v4271, %v4269
          %v4328 = vpack.c.b16 %v4274, %v4272
          %v4329 = vpack.c.b16 %v4275, %v4273
          %v4330 = vpack.c.b16 %v4278, %v4276
          %v4331 = vpack.c.b16 %v4279, %v4277
          %v4332 = vpack.c.b16 %v4282, %v4280
          %v4333 = vpack.c.b16 %v4283, %v4281
          %v4334 = vpack.c.b16 %v4286, %v4284
          %v4335 = vpack.c.b16 %v4287, %v4285
          %v4336 = vpack.c.b16 %v4290, %v4288
          %v4337 = vpack.c.b16 %v4291, %v4289
          %v4338 = vpack.c.b16 %v4294, %v4292
          %v4339 = vpack.c.b16 %v4295, %v4293
          %v4340 = vpack.c.b16 %v4298, %v4296
          %v4341 = vpack.c.b16 %v4299, %v4297
          %v4342 = vpack.c.b16 %v4302, %v4300
          %v4343 = vpack.c.b16 %v4303, %v4301
          %v4344 = vpack.c.b16 %v4306, %v4304
          %v4345 = vpack.c.b16 %v4307, %v4305
          %v4346 = vpack.c.b16 %v4310, %v4308
          %v4347 = vpack.c.b16 %v4311, %v4309
          %v4348 = vpack.c.b16 %v4314, %v4312
          %v4349 = vpack.c.b16 %v4315, %v4313
          %v4350 = vpack.c.b16 %v4318, %v4316
          %v4351 = vpack.c.b16 %v4319, %v4317
          %4384 = vmatprep.subr.bf16.mxu0 %v4321
          %4385 = vmatpush1.bf16.msra.mxu0 %v4320
          %4386 = vmatprep.subr.bf16.mxu0 %v4323
          %4387 = vmatpush1.bf16.msra.mxu0 %v4322
          %4388 = vmatprep.subr.bf16.mxu0 %v4325
          %4389 = vmatpush1.bf16.msra.mxu0 %v4324
          %4390 = vmatprep.subr.bf16.mxu0 %v4327
          %4391 = vmatpush1.bf16.msra.mxu0 %v4326
          %4392 = vmatprep.subr.bf16.mxu0 %v4329
          %4393 = vmatpush1.bf16.msra.mxu0 %v4328
          %4394 = vmatprep.subr.bf16.mxu0 %v4331
          %4395 = vmatpush1.bf16.msra.mxu0 %v4330
          %4396 = vmatprep.subr.bf16.mxu0 %v4333
          %4397 = vmatpush1.bf16.msra.mxu0 %v4332
          %4398 = vmatprep.subr.bf16.mxu0 %v4335
          %4399 = vmatpush1.bf16.msra.mxu0 %v4334
          %4400 = vmatprep.subr.bf16.mxu0 %v4337
          %4401 = vmatpush1.bf16.msra.mxu0 %v4336
          %4402 = vmatprep.subr.bf16.mxu0 %v4339
          %4403 = vmatpush1.bf16.msra.mxu0 %v4338
          %4404 = vmatprep.subr.bf16.mxu0 %v4341
          %4405 = vmatpush1.bf16.msra.mxu0 %v4340
          %4406 = vmatprep.subr.bf16.mxu0 %v4343
          %4407 = vmatpush1.bf16.msra.mxu0 %v4342
          %4408 = vmatprep.subr.bf16.mxu0 %v4345
          %4409 = vmatpush1.bf16.msra.mxu0 %v4344
          %4410 = vmatprep.subr.bf16.mxu0 %v4347
          %4411 = vmatpush1.bf16.msra.mxu0 %v4346
          %4412 = vmatprep.subr.bf16.mxu0 %v4349
          %4413 = vmatpush1.bf16.msra.mxu0 %v4348
          %4414 = vmatprep.subr.bf16.mxu0 %v4351
          %4415 = vmatpush1.bf16.msra.mxu0 %v4350
          %4416 = vmatprep.mubr.bf16.mxu0 %v4179
          %4417 = vmatmul.mubr.bf16.gmra.mrb[0].mxu0 %v4178
          %v4418 = vpop.f32.mrb[0].mxu0
          %v4419 = vadd.f32 %v4217, %v4418
          %v4420 = vpop.f32.mrb[0].mxu0
          %v4421 = vadd.f32 %v4221, %v4420
          %v4422 = vpop.f32.mrb[0].mxu0
          %v4423 = vadd.f32 %v4217, %v4422
          %v4424 = vpop.f32.mrb[0].mxu0
          %v4425 = vadd.f32 %v4221, %v4424
          %4426 = vdwg.mxu0
          %4427 = vst [vmem:[%s550] sm:$0xff] %v4419
          %4428 = vst [vmem:[%s550 + $0x8] sm:$0xff] %v4421
          %4429 = vst [vmem:[%s550 + $0x10] sm:$0x1] %v4423
          %4430 = vst [vmem:[%s550 + $0x18] sm:$0x1] %v4425
        $region101: #{planning_decoder_pallas.4} parent=88 // pred_fallthru
          _
        %p4431 = scmp.lt.s32.totalorder %s23, 1
        %s4432 = scalar_select %p4431, %s23, 1
        %s4433 = smul.addr %s4432, 4
        %s4434 = smul.addr %s4433, 8
        %s4435 = scalar_lea.vmem %s8, %s4434
        // Predicated region
        $region102: #{planning_decoder_pallas.4} parent=88 // pred_check
          %p4436 = pneg %p224
        $region103: #{planning_decoder_pallas.4} parent=88 // pred_check_branch
          %4438 = sbr.rel (%p4436) target = $region105
        $region104: #{planning_decoder_pallas.4} parent=88 // pred_region
          _
        $region105: #{planning_decoder_pallas.4} parent=88 // pred_fallthru
          _
      $region89: #{planning_decoder_pallas.4} parent=5 // pred_fallthru
        _
      %p4439 = scmp.le.s32.totalorder 2, %s14
      // Predicated region
      $region106: #{planning_decoder_pallas.4} parent=5 // pred_check
        %p4440 = pneg %p4439
      $region107: #{planning_decoder_pallas.4} parent=5 // pred_check_branch
        %4442 = sbr.rel (%p4440) target = $region109
      $region108: #{planning_decoder_pallas.4} parent=5 // pred_region
        %s4443 = ssub.s32 %s14, 2
        // Predicated region
        $region110: #{planning_decoder_pallas.4} parent=108 // pred_check
          %p4444 = pneg %p230
        $region111: #{planning_decoder_pallas.4} parent=108 // pred_check_branch
          %4446 = sbr.rel (%p4444) target = $region113
        $region112: #{planning_decoder_pallas.4} parent=108 // pred_region
          %p4447 = scmp.lt.s32.totalorder %s25, 1
          %s4448 = scalar_select %p4447, %s25, 1
          %s4449 = smul.addr %s4448, 4
          %s4450 = smul.addr %s4449, 8
          %s4451 = scalar_lea.vmem %s8, %s4450
        $region113: #{planning_decoder_pallas.4} parent=108 // pred_fallthru
          _
      $region109: #{planning_decoder_pallas.4} parent=5 // pred_fallthru
        _
    $region6: #{planning_decoder_pallas.4} parent=1 // loop_footer
      %s18 = sadd.s32 1, %s14
    $region7: #{planning_decoder_pallas.4} parent=1 // loop_footer_branch
      %13 = sbr.rel target = $region3
    $region8: #{planning_decoder_pallas.4} parent=1 // loop_exit
      _

// kernel: squeeze.5
$region0: #{squeeze.5}
  %s0 = inlined_call_operand.vmem [shape: f32[18], index: 0, kind: input, shape index: {}]
  %s1 = inlined_call_operand.hbm [shape: f32[2,9], index: 1, kind: output, shape index: {}]
  $region1: #{squeeze.5} parent=0
    #allocation0 [shape = 'u8[1024]{0}', space=vmem, size = 0x400, scoped, tag = 'operand span for operand 1']
    #allocation1 [shape = 's32[1]{0}', space=sflag, size = 0x4, scoped, tag = 'scoped memory for squeeze.5']
    #allocation2 [shape = 'u8[4096]{0}', space=vmem, size = 0x1000, scoped, tag = 'scoped mem for output reshape']
    #allocation3 [shape = 'u8[4096]{0}', space=vmem, size = 0x1000, scoped, tag = 'scoped mem for input reshape']
    %2 = vsyncpa [#allocation1], 0
    %s4 = sshllo.u32 0, 1
    %v5 = vld [vmem:[%s0] sm:%s4]
    %6 = vst [vmem:[#allocation3] sm:%s4] %v5
    %v7 = vld [vmem:[#allocation3] sm:$0x1]
    %vm8 = vcmask 72704
    %9 = vst.msk [vmem:[#allocation2] sm:$0x1] %vm8, %v7
    %v10 = vld [vmem:[#allocation3] sm:$0x1]
    %11 = vrot.lane.b32.xlu0 %v10, 119
    %v12 = vpop.permute.xlu0 %11
    %vm13 = vcmask 72704
    %s14 = scalar_lea.vmem [#allocation2], 1
    %15 = vst.msk [vmem:[%s14] sm:$0x1] %vm13, %v12
    %s17 = sshllo.u32 0, 2
    %v19 = vld [vmem:[#allocation2] sm:%s17]
    %s20 = sshllo.u32 0, 2
    %21 = vst [vmem:[#allocation0] sm:%s20] %v19
    %s23 = ssub.s32 32, 32
    %24 = vsyncadd [#allocation1], %s23
    %s26 = sshll.u32 [#allocation0], 4
    %s27 = int_to_ptr.vmem [resolvable:$true] %s26
    %29 = dma.vmem_to_hbm [thread:$0]  %s27, 32, %s1, [#allocation1]
    %30 = dma.done [#allocation1], 32
    %31 = vsyncpa [#allocation1], 1

// kernel: planning_decoder_pallas.5
$region0: #{planning_decoder_pallas.5}
  #allocation0 [shape = 'u32[]', space=smem, size = 0x4, offset = 0x4, fixed_abs, tag = 'smem constant byte address 0x4 - core index']
  #allocation1 [shape = 'u32[144,128]{1,0:T(1,128)}', space=vmem, size = 0x12000, scoped, tag = 'internal scratch']
  #allocation2 [shape = 'f32[1,1]{1,0:T(1,128)S(1)}', space=vmem, size = 0x200, scoped, tag = 'scoped memory for planning_decoder_pallas.5']
  %s0 = inlined_call_operand.vmem [shape: f32[18,256], index: 0, kind: input, shape index: {}]
  %s1 = inlined_call_operand.vmem [shape: f32[18,256], index: 1, kind: input, shape index: {}]
  %s2 = inlined_call_operand.vmem [shape: f32[1,256], index: 2, kind: input, shape index: {}]
  %s3 = inlined_call_operand.vmem [shape: f32[1,256], index: 3, kind: input, shape index: {}]
  %s4 = inlined_call_operand.vmem [shape: bf16[256,1024], index: 4, kind: input, shape index: {}]
  %s5 = inlined_call_operand.vmem [shape: f32[1,1024], index: 5, kind: input, shape index: {}]
  %s6 = inlined_call_operand.vmem [shape: bf16[1024,256], index: 6, kind: input, shape index: {}]
  %s7 = inlined_call_operand.vmem [shape: f32[1,256], index: 7, kind: input, shape index: {}]
  %s8 = inlined_call_operand.vmem [shape: f32[1,256], index: 8, kind: input, shape index: {}]
  %s9 = inlined_call_operand.vmem [shape: f32[1,256], index: 9, kind: input, shape index: {}]
  %s10 = inlined_call_operand.vmem [shape: bf16[256,128], index: 10, kind: input, shape index: {}]
  %s11 = inlined_call_operand.vmem [shape: f32[1,128], index: 11, kind: input, shape index: {}]
  %s12 = inlined_call_operand.vmem [shape: bf16[128,100], index: 12, kind: input, shape index: {}]
  %s13 = inlined_call_operand.vmem [shape: f32[1,100], index: 13, kind: input, shape index: {}]
  %s14 = inlined_call_operand.vmem [shape: bf16[256,128], index: 14, kind: input, shape index: {}]
  %s15 = inlined_call_operand.vmem [shape: f32[1,128], index: 15, kind: input, shape index: {}]
  %s16 = inlined_call_operand.vmem [shape: bf16[128,1], index: 16, kind: input, shape index: {}]
  %s17 = inlined_call_operand.<no memory space> [shape: f32[1,1], index: 17, kind: input, shape index: {}]
  %s18 = inlined_call_operand.vmem [shape: f32[18,128], index: 18, kind: output, shape index: {}]
  %s19 = sld [smem:[#allocation0]]
  $region82: #{planning_decoder_pallas.5} parent=0
    _
  %s21 = ssub.s32 1, %s19
  %s22 = scalar_select 0, %s21, %s19
  %v23 = vstv %s17
  %24 = vst [vmem:[#allocation2] sm:$0x1] %v23
  // Predicated region
  $region2: #{planning_decoder_pallas.5} parent=0 // pred_check
    _
  $region3: #{planning_decoder_pallas.5} parent=0 // pred_check_branch
    %26 = sbr.rel (0) target = $region5
  $region4: #{planning_decoder_pallas.5} parent=0 // pred_region
    _
  $region5: #{planning_decoder_pallas.5} parent=0 // pred_fallthru
    _
  // Predicated region
  $region6: #{planning_decoder_pallas.5} parent=0 // pred_check
    _
  $region7: #{planning_decoder_pallas.5} parent=0 // pred_check_branch
    %28 = sbr.rel (0) target = $region9
  $region8: #{planning_decoder_pallas.5} parent=0 // pred_region
    _
  $region9: #{planning_decoder_pallas.5} parent=0 // pred_fallthru
    _
  // Predicated region
  $region10: #{planning_decoder_pallas.5} parent=0 // pred_check
    _
  $region11: #{planning_decoder_pallas.5} parent=0 // pred_check_branch
    %30 = sbr.rel (0) target = $region13
  $region12: #{planning_decoder_pallas.5} parent=0 // pred_region
    _
  $region13: #{planning_decoder_pallas.5} parent=0 // pred_fallthru
    _
  // Predicated region
  $region14: #{planning_decoder_pallas.5} parent=0 // pred_check
    _
  $region15: #{planning_decoder_pallas.5} parent=0 // pred_check_branch
    %32 = sbr.rel (0) target = $region17
  $region16: #{planning_decoder_pallas.5} parent=0 // pred_region
    _
  $region17: #{planning_decoder_pallas.5} parent=0 // pred_fallthru
    _
  // Predicated region
  $region18: #{planning_decoder_pallas.5} parent=0 // pred_check
    _
  $region19: #{planning_decoder_pallas.5} parent=0 // pred_check_branch
    %34 = sbr.rel (0) target = $region21
  $region20: #{planning_decoder_pallas.5} parent=0 // pred_region
    _
  $region21: #{planning_decoder_pallas.5} parent=0 // pred_fallthru
    _
  // Predicated region
  $region22: #{planning_decoder_pallas.5} parent=0 // pred_check
    _
  $region23: #{planning_decoder_pallas.5} parent=0 // pred_check_branch
    %36 = sbr.rel (0) target = $region25
  $region24: #{planning_decoder_pallas.5} parent=0 // pred_region
    _
  $region25: #{planning_decoder_pallas.5} parent=0 // pred_fallthru
    _
  // Predicated region
  $region26: #{planning_decoder_pallas.5} parent=0 // pred_check
    _
  $region27: #{planning_decoder_pallas.5} parent=0 // pred_check_branch
    %38 = sbr.rel (0) target = $region29
  $region28: #{planning_decoder_pallas.5} parent=0 // pred_region
    _
  $region29: #{planning_decoder_pallas.5} parent=0 // pred_fallthru
    _
  // Predicated region
  $region30: #{planning_decoder_pallas.5} parent=0 // pred_check
    _
  $region31: #{planning_decoder_pallas.5} parent=0 // pred_check_branch
    %40 = sbr.rel (0) target = $region33
  $region32: #{planning_decoder_pallas.5} parent=0 // pred_region
    _
  $region33: #{planning_decoder_pallas.5} parent=0 // pred_fallthru
    _
  // Predicated region
  $region34: #{planning_decoder_pallas.5} parent=0 // pred_check
    _
  $region35: #{planning_decoder_pallas.5} parent=0 // pred_check_branch
    %42 = sbr.rel (0) target = $region37
  $region36: #{planning_decoder_pallas.5} parent=0 // pred_region
    _
  $region37: #{planning_decoder_pallas.5} parent=0 // pred_fallthru
    _
  // Predicated region
  $region38: #{planning_decoder_pallas.5} parent=0 // pred_check
    _
  $region39: #{planning_decoder_pallas.5} parent=0 // pred_check_branch
    %44 = sbr.rel (0) target = $region41
  $region40: #{planning_decoder_pallas.5} parent=0 // pred_region
    _
  $region41: #{planning_decoder_pallas.5} parent=0 // pred_fallthru
    _
  // Predicated region
  $region42: #{planning_decoder_pallas.5} parent=0 // pred_check
    _
  $region43: #{planning_decoder_pallas.5} parent=0 // pred_check_branch
    %46 = sbr.rel (0) target = $region45
  $region44: #{planning_decoder_pallas.5} parent=0 // pred_region
    _
  $region45: #{planning_decoder_pallas.5} parent=0 // pred_fallthru
    _
  // Predicated region
  $region46: #{planning_decoder_pallas.5} parent=0 // pred_check
    _
  $region47: #{planning_decoder_pallas.5} parent=0 // pred_check_branch
    %48 = sbr.rel (0) target = $region49
  $region48: #{planning_decoder_pallas.5} parent=0 // pred_region
    _
  $region49: #{planning_decoder_pallas.5} parent=0 // pred_fallthru
    _
  // Predicated region
  $region50: #{planning_decoder_pallas.5} parent=0 // pred_check
    _
  $region51: #{planning_decoder_pallas.5} parent=0 // pred_check_branch
    %50 = sbr.rel (0) target = $region53
  $region52: #{planning_decoder_pallas.5} parent=0 // pred_region
    _
  $region53: #{planning_decoder_pallas.5} parent=0 // pred_fallthru
    _
  // Predicated region
  $region54: #{planning_decoder_pallas.5} parent=0 // pred_check
    _
  $region55: #{planning_decoder_pallas.5} parent=0 // pred_check_branch
    %52 = sbr.rel (0) target = $region57
  $region56: #{planning_decoder_pallas.5} parent=0 // pred_region
    _
  $region57: #{planning_decoder_pallas.5} parent=0 // pred_fallthru
    _
  // Predicated region
  $region58: #{planning_decoder_pallas.5} parent=0 // pred_check
    _
  $region59: #{planning_decoder_pallas.5} parent=0 // pred_check_branch
    %54 = sbr.rel (0) target = $region61
  $region60: #{planning_decoder_pallas.5} parent=0 // pred_region
    _
  $region61: #{planning_decoder_pallas.5} parent=0 // pred_fallthru
    _
  // Predicated region
  $region62: #{planning_decoder_pallas.5} parent=0 // pred_check
    _
  $region63: #{planning_decoder_pallas.5} parent=0 // pred_check_branch
    %56 = sbr.rel (0) target = $region65
  $region64: #{planning_decoder_pallas.5} parent=0 // pred_region
    _
  $region65: #{planning_decoder_pallas.5} parent=0 // pred_fallthru
    _
  // Predicated region
  $region66: #{planning_decoder_pallas.5} parent=0 // pred_check
    _
  $region67: #{planning_decoder_pallas.5} parent=0 // pred_check_branch
    %58 = sbr.rel (0) target = $region69
  $region68: #{planning_decoder_pallas.5} parent=0 // pred_region
    _
  $region69: #{planning_decoder_pallas.5} parent=0 // pred_fallthru
    _
  // Predicated region
  $region70: #{planning_decoder_pallas.5} parent=0 // pred_check
    _
  $region71: #{planning_decoder_pallas.5} parent=0 // pred_check_branch
    %60 = sbr.rel (0) target = $region73
  $region72: #{planning_decoder_pallas.5} parent=0 // pred_region
    _
  $region73: #{planning_decoder_pallas.5} parent=0 // pred_fallthru
    _
  %v62 = vld [vmem:[%s0] sm:$0xff]
  %v63 = vld [vmem:[%s0 + $0x8] sm:$0xff]
  %v64 = vld [vmem:[%s0 + $0x10] sm:$0xff]
  %v65 = vld [vmem:[%s0 + $0x18] sm:$0xff]
  %v66 = vld [vmem:[%s0 + $0x20] sm:$0x3]
  %v67 = vld [vmem:[%s0 + $0x28] sm:$0x3]
  %v68 = vld [vmem:[%s1] sm:$0xff]
  %v69 = vld [vmem:[%s1 + $0x8] sm:$0xff]
  %v70 = vld [vmem:[%s1 + $0x10] sm:$0xff]
  %v71 = vld [vmem:[%s1 + $0x18] sm:$0xff]
  %v72 = vld [vmem:[%s1 + $0x20] sm:$0x3]
  %v73 = vld [vmem:[%s1 + $0x28] sm:$0x3]
  %v74 = vadd.f32 %v62, %v68
  %v75 = vadd.f32 %v63, %v69
  %v76 = vadd.f32 %v64, %v70
  %v77 = vadd.f32 %v65, %v71
  %v78 = vadd.f32 %v66, %v72
  %v79 = vadd.f32 %v67, %v73
  %v80 = vld [vmem:[%s2] sm:$0x3]
  %v81 = vld [vmem:[%s3] sm:$0x3]
  %v82 = vadd.f32 %v74, %v75
  %83 = vadd.xlane.f32.xlu0 %v82
  %v84 = vpop.xlane.xlu0 %83
  %v85 = vadd.f32 %v76, %v77
  %86 = vadd.xlane.f32.xlu0 %v85
  %v87 = vpop.xlane.xlu0 %86
  %vm88 = vcmask 1041408
  %v89 = vsel %vm88, %v78, 0.0
  %v90 = vsel %vm88, %v79, 0.0
  %v91 = vadd.f32 %v89, %v90
  %92 = vadd.xlane.f32.xlu0 %v91
  %v93 = vpop.xlane.xlu0 %92
  %v94 = vrcp.pop 256.0
  %v95 = vmul.f32 %v84, %v94
  %v96 = vmul.f32 %v87, %v94
  %v97 = vmul.f32 %v93, %v94
  %v98 = vsub.f32 %v74, %v95
  %v99 = vsub.f32 %v75, %v95
  %v100 = vsub.f32 %v76, %v96
  %v101 = vsub.f32 %v77, %v96
  %v102 = vsub.f32 %v78, %v97
  %v103 = vsub.f32 %v79, %v97
  %v104 = vmul.f32 %v98, %v98
  %v105 = vmul.f32 %v99, %v99
  %v106 = vmul.f32 %v100, %v100
  %v107 = vmul.f32 %v101, %v101
  %v108 = vmul.f32 %v102, %v102
  %v109 = vmul.f32 %v103, %v103
  %v110 = vadd.f32 %v104, %v105
  %111 = vadd.xlane.f32.xlu0 %v110
  %v112 = vpop.xlane.xlu0 %111
  %v113 = vadd.f32 %v106, %v107
  %114 = vadd.xlane.f32.xlu0 %v113
  %v115 = vpop.xlane.xlu0 %114
  %v116 = vsel %vm88, %v108, 0.0
  %v117 = vsel %vm88, %v109, 0.0
  %v118 = vadd.f32 %v116, %v117
  %119 = vadd.xlane.f32.xlu0 %v118
  %v120 = vpop.xlane.xlu0 %119
  %v121 = vmul.f32 %v112, %v94
  %v122 = vmul.f32 %v115, %v94
  %v123 = vmul.f32 %v120, %v94
  %v124 = vadd.f32 %v121, 1e-05
  %v125 = vadd.f32 %v122, 1e-05
  %v126 = vadd.f32 %v123, 1e-05
  %v127 = vrsqrt.pop %v124
  %v128 = vrsqrt.pop %v125
  %v129 = vrsqrt.pop %v126
  %v130 = vmul.f32 %v98, %v127
  %v131 = vmul.f32 %v99, %v127
  %v132 = vmul.f32 %v100, %v128
  %v133 = vmul.f32 %v101, %v128
  %v134 = vmul.f32 %v102, %v129
  %v135 = vmul.f32 %v103, %v129
  %v137 = vlaneseq
  %v138 = vshrl.u32 %v137, 7
  %v139 = vsub.s32 0, %v138
  %v140 = vrot.slane %v80, %v139
  %v141 = vlaneseq
  %v142 = vshrl.u32 %v141, 7
  %v143 = vsub.s32 1, %v142
  %v144 = vrot.slane %v80, %v143
  %v147 = vmul.f32 %v130, %v140
  %v148 = vmul.f32 %v131, %v144
  %v149 = vmul.f32 %v132, %v140
  %v150 = vmul.f32 %v133, %v144
  %v151 = vmul.f32 %v134, %v140
  %v152 = vmul.f32 %v135, %v144
  %v154 = vlaneseq
  %v155 = vshrl.u32 %v154, 7
  %v156 = vsub.s32 0, %v155
  %v157 = vrot.slane %v81, %v156
  %v158 = vlaneseq
  %v159 = vshrl.u32 %v158, 7
  %v160 = vsub.s32 1, %v159
  %v161 = vrot.slane %v81, %v160
  %v164 = vadd.f32 %v147, %v157
  %v165 = vadd.f32 %v148, %v161
  %v166 = vadd.f32 %v149, %v157
  %v167 = vadd.f32 %v150, %v161
  %v168 = vadd.f32 %v151, %v157
  %v169 = vadd.f32 %v152, %v161
  %v170 = vpack.c.bf16 %v166, %v164
  %v171 = vpack.c.bf16 %v167, %v165
  %v172 = vpack.c.bf16 %v168, %v168
  %v173 = vpack.c.bf16 %v169, %v169
  %v174 = vld [vmem:[%s4] sm:$0xff]
  %v175 = vld [vmem:[%s4 + $0x8] sm:$0xff]
  %v176 = vld [vmem:[%s4 + $0x10] sm:$0xff]
  %v177 = vld [vmem:[%s4 + $0x18] sm:$0xff]
  %v178 = vld [vmem:[%s4 + $0x20] sm:$0xff]
  %v179 = vld [vmem:[%s4 + $0x28] sm:$0xff]
  %v180 = vld [vmem:[%s4 + $0x30] sm:$0xff]
  %v181 = vld [vmem:[%s4 + $0x38] sm:$0xff]
  %v182 = vld [vmem:[%s4 + $0x40] sm:$0xff]
  %v183 = vld [vmem:[%s4 + $0x48] sm:$0xff]
  %v184 = vld [vmem:[%s4 + $0x50] sm:$0xff]
  %v185 = vld [vmem:[%s4 + $0x58] sm:$0xff]
  %v186 = vld [vmem:[%s4 + $0x60] sm:$0xff]
  %v187 = vld [vmem:[%s4 + $0x68] sm:$0xff]
  %v188 = vld [vmem:[%s4 + $0x70] sm:$0xff]
  %v189 = vld [vmem:[%s4 + $0x78] sm:$0xff]
  %v190 = vld [vmem:[%s4 + $0x80] sm:$0xff]
  %v191 = vld [vmem:[%s4 + $0x88] sm:$0xff]
  %v192 = vld [vmem:[%s4 + $0x90] sm:$0xff]
  %v193 = vld [vmem:[%s4 + $0x98] sm:$0xff]
  %v194 = vld [vmem:[%s4 + $0xa0] sm:$0xff]
  %v195 = vld [vmem:[%s4 + $0xa8] sm:$0xff]
  %v196 = vld [vmem:[%s4 + $0xb0] sm:$0xff]
  %v197 = vld [vmem:[%s4 + $0xb8] sm:$0xff]
  %v198 = vld [vmem:[%s4 + $0xc0] sm:$0xff]
  %v199 = vld [vmem:[%s4 + $0xc8] sm:$0xff]
  %v200 = vld [vmem:[%s4 + $0xd0] sm:$0xff]
  %v201 = vld [vmem:[%s4 + $0xd8] sm:$0xff]
  %v202 = vld [vmem:[%s4 + $0xe0] sm:$0xff]
  %v203 = vld [vmem:[%s4 + $0xe8] sm:$0xff]
  %v204 = vld [vmem:[%s4 + $0xf0] sm:$0xff]
  %v205 = vld [vmem:[%s4 + $0xf8] sm:$0xff]
  %v206 = vld [vmem:[%s4 + $0x100] sm:$0xff]
  %v207 = vld [vmem:[%s4 + $0x108] sm:$0xff]
  %v208 = vld [vmem:[%s4 + $0x110] sm:$0xff]
  %v209 = vld [vmem:[%s4 + $0x118] sm:$0xff]
  %v210 = vld [vmem:[%s4 + $0x120] sm:$0xff]
  %v211 = vld [vmem:[%s4 + $0x128] sm:$0xff]
  %v212 = vld [vmem:[%s4 + $0x130] sm:$0xff]
  %v213 = vld [vmem:[%s4 + $0x138] sm:$0xff]
  %v214 = vld [vmem:[%s4 + $0x140] sm:$0xff]
  %v215 = vld [vmem:[%s4 + $0x148] sm:$0xff]
  %v216 = vld [vmem:[%s4 + $0x150] sm:$0xff]
  %v217 = vld [vmem:[%s4 + $0x158] sm:$0xff]
  %v218 = vld [vmem:[%s4 + $0x160] sm:$0xff]
  %v219 = vld [vmem:[%s4 + $0x168] sm:$0xff]
  %v220 = vld [vmem:[%s4 + $0x170] sm:$0xff]
  %v221 = vld [vmem:[%s4 + $0x178] sm:$0xff]
  %v222 = vld [vmem:[%s4 + $0x180] sm:$0xff]
  %v223 = vld [vmem:[%s4 + $0x188] sm:$0xff]
  %v224 = vld [vmem:[%s4 + $0x190] sm:$0xff]
  %v225 = vld [vmem:[%s4 + $0x198] sm:$0xff]
  %v226 = vld [vmem:[%s4 + $0x1a0] sm:$0xff]
  %v227 = vld [vmem:[%s4 + $0x1a8] sm:$0xff]
  %v228 = vld [vmem:[%s4 + $0x1b0] sm:$0xff]
  %v229 = vld [vmem:[%s4 + $0x1b8] sm:$0xff]
  %v230 = vld [vmem:[%s4 + $0x1c0] sm:$0xff]
  %v231 = vld [vmem:[%s4 + $0x1c8] sm:$0xff]
  %v232 = vld [vmem:[%s4 + $0x1d0] sm:$0xff]
  %v233 = vld [vmem:[%s4 + $0x1d8] sm:$0xff]
  %v234 = vld [vmem:[%s4 + $0x1e0] sm:$0xff]
  %v235 = vld [vmem:[%s4 + $0x1e8] sm:$0xff]
  %v236 = vld [vmem:[%s4 + $0x1f0] sm:$0xff]
  %v237 = vld [vmem:[%s4 + $0x1f8] sm:$0xff]
  %v238 = vld [vmem:[%s4 + $0x200] sm:$0xff]
  %v239 = vld [vmem:[%s4 + $0x208] sm:$0xff]
  %v240 = vld [vmem:[%s4 + $0x210] sm:$0xff]
  %v241 = vld [vmem:[%s4 + $0x218] sm:$0xff]
  %v242 = vld [vmem:[%s4 + $0x220] sm:$0xff]
  %v243 = vld [vmem:[%s4 + $0x228] sm:$0xff]
  %v244 = vld [vmem:[%s4 + $0x230] sm:$0xff]
  %v245 = vld [vmem:[%s4 + $0x238] sm:$0xff]
  %v246 = vld [vmem:[%s4 + $0x240] sm:$0xff]
  %v247 = vld [vmem:[%s4 + $0x248] sm:$0xff]
  %v248 = vld [vmem:[%s4 + $0x250] sm:$0xff]
  %v249 = vld [vmem:[%s4 + $0x258] sm:$0xff]
  %v250 = vld [vmem:[%s4 + $0x260] sm:$0xff]
  %v251 = vld [vmem:[%s4 + $0x268] sm:$0xff]
  %v252 = vld [vmem:[%s4 + $0x270] sm:$0xff]
  %v253 = vld [vmem:[%s4 + $0x278] sm:$0xff]
  %v254 = vld [vmem:[%s4 + $0x280] sm:$0xff]
  %v255 = vld [vmem:[%s4 + $0x288] sm:$0xff]
  %v256 = vld [vmem:[%s4 + $0x290] sm:$0xff]
  %v257 = vld [vmem:[%s4 + $0x298] sm:$0xff]
  %v258 = vld [vmem:[%s4 + $0x2a0] sm:$0xff]
  %v259 = vld [vmem:[%s4 + $0x2a8] sm:$0xff]
  %v260 = vld [vmem:[%s4 + $0x2b0] sm:$0xff]
  %v261 = vld [vmem:[%s4 + $0x2b8] sm:$0xff]
  %v262 = vld [vmem:[%s4 + $0x2c0] sm:$0xff]
  %v263 = vld [vmem:[%s4 + $0x2c8] sm:$0xff]
  %v264 = vld [vmem:[%s4 + $0x2d0] sm:$0xff]
  %v265 = vld [vmem:[%s4 + $0x2d8] sm:$0xff]
  %v266 = vld [vmem:[%s4 + $0x2e0] sm:$0xff]
  %v267 = vld [vmem:[%s4 + $0x2e8] sm:$0xff]
  %v268 = vld [vmem:[%s4 + $0x2f0] sm:$0xff]
  %v269 = vld [vmem:[%s4 + $0x2f8] sm:$0xff]
  %v270 = vld [vmem:[%s4 + $0x300] sm:$0xff]
  %v271 = vld [vmem:[%s4 + $0x308] sm:$0xff]
  %v272 = vld [vmem:[%s4 + $0x310] sm:$0xff]
  %v273 = vld [vmem:[%s4 + $0x318] sm:$0xff]
  %v274 = vld [vmem:[%s4 + $0x320] sm:$0xff]
  %v275 = vld [vmem:[%s4 + $0x328] sm:$0xff]
  %v276 = vld [vmem:[%s4 + $0x330] sm:$0xff]
  %v277 = vld [vmem:[%s4 + $0x338] sm:$0xff]
  %v278 = vld [vmem:[%s4 + $0x340] sm:$0xff]
  %v279 = vld [vmem:[%s4 + $0x348] sm:$0xff]
  %v280 = vld [vmem:[%s4 + $0x350] sm:$0xff]
  %v281 = vld [vmem:[%s4 + $0x358] sm:$0xff]
  %v282 = vld [vmem:[%s4 + $0x360] sm:$0xff]
  %v283 = vld [vmem:[%s4 + $0x368] sm:$0xff]
  %v284 = vld [vmem:[%s4 + $0x370] sm:$0xff]
  %v285 = vld [vmem:[%s4 + $0x378] sm:$0xff]
  %v286 = vld [vmem:[%s4 + $0x380] sm:$0xff]
  %v287 = vld [vmem:[%s4 + $0x388] sm:$0xff]
  %v288 = vld [vmem:[%s4 + $0x390] sm:$0xff]
  %v289 = vld [vmem:[%s4 + $0x398] sm:$0xff]
  %v290 = vld [vmem:[%s4 + $0x3a0] sm:$0xff]
  %v291 = vld [vmem:[%s4 + $0x3a8] sm:$0xff]
  %v292 = vld [vmem:[%s4 + $0x3b0] sm:$0xff]
  %v293 = vld [vmem:[%s4 + $0x3b8] sm:$0xff]
  %v294 = vld [vmem:[%s4 + $0x3c0] sm:$0xff]
  %v295 = vld [vmem:[%s4 + $0x3c8] sm:$0xff]
  %v296 = vld [vmem:[%s4 + $0x3d0] sm:$0xff]
  %v297 = vld [vmem:[%s4 + $0x3d8] sm:$0xff]
  %v298 = vld [vmem:[%s4 + $0x3e0] sm:$0xff]
  %v299 = vld [vmem:[%s4 + $0x3e8] sm:$0xff]
  %v300 = vld [vmem:[%s4 + $0x3f0] sm:$0xff]
  %v301 = vld [vmem:[%s4 + $0x3f8] sm:$0xff]
  %v302 = vld [vmem:[%s5] sm:$0xff]
  %v304 = vlaneseq
  %v305 = vshrl.u32 %v304, 7
  %v306 = vsub.s32 0, %v305
  %v307 = vrot.slane %v302, %v306
  %v308 = vlaneseq
  %v309 = vshrl.u32 %v308, 7
  %v310 = vsub.s32 1, %v309
  %v311 = vrot.slane %v302, %v310
  %v312 = vlaneseq
  %v313 = vshrl.u32 %v312, 7
  %v314 = vsub.s32 2, %v313
  %v315 = vrot.slane %v302, %v314
  %v316 = vlaneseq
  %v317 = vshrl.u32 %v316, 7
  %v318 = vsub.s32 3, %v317
  %v319 = vrot.slane %v302, %v318
  %v320 = vlaneseq
  %v321 = vshrl.u32 %v320, 7
  %v322 = vsub.s32 4, %v321
  %v323 = vrot.slane %v302, %v322
  %v324 = vlaneseq
  %v325 = vshrl.u32 %v324, 7
  %v326 = vsub.s32 5, %v325
  %v327 = vrot.slane %v302, %v326
  %v328 = vlaneseq
  %v329 = vshrl.u32 %v328, 7
  %v330 = vsub.s32 6, %v329
  %v331 = vrot.slane %v302, %v330
  %v332 = vlaneseq
  %v333 = vshrl.u32 %v332, 7
  %v334 = vsub.s32 7, %v333
  %v335 = vrot.slane %v302, %v334
  %v472 = vunpack.c.l.b16 %v174
  %v473 = vunpack.c.h.b16 %v174
  %v474 = vunpack.c.l.b16 %v175
  %v475 = vunpack.c.h.b16 %v175
  %v476 = vunpack.c.l.b16 %v176
  %v477 = vunpack.c.h.b16 %v176
  %v478 = vunpack.c.l.b16 %v177
  %v479 = vunpack.c.h.b16 %v177
  %v480 = vunpack.c.l.b16 %v178
  %v481 = vunpack.c.h.b16 %v178
  %v482 = vunpack.c.l.b16 %v179
  %v483 = vunpack.c.h.b16 %v179
  %v484 = vunpack.c.l.b16 %v180
  %v485 = vunpack.c.h.b16 %v180
  %v486 = vunpack.c.l.b16 %v181
  %v487 = vunpack.c.h.b16 %v181
  %v488 = vunpack.c.l.b16 %v182
  %v489 = vunpack.c.h.b16 %v182
  %v490 = vunpack.c.l.b16 %v183
  %v491 = vunpack.c.h.b16 %v183
  %v492 = vunpack.c.l.b16 %v184
  %v493 = vunpack.c.h.b16 %v184
  %v494 = vunpack.c.l.b16 %v185
  %v495 = vunpack.c.h.b16 %v185
  %v496 = vunpack.c.l.b16 %v186
  %v497 = vunpack.c.h.b16 %v186
  %v498 = vunpack.c.l.b16 %v187
  %v499 = vunpack.c.h.b16 %v187
  %v500 = vunpack.c.l.b16 %v188
  %v501 = vunpack.c.h.b16 %v188
  %v502 = vunpack.c.l.b16 %v189
  %v503 = vunpack.c.h.b16 %v189
  %v504 = vunpack.c.l.b16 %v190
  %v505 = vunpack.c.h.b16 %v190
  %v506 = vunpack.c.l.b16 %v191
  %v507 = vunpack.c.h.b16 %v191
  %v508 = vunpack.c.l.b16 %v192
  %v509 = vunpack.c.h.b16 %v192
  %v510 = vunpack.c.l.b16 %v193
  %v511 = vunpack.c.h.b16 %v193
  %v512 = vunpack.c.l.b16 %v194
  %v513 = vunpack.c.h.b16 %v194
  %v514 = vunpack.c.l.b16 %v195
  %v515 = vunpack.c.h.b16 %v195
  %v516 = vunpack.c.l.b16 %v196
  %v517 = vunpack.c.h.b16 %v196
  %v518 = vunpack.c.l.b16 %v197
  %v519 = vunpack.c.h.b16 %v197
  %v520 = vunpack.c.l.b16 %v198
  %v521 = vunpack.c.h.b16 %v198
  %v522 = vunpack.c.l.b16 %v199
  %v523 = vunpack.c.h.b16 %v199
  %v524 = vunpack.c.l.b16 %v200
  %v525 = vunpack.c.h.b16 %v200
  %v526 = vunpack.c.l.b16 %v201
  %v527 = vunpack.c.h.b16 %v201
  %v528 = vunpack.c.l.b16 %v202
  %v529 = vunpack.c.h.b16 %v202
  %v530 = vunpack.c.l.b16 %v203
  %v531 = vunpack.c.h.b16 %v203
  %v532 = vunpack.c.l.b16 %v204
  %v533 = vunpack.c.h.b16 %v204
  %v534 = vunpack.c.l.b16 %v205
  %v535 = vunpack.c.h.b16 %v205
  %v536 = vunpack.c.l.b16 %v206
  %v537 = vunpack.c.h.b16 %v206
  %v538 = vunpack.c.l.b16 %v207
  %v539 = vunpack.c.h.b16 %v207
  %v540 = vunpack.c.l.b16 %v208
  %v541 = vunpack.c.h.b16 %v208
  %v542 = vunpack.c.l.b16 %v209
  %v543 = vunpack.c.h.b16 %v209
  %v544 = vunpack.c.l.b16 %v210
  %v545 = vunpack.c.h.b16 %v210
  %v546 = vunpack.c.l.b16 %v211
  %v547 = vunpack.c.h.b16 %v211
  %v548 = vunpack.c.l.b16 %v212
  %v549 = vunpack.c.h.b16 %v212
  %v550 = vunpack.c.l.b16 %v213
  %v551 = vunpack.c.h.b16 %v213
  %v552 = vunpack.c.l.b16 %v214
  %v553 = vunpack.c.h.b16 %v214
  %v554 = vunpack.c.l.b16 %v215
  %v555 = vunpack.c.h.b16 %v215
  %v556 = vunpack.c.l.b16 %v216
  %v557 = vunpack.c.h.b16 %v216
  %v558 = vunpack.c.l.b16 %v217
  %v559 = vunpack.c.h.b16 %v217
  %v560 = vunpack.c.l.b16 %v218
  %v561 = vunpack.c.h.b16 %v218
  %v562 = vunpack.c.l.b16 %v219
  %v563 = vunpack.c.h.b16 %v219
  %v564 = vunpack.c.l.b16 %v220
  %v565 = vunpack.c.h.b16 %v220
  %v566 = vunpack.c.l.b16 %v221
  %v567 = vunpack.c.h.b16 %v221
  %v568 = vunpack.c.l.b16 %v222
  %v569 = vunpack.c.h.b16 %v222
  %v570 = vunpack.c.l.b16 %v223
  %v571 = vunpack.c.h.b16 %v223
  %v572 = vunpack.c.l.b16 %v224
  %v573 = vunpack.c.h.b16 %v224
  %v574 = vunpack.c.l.b16 %v225
  %v575 = vunpack.c.h.b16 %v225
  %v576 = vunpack.c.l.b16 %v226
  %v577 = vunpack.c.h.b16 %v226
  %v578 = vunpack.c.l.b16 %v227
  %v579 = vunpack.c.h.b16 %v227
  %v580 = vunpack.c.l.b16 %v228
  %v581 = vunpack.c.h.b16 %v228
  %v582 = vunpack.c.l.b16 %v229
  %v583 = vunpack.c.h.b16 %v229
  %v584 = vunpack.c.l.b16 %v230
  %v585 = vunpack.c.h.b16 %v230
  %v586 = vunpack.c.l.b16 %v231
  %v587 = vunpack.c.h.b16 %v231
  %v588 = vunpack.c.l.b16 %v232
  %v589 = vunpack.c.h.b16 %v232
  %v590 = vunpack.c.l.b16 %v233
  %v591 = vunpack.c.h.b16 %v233
  %v592 = vunpack.c.l.b16 %v234
  %v593 = vunpack.c.h.b16 %v234
  %v594 = vunpack.c.l.b16 %v235
  %v595 = vunpack.c.h.b16 %v235
  %v596 = vunpack.c.l.b16 %v236
  %v597 = vunpack.c.h.b16 %v236
  %v598 = vunpack.c.l.b16 %v237
  %v599 = vunpack.c.h.b16 %v237
  %v600 = vunpack.c.l.b16 %v238
  %v601 = vunpack.c.h.b16 %v238
  %v602 = vunpack.c.l.b16 %v239
  %v603 = vunpack.c.h.b16 %v239
  %v604 = vunpack.c.l.b16 %v240
  %v605 = vunpack.c.h.b16 %v240
  %v606 = vunpack.c.l.b16 %v241
  %v607 = vunpack.c.h.b16 %v241
  %v608 = vunpack.c.l.b16 %v242
  %v609 = vunpack.c.h.b16 %v242
  %v610 = vunpack.c.l.b16 %v243
  %v611 = vunpack.c.h.b16 %v243
  %v612 = vunpack.c.l.b16 %v244
  %v613 = vunpack.c.h.b16 %v244
  %v614 = vunpack.c.l.b16 %v245
  %v615 = vunpack.c.h.b16 %v245
  %v616 = vunpack.c.l.b16 %v246
  %v617 = vunpack.c.h.b16 %v246
  %v618 = vunpack.c.l.b16 %v247
  %v619 = vunpack.c.h.b16 %v247
  %v620 = vunpack.c.l.b16 %v248
  %v621 = vunpack.c.h.b16 %v248
  %v622 = vunpack.c.l.b16 %v249
  %v623 = vunpack.c.h.b16 %v249
  %v624 = vunpack.c.l.b16 %v250
  %v625 = vunpack.c.h.b16 %v250
  %v626 = vunpack.c.l.b16 %v251
  %v627 = vunpack.c.h.b16 %v251
  %v628 = vunpack.c.l.b16 %v252
  %v629 = vunpack.c.h.b16 %v252
  %v630 = vunpack.c.l.b16 %v253
  %v631 = vunpack.c.h.b16 %v253
  %v632 = vunpack.c.l.b16 %v254
  %v633 = vunpack.c.h.b16 %v254
  %v634 = vunpack.c.l.b16 %v255
  %v635 = vunpack.c.h.b16 %v255
  %v636 = vunpack.c.l.b16 %v256
  %v637 = vunpack.c.h.b16 %v256
  %v638 = vunpack.c.l.b16 %v257
  %v639 = vunpack.c.h.b16 %v257
  %v640 = vunpack.c.l.b16 %v258
  %v641 = vunpack.c.h.b16 %v258
  %v642 = vunpack.c.l.b16 %v259
  %v643 = vunpack.c.h.b16 %v259
  %v644 = vunpack.c.l.b16 %v260
  %v645 = vunpack.c.h.b16 %v260
  %v646 = vunpack.c.l.b16 %v261
  %v647 = vunpack.c.h.b16 %v261
  %v648 = vunpack.c.l.b16 %v262
  %v649 = vunpack.c.h.b16 %v262
  %v650 = vunpack.c.l.b16 %v263
  %v651 = vunpack.c.h.b16 %v263
  %v652 = vunpack.c.l.b16 %v264
  %v653 = vunpack.c.h.b16 %v264
  %v654 = vunpack.c.l.b16 %v265
  %v655 = vunpack.c.h.b16 %v265
  %v656 = vunpack.c.l.b16 %v266
  %v657 = vunpack.c.h.b16 %v266
  %v658 = vunpack.c.l.b16 %v267
  %v659 = vunpack.c.h.b16 %v267
  %v660 = vunpack.c.l.b16 %v268
  %v661 = vunpack.c.h.b16 %v268
  %v662 = vunpack.c.l.b16 %v269
  %v663 = vunpack.c.h.b16 %v269
  %v664 = vunpack.c.l.b16 %v270
  %v665 = vunpack.c.h.b16 %v270
  %v666 = vunpack.c.l.b16 %v271
  %v667 = vunpack.c.h.b16 %v271
  %v668 = vunpack.c.l.b16 %v272
  %v669 = vunpack.c.h.b16 %v272
  %v670 = vunpack.c.l.b16 %v273
  %v671 = vunpack.c.h.b16 %v273
  %v672 = vunpack.c.l.b16 %v274
  %v673 = vunpack.c.h.b16 %v274
  %v674 = vunpack.c.l.b16 %v275
  %v675 = vunpack.c.h.b16 %v275
  %v676 = vunpack.c.l.b16 %v276
  %v677 = vunpack.c.h.b16 %v276
  %v678 = vunpack.c.l.b16 %v277
  %v679 = vunpack.c.h.b16 %v277
  %v680 = vunpack.c.l.b16 %v278
  %v681 = vunpack.c.h.b16 %v278
  %v682 = vunpack.c.l.b16 %v279
  %v683 = vunpack.c.h.b16 %v279
  %v684 = vunpack.c.l.b16 %v280
  %v685 = vunpack.c.h.b16 %v280
  %v686 = vunpack.c.l.b16 %v281
  %v687 = vunpack.c.h.b16 %v281
  %v688 = vunpack.c.l.b16 %v282
  %v689 = vunpack.c.h.b16 %v282
  %v690 = vunpack.c.l.b16 %v283
  %v691 = vunpack.c.h.b16 %v283
  %v692 = vunpack.c.l.b16 %v284
  %v693 = vunpack.c.h.b16 %v284
  %v694 = vunpack.c.l.b16 %v285
  %v695 = vunpack.c.h.b16 %v285
  %v696 = vunpack.c.l.b16 %v286
  %v697 = vunpack.c.h.b16 %v286
  %v698 = vunpack.c.l.b16 %v287
  %v699 = vunpack.c.h.b16 %v287
  %v700 = vunpack.c.l.b16 %v288
  %v701 = vunpack.c.h.b16 %v288
  %v702 = vunpack.c.l.b16 %v289
  %v703 = vunpack.c.h.b16 %v289
  %v704 = vunpack.c.l.b16 %v290
  %v705 = vunpack.c.h.b16 %v290
  %v706 = vunpack.c.l.b16 %v291
  %v707 = vunpack.c.h.b16 %v291
  %v708 = vunpack.c.l.b16 %v292
  %v709 = vunpack.c.h.b16 %v292
  %v710 = vunpack.c.l.b16 %v293
  %v711 = vunpack.c.h.b16 %v293
  %v712 = vunpack.c.l.b16 %v294
  %v713 = vunpack.c.h.b16 %v294
  %v714 = vunpack.c.l.b16 %v295
  %v715 = vunpack.c.h.b16 %v295
  %v716 = vunpack.c.l.b16 %v296
  %v717 = vunpack.c.h.b16 %v296
  %v718 = vunpack.c.l.b16 %v297
  %v719 = vunpack.c.h.b16 %v297
  %v720 = vunpack.c.l.b16 %v298
  %v721 = vunpack.c.h.b16 %v298
  %v722 = vunpack.c.l.b16 %v299
  %v723 = vunpack.c.h.b16 %v299
  %v724 = vunpack.c.l.b16 %v300
  %v725 = vunpack.c.h.b16 %v300
  %v726 = vunpack.c.l.b16 %v301
  %v727 = vunpack.c.h.b16 %v301
  %v728 = vpack.c.b16 %v480, %v472
  %v729 = vpack.c.b16 %v481, %v473
  %v730 = vpack.c.b16 %v482, %v474
  %v731 = vpack.c.b16 %v483, %v475
  %v732 = vpack.c.b16 %v484, %v476
  %v733 = vpack.c.b16 %v485, %v477
  %v734 = vpack.c.b16 %v486, %v478
  %v735 = vpack.c.b16 %v487, %v479
  %v736 = vpack.c.b16 %v496, %v488
  %v737 = vpack.c.b16 %v497, %v489
  %v738 = vpack.c.b16 %v498, %v490
  %v739 = vpack.c.b16 %v499, %v491
  %v740 = vpack.c.b16 %v500, %v492
  %v741 = vpack.c.b16 %v501, %v493
  %v742 = vpack.c.b16 %v502, %v494
  %v743 = vpack.c.b16 %v503, %v495
  %v744 = vpack.c.b16 %v512, %v504
  %v745 = vpack.c.b16 %v513, %v505
  %v746 = vpack.c.b16 %v514, %v506
  %v747 = vpack.c.b16 %v515, %v507
  %v748 = vpack.c.b16 %v516, %v508
  %v749 = vpack.c.b16 %v517, %v509
  %v750 = vpack.c.b16 %v518, %v510
  %v751 = vpack.c.b16 %v519, %v511
  %v752 = vpack.c.b16 %v528, %v520
  %v753 = vpack.c.b16 %v529, %v521
  %v754 = vpack.c.b16 %v530, %v522
  %v755 = vpack.c.b16 %v531, %v523
  %v756 = vpack.c.b16 %v532, %v524
  %v757 = vpack.c.b16 %v533, %v525
  %v758 = vpack.c.b16 %v534, %v526
  %v759 = vpack.c.b16 %v535, %v527
  %v760 = vpack.c.b16 %v544, %v536
  %v761 = vpack.c.b16 %v545, %v537
  %v762 = vpack.c.b16 %v546, %v538
  %v763 = vpack.c.b16 %v547, %v539
  %v764 = vpack.c.b16 %v548, %v540
  %v765 = vpack.c.b16 %v549, %v541
  %v766 = vpack.c.b16 %v550, %v542
  %v767 = vpack.c.b16 %v551, %v543
  %v768 = vpack.c.b16 %v560, %v552
  %v769 = vpack.c.b16 %v561, %v553
  %v770 = vpack.c.b16 %v562, %v554
  %v771 = vpack.c.b16 %v563, %v555
  %v772 = vpack.c.b16 %v564, %v556
  %v773 = vpack.c.b16 %v565, %v557
  %v774 = vpack.c.b16 %v566, %v558
  %v775 = vpack.c.b16 %v567, %v559
  %v776 = vpack.c.b16 %v576, %v568
  %v777 = vpack.c.b16 %v577, %v569
  %v778 = vpack.c.b16 %v578, %v570
  %v779 = vpack.c.b16 %v579, %v571
  %v780 = vpack.c.b16 %v580, %v572
  %v781 = vpack.c.b16 %v581, %v573
  %v782 = vpack.c.b16 %v582, %v574
  %v783 = vpack.c.b16 %v583, %v575
  %v784 = vpack.c.b16 %v592, %v584
  %v785 = vpack.c.b16 %v593, %v585
  %v786 = vpack.c.b16 %v594, %v586
  %v787 = vpack.c.b16 %v595, %v587
  %v788 = vpack.c.b16 %v596, %v588
  %v789 = vpack.c.b16 %v597, %v589
  %v790 = vpack.c.b16 %v598, %v590
  %v791 = vpack.c.b16 %v599, %v591
  %v792 = vpack.c.b16 %v608, %v600
  %v793 = vpack.c.b16 %v609, %v601
  %v794 = vpack.c.b16 %v610, %v602
  %v795 = vpack.c.b16 %v611, %v603
  %v796 = vpack.c.b16 %v612, %v604
  %v797 = vpack.c.b16 %v613, %v605
  %v798 = vpack.c.b16 %v614, %v606
  %v799 = vpack.c.b16 %v615, %v607
  %v800 = vpack.c.b16 %v624, %v616
  %v801 = vpack.c.b16 %v625, %v617
  %v802 = vpack.c.b16 %v626, %v618
  %v803 = vpack.c.b16 %v627, %v619
  %v804 = vpack.c.b16 %v628, %v620
  %v805 = vpack.c.b16 %v629, %v621
  %v806 = vpack.c.b16 %v630, %v622
  %v807 = vpack.c.b16 %v631, %v623
  %v808 = vpack.c.b16 %v640, %v632
  %v809 = vpack.c.b16 %v641, %v633
  %v810 = vpack.c.b16 %v642, %v634
  %v811 = vpack.c.b16 %v643, %v635
  %v812 = vpack.c.b16 %v644, %v636
  %v813 = vpack.c.b16 %v645, %v637
  %v814 = vpack.c.b16 %v646, %v638
  %v815 = vpack.c.b16 %v647, %v639
  %v816 = vpack.c.b16 %v656, %v648
  %v817 = vpack.c.b16 %v657, %v649
  %v818 = vpack.c.b16 %v658, %v650
  %v819 = vpack.c.b16 %v659, %v651
  %v820 = vpack.c.b16 %v660, %v652
  %v821 = vpack.c.b16 %v661, %v653
  %v822 = vpack.c.b16 %v662, %v654
  %v823 = vpack.c.b16 %v663, %v655
  %v824 = vpack.c.b16 %v672, %v664
  %v825 = vpack.c.b16 %v673, %v665
  %v826 = vpack.c.b16 %v674, %v666
  %v827 = vpack.c.b16 %v675, %v667
  %v828 = vpack.c.b16 %v676, %v668
  %v829 = vpack.c.b16 %v677, %v669
  %v830 = vpack.c.b16 %v678, %v670
  %v831 = vpack.c.b16 %v679, %v671
  %v832 = vpack.c.b16 %v688, %v680
  %v833 = vpack.c.b16 %v689, %v681
  %v834 = vpack.c.b16 %v690, %v682
  %v835 = vpack.c.b16 %v691, %v683
  %v836 = vpack.c.b16 %v692, %v684
  %v837 = vpack.c.b16 %v693, %v685
  %v838 = vpack.c.b16 %v694, %v686
  %v839 = vpack.c.b16 %v695, %v687
  %v840 = vpack.c.b16 %v704, %v696
  %v841 = vpack.c.b16 %v705, %v697
  %v842 = vpack.c.b16 %v706, %v698
  %v843 = vpack.c.b16 %v707, %v699
  %v844 = vpack.c.b16 %v708, %v700
  %v845 = vpack.c.b16 %v709, %v701
  %v846 = vpack.c.b16 %v710, %v702
  %v847 = vpack.c.b16 %v711, %v703
  %v848 = vpack.c.b16 %v720, %v712
  %v849 = vpack.c.b16 %v721, %v713
  %v850 = vpack.c.b16 %v722, %v714
  %v851 = vpack.c.b16 %v723, %v715
  %v852 = vpack.c.b16 %v724, %v716
  %v853 = vpack.c.b16 %v725, %v717
  %v854 = vpack.c.b16 %v726, %v718
  %v855 = vpack.c.b16 %v727, %v719
  %984 = vmatprep.subr.bf16.mxu0 %v729
  %985 = vmatpush1.bf16.msra.mxu0 %v728
  %986 = vmatprep.subr.bf16.mxu0 %v737
  %987 = vmatpush1.bf16.msra.mxu0 %v736
  %988 = vmatprep.subr.bf16.mxu0 %v745
  %989 = vmatpush1.bf16.msra.mxu0 %v744
  %990 = vmatprep.subr.bf16.mxu0 %v753
  %991 = vmatpush1.bf16.msra.mxu0 %v752
  %992 = vmatprep.subr.bf16.mxu0 %v761
  %993 = vmatpush1.bf16.msra.mxu0 %v760
  %994 = vmatprep.subr.bf16.mxu0 %v769
  %995 = vmatpush1.bf16.msra.mxu0 %v768
  %996 = vmatprep.subr.bf16.mxu0 %v777
  %997 = vmatpush1.bf16.msra.mxu0 %v776
  %998 = vmatprep.subr.bf16.mxu0 %v785
  %999 = vmatpush1.bf16.msra.mxu0 %v784
  %1000 = vmatprep.subr.bf16.mxu0 %v793
  %1001 = vmatpush1.bf16.msra.mxu0 %v792
  %1002 = vmatprep.subr.bf16.mxu0 %v801
  %1003 = vmatpush1.bf16.msra.mxu0 %v800
  %1004 = vmatprep.subr.bf16.mxu0 %v809
  %1005 = vmatpush1.bf16.msra.mxu0 %v808
  %1006 = vmatprep.subr.bf16.mxu0 %v817
  %1007 = vmatpush1.bf16.msra.mxu0 %v816
  %1008 = vmatprep.subr.bf16.mxu0 %v825
  %1009 = vmatpush1.bf16.msra.mxu0 %v824
  %1010 = vmatprep.subr.bf16.mxu0 %v833
  %1011 = vmatpush1.bf16.msra.mxu0 %v832
  %1012 = vmatprep.subr.bf16.mxu0 %v841
  %1013 = vmatpush1.bf16.msra.mxu0 %v840
  %1014 = vmatprep.subr.bf16.mxu0 %v849
  %1015 = vmatpush1.bf16.msra.mxu0 %v848
  %1016 = vmatprep.mubr.bf16.mxu0 %v171
  %1017 = vmatmul.mubr.bf16.gmra.mrb[0].mxu0 %v170
  %v1018 = vpop.f32.mrb[0].mxu0
  %v1019 = vadd.f32 %v307, %v1018
  %v1020 = vpop.f32.mrb[0].mxu0
  %v1021 = vadd.f32 %v311, %v1020
  %v1022 = vpop.f32.mrb[0].mxu0
  %v1023 = vadd.f32 %v307, %v1022
  %v1024 = vpop.f32.mrb[0].mxu0
  %v1025 = vadd.f32 %v311, %v1024
  %1026 = vmatprep.mubr.bf16.mxu0 %v173
  %1027 = vmatmul.mubr.bf16.gmra.mrb[0].mxu0 %v172
  %v1028 = vpop.f32.mrb[0].mxu0
  %v1029 = vadd.f32 %v307, %v1028
  %v1030 = vpop.f32.mrb[0].mxu0
  %v1031 = vadd.f32 %v311, %v1030
  %v1032 = vpop.f32.mrb[0].mxu0
  %v1033 = vpop.f32.mrb[0].mxu0
  %1034 = vdwg.mxu0
  %1035 = vmatprep.subr.bf16.mxu0 %v731
  %1036 = vmatpush1.bf16.msra.mxu0 %v730
  %1037 = vmatprep.subr.bf16.mxu0 %v739
  %1038 = vmatpush1.bf16.msra.mxu0 %v738
  %1039 = vmatprep.subr.bf16.mxu0 %v747
  %1040 = vmatpush1.bf16.msra.mxu0 %v746
  %1041 = vmatprep.subr.bf16.mxu0 %v755
  %1042 = vmatpush1.bf16.msra.mxu0 %v754
  %1043 = vmatprep.subr.bf16.mxu0 %v763
  %1044 = vmatpush1.bf16.msra.mxu0 %v762
  %1045 = vmatprep.subr.bf16.mxu0 %v771
  %1046 = vmatpush1.bf16.msra.mxu0 %v770
  %1047 = vmatprep.subr.bf16.mxu0 %v779
  %1048 = vmatpush1.bf16.msra.mxu0 %v778
  %1049 = vmatprep.subr.bf16.mxu0 %v787
  %1050 = vmatpush1.bf16.msra.mxu0 %v786
  %1051 = vmatprep.subr.bf16.mxu0 %v795
  %1052 = vmatpush1.bf16.msra.mxu0 %v794
  %1053 = vmatprep.subr.bf16.mxu0 %v803
  %1054 = vmatpush1.bf16.msra.mxu0 %v802
  %1055 = vmatprep.subr.bf16.mxu0 %v811
  %1056 = vmatpush1.bf16.msra.mxu0 %v810
  %1057 = vmatprep.subr.bf16.mxu0 %v819
  %1058 = vmatpush1.bf16.msra.mxu0 %v818
  %1059 = vmatprep.subr.bf16.mxu0 %v827
  %1060 = vmatpush1.bf16.msra.mxu0 %v826
  %1061 = vmatprep.subr.bf16.mxu0 %v835
  %1062 = vmatpush1.bf16.msra.mxu0 %v834
  %1063 = vmatprep.subr.bf16.mxu0 %v843
  %1064 = vmatpush1.bf16.msra.mxu0 %v842
  %1065 = vmatprep.subr.bf16.mxu0 %v851
  %1066 = vmatpush1.bf16.msra.mxu0 %v850
  %1067 = vmatprep.mubr.bf16.mxu0 %v171
  %1068 = vmatmul.mubr.bf16.gmra.mrb[0].mxu0 %v170
  %v1069 = vpop.f32.mrb[0].mxu0
  %v1070 = vadd.f32 %v315, %v1069
  %v1071 = vpop.f32.mrb[0].mxu0
  %v1072 = vadd.f32 %v319, %v1071
  %v1073 = vpop.f32.mrb[0].mxu0
  %v1074 = vadd.f32 %v315, %v1073
  %v1075 = vpop.f32.mrb[0].mxu0
  %v1076 = vadd.f32 %v319, %v1075
  %1077 = vmatprep.mubr.bf16.mxu0 %v173
  %1078 = vmatmul.mubr.bf16.gmra.mrb[0].mxu0 %v172
  %v1079 = vpop.f32.mrb[0].mxu0
  %v1080 = vadd.f32 %v315, %v1079
  %v1081 = vpop.f32.mrb[0].mxu0
  %v1082 = vadd.f32 %v319, %v1081
  %v1083 = vpop.f32.mrb[0].mxu0
  %v1084 = vpop.f32.mrb[0].mxu0
  %1085 = vdwg.mxu0
  %1086 = vmatprep.subr.bf16.mxu0 %v733
  %1087 = vmatpush1.bf16.msra.mxu0 %v732
  %1088 = vmatprep.subr.bf16.mxu0 %v741
  %1089 = vmatpush1.bf16.msra.mxu0 %v740
  %1090 = vmatprep.subr.bf16.mxu0 %v749
  %1091 = vmatpush1.bf16.msra.mxu0 %v748
  %1092 = vmatprep.subr.bf16.mxu0 %v757
  %1093 = vmatpush1.bf16.msra.mxu0 %v756
  %1094 = vmatprep.subr.bf16.mxu0 %v765
  %1095 = vmatpush1.bf16.msra.mxu0 %v764
  %1096 = vmatprep.subr.bf16.mxu0 %v773
  %1097 = vmatpush1.bf16.msra.mxu0 %v772
  %1098 = vmatprep.subr.bf16.mxu0 %v781
  %1099 = vmatpush1.bf16.msra.mxu0 %v780
  %1100 = vmatprep.subr.bf16.mxu0 %v789
  %1101 = vmatpush1.bf16.msra.mxu0 %v788
  %1102 = vmatprep.subr.bf16.mxu0 %v797
  %1103 = vmatpush1.bf16.msra.mxu0 %v796
  %1104 = vmatprep.subr.bf16.mxu0 %v805
  %1105 = vmatpush1.bf16.msra.mxu0 %v804
  %1106 = vmatprep.subr.bf16.mxu0 %v813
  %1107 = vmatpush1.bf16.msra.mxu0 %v812
  %1108 = vmatprep.subr.bf16.mxu0 %v821
  %1109 = vmatpush1.bf16.msra.mxu0 %v820
  %1110 = vmatprep.subr.bf16.mxu0 %v829
  %1111 = vmatpush1.bf16.msra.mxu0 %v828
  %1112 = vmatprep.subr.bf16.mxu0 %v837
  %1113 = vmatpush1.bf16.msra.mxu0 %v836
  %1114 = vmatprep.subr.bf16.mxu0 %v845
  %1115 = vmatpush1.bf16.msra.mxu0 %v844
  %1116 = vmatprep.subr.bf16.mxu0 %v853
  %1117 = vmatpush1.bf16.msra.mxu0 %v852
  %1118 = vmatprep.mubr.bf16.mxu0 %v171
  %1119 = vmatmul.mubr.bf16.gmra.mrb[0].mxu0 %v170
  %v1120 = vpop.f32.mrb[0].mxu0
  %v1121 = vadd.f32 %v323, %v1120
  %v1122 = vpop.f32.mrb[0].mxu0
  %v1123 = vadd.f32 %v327, %v1122
  %v1124 = vpop.f32.mrb[0].mxu0
  %v1125 = vadd.f32 %v323, %v1124
  %v1126 = vpop.f32.mrb[0].mxu0
  %v1127 = vadd.f32 %v327, %v1126
  %1128 = vmatprep.mubr.bf16.mxu0 %v173
  %1129 = vmatmul.mubr.bf16.gmra.mrb[0].mxu0 %v172
  %v1130 = vpop.f32.mrb[0].mxu0
  %v1131 = vadd.f32 %v323, %v1130
  %v1132 = vpop.f32.mrb[0].mxu0
  %v1133 = vadd.f32 %v327, %v1132
  %v1134 = vpop.f32.mrb[0].mxu0
  %v1135 = vpop.f32.mrb[0].mxu0
  %1136 = vdwg.mxu0
  %1137 = vmatprep.subr.bf16.mxu0 %v735
  %1138 = vmatpush1.bf16.msra.mxu0 %v734
  %1139 = vmatprep.subr.bf16.mxu0 %v743
  %1140 = vmatpush1.bf16.msra.mxu0 %v742
  %1141 = vmatprep.subr.bf16.mxu0 %v751
  %1142 = vmatpush1.bf16.msra.mxu0 %v750
  %1143 = vmatprep.subr.bf16.mxu0 %v759
  %1144 = vmatpush1.bf16.msra.mxu0 %v758
  %1145 = vmatprep.subr.bf16.mxu0 %v767
  %1146 = vmatpush1.bf16.msra.mxu0 %v766
  %1147 = vmatprep.subr.bf16.mxu0 %v775
  %1148 = vmatpush1.bf16.msra.mxu0 %v774
  %1149 = vmatprep.subr.bf16.mxu0 %v783
  %1150 = vmatpush1.bf16.msra.mxu0 %v782
  %1151 = vmatprep.subr.bf16.mxu0 %v791
  %1152 = vmatpush1.bf16.msra.mxu0 %v790
  %1153 = vmatprep.subr.bf16.mxu0 %v799
  %1154 = vmatpush1.bf16.msra.mxu0 %v798
  %1155 = vmatprep.subr.bf16.mxu0 %v807
  %1156 = vmatpush1.bf16.msra.mxu0 %v806
  %1157 = vmatprep.subr.bf16.mxu0 %v815
  %1158 = vmatpush1.bf16.msra.mxu0 %v814
  %1159 = vmatprep.subr.bf16.mxu0 %v823
  %1160 = vmatpush1.bf16.msra.mxu0 %v822
  %1161 = vmatprep.subr.bf16.mxu0 %v831
  %1162 = vmatpush1.bf16.msra.mxu0 %v830
  %1163 = vmatprep.subr.bf16.mxu0 %v839
  %1164 = vmatpush1.bf16.msra.mxu0 %v838
  %1165 = vmatprep.subr.bf16.mxu0 %v847
  %1166 = vmatpush1.bf16.msra.mxu0 %v846
  %1167 = vmatprep.subr.bf16.mxu0 %v855
  %1168 = vmatpush1.bf16.msra.mxu0 %v854
  %1169 = vmatprep.mubr.bf16.mxu0 %v171
  %1170 = vmatmul.mubr.bf16.gmra.mrb[0].mxu0 %v170
  %v1171 = vpop.f32.mrb[0].mxu0
  %v1172 = vadd.f32 %v331, %v1171
  %v1173 = vpop.f32.mrb[0].mxu0
  %v1174 = vadd.f32 %v335, %v1173
  %v1175 = vpop.f32.mrb[0].mxu0
  %v1176 = vadd.f32 %v331, %v1175
  %v1177 = vpop.f32.mrb[0].mxu0
  %v1178 = vadd.f32 %v335, %v1177
  %1179 = vmatprep.mubr.bf16.mxu0 %v173
  %1180 = vmatmul.mubr.bf16.gmra.mrb[0].mxu0 %v172
  %v1181 = vpop.f32.mrb[0].mxu0
  %v1182 = vadd.f32 %v331, %v1181
  %v1183 = vpop.f32.mrb[0].mxu0
  %v1184 = vadd.f32 %v335, %v1183
  %v1185 = vpop.f32.mrb[0].mxu0
  %v1186 = vpop.f32.mrb[0].mxu0
  %1187 = vdwg.mxu0
  %v1188 = vmul.f32 %v1019, 0.5
  %v1189 = vmul.f32 %v1021, 0.5
  %v1190 = vmul.f32 %v1070, 0.5
  %v1191 = vmul.f32 %v1072, 0.5
  %v1192 = vmul.f32 %v1121, 0.5
  %v1193 = vmul.f32 %v1123, 0.5
  %v1194 = vmul.f32 %v1172, 0.5
  %v1195 = vmul.f32 %v1174, 0.5
  %v1196 = vmul.f32 %v1023, 0.5
  %v1197 = vmul.f32 %v1025, 0.5
  %v1198 = vmul.f32 %v1074, 0.5
  %v1199 = vmul.f32 %v1076, 0.5
  %v1200 = vmul.f32 %v1125, 0.5
  %v1201 = vmul.f32 %v1127, 0.5
  %v1202 = vmul.f32 %v1176, 0.5
  %v1203 = vmul.f32 %v1178, 0.5
  %v1204 = vmul.f32 %v1029, 0.5
  %v1205 = vmul.f32 %v1031, 0.5
  %v1206 = vmul.f32 %v1080, 0.5
  %v1207 = vmul.f32 %v1082, 0.5
  %v1208 = vmul.f32 %v1131, 0.5
  %v1209 = vmul.f32 %v1133, 0.5
  %v1210 = vmul.f32 %v1182, 0.5
  %v1211 = vmul.f32 %v1184, 0.5
  %v1212 = vmul.f32 %v1019, 0.044715
  %v1213 = vmul.f32 %v1021, 0.044715
  %v1214 = vmul.f32 %v1070, 0.044715
  %v1215 = vmul.f32 %v1072, 0.044715
  %v1216 = vmul.f32 %v1121, 0.044715
  %v1217 = vmul.f32 %v1123, 0.044715
  %v1218 = vmul.f32 %v1172, 0.044715
  %v1219 = vmul.f32 %v1174, 0.044715
  %v1220 = vmul.f32 %v1023, 0.044715
  %v1221 = vmul.f32 %v1025, 0.044715
  %v1222 = vmul.f32 %v1074, 0.044715
  %v1223 = vmul.f32 %v1076, 0.044715
  %v1224 = vmul.f32 %v1125, 0.044715
  %v1225 = vmul.f32 %v1127, 0.044715
  %v1226 = vmul.f32 %v1176, 0.044715
  %v1227 = vmul.f32 %v1178, 0.044715
  %v1228 = vmul.f32 %v1029, 0.044715
  %v1229 = vmul.f32 %v1031, 0.044715
  %v1230 = vmul.f32 %v1080, 0.044715
  %v1231 = vmul.f32 %v1082, 0.044715
  %v1232 = vmul.f32 %v1131, 0.044715
  %v1233 = vmul.f32 %v1133, 0.044715
  %v1234 = vmul.f32 %v1182, 0.044715
  %v1235 = vmul.f32 %v1184, 0.044715
  %v1236 = vmul.f32 %v1212, %v1019
  %v1237 = vmul.f32 %v1213, %v1021
  %v1238 = vmul.f32 %v1214, %v1070
  %v1239 = vmul.f32 %v1215, %v1072
  %v1240 = vmul.f32 %v1216, %v1121
  %v1241 = vmul.f32 %v1217, %v1123
  %v1242 = vmul.f32 %v1218, %v1172
  %v1243 = vmul.f32 %v1219, %v1174
  %v1244 = vmul.f32 %v1220, %v1023
  %v1245 = vmul.f32 %v1221, %v1025
  %v1246 = vmul.f32 %v1222, %v1074
  %v1247 = vmul.f32 %v1223, %v1076
  %v1248 = vmul.f32 %v1224, %v1125
  %v1249 = vmul.f32 %v1225, %v1127
  %v1250 = vmul.f32 %v1226, %v1176
  %v1251 = vmul.f32 %v1227, %v1178
  %v1252 = vmul.f32 %v1228, %v1029
  %v1253 = vmul.f32 %v1229, %v1031
  %v1254 = vmul.f32 %v1230, %v1080
  %v1255 = vmul.f32 %v1231, %v1082
  %v1256 = vmul.f32 %v1232, %v1131
  %v1257 = vmul.f32 %v1233, %v1133
  %v1258 = vmul.f32 %v1234, %v1182
  %v1259 = vmul.f32 %v1235, %v1184
  %v1260 = vmul.f32 %v1236, %v1019
  %v1261 = vmul.f32 %v1237, %v1021
  %v1262 = vmul.f32 %v1238, %v1070
  %v1263 = vmul.f32 %v1239, %v1072
  %v1264 = vmul.f32 %v1240, %v1121
  %v1265 = vmul.f32 %v1241, %v1123
  %v1266 = vmul.f32 %v1242, %v1172
  %v1267 = vmul.f32 %v1243, %v1174
  %v1268 = vmul.f32 %v1244, %v1023
  %v1269 = vmul.f32 %v1245, %v1025
  %v1270 = vmul.f32 %v1246, %v1074
  %v1271 = vmul.f32 %v1247, %v1076
  %v1272 = vmul.f32 %v1248, %v1125
  %v1273 = vmul.f32 %v1249, %v1127
  %v1274 = vmul.f32 %v1250, %v1176
  %v1275 = vmul.f32 %v1251, %v1178
  %v1276 = vmul.f32 %v1252, %v1029
  %v1277 = vmul.f32 %v1253, %v1031
  %v1278 = vmul.f32 %v1254, %v1080
  %v1279 = vmul.f32 %v1255, %v1082
  %v1280 = vmul.f32 %v1256, %v1131
  %v1281 = vmul.f32 %v1257, %v1133
  %v1282 = vmul.f32 %v1258, %v1182
  %v1283 = vmul.f32 %v1259, %v1184
  %v1284 = vadd.f32 %v1019, %v1260
  %v1285 = vadd.f32 %v1021, %v1261
  %v1286 = vadd.f32 %v1070, %v1262
  %v1287 = vadd.f32 %v1072, %v1263
  %v1288 = vadd.f32 %v1121, %v1264
  %v1289 = vadd.f32 %v1123, %v1265
  %v1290 = vadd.f32 %v1172, %v1266
  %v1291 = vadd.f32 %v1174, %v1267
  %v1292 = vadd.f32 %v1023, %v1268
  %v1293 = vadd.f32 %v1025, %v1269
  %v1294 = vadd.f32 %v1074, %v1270
  %v1295 = vadd.f32 %v1076, %v1271
  %v1296 = vadd.f32 %v1125, %v1272
  %v1297 = vadd.f32 %v1127, %v1273
  %v1298 = vadd.f32 %v1176, %v1274
  %v1299 = vadd.f32 %v1178, %v1275
  %v1300 = vadd.f32 %v1029, %v1276
  %v1301 = vadd.f32 %v1031, %v1277
  %v1302 = vadd.f32 %v1080, %v1278
  %v1303 = vadd.f32 %v1082, %v1279
  %v1304 = vadd.f32 %v1131, %v1280
  %v1305 = vadd.f32 %v1133, %v1281
  %v1306 = vadd.f32 %v1182, %v1282
  %v1307 = vadd.f32 %v1184, %v1283
  %v1308 = vmul.f32 %v1284, 0.7978846
  %v1309 = vmul.f32 %v1285, 0.7978846
  %v1310 = vmul.f32 %v1286, 0.7978846
  %v1311 = vmul.f32 %v1287, 0.7978846
  %v1312 = vmul.f32 %v1288, 0.7978846
  %v1313 = vmul.f32 %v1289, 0.7978846
  %v1314 = vmul.f32 %v1290, 0.7978846
  %v1315 = vmul.f32 %v1291, 0.7978846
  %v1316 = vmul.f32 %v1292, 0.7978846
  %v1317 = vmul.f32 %v1293, 0.7978846
  %v1318 = vmul.f32 %v1294, 0.7978846
  %v1319 = vmul.f32 %v1295, 0.7978846
  %v1320 = vmul.f32 %v1296, 0.7978846
  %v1321 = vmul.f32 %v1297, 0.7978846
  %v1322 = vmul.f32 %v1298, 0.7978846
  %v1323 = vmul.f32 %v1299, 0.7978846
  %v1324 = vmul.f32 %v1300, 0.7978846
  %v1325 = vmul.f32 %v1301, 0.7978846
  %v1326 = vmul.f32 %v1302, 0.7978846
  %v1327 = vmul.f32 %v1303, 0.7978846
  %v1328 = vmul.f32 %v1304, 0.7978846
  %v1329 = vmul.f32 %v1305, 0.7978846
  %v1330 = vmul.f32 %v1306, 0.7978846
  %v1331 = vmul.f32 %v1307, 0.7978846
  %v1332 = vtanh.pop %v1308
  %v1333 = vtanh.pop %v1309
  %v1334 = vtanh.pop %v1310
  %v1335 = vtanh.pop %v1311
  %v1336 = vtanh.pop %v1312
  %v1337 = vtanh.pop %v1313
  %v1338 = vtanh.pop %v1314
  %v1339 = vtanh.pop %v1315
  %v1340 = vtanh.pop %v1316
  %v1341 = vtanh.pop %v1317
  %v1342 = vtanh.pop %v1318
  %v1343 = vtanh.pop %v1319
  %v1344 = vtanh.pop %v1320
  %v1345 = vtanh.pop %v1321
  %v1346 = vtanh.pop %v1322
  %v1347 = vtanh.pop %v1323
  %v1348 = vtanh.pop %v1324
  %v1349 = vtanh.pop %v1325
  %v1350 = vtanh.pop %v1326
  %v1351 = vtanh.pop %v1327
  %v1352 = vtanh.pop %v1328
  %v1353 = vtanh.pop %v1329
  %v1354 = vtanh.pop %v1330
  %v1355 = vtanh.pop %v1331
  %v1356 = vadd.f32 %v1332, 1.0
  %v1357 = vadd.f32 %v1333, 1.0
  %v1358 = vadd.f32 %v1334, 1.0
  %v1359 = vadd.f32 %v1335, 1.0
  %v1360 = vadd.f32 %v1336, 1.0
  %v1361 = vadd.f32 %v1337, 1.0
  %v1362 = vadd.f32 %v1338, 1.0
  %v1363 = vadd.f32 %v1339, 1.0
  %v1364 = vadd.f32 %v1340, 1.0
  %v1365 = vadd.f32 %v1341, 1.0
  %v1366 = vadd.f32 %v1342, 1.0
  %v1367 = vadd.f32 %v1343, 1.0
  %v1368 = vadd.f32 %v1344, 1.0
  %v1369 = vadd.f32 %v1345, 1.0
  %v1370 = vadd.f32 %v1346, 1.0
  %v1371 = vadd.f32 %v1347, 1.0
  %v1372 = vadd.f32 %v1348, 1.0
  %v1373 = vadd.f32 %v1349, 1.0
  %v1374 = vadd.f32 %v1350, 1.0
  %v1375 = vadd.f32 %v1351, 1.0
  %v1376 = vadd.f32 %v1352, 1.0
  %v1377 = vadd.f32 %v1353, 1.0
  %v1378 = vadd.f32 %v1354, 1.0
  %v1379 = vadd.f32 %v1355, 1.0
  %v1380 = vmul.f32 %v1188, %v1356
  %v1381 = vmul.f32 %v1189, %v1357
  %v1382 = vmul.f32 %v1190, %v1358
  %v1383 = vmul.f32 %v1191, %v1359
  %v1384 = vmul.f32 %v1192, %v1360
  %v1385 = vmul.f32 %v1193, %v1361
  %v1386 = vmul.f32 %v1194, %v1362
  %v1387 = vmul.f32 %v1195, %v1363
  %v1388 = vmul.f32 %v1196, %v1364
  %v1389 = vmul.f32 %v1197, %v1365
  %v1390 = vmul.f32 %v1198, %v1366
  %v1391 = vmul.f32 %v1199, %v1367
  %v1392 = vmul.f32 %v1200, %v1368
  %v1393 = vmul.f32 %v1201, %v1369
  %v1394 = vmul.f32 %v1202, %v1370
  %v1395 = vmul.f32 %v1203, %v1371
  %v1396 = vmul.f32 %v1204, %v1372
  %v1397 = vmul.f32 %v1205, %v1373
  %v1398 = vmul.f32 %v1206, %v1374
  %v1399 = vmul.f32 %v1207, %v1375
  %v1400 = vmul.f32 %v1208, %v1376
  %v1401 = vmul.f32 %v1209, %v1377
  %v1402 = vmul.f32 %v1210, %v1378
  %v1403 = vmul.f32 %v1211, %v1379
  %v1404 = vpack.c.bf16 %v1388, %v1380
  %v1405 = vpack.c.bf16 %v1389, %v1381
  %v1406 = vpack.c.bf16 %v1390, %v1382
  %v1407 = vpack.c.bf16 %v1391, %v1383
  %v1408 = vpack.c.bf16 %v1392, %v1384
  %v1409 = vpack.c.bf16 %v1393, %v1385
  %v1410 = vpack.c.bf16 %v1394, %v1386
  %v1411 = vpack.c.bf16 %v1395, %v1387
  %v1412 = vpack.c.bf16 %v1396, %v1396
  %v1413 = vpack.c.bf16 %v1397, %v1397
  %v1414 = vpack.c.bf16 %v1398, %v1398
  %v1415 = vpack.c.bf16 %v1399, %v1399
  %v1416 = vpack.c.bf16 %v1400, %v1400
  %v1417 = vpack.c.bf16 %v1401, %v1401
  %v1418 = vpack.c.bf16 %v1402, %v1402
  %v1419 = vpack.c.bf16 %v1403, %v1403
  %v1420 = vld [vmem:[%s6] sm:$0xff]
  %v1421 = vld [vmem:[%s6 + $0x8] sm:$0xff]
  %v1422 = vld [vmem:[%s6 + $0x10] sm:$0xff]
  %v1423 = vld [vmem:[%s6 + $0x18] sm:$0xff]
  %v1424 = vld [vmem:[%s6 + $0x20] sm:$0xff]
  %v1425 = vld [vmem:[%s6 + $0x28] sm:$0xff]
  %v1426 = vld [vmem:[%s6 + $0x30] sm:$0xff]
  %v1427 = vld [vmem:[%s6 + $0x38] sm:$0xff]
  %v1428 = vld [vmem:[%s6 + $0x40] sm:$0xff]
  %v1429 = vld [vmem:[%s6 + $0x48] sm:$0xff]
  %v1430 = vld [vmem:[%s6 + $0x50] sm:$0xff]
  %v1431 = vld [vmem:[%s6 + $0x58] sm:$0xff]
  %v1432 = vld [vmem:[%s6 + $0x60] sm:$0xff]
  %v1433 = vld [vmem:[%s6 + $0x68] sm:$0xff]
  %v1434 = vld [vmem:[%s6 + $0x70] sm:$0xff]
  %v1435 = vld [vmem:[%s6 + $0x78] sm:$0xff]
  %v1436 = vld [vmem:[%s6 + $0x80] sm:$0xff]
  %v1437 = vld [vmem:[%s6 + $0x88] sm:$0xff]
  %v1438 = vld [vmem:[%s6 + $0x90] sm:$0xff]
  %v1439 = vld [vmem:[%s6 + $0x98] sm:$0xff]
  %v1440 = vld [vmem:[%s6 + $0xa0] sm:$0xff]
  %v1441 = vld [vmem:[%s6 + $0xa8] sm:$0xff]
  %v1442 = vld [vmem:[%s6 + $0xb0] sm:$0xff]
  %v1443 = vld [vmem:[%s6 + $0xb8] sm:$0xff]
  %v1444 = vld [vmem:[%s6 + $0xc0] sm:$0xff]
  %v1445 = vld [vmem:[%s6 + $0xc8] sm:$0xff]
  %v1446 = vld [vmem:[%s6 + $0xd0] sm:$0xff]
  %v1447 = vld [vmem:[%s6 + $0xd8] sm:$0xff]
  %v1448 = vld [vmem:[%s6 + $0xe0] sm:$0xff]
  %v1449 = vld [vmem:[%s6 + $0xe8] sm:$0xff]
  %v1450 = vld [vmem:[%s6 + $0xf0] sm:$0xff]
  %v1451 = vld [vmem:[%s6 + $0xf8] sm:$0xff]
  %v1452 = vld [vmem:[%s6 + $0x100] sm:$0xff]
  %v1453 = vld [vmem:[%s6 + $0x108] sm:$0xff]
  %v1454 = vld [vmem:[%s6 + $0x110] sm:$0xff]
  %v1455 = vld [vmem:[%s6 + $0x118] sm:$0xff]
  %v1456 = vld [vmem:[%s6 + $0x120] sm:$0xff]
  %v1457 = vld [vmem:[%s6 + $0x128] sm:$0xff]
  %v1458 = vld [vmem:[%s6 + $0x130] sm:$0xff]
  %v1459 = vld [vmem:[%s6 + $0x138] sm:$0xff]
  %v1460 = vld [vmem:[%s6 + $0x140] sm:$0xff]
  %v1461 = vld [vmem:[%s6 + $0x148] sm:$0xff]
  %v1462 = vld [vmem:[%s6 + $0x150] sm:$0xff]
  %v1463 = vld [vmem:[%s6 + $0x158] sm:$0xff]
  %v1464 = vld [vmem:[%s6 + $0x160] sm:$0xff]
  %v1465 = vld [vmem:[%s6 + $0x168] sm:$0xff]
  %v1466 = vld [vmem:[%s6 + $0x170] sm:$0xff]
  %v1467 = vld [vmem:[%s6 + $0x178] sm:$0xff]
  %v1468 = vld [vmem:[%s6 + $0x180] sm:$0xff]
  %v1469 = vld [vmem:[%s6 + $0x188] sm:$0xff]
  %v1470 = vld [vmem:[%s6 + $0x190] sm:$0xff]
  %v1471 = vld [vmem:[%s6 + $0x198] sm:$0xff]
  %v1472 = vld [vmem:[%s6 + $0x1a0] sm:$0xff]
  %v1473 = vld [vmem:[%s6 + $0x1a8] sm:$0xff]
  %v1474 = vld [vmem:[%s6 + $0x1b0] sm:$0xff]
  %v1475 = vld [vmem:[%s6 + $0x1b8] sm:$0xff]
  %v1476 = vld [vmem:[%s6 + $0x1c0] sm:$0xff]
  %v1477 = vld [vmem:[%s6 + $0x1c8] sm:$0xff]
  %v1478 = vld [vmem:[%s6 + $0x1d0] sm:$0xff]
  %v1479 = vld [vmem:[%s6 + $0x1d8] sm:$0xff]
  %v1480 = vld [vmem:[%s6 + $0x1e0] sm:$0xff]
  %v1481 = vld [vmem:[%s6 + $0x1e8] sm:$0xff]
  %v1482 = vld [vmem:[%s6 + $0x1f0] sm:$0xff]
  %v1483 = vld [vmem:[%s6 + $0x1f8] sm:$0xff]
  %v1484 = vld [vmem:[%s6 + $0x200] sm:$0xff]
  %v1485 = vld [vmem:[%s6 + $0x208] sm:$0xff]
  %v1486 = vld [vmem:[%s6 + $0x210] sm:$0xff]
  %v1487 = vld [vmem:[%s6 + $0x218] sm:$0xff]
  %v1488 = vld [vmem:[%s6 + $0x220] sm:$0xff]
  %v1489 = vld [vmem:[%s6 + $0x228] sm:$0xff]
  %v1490 = vld [vmem:[%s6 + $0x230] sm:$0xff]
  %v1491 = vld [vmem:[%s6 + $0x238] sm:$0xff]
  %v1492 = vld [vmem:[%s6 + $0x240] sm:$0xff]
  %v1493 = vld [vmem:[%s6 + $0x248] sm:$0xff]
  %v1494 = vld [vmem:[%s6 + $0x250] sm:$0xff]
  %v1495 = vld [vmem:[%s6 + $0x258] sm:$0xff]
  %v1496 = vld [vmem:[%s6 + $0x260] sm:$0xff]
  %v1497 = vld [vmem:[%s6 + $0x268] sm:$0xff]
  %v1498 = vld [vmem:[%s6 + $0x270] sm:$0xff]
  %v1499 = vld [vmem:[%s6 + $0x278] sm:$0xff]
  %v1500 = vld [vmem:[%s6 + $0x280] sm:$0xff]
  %v1501 = vld [vmem:[%s6 + $0x288] sm:$0xff]
  %v1502 = vld [vmem:[%s6 + $0x290] sm:$0xff]
  %v1503 = vld [vmem:[%s6 + $0x298] sm:$0xff]
  %v1504 = vld [vmem:[%s6 + $0x2a0] sm:$0xff]
  %v1505 = vld [vmem:[%s6 + $0x2a8] sm:$0xff]
  %v1506 = vld [vmem:[%s6 + $0x2b0] sm:$0xff]
  %v1507 = vld [vmem:[%s6 + $0x2b8] sm:$0xff]
  %v1508 = vld [vmem:[%s6 + $0x2c0] sm:$0xff]
  %v1509 = vld [vmem:[%s6 + $0x2c8] sm:$0xff]
  %v1510 = vld [vmem:[%s6 + $0x2d0] sm:$0xff]
  %v1511 = vld [vmem:[%s6 + $0x2d8] sm:$0xff]
  %v1512 = vld [vmem:[%s6 + $0x2e0] sm:$0xff]
  %v1513 = vld [vmem:[%s6 + $0x2e8] sm:$0xff]
  %v1514 = vld [vmem:[%s6 + $0x2f0] sm:$0xff]
  %v1515 = vld [vmem:[%s6 + $0x2f8] sm:$0xff]
  %v1516 = vld [vmem:[%s6 + $0x300] sm:$0xff]
  %v1517 = vld [vmem:[%s6 + $0x308] sm:$0xff]
  %v1518 = vld [vmem:[%s6 + $0x310] sm:$0xff]
  %v1519 = vld [vmem:[%s6 + $0x318] sm:$0xff]
  %v1520 = vld [vmem:[%s6 + $0x320] sm:$0xff]
  %v1521 = vld [vmem:[%s6 + $0x328] sm:$0xff]
  %v1522 = vld [vmem:[%s6 + $0x330] sm:$0xff]
  %v1523 = vld [vmem:[%s6 + $0x338] sm:$0xff]
  %v1524 = vld [vmem:[%s6 + $0x340] sm:$0xff]
  %v1525 = vld [vmem:[%s6 + $0x348] sm:$0xff]
  %v1526 = vld [vmem:[%s6 + $0x350] sm:$0xff]
  %v1527 = vld [vmem:[%s6 + $0x358] sm:$0xff]
  %v1528 = vld [vmem:[%s6 + $0x360] sm:$0xff]
  %v1529 = vld [vmem:[%s6 + $0x368] sm:$0xff]
  %v1530 = vld [vmem:[%s6 + $0x370] sm:$0xff]
  %v1531 = vld [vmem:[%s6 + $0x378] sm:$0xff]
  %v1532 = vld [vmem:[%s6 + $0x380] sm:$0xff]
  %v1533 = vld [vmem:[%s6 + $0x388] sm:$0xff]
  %v1534 = vld [vmem:[%s6 + $0x390] sm:$0xff]
  %v1535 = vld [vmem:[%s6 + $0x398] sm:$0xff]
  %v1536 = vld [vmem:[%s6 + $0x3a0] sm:$0xff]
  %v1537 = vld [vmem:[%s6 + $0x3a8] sm:$0xff]
  %v1538 = vld [vmem:[%s6 + $0x3b0] sm:$0xff]
  %v1539 = vld [vmem:[%s6 + $0x3b8] sm:$0xff]
  %v1540 = vld [vmem:[%s6 + $0x3c0] sm:$0xff]
  %v1541 = vld [vmem:[%s6 + $0x3c8] sm:$0xff]
  %v1542 = vld [vmem:[%s6 + $0x3d0] sm:$0xff]
  %v1543 = vld [vmem:[%s6 + $0x3d8] sm:$0xff]
  %v1544 = vld [vmem:[%s6 + $0x3e0] sm:$0xff]
  %v1545 = vld [vmem:[%s6 + $0x3e8] sm:$0xff]
  %v1546 = vld [vmem:[%s6 + $0x3f0] sm:$0xff]
  %v1547 = vld [vmem:[%s6 + $0x3f8] sm:$0xff]
  %v1548 = vld [vmem:[%s7] sm:$0x3]
  %v1550 = vlaneseq
  %v1551 = vshrl.u32 %v1550, 7
  %v1552 = vsub.s32 0, %v1551
  %v1553 = vrot.slane %v1548, %v1552
  %v1554 = vlaneseq
  %v1555 = vshrl.u32 %v1554, 7
  %v1556 = vsub.s32 1, %v1555
  %v1557 = vrot.slane %v1548, %v1556
  %v1688 = vunpack.c.l.b16 %v1420
  %v1689 = vunpack.c.h.b16 %v1420
  %v1690 = vunpack.c.l.b16 %v1421
  %v1691 = vunpack.c.h.b16 %v1421
  %v1692 = vunpack.c.l.b16 %v1422
  %v1693 = vunpack.c.h.b16 %v1422
  %v1694 = vunpack.c.l.b16 %v1423
  %v1695 = vunpack.c.h.b16 %v1423
  %v1696 = vunpack.c.l.b16 %v1424
  %v1697 = vunpack.c.h.b16 %v1424
  %v1698 = vunpack.c.l.b16 %v1425
  %v1699 = vunpack.c.h.b16 %v1425
  %v1700 = vunpack.c.l.b16 %v1426
  %v1701 = vunpack.c.h.b16 %v1426
  %v1702 = vunpack.c.l.b16 %v1427
  %v1703 = vunpack.c.h.b16 %v1427
  %v1704 = vunpack.c.l.b16 %v1428
  %v1705 = vunpack.c.h.b16 %v1428
  %v1706 = vunpack.c.l.b16 %v1429
  %v1707 = vunpack.c.h.b16 %v1429
  %v1708 = vunpack.c.l.b16 %v1430
  %v1709 = vunpack.c.h.b16 %v1430
  %v1710 = vunpack.c.l.b16 %v1431
  %v1711 = vunpack.c.h.b16 %v1431
  %v1712 = vunpack.c.l.b16 %v1432
  %v1713 = vunpack.c.h.b16 %v1432
  %v1714 = vunpack.c.l.b16 %v1433
  %v1715 = vunpack.c.h.b16 %v1433
  %v1716 = vunpack.c.l.b16 %v1434
  %v1717 = vunpack.c.h.b16 %v1434
  %v1718 = vunpack.c.l.b16 %v1435
  %v1719 = vunpack.c.h.b16 %v1435
  %v1720 = vunpack.c.l.b16 %v1436
  %v1721 = vunpack.c.h.b16 %v1436
  %v1722 = vunpack.c.l.b16 %v1437
  %v1723 = vunpack.c.h.b16 %v1437
  %v1724 = vunpack.c.l.b16 %v1438
  %v1725 = vunpack.c.h.b16 %v1438
  %v1726 = vunpack.c.l.b16 %v1439
  %v1727 = vunpack.c.h.b16 %v1439
  %v1728 = vunpack.c.l.b16 %v1440
  %v1729 = vunpack.c.h.b16 %v1440
  %v1730 = vunpack.c.l.b16 %v1441
  %v1731 = vunpack.c.h.b16 %v1441
  %v1732 = vunpack.c.l.b16 %v1442
  %v1733 = vunpack.c.h.b16 %v1442
  %v1734 = vunpack.c.l.b16 %v1443
  %v1735 = vunpack.c.h.b16 %v1443
  %v1736 = vunpack.c.l.b16 %v1444
  %v1737 = vunpack.c.h.b16 %v1444
  %v1738 = vunpack.c.l.b16 %v1445
  %v1739 = vunpack.c.h.b16 %v1445
  %v1740 = vunpack.c.l.b16 %v1446
  %v1741 = vunpack.c.h.b16 %v1446
  %v1742 = vunpack.c.l.b16 %v1447
  %v1743 = vunpack.c.h.b16 %v1447
  %v1744 = vunpack.c.l.b16 %v1448
  %v1745 = vunpack.c.h.b16 %v1448
  %v1746 = vunpack.c.l.b16 %v1449
  %v1747 = vunpack.c.h.b16 %v1449
  %v1748 = vunpack.c.l.b16 %v1450
  %v1749 = vunpack.c.h.b16 %v1450
  %v1750 = vunpack.c.l.b16 %v1451
  %v1751 = vunpack.c.h.b16 %v1451
  %v1752 = vunpack.c.l.b16 %v1452
  %v1753 = vunpack.c.h.b16 %v1452
  %v1754 = vunpack.c.l.b16 %v1453
  %v1755 = vunpack.c.h.b16 %v1453
  %v1756 = vunpack.c.l.b16 %v1454
  %v1757 = vunpack.c.h.b16 %v1454
  %v1758 = vunpack.c.l.b16 %v1455
  %v1759 = vunpack.c.h.b16 %v1455
  %v1760 = vunpack.c.l.b16 %v1456
  %v1761 = vunpack.c.h.b16 %v1456
  %v1762 = vunpack.c.l.b16 %v1457
  %v1763 = vunpack.c.h.b16 %v1457
  %v1764 = vunpack.c.l.b16 %v1458
  %v1765 = vunpack.c.h.b16 %v1458
  %v1766 = vunpack.c.l.b16 %v1459
  %v1767 = vunpack.c.h.b16 %v1459
  %v1768 = vunpack.c.l.b16 %v1460
  %v1769 = vunpack.c.h.b16 %v1460
  %v1770 = vunpack.c.l.b16 %v1461
  %v1771 = vunpack.c.h.b16 %v1461
  %v1772 = vunpack.c.l.b16 %v1462
  %v1773 = vunpack.c.h.b16 %v1462
  %v1774 = vunpack.c.l.b16 %v1463
  %v1775 = vunpack.c.h.b16 %v1463
  %v1776 = vunpack.c.l.b16 %v1464
  %v1777 = vunpack.c.h.b16 %v1464
  %v1778 = vunpack.c.l.b16 %v1465
  %v1779 = vunpack.c.h.b16 %v1465
  %v1780 = vunpack.c.l.b16 %v1466
  %v1781 = vunpack.c.h.b16 %v1466
  %v1782 = vunpack.c.l.b16 %v1467
  %v1783 = vunpack.c.h.b16 %v1467
  %v1784 = vunpack.c.l.b16 %v1468
  %v1785 = vunpack.c.h.b16 %v1468
  %v1786 = vunpack.c.l.b16 %v1469
  %v1787 = vunpack.c.h.b16 %v1469
  %v1788 = vunpack.c.l.b16 %v1470
  %v1789 = vunpack.c.h.b16 %v1470
  %v1790 = vunpack.c.l.b16 %v1471
  %v1791 = vunpack.c.h.b16 %v1471
  %v1792 = vunpack.c.l.b16 %v1472
  %v1793 = vunpack.c.h.b16 %v1472
  %v1794 = vunpack.c.l.b16 %v1473
  %v1795 = vunpack.c.h.b16 %v1473
  %v1796 = vunpack.c.l.b16 %v1474
  %v1797 = vunpack.c.h.b16 %v1474
  %v1798 = vunpack.c.l.b16 %v1475
  %v1799 = vunpack.c.h.b16 %v1475
  %v1800 = vunpack.c.l.b16 %v1476
  %v1801 = vunpack.c.h.b16 %v1476
  %v1802 = vunpack.c.l.b16 %v1477
  %v1803 = vunpack.c.h.b16 %v1477
  %v1804 = vunpack.c.l.b16 %v1478
  %v1805 = vunpack.c.h.b16 %v1478
  %v1806 = vunpack.c.l.b16 %v1479
  %v1807 = vunpack.c.h.b16 %v1479
  %v1808 = vunpack.c.l.b16 %v1480
  %v1809 = vunpack.c.h.b16 %v1480
  %v1810 = vunpack.c.l.b16 %v1481
  %v1811 = vunpack.c.h.b16 %v1481
  %v1812 = vunpack.c.l.b16 %v1482
  %v1813 = vunpack.c.h.b16 %v1482
  %v1814 = vunpack.c.l.b16 %v1483
  %v1815 = vunpack.c.h.b16 %v1483
  %v1816 = vunpack.c.l.b16 %v1484
  %v1817 = vunpack.c.h.b16 %v1484
  %v1818 = vunpack.c.l.b16 %v1485
  %v1819 = vunpack.c.h.b16 %v1485
  %v1820 = vunpack.c.l.b16 %v1486
  %v1821 = vunpack.c.h.b16 %v1486
  %v1822 = vunpack.c.l.b16 %v1487
  %v1823 = vunpack.c.h.b16 %v1487
  %v1824 = vunpack.c.l.b16 %v1488
  %v1825 = vunpack.c.h.b16 %v1488
  %v1826 = vunpack.c.l.b16 %v1489
  %v1827 = vunpack.c.h.b16 %v1489
  %v1828 = vunpack.c.l.b16 %v1490
  %v1829 = vunpack.c.h.b16 %v1490
  %v1830 = vunpack.c.l.b16 %v1491
  %v1831 = vunpack.c.h.b16 %v1491
  %v1832 = vunpack.c.l.b16 %v1492
  %v1833 = vunpack.c.h.b16 %v1492
  %v1834 = vunpack.c.l.b16 %v1493
  %v1835 = vunpack.c.h.b16 %v1493
  %v1836 = vunpack.c.l.b16 %v1494
  %v1837 = vunpack.c.h.b16 %v1494
  %v1838 = vunpack.c.l.b16 %v1495
  %v1839 = vunpack.c.h.b16 %v1495
  %v1840 = vunpack.c.l.b16 %v1496
  %v1841 = vunpack.c.h.b16 %v1496
  %v1842 = vunpack.c.l.b16 %v1497
  %v1843 = vunpack.c.h.b16 %v1497
  %v1844 = vunpack.c.l.b16 %v1498
  %v1845 = vunpack.c.h.b16 %v1498
  %v1846 = vunpack.c.l.b16 %v1499
  %v1847 = vunpack.c.h.b16 %v1499
  %v1848 = vunpack.c.l.b16 %v1500
  %v1849 = vunpack.c.h.b16 %v1500
  %v1850 = vunpack.c.l.b16 %v1501
  %v1851 = vunpack.c.h.b16 %v1501
  %v1852 = vunpack.c.l.b16 %v1502
  %v1853 = vunpack.c.h.b16 %v1502
  %v1854 = vunpack.c.l.b16 %v1503
  %v1855 = vunpack.c.h.b16 %v1503
  %v1856 = vunpack.c.l.b16 %v1504
  %v1857 = vunpack.c.h.b16 %v1504
  %v1858 = vunpack.c.l.b16 %v1505
  %v1859 = vunpack.c.h.b16 %v1505
  %v1860 = vunpack.c.l.b16 %v1506
  %v1861 = vunpack.c.h.b16 %v1506
  %v1862 = vunpack.c.l.b16 %v1507
  %v1863 = vunpack.c.h.b16 %v1507
  %v1864 = vunpack.c.l.b16 %v1508
  %v1865 = vunpack.c.h.b16 %v1508
  %v1866 = vunpack.c.l.b16 %v1509
  %v1867 = vunpack.c.h.b16 %v1509
  %v1868 = vunpack.c.l.b16 %v1510
  %v1869 = vunpack.c.h.b16 %v1510
  %v1870 = vunpack.c.l.b16 %v1511
  %v1871 = vunpack.c.h.b16 %v1511
  %v1872 = vunpack.c.l.b16 %v1512
  %v1873 = vunpack.c.h.b16 %v1512
  %v1874 = vunpack.c.l.b16 %v1513
  %v1875 = vunpack.c.h.b16 %v1513
  %v1876 = vunpack.c.l.b16 %v1514
  %v1877 = vunpack.c.h.b16 %v1514
  %v1878 = vunpack.c.l.b16 %v1515
  %v1879 = vunpack.c.h.b16 %v1515
  %v1880 = vunpack.c.l.b16 %v1516
  %v1881 = vunpack.c.h.b16 %v1516
  %v1882 = vunpack.c.l.b16 %v1517
  %v1883 = vunpack.c.h.b16 %v1517
  %v1884 = vunpack.c.l.b16 %v1518
  %v1885 = vunpack.c.h.b16 %v1518
  %v1886 = vunpack.c.l.b16 %v1519
  %v1887 = vunpack.c.h.b16 %v1519
  %v1888 = vunpack.c.l.b16 %v1520
  %v1889 = vunpack.c.h.b16 %v1520
  %v1890 = vunpack.c.l.b16 %v1521
  %v1891 = vunpack.c.h.b16 %v1521
  %v1892 = vunpack.c.l.b16 %v1522
  %v1893 = vunpack.c.h.b16 %v1522
  %v1894 = vunpack.c.l.b16 %v1523
  %v1895 = vunpack.c.h.b16 %v1523
  %v1896 = vunpack.c.l.b16 %v1524
  %v1897 = vunpack.c.h.b16 %v1524
  %v1898 = vunpack.c.l.b16 %v1525
  %v1899 = vunpack.c.h.b16 %v1525
  %v1900 = vunpack.c.l.b16 %v1526
  %v1901 = vunpack.c.h.b16 %v1526
  %v1902 = vunpack.c.l.b16 %v1527
  %v1903 = vunpack.c.h.b16 %v1527
  %v1904 = vunpack.c.l.b16 %v1528
  %v1905 = vunpack.c.h.b16 %v1528
  %v1906 = vunpack.c.l.b16 %v1529
  %v1907 = vunpack.c.h.b16 %v1529
  %v1908 = vunpack.c.l.b16 %v1530
  %v1909 = vunpack.c.h.b16 %v1530
  %v1910 = vunpack.c.l.b16 %v1531
  %v1911 = vunpack.c.h.b16 %v1531
  %v1912 = vunpack.c.l.b16 %v1532
  %v1913 = vunpack.c.h.b16 %v1532
  %v1914 = vunpack.c.l.b16 %v1533
  %v1915 = vunpack.c.h.b16 %v1533
  %v1916 = vunpack.c.l.b16 %v1534
  %v1917 = vunpack.c.h.b16 %v1534
  %v1918 = vunpack.c.l.b16 %v1535
  %v1919 = vunpack.c.h.b16 %v1535
  %v1920 = vunpack.c.l.b16 %v1536
  %v1921 = vunpack.c.h.b16 %v1536
  %v1922 = vunpack.c.l.b16 %v1537
  %v1923 = vunpack.c.h.b16 %v1537
  %v1924 = vunpack.c.l.b16 %v1538
  %v1925 = vunpack.c.h.b16 %v1538
  %v1926 = vunpack.c.l.b16 %v1539
  %v1927 = vunpack.c.h.b16 %v1539
  %v1928 = vunpack.c.l.b16 %v1540
  %v1929 = vunpack.c.h.b16 %v1540
  %v1930 = vunpack.c.l.b16 %v1541
  %v1931 = vunpack.c.h.b16 %v1541
  %v1932 = vunpack.c.l.b16 %v1542
  %v1933 = vunpack.c.h.b16 %v1542
  %v1934 = vunpack.c.l.b16 %v1543
  %v1935 = vunpack.c.h.b16 %v1543
  %v1936 = vunpack.c.l.b16 %v1544
  %v1937 = vunpack.c.h.b16 %v1544
  %v1938 = vunpack.c.l.b16 %v1545
  %v1939 = vunpack.c.h.b16 %v1545
  %v1940 = vunpack.c.l.b16 %v1546
  %v1941 = vunpack.c.h.b16 %v1546
  %v1942 = vunpack.c.l.b16 %v1547
  %v1943 = vunpack.c.h.b16 %v1547
  %v1944 = vpack.c.b16 %v1690, %v1688
  %v1945 = vpack.c.b16 %v1691, %v1689
  %v1946 = vpack.c.b16 %v1694, %v1692
  %v1947 = vpack.c.b16 %v1695, %v1693
  %v1948 = vpack.c.b16 %v1698, %v1696
  %v1949 = vpack.c.b16 %v1699, %v1697
  %v1950 = vpack.c.b16 %v1702, %v1700
  %v1951 = vpack.c.b16 %v1703, %v1701
  %v1952 = vpack.c.b16 %v1706, %v1704
  %v1953 = vpack.c.b16 %v1707, %v1705
  %v1954 = vpack.c.b16 %v1710, %v1708
  %v1955 = vpack.c.b16 %v1711, %v1709
  %v1956 = vpack.c.b16 %v1714, %v1712
  %v1957 = vpack.c.b16 %v1715, %v1713
  %v1958 = vpack.c.b16 %v1718, %v1716
  %v1959 = vpack.c.b16 %v1719, %v1717
  %v1960 = vpack.c.b16 %v1722, %v1720
  %v1961 = vpack.c.b16 %v1723, %v1721
  %v1962 = vpack.c.b16 %v1726, %v1724
  %v1963 = vpack.c.b16 %v1727, %v1725
  %v1964 = vpack.c.b16 %v1730, %v1728
  %v1965 = vpack.c.b16 %v1731, %v1729
  %v1966 = vpack.c.b16 %v1734, %v1732
  %v1967 = vpack.c.b16 %v1735, %v1733
  %v1968 = vpack.c.b16 %v1738, %v1736
  %v1969 = vpack.c.b16 %v1739, %v1737
  %v1970 = vpack.c.b16 %v1742, %v1740
  %v1971 = vpack.c.b16 %v1743, %v1741
  %v1972 = vpack.c.b16 %v1746, %v1744
  %v1973 = vpack.c.b16 %v1747, %v1745
  %v1974 = vpack.c.b16 %v1750, %v1748
  %v1975 = vpack.c.b16 %v1751, %v1749
  %v1976 = vpack.c.b16 %v1754, %v1752
  %v1977 = vpack.c.b16 %v1755, %v1753
  %v1978 = vpack.c.b16 %v1758, %v1756
  %v1979 = vpack.c.b16 %v1759, %v1757
  %v1980 = vpack.c.b16 %v1762, %v1760
  %v1981 = vpack.c.b16 %v1763, %v1761
  %v1982 = vpack.c.b16 %v1766, %v1764
  %v1983 = vpack.c.b16 %v1767, %v1765
  %v1984 = vpack.c.b16 %v1770, %v1768
  %v1985 = vpack.c.b16 %v1771, %v1769
  %v1986 = vpack.c.b16 %v1774, %v1772
  %v1987 = vpack.c.b16 %v1775, %v1773
  %v1988 = vpack.c.b16 %v1778, %v1776
  %v1989 = vpack.c.b16 %v1779, %v1777
  %v1990 = vpack.c.b16 %v1782, %v1780
  %v1991 = vpack.c.b16 %v1783, %v1781
  %v1992 = vpack.c.b16 %v1786, %v1784
  %v1993 = vpack.c.b16 %v1787, %v1785
  %v1994 = vpack.c.b16 %v1790, %v1788
  %v1995 = vpack.c.b16 %v1791, %v1789
  %v1996 = vpack.c.b16 %v1794, %v1792
  %v1997 = vpack.c.b16 %v1795, %v1793
  %v1998 = vpack.c.b16 %v1798, %v1796
  %v1999 = vpack.c.b16 %v1799, %v1797
  %v2000 = vpack.c.b16 %v1802, %v1800
  %v2001 = vpack.c.b16 %v1803, %v1801
  %v2002 = vpack.c.b16 %v1806, %v1804
  %v2003 = vpack.c.b16 %v1807, %v1805
  %v2004 = vpack.c.b16 %v1810, %v1808
  %v2005 = vpack.c.b16 %v1811, %v1809
  %v2006 = vpack.c.b16 %v1814, %v1812
  %v2007 = vpack.c.b16 %v1815, %v1813
  %v2008 = vpack.c.b16 %v1818, %v1816
  %v2009 = vpack.c.b16 %v1819, %v1817
  %v2010 = vpack.c.b16 %v1822, %v1820
  %v2011 = vpack.c.b16 %v1823, %v1821
  %v2012 = vpack.c.b16 %v1826, %v1824
  %v2013 = vpack.c.b16 %v1827, %v1825
  %v2014 = vpack.c.b16 %v1830, %v1828
  %v2015 = vpack.c.b16 %v1831, %v1829
  %v2016 = vpack.c.b16 %v1834, %v1832
  %v2017 = vpack.c.b16 %v1835, %v1833
  %v2018 = vpack.c.b16 %v1838, %v1836
  %v2019 = vpack.c.b16 %v1839, %v1837
  %v2020 = vpack.c.b16 %v1842, %v1840
  %v2021 = vpack.c.b16 %v1843, %v1841
  %v2022 = vpack.c.b16 %v1846, %v1844
  %v2023 = vpack.c.b16 %v1847, %v1845
  %v2024 = vpack.c.b16 %v1850, %v1848
  %v2025 = vpack.c.b16 %v1851, %v1849
  %v2026 = vpack.c.b16 %v1854, %v1852
  %v2027 = vpack.c.b16 %v1855, %v1853
  %v2028 = vpack.c.b16 %v1858, %v1856
  %v2029 = vpack.c.b16 %v1859, %v1857
  %v2030 = vpack.c.b16 %v1862, %v1860
  %v2031 = vpack.c.b16 %v1863, %v1861
  %v2032 = vpack.c.b16 %v1866, %v1864
  %v2033 = vpack.c.b16 %v1867, %v1865
  %v2034 = vpack.c.b16 %v1870, %v1868
  %v2035 = vpack.c.b16 %v1871, %v1869
  %v2036 = vpack.c.b16 %v1874, %v1872
  %v2037 = vpack.c.b16 %v1875, %v1873
  %v2038 = vpack.c.b16 %v1878, %v1876
  %v2039 = vpack.c.b16 %v1879, %v1877
  %v2040 = vpack.c.b16 %v1882, %v1880
  %v2041 = vpack.c.b16 %v1883, %v1881
  %v2042 = vpack.c.b16 %v1886, %v1884
  %v2043 = vpack.c.b16 %v1887, %v1885
  %v2044 = vpack.c.b16 %v1890, %v1888
  %v2045 = vpack.c.b16 %v1891, %v1889
  %v2046 = vpack.c.b16 %v1894, %v1892
  %v2047 = vpack.c.b16 %v1895, %v1893
  %v2048 = vpack.c.b16 %v1898, %v1896
  %v2049 = vpack.c.b16 %v1899, %v1897
  %v2050 = vpack.c.b16 %v1902, %v1900
  %v2051 = vpack.c.b16 %v1903, %v1901
  %v2052 = vpack.c.b16 %v1906, %v1904
  %v2053 = vpack.c.b16 %v1907, %v1905
  %v2054 = vpack.c.b16 %v1910, %v1908
  %v2055 = vpack.c.b16 %v1911, %v1909
  %v2056 = vpack.c.b16 %v1914, %v1912
  %v2057 = vpack.c.b16 %v1915, %v1913
  %v2058 = vpack.c.b16 %v1918, %v1916
  %v2059 = vpack.c.b16 %v1919, %v1917
  %v2060 = vpack.c.b16 %v1922, %v1920
  %v2061 = vpack.c.b16 %v1923, %v1921
  %v2062 = vpack.c.b16 %v1926, %v1924
  %v2063 = vpack.c.b16 %v1927, %v1925
  %v2064 = vpack.c.b16 %v1930, %v1928
  %v2065 = vpack.c.b16 %v1931, %v1929
  %v2066 = vpack.c.b16 %v1934, %v1932
  %v2067 = vpack.c.b16 %v1935, %v1933
  %v2068 = vpack.c.b16 %v1938, %v1936
  %v2069 = vpack.c.b16 %v1939, %v1937
  %v2070 = vpack.c.b16 %v1942, %v1940
  %v2071 = vpack.c.b16 %v1943, %v1941
  %2200 = vmatprep.subr.bf16.mxu0 %v1945
  %2201 = vmatpush1.bf16.msra.mxu0 %v1944
  %2202 = vmatprep.subr.bf16.mxu0 %v1947
  %2203 = vmatpush1.bf16.msra.mxu0 %v1946
  %2204 = vmatprep.subr.bf16.mxu0 %v1949
  %2205 = vmatpush1.bf16.msra.mxu0 %v1948
  %2206 = vmatprep.subr.bf16.mxu0 %v1951
  %2207 = vmatpush1.bf16.msra.mxu0 %v1950
  %2208 = vmatprep.subr.bf16.mxu0 %v1953
  %2209 = vmatpush1.bf16.msra.mxu0 %v1952
  %2210 = vmatprep.subr.bf16.mxu0 %v1955
  %2211 = vmatpush1.bf16.msra.mxu0 %v1954
  %2212 = vmatprep.subr.bf16.mxu0 %v1957
  %2213 = vmatpush1.bf16.msra.mxu0 %v1956
  %2214 = vmatprep.subr.bf16.mxu0 %v1959
  %2215 = vmatpush1.bf16.msra.mxu0 %v1958
  %2216 = vmatprep.subr.bf16.mxu0 %v1961
  %2217 = vmatpush1.bf16.msra.mxu0 %v1960
  %2218 = vmatprep.subr.bf16.mxu0 %v1963
  %2219 = vmatpush1.bf16.msra.mxu0 %v1962
  %2220 = vmatprep.subr.bf16.mxu0 %v1965
  %2221 = vmatpush1.bf16.msra.mxu0 %v1964
  %2222 = vmatprep.subr.bf16.mxu0 %v1967
  %2223 = vmatpush1.bf16.msra.mxu0 %v1966
  %2224 = vmatprep.subr.bf16.mxu0 %v1969
  %2225 = vmatpush1.bf16.msra.mxu0 %v1968
  %2226 = vmatprep.subr.bf16.mxu0 %v1971
  %2227 = vmatpush1.bf16.msra.mxu0 %v1970
  %2228 = vmatprep.subr.bf16.mxu0 %v1973
  %2229 = vmatpush1.bf16.msra.mxu0 %v1972
  %2230 = vmatprep.subr.bf16.mxu0 %v1975
  %2231 = vmatpush1.bf16.msra.mxu0 %v1974
  %2232 = vmatprep.mubr.bf16.mxu0 %v1405
  %2233 = vmatmul.mubr.bf16.gmra.mrb[0].mxu0 %v1404
  %v2234 = vpop.f32.mrb[0].mxu0
  %v2235 = vadd.f32 %v1553, %v2234
  %v2236 = vpop.f32.mrb[0].mxu0
  %v2237 = vadd.f32 %v1557, %v2236
  %v2238 = vpop.f32.mrb[0].mxu0
  %v2239 = vadd.f32 %v1553, %v2238
  %v2240 = vpop.f32.mrb[0].mxu0
  %v2241 = vadd.f32 %v1557, %v2240
  %2242 = vmatprep.mubr.bf16.mxu0 %v1413
  %2243 = vmatmul.mubr.bf16.gmra.mrb[0].mxu0 %v1412
  %v2244 = vpop.f32.mrb[0].mxu0
  %v2245 = vadd.f32 %v1553, %v2244
  %v2246 = vpop.f32.mrb[0].mxu0
  %v2247 = vadd.f32 %v1557, %v2246
  %v2248 = vpop.f32.mrb[0].mxu0
  %v2249 = vpop.f32.mrb[0].mxu0
  %2250 = vdwg.mxu0
  %2251 = vmatprep.subr.bf16.mxu0 %v1977
  %2252 = vmatpush1.bf16.msra.mxu0 %v1976
  %2253 = vmatprep.subr.bf16.mxu0 %v1979
  %2254 = vmatpush1.bf16.msra.mxu0 %v1978
  %2255 = vmatprep.subr.bf16.mxu0 %v1981
  %2256 = vmatpush1.bf16.msra.mxu0 %v1980
  %2257 = vmatprep.subr.bf16.mxu0 %v1983
  %2258 = vmatpush1.bf16.msra.mxu0 %v1982
  %2259 = vmatprep.subr.bf16.mxu0 %v1985
  %2260 = vmatpush1.bf16.msra.mxu0 %v1984
  %2261 = vmatprep.subr.bf16.mxu0 %v1987
  %2262 = vmatpush1.bf16.msra.mxu0 %v1986
  %2263 = vmatprep.subr.bf16.mxu0 %v1989
  %2264 = vmatpush1.bf16.msra.mxu0 %v1988
  %2265 = vmatprep.subr.bf16.mxu0 %v1991
  %2266 = vmatpush1.bf16.msra.mxu0 %v1990
  %2267 = vmatprep.subr.bf16.mxu0 %v1993
  %2268 = vmatpush1.bf16.msra.mxu0 %v1992
  %2269 = vmatprep.subr.bf16.mxu0 %v1995
  %2270 = vmatpush1.bf16.msra.mxu0 %v1994
  %2271 = vmatprep.subr.bf16.mxu0 %v1997
  %2272 = vmatpush1.bf16.msra.mxu0 %v1996
  %2273 = vmatprep.subr.bf16.mxu0 %v1999
  %2274 = vmatpush1.bf16.msra.mxu0 %v1998
  %2275 = vmatprep.subr.bf16.mxu0 %v2001
  %2276 = vmatpush1.bf16.msra.mxu0 %v2000
  %2277 = vmatprep.subr.bf16.mxu0 %v2003
  %2278 = vmatpush1.bf16.msra.mxu0 %v2002
  %2279 = vmatprep.subr.bf16.mxu0 %v2005
  %2280 = vmatpush1.bf16.msra.mxu0 %v2004
  %2281 = vmatprep.subr.bf16.mxu0 %v2007
  %2282 = vmatpush1.bf16.msra.mxu0 %v2006
  %2283 = vmatprep.mubr.bf16.mxu0 %v1407
  %2284 = vmatmul.mubr.bf16.gmra.mrb[0].mxu0 %v1406
  %v2285 = vpop.f32.mrb[0].mxu0
  %v2286 = vadd.f32 %v2235, %v2285
  %v2287 = vpop.f32.mrb[0].mxu0
  %v2288 = vadd.f32 %v2237, %v2287
  %v2289 = vpop.f32.mrb[0].mxu0
  %v2290 = vadd.f32 %v2239, %v2289
  %v2291 = vpop.f32.mrb[0].mxu0
  %v2292 = vadd.f32 %v2241, %v2291
  %2293 = vmatprep.mubr.bf16.mxu0 %v1415
  %2294 = vmatmul.mubr.bf16.gmra.mrb[0].mxu0 %v1414
  %v2295 = vpop.f32.mrb[0].mxu0
  %v2296 = vadd.f32 %v2245, %v2295
  %v2297 = vpop.f32.mrb[0].mxu0
  %v2298 = vadd.f32 %v2247, %v2297
  %v2299 = vpop.f32.mrb[0].mxu0
  %v2300 = vpop.f32.mrb[0].mxu0
  %2301 = vdwg.mxu0
  %2302 = vmatprep.subr.bf16.mxu0 %v2009
  %2303 = vmatpush1.bf16.msra.mxu0 %v2008
  %2304 = vmatprep.subr.bf16.mxu0 %v2011
  %2305 = vmatpush1.bf16.msra.mxu0 %v2010
  %2306 = vmatprep.subr.bf16.mxu0 %v2013
  %2307 = vmatpush1.bf16.msra.mxu0 %v2012
  %2308 = vmatprep.subr.bf16.mxu0 %v2015
  %2309 = vmatpush1.bf16.msra.mxu0 %v2014
  %2310 = vmatprep.subr.bf16.mxu0 %v2017
  %2311 = vmatpush1.bf16.msra.mxu0 %v2016
  %2312 = vmatprep.subr.bf16.mxu0 %v2019
  %2313 = vmatpush1.bf16.msra.mxu0 %v2018
  %2314 = vmatprep.subr.bf16.mxu0 %v2021
  %2315 = vmatpush1.bf16.msra.mxu0 %v2020
  %2316 = vmatprep.subr.bf16.mxu0 %v2023
  %2317 = vmatpush1.bf16.msra.mxu0 %v2022
  %2318 = vmatprep.subr.bf16.mxu0 %v2025
  %2319 = vmatpush1.bf16.msra.mxu0 %v2024
  %2320 = vmatprep.subr.bf16.mxu0 %v2027
  %2321 = vmatpush1.bf16.msra.mxu0 %v2026
  %2322 = vmatprep.subr.bf16.mxu0 %v2029
  %2323 = vmatpush1.bf16.msra.mxu0 %v2028
  %2324 = vmatprep.subr.bf16.mxu0 %v2031
  %2325 = vmatpush1.bf16.msra.mxu0 %v2030
  %2326 = vmatprep.subr.bf16.mxu0 %v2033
  %2327 = vmatpush1.bf16.msra.mxu0 %v2032
  %2328 = vmatprep.subr.bf16.mxu0 %v2035
  %2329 = vmatpush1.bf16.msra.mxu0 %v2034
  %2330 = vmatprep.subr.bf16.mxu0 %v2037
  %2331 = vmatpush1.bf16.msra.mxu0 %v2036
  %2332 = vmatprep.subr.bf16.mxu0 %v2039
  %2333 = vmatpush1.bf16.msra.mxu0 %v2038
  %2334 = vmatprep.mubr.bf16.mxu0 %v1409
  %2335 = vmatmul.mubr.bf16.gmra.mrb[0].mxu0 %v1408
  %v2336 = vpop.f32.mrb[0].mxu0
  %v2337 = vadd.f32 %v2286, %v2336
  %v2338 = vpop.f32.mrb[0].mxu0
  %v2339 = vadd.f32 %v2288, %v2338
  %v2340 = vpop.f32.mrb[0].mxu0
  %v2341 = vadd.f32 %v2290, %v2340
  %v2342 = vpop.f32.mrb[0].mxu0
  %v2343 = vadd.f32 %v2292, %v2342
  %2344 = vmatprep.mubr.bf16.mxu0 %v1417
  %2345 = vmatmul.mubr.bf16.gmra.mrb[0].mxu0 %v1416
  %v2346 = vpop.f32.mrb[0].mxu0
  %v2347 = vadd.f32 %v2296, %v2346
  %v2348 = vpop.f32.mrb[0].mxu0
  %v2349 = vadd.f32 %v2298, %v2348
  %v2350 = vpop.f32.mrb[0].mxu0
  %v2351 = vpop.f32.mrb[0].mxu0
  %2352 = vdwg.mxu0
  %2353 = vmatprep.subr.bf16.mxu0 %v2041
  %2354 = vmatpush1.bf16.msra.mxu0 %v2040
  %2355 = vmatprep.subr.bf16.mxu0 %v2043
  %2356 = vmatpush1.bf16.msra.mxu0 %v2042
  %2357 = vmatprep.subr.bf16.mxu0 %v2045
  %2358 = vmatpush1.bf16.msra.mxu0 %v2044
  %2359 = vmatprep.subr.bf16.mxu0 %v2047
  %2360 = vmatpush1.bf16.msra.mxu0 %v2046
  %2361 = vmatprep.subr.bf16.mxu0 %v2049
  %2362 = vmatpush1.bf16.msra.mxu0 %v2048
  %2363 = vmatprep.subr.bf16.mxu0 %v2051
  %2364 = vmatpush1.bf16.msra.mxu0 %v2050
  %2365 = vmatprep.subr.bf16.mxu0 %v2053
  %2366 = vmatpush1.bf16.msra.mxu0 %v2052
  %2367 = vmatprep.subr.bf16.mxu0 %v2055
  %2368 = vmatpush1.bf16.msra.mxu0 %v2054
  %2369 = vmatprep.subr.bf16.mxu0 %v2057
  %2370 = vmatpush1.bf16.msra.mxu0 %v2056
  %2371 = vmatprep.subr.bf16.mxu0 %v2059
  %2372 = vmatpush1.bf16.msra.mxu0 %v2058
  %2373 = vmatprep.subr.bf16.mxu0 %v2061
  %2374 = vmatpush1.bf16.msra.mxu0 %v2060
  %2375 = vmatprep.subr.bf16.mxu0 %v2063
  %2376 = vmatpush1.bf16.msra.mxu0 %v2062
  %2377 = vmatprep.subr.bf16.mxu0 %v2065
  %2378 = vmatpush1.bf16.msra.mxu0 %v2064
  %2379 = vmatprep.subr.bf16.mxu0 %v2067
  %2380 = vmatpush1.bf16.msra.mxu0 %v2066
  %2381 = vmatprep.subr.bf16.mxu0 %v2069
  %2382 = vmatpush1.bf16.msra.mxu0 %v2068
  %2383 = vmatprep.subr.bf16.mxu0 %v2071
  %2384 = vmatpush1.bf16.msra.mxu0 %v2070
  %2385 = vmatprep.mubr.bf16.mxu0 %v1411
  %2386 = vmatmul.mubr.bf16.gmra.mrb[0].mxu0 %v1410
  %v2387 = vpop.f32.mrb[0].mxu0
  %v2388 = vadd.f32 %v2337, %v2387
  %v2389 = vpop.f32.mrb[0].mxu0
  %v2390 = vadd.f32 %v2339, %v2389
  %v2391 = vpop.f32.mrb[0].mxu0
  %v2392 = vadd.f32 %v2341, %v2391
  %v2393 = vpop.f32.mrb[0].mxu0
  %v2394 = vadd.f32 %v2343, %v2393
  %2395 = vmatprep.mubr.bf16.mxu0 %v1419
  %2396 = vmatmul.mubr.bf16.gmra.mrb[0].mxu0 %v1418
  %v2397 = vpop.f32.mrb[0].mxu0
  %v2398 = vadd.f32 %v2347, %v2397
  %v2399 = vpop.f32.mrb[0].mxu0
  %v2400 = vadd.f32 %v2349, %v2399
  %v2401 = vpop.f32.mrb[0].mxu0
  %v2402 = vpop.f32.mrb[0].mxu0
  %2403 = vdwg.mxu0
  %v2404 = vadd.f32 %v2388, %v164
  %v2405 = vadd.f32 %v2390, %v165
  %v2406 = vadd.f32 %v2392, %v166
  %v2407 = vadd.f32 %v2394, %v167
  %v2408 = vadd.f32 %v2398, %v168
  %v2409 = vadd.f32 %v2400, %v169
  %v2410 = vld [vmem:[%s8] sm:$0x3]
  %v2411 = vld [vmem:[%s9] sm:$0x3]
  %v2412 = vadd.f32 %v2404, %v2405
  %2413 = vadd.xlane.f32.xlu0 %v2412
  %v2414 = vpop.xlane.xlu0 %2413
  %v2415 = vadd.f32 %v2406, %v2407
  %2416 = vadd.xlane.f32.xlu0 %v2415
  %v2417 = vpop.xlane.xlu0 %2416
  %v2418 = vsel %vm88, %v2408, 0.0
  %v2419 = vsel %vm88, %v2409, 0.0
  %v2420 = vadd.f32 %v2418, %v2419
  %2421 = vadd.xlane.f32.xlu0 %v2420
  %v2422 = vpop.xlane.xlu0 %2421
  %v2423 = vmul.f32 %v2414, %v94
  %v2424 = vmul.f32 %v2417, %v94
  %v2425 = vmul.f32 %v2422, %v94
  %v2426 = vsub.f32 %v2404, %v2423
  %v2427 = vsub.f32 %v2405, %v2423
  %v2428 = vsub.f32 %v2406, %v2424
  %v2429 = vsub.f32 %v2407, %v2424
  %v2430 = vsub.f32 %v2408, %v2425
  %v2431 = vsub.f32 %v2409, %v2425
  %v2432 = vmul.f32 %v2426, %v2426
  %v2433 = vmul.f32 %v2427, %v2427
  %v2434 = vmul.f32 %v2428, %v2428
  %v2435 = vmul.f32 %v2429, %v2429
  %v2436 = vmul.f32 %v2430, %v2430
  %v2437 = vmul.f32 %v2431, %v2431
  %v2438 = vadd.f32 %v2432, %v2433
  %2439 = vadd.xlane.f32.xlu0 %v2438
  %v2440 = vpop.xlane.xlu0 %2439
  %v2441 = vadd.f32 %v2434, %v2435
  %2442 = vadd.xlane.f32.xlu0 %v2441
  %v2443 = vpop.xlane.xlu0 %2442
  %v2444 = vsel %vm88, %v2436, 0.0
  %v2445 = vsel %vm88, %v2437, 0.0
  %v2446 = vadd.f32 %v2444, %v2445
  %2447 = vadd.xlane.f32.xlu0 %v2446
  %v2448 = vpop.xlane.xlu0 %2447
  %v2449 = vmul.f32 %v2440, %v94
  %v2450 = vmul.f32 %v2443, %v94
  %v2451 = vmul.f32 %v2448, %v94
  %v2452 = vadd.f32 %v2449, 1e-05
  %v2453 = vadd.f32 %v2450, 1e-05
  %v2454 = vadd.f32 %v2451, 1e-05
  %v2455 = vrsqrt.pop %v2452
  %v2456 = vrsqrt.pop %v2453
  %v2457 = vrsqrt.pop %v2454
  %v2458 = vmul.f32 %v2426, %v2455
  %v2459 = vmul.f32 %v2427, %v2455
  %v2460 = vmul.f32 %v2428, %v2456
  %v2461 = vmul.f32 %v2429, %v2456
  %v2462 = vmul.f32 %v2430, %v2457
  %v2463 = vmul.f32 %v2431, %v2457
  %v2465 = vlaneseq
  %v2466 = vshrl.u32 %v2465, 7
  %v2467 = vsub.s32 0, %v2466
  %v2468 = vrot.slane %v2410, %v2467
  %v2469 = vlaneseq
  %v2470 = vshrl.u32 %v2469, 7
  %v2471 = vsub.s32 1, %v2470
  %v2472 = vrot.slane %v2410, %v2471
  %v2475 = vmul.f32 %v2458, %v2468
  %v2476 = vmul.f32 %v2459, %v2472
  %v2477 = vmul.f32 %v2460, %v2468
  %v2478 = vmul.f32 %v2461, %v2472
  %v2479 = vmul.f32 %v2462, %v2468
  %v2480 = vmul.f32 %v2463, %v2472
  %v2482 = vlaneseq
  %v2483 = vshrl.u32 %v2482, 7
  %v2484 = vsub.s32 0, %v2483
  %v2485 = vrot.slane %v2411, %v2484
  %v2486 = vlaneseq
  %v2487 = vshrl.u32 %v2486, 7
  %v2488 = vsub.s32 1, %v2487
  %v2489 = vrot.slane %v2411, %v2488
  %v2492 = vadd.f32 %v2475, %v2485
  %v2493 = vadd.f32 %v2476, %v2489
  %v2494 = vadd.f32 %v2477, %v2485
  %v2495 = vadd.f32 %v2478, %v2489
  %v2496 = vadd.f32 %v2479, %v2485
  %v2497 = vadd.f32 %v2480, %v2489
  %v2498 = vpack.c.bf16 %v2494, %v2492
  %v2499 = vpack.c.bf16 %v2495, %v2493
  %v2500 = vpack.c.bf16 %v2496, %v2496
  %v2501 = vpack.c.bf16 %v2497, %v2497
  %v2502 = vld [vmem:[%s10] sm:$0xf]
  %v2503 = vld [vmem:[%s10 + $0x4] sm:$0xf]
  %v2504 = vld [vmem:[%s10 + $0x8] sm:$0xf]
  %v2505 = vld [vmem:[%s10 + $0xc] sm:$0xf]
  %v2506 = vld [vmem:[%s10 + $0x10] sm:$0xf]
  %v2507 = vld [vmem:[%s10 + $0x14] sm:$0xf]
  %v2508 = vld [vmem:[%s10 + $0x18] sm:$0xf]
  %v2509 = vld [vmem:[%s10 + $0x1c] sm:$0xf]
  %v2510 = vld [vmem:[%s10 + $0x20] sm:$0xf]
  %v2511 = vld [vmem:[%s10 + $0x24] sm:$0xf]
  %v2512 = vld [vmem:[%s10 + $0x28] sm:$0xf]
  %v2513 = vld [vmem:[%s10 + $0x2c] sm:$0xf]
  %v2514 = vld [vmem:[%s10 + $0x30] sm:$0xf]
  %v2515 = vld [vmem:[%s10 + $0x34] sm:$0xf]
  %v2516 = vld [vmem:[%s10 + $0x38] sm:$0xf]
  %v2517 = vld [vmem:[%s10 + $0x3c] sm:$0xf]
  %v2518 = vld [vmem:[%s10 + $0x40] sm:$0xf]
  %v2519 = vld [vmem:[%s10 + $0x44] sm:$0xf]
  %v2520 = vld [vmem:[%s10 + $0x48] sm:$0xf]
  %v2521 = vld [vmem:[%s10 + $0x4c] sm:$0xf]
  %v2522 = vld [vmem:[%s10 + $0x50] sm:$0xf]
  %v2523 = vld [vmem:[%s10 + $0x54] sm:$0xf]
  %v2524 = vld [vmem:[%s10 + $0x58] sm:$0xf]
  %v2525 = vld [vmem:[%s10 + $0x5c] sm:$0xf]
  %v2526 = vld [vmem:[%s10 + $0x60] sm:$0xf]
  %v2527 = vld [vmem:[%s10 + $0x64] sm:$0xf]
  %v2528 = vld [vmem:[%s10 + $0x68] sm:$0xf]
  %v2529 = vld [vmem:[%s10 + $0x6c] sm:$0xf]
  %v2530 = vld [vmem:[%s10 + $0x70] sm:$0xf]
  %v2531 = vld [vmem:[%s10 + $0x74] sm:$0xf]
  %v2532 = vld [vmem:[%s10 + $0x78] sm:$0xf]
  %v2533 = vld [vmem:[%s10 + $0x7c] sm:$0xf]
  %v2534 = vld [vmem:[%s11] sm:$0x1]
  %v2536 = vlaneseq
  %v2537 = vshrl.u32 %v2536, 7
  %v2538 = vsub.s32 0, %v2537
  %v2539 = vrot.slane %v2534, %v2538
  %v2573 = vunpack.c.l.b16 %v2502
  %v2574 = vunpack.c.l.b16 %v2503
  %v2575 = vunpack.c.l.b16 %v2504
  %v2576 = vunpack.c.l.b16 %v2505
  %v2577 = vunpack.c.l.b16 %v2506
  %v2578 = vunpack.c.l.b16 %v2507
  %v2579 = vunpack.c.l.b16 %v2508
  %v2580 = vunpack.c.l.b16 %v2509
  %v2581 = vunpack.c.l.b16 %v2510
  %v2582 = vunpack.c.l.b16 %v2511
  %v2583 = vunpack.c.l.b16 %v2512
  %v2584 = vunpack.c.l.b16 %v2513
  %v2585 = vunpack.c.l.b16 %v2514
  %v2586 = vunpack.c.l.b16 %v2515
  %v2587 = vunpack.c.l.b16 %v2516
  %v2588 = vunpack.c.l.b16 %v2517
  %v2589 = vunpack.c.l.b16 %v2518
  %v2590 = vunpack.c.l.b16 %v2519
  %v2591 = vunpack.c.l.b16 %v2520
  %v2592 = vunpack.c.l.b16 %v2521
  %v2593 = vunpack.c.l.b16 %v2522
  %v2594 = vunpack.c.l.b16 %v2523
  %v2595 = vunpack.c.l.b16 %v2524
  %v2596 = vunpack.c.l.b16 %v2525
  %v2597 = vunpack.c.l.b16 %v2526
  %v2598 = vunpack.c.l.b16 %v2527
  %v2599 = vunpack.c.l.b16 %v2528
  %v2600 = vunpack.c.l.b16 %v2529
  %v2601 = vunpack.c.l.b16 %v2530
  %v2602 = vunpack.c.l.b16 %v2531
  %v2603 = vunpack.c.l.b16 %v2532
  %v2604 = vunpack.c.l.b16 %v2533
  %v2605 = vpack.c.b16 %v2574, %v2573
  %v2606 = vpack.c.b16 %v2576, %v2575
  %v2607 = vpack.c.b16 %v2578, %v2577
  %v2608 = vpack.c.b16 %v2580, %v2579
  %v2609 = vpack.c.b16 %v2582, %v2581
  %v2610 = vpack.c.b16 %v2584, %v2583
  %v2611 = vpack.c.b16 %v2586, %v2585
  %v2612 = vpack.c.b16 %v2588, %v2587
  %v2613 = vpack.c.b16 %v2590, %v2589
  %v2614 = vpack.c.b16 %v2592, %v2591
  %v2615 = vpack.c.b16 %v2594, %v2593
  %v2616 = vpack.c.b16 %v2596, %v2595
  %v2617 = vpack.c.b16 %v2598, %v2597
  %v2618 = vpack.c.b16 %v2600, %v2599
  %v2619 = vpack.c.b16 %v2602, %v2601
  %v2620 = vpack.c.b16 %v2604, %v2603
  %2637 = vmatprep.subr.bf16.mxu0 0
  %2638 = vmatpush1.bf16.msra.mxu0 %v2605
  %2639 = vmatprep.subr.bf16.mxu0 0
  %2640 = vmatpush1.bf16.msra.mxu0 %v2606
  %2641 = vmatprep.subr.bf16.mxu0 0
  %2642 = vmatpush1.bf16.msra.mxu0 %v2607
  %2643 = vmatprep.subr.bf16.mxu0 0
  %2644 = vmatpush1.bf16.msra.mxu0 %v2608
  %2645 = vmatprep.subr.bf16.mxu0 0
  %2646 = vmatpush1.bf16.msra.mxu0 %v2609
  %2647 = vmatprep.subr.bf16.mxu0 0
  %2648 = vmatpush1.bf16.msra.mxu0 %v2610
  %2649 = vmatprep.subr.bf16.mxu0 0
  %2650 = vmatpush1.bf16.msra.mxu0 %v2611
  %2651 = vmatprep.subr.bf16.mxu0 0
  %2652 = vmatpush1.bf16.msra.mxu0 %v2612
  %2653 = vmatprep.subr.bf16.mxu0 0
  %2654 = vmatpush1.bf16.msra.mxu0 %v2613
  %2655 = vmatprep.subr.bf16.mxu0 0
  %2656 = vmatpush1.bf16.msra.mxu0 %v2614
  %2657 = vmatprep.subr.bf16.mxu0 0
  %2658 = vmatpush1.bf16.msra.mxu0 %v2615
  %2659 = vmatprep.subr.bf16.mxu0 0
  %2660 = vmatpush1.bf16.msra.mxu0 %v2616
  %2661 = vmatprep.subr.bf16.mxu0 0
  %2662 = vmatpush1.bf16.msra.mxu0 %v2617
  %2663 = vmatprep.subr.bf16.mxu0 0
  %2664 = vmatpush1.bf16.msra.mxu0 %v2618
  %2665 = vmatprep.subr.bf16.mxu0 0
  %2666 = vmatpush1.bf16.msra.mxu0 %v2619
  %2667 = vmatprep.subr.bf16.mxu0 0
  %2668 = vmatpush1.bf16.msra.mxu0 %v2620
  %2669 = vmatprep.mubr.bf16.mxu0 %v2499
  %2670 = vmatmul.mubr.bf16.gmra.mrb[0].mxu0 %v2498
  %v2671 = vpop.f32.mrb[0].mxu0
  %v2672 = vadd.f32 %v2539, %v2671
  %v2673 = vpop.f32.mrb[0].mxu0
  %v2674 = vpop.f32.mrb[0].mxu0
  %v2675 = vadd.f32 %v2539, %v2674
  %v2676 = vpop.f32.mrb[0].mxu0
  %2677 = vmatprep.mubr.bf16.mxu0 %v2501
  %2678 = vmatmul.mubr.bf16.gmra.mrb[0].mxu0 %v2500
  %v2679 = vpop.f32.mrb[0].mxu0
  %v2680 = vadd.f32 %v2539, %v2679
  %v2681 = vpop.f32.mrb[0].mxu0
  %v2682 = vpop.f32.mrb[0].mxu0
  %v2683 = vpop.f32.mrb[0].mxu0
  %2684 = vdwg.mxu0
  %vm2685 = vcmp.gt.f32.partialorder %v2672, 0.0
  %vm2686 = vcmp.gt.f32.partialorder %v2675, 0.0
  %vm2687 = vcmp.gt.f32.partialorder %v2680, 0.0
  %v2688 = vmin.f32 %v2672, 0.0
  %v2689 = vmin.f32 %v2675, 0.0
  %v2690 = vmin.f32 %v2680, 0.0
  %v2691 = vmul.f32 %v2688, 1.442695
  %v2692 = vpow.pop %v2691
  %v2693 = vmul.f32 %v2689, 1.442695
  %v2694 = vpow.pop %v2693
  %v2695 = vmul.f32 %v2690, 1.442695
  %v2696 = vpow.pop %v2695
  %v2697 = vsub.f32 %v2692, 1.0
  %v2698 = vsub.f32 %v2694, 1.0
  %v2699 = vsub.f32 %v2696, 1.0
  %v2700 = vsel %vm2685, %v2672, %v2697
  %v2701 = vsel %vm2686, %v2675, %v2698
  %v2702 = vsel %vm2687, %v2680, %v2699
  %v2703 = vpack.c.bf16 %v2701, %v2700
  %v2704 = vpack.c.bf16 %v2702, %v2702
  %v2705 = vld [vmem:[%s12] sm:$0xf]
  %v2706 = vld [vmem:[%s12 + $0x4] sm:$0xf]
  %v2707 = vld [vmem:[%s12 + $0x8] sm:$0xf]
  %v2708 = vld [vmem:[%s12 + $0xc] sm:$0xf]
  %v2709 = vld [vmem:[%s12 + $0x10] sm:$0xf]
  %v2710 = vld [vmem:[%s12 + $0x14] sm:$0xf]
  %v2711 = vld [vmem:[%s12 + $0x18] sm:$0xf]
  %v2712 = vld [vmem:[%s12 + $0x1c] sm:$0xf]
  %v2713 = vld [vmem:[%s12 + $0x20] sm:$0xf]
  %v2714 = vld [vmem:[%s12 + $0x24] sm:$0xf]
  %v2715 = vld [vmem:[%s12 + $0x28] sm:$0xf]
  %v2716 = vld [vmem:[%s12 + $0x2c] sm:$0xf]
  %v2717 = vld [vmem:[%s12 + $0x30] sm:$0xf]
  %v2718 = vld [vmem:[%s12 + $0x34] sm:$0xf]
  %v2719 = vld [vmem:[%s12 + $0x38] sm:$0xf]
  %v2720 = vld [vmem:[%s12 + $0x3c] sm:$0xf]
  %v2721 = vld [vmem:[%s13] sm:$0x1]
  %v2723 = vlaneseq
  %v2724 = vshrl.u32 %v2723, 7
  %v2725 = vsub.s32 0, %v2724
  %v2726 = vrot.slane %v2721, %v2725
  %v2744 = vunpack.c.l.b16 %v2705
  %v2745 = vunpack.c.l.b16 %v2706
  %v2746 = vunpack.c.l.b16 %v2707
  %v2747 = vunpack.c.l.b16 %v2708
  %v2748 = vunpack.c.l.b16 %v2709
  %v2749 = vunpack.c.l.b16 %v2710
  %v2750 = vunpack.c.l.b16 %v2711
  %v2751 = vunpack.c.l.b16 %v2712
  %v2752 = vunpack.c.l.b16 %v2713
  %v2753 = vunpack.c.l.b16 %v2714
  %v2754 = vunpack.c.l.b16 %v2715
  %v2755 = vunpack.c.l.b16 %v2716
  %v2756 = vunpack.c.l.b16 %v2717
  %v2757 = vunpack.c.l.b16 %v2718
  %v2758 = vunpack.c.l.b16 %v2719
  %v2759 = vunpack.c.l.b16 %v2720
  %v2760 = vpack.c.b16 %v2745, %v2744
  %v2761 = vpack.c.b16 %v2747, %v2746
  %v2762 = vpack.c.b16 %v2749, %v2748
  %v2763 = vpack.c.b16 %v2751, %v2750
  %v2764 = vpack.c.b16 %v2753, %v2752
  %v2765 = vpack.c.b16 %v2755, %v2754
  %v2766 = vpack.c.b16 %v2757, %v2756
  %v2767 = vpack.c.b16 %v2759, %v2758
  %2776 = vmatprep.subr.bf16.mxu0 0
  %2777 = vmatpush1.bf16.msra.mxu0 %v2760
  %2778 = vmatprep.subr.bf16.mxu0 0
  %2779 = vmatpush1.bf16.msra.mxu0 %v2761
  %2780 = vmatprep.subr.bf16.mxu0 0
  %2781 = vmatpush1.bf16.msra.mxu0 %v2762
  %2782 = vmatprep.subr.bf16.mxu0 0
  %2783 = vmatpush1.bf16.msra.mxu0 %v2763
  %2784 = vmatprep.subr.bf16.mxu0 0
  %2785 = vmatpush1.bf16.msra.mxu0 %v2764
  %2786 = vmatprep.subr.bf16.mxu0 0
  %2787 = vmatpush1.bf16.msra.mxu0 %v2765
  %2788 = vmatprep.subr.bf16.mxu0 0
  %2789 = vmatpush1.bf16.msra.mxu0 %v2766
  %2790 = vmatprep.subr.bf16.mxu0 0
  %2791 = vmatpush1.bf16.msra.mxu0 %v2767
  %2792 = vmatprep.subr.bf16.mxu0 0
  %2793 = vmatpush1.bf16.msra.mxu0 0
  %2794 = vmatprep.subr.bf16.mxu0 0
  %2795 = vmatpush1.bf16.msra.mxu0 0
  %2796 = vmatprep.subr.bf16.mxu0 0
  %2797 = vmatpush1.bf16.msra.mxu0 0
  %2798 = vmatprep.subr.bf16.mxu0 0
  %2799 = vmatpush1.bf16.msra.mxu0 0
  %2800 = vmatprep.subr.bf16.mxu0 0
  %2801 = vmatpush1.bf16.msra.mxu0 0
  %2802 = vmatprep.subr.bf16.mxu0 0
  %2803 = vmatpush1.bf16.msra.mxu0 0
  %2804 = vmatprep.subr.bf16.mxu0 0
  %2805 = vmatpush1.bf16.msra.mxu0 0
  %2806 = vmatprep.subr.bf16.mxu0 0
  %2807 = vmatpush1.bf16.msra.mxu0 0
  %2808 = vmatprep.mubr.bf16.mxu0 0
  %2809 = vmatmul.mubr.bf16.gmra.mrb[0].mxu0 %v2703
  %v2810 = vpop.f32.mrb[0].mxu0
  %v2811 = vadd.f32 %v2726, %v2810
  %v2812 = vpop.f32.mrb[0].mxu0
  %v2813 = vpop.f32.mrb[0].mxu0
  %v2814 = vadd.f32 %v2726, %v2813
  %v2815 = vpop.f32.mrb[0].mxu0
  %2816 = vmatprep.mubr.bf16.mxu0 0
  %2817 = vmatmul.mubr.bf16.gmra.mrb[0].mxu0 %v2704
  %v2818 = vpop.f32.mrb[0].mxu0
  %v2819 = vadd.f32 %v2726, %v2818
  %v2820 = vpop.f32.mrb[0].mxu0
  %v2821 = vpop.f32.mrb[0].mxu0
  %v2822 = vpop.f32.mrb[0].mxu0
  %2823 = vdwg.mxu0
  %v2824 = vld [vmem:[%s14] sm:$0xf]
  %v2825 = vld [vmem:[%s14 + $0x4] sm:$0xf]
  %v2826 = vld [vmem:[%s14 + $0x8] sm:$0xf]
  %v2827 = vld [vmem:[%s14 + $0xc] sm:$0xf]
  %v2828 = vld [vmem:[%s14 + $0x10] sm:$0xf]
  %v2829 = vld [vmem:[%s14 + $0x14] sm:$0xf]
  %v2830 = vld [vmem:[%s14 + $0x18] sm:$0xf]
  %v2831 = vld [vmem:[%s14 + $0x1c] sm:$0xf]
  %v2832 = vld [vmem:[%s14 + $0x20] sm:$0xf]
  %v2833 = vld [vmem:[%s14 + $0x24] sm:$0xf]
  %v2834 = vld [vmem:[%s14 + $0x28] sm:$0xf]
  %v2835 = vld [vmem:[%s14 + $0x2c] sm:$0xf]
  %v2836 = vld [vmem:[%s14 + $0x30] sm:$0xf]
  %v2837 = vld [vmem:[%s14 + $0x34] sm:$0xf]
  %v2838 = vld [vmem:[%s14 + $0x38] sm:$0xf]
  %v2839 = vld [vmem:[%s14 + $0x3c] sm:$0xf]
  %v2840 = vld [vmem:[%s14 + $0x40] sm:$0xf]
  %v2841 = vld [vmem:[%s14 + $0x44] sm:$0xf]
  %v2842 = vld [vmem:[%s14 + $0x48] sm:$0xf]
  %v2843 = vld [vmem:[%s14 + $0x4c] sm:$0xf]
  %v2844 = vld [vmem:[%s14 + $0x50] sm:$0xf]
  %v2845 = vld [vmem:[%s14 + $0x54] sm:$0xf]
  %v2846 = vld [vmem:[%s14 + $0x58] sm:$0xf]
  %v2847 = vld [vmem:[%s14 + $0x5c] sm:$0xf]
  %v2848 = vld [vmem:[%s14 + $0x60] sm:$0xf]
  %v2849 = vld [vmem:[%s14 + $0x64] sm:$0xf]
  %v2850 = vld [vmem:[%s14 + $0x68] sm:$0xf]
  %v2851 = vld [vmem:[%s14 + $0x6c] sm:$0xf]
  %v2852 = vld [vmem:[%s14 + $0x70] sm:$0xf]
  %v2853 = vld [vmem:[%s14 + $0x74] sm:$0xf]
  %v2854 = vld [vmem:[%s14 + $0x78] sm:$0xf]
  %v2855 = vld [vmem:[%s14 + $0x7c] sm:$0xf]
  %v2856 = vld [vmem:[%s15] sm:$0x1]
  %v2858 = vlaneseq
  %v2859 = vshrl.u32 %v2858, 7
  %v2860 = vsub.s32 0, %v2859
  %v2861 = vrot.slane %v2856, %v2860
  %v2895 = vunpack.c.l.b16 %v2824
  %v2896 = vunpack.c.l.b16 %v2825
  %v2897 = vunpack.c.l.b16 %v2826
  %v2898 = vunpack.c.l.b16 %v2827
  %v2899 = vunpack.c.l.b16 %v2828
  %v2900 = vunpack.c.l.b16 %v2829
  %v2901 = vunpack.c.l.b16 %v2830
  %v2902 = vunpack.c.l.b16 %v2831
  %v2903 = vunpack.c.l.b16 %v2832
  %v2904 = vunpack.c.l.b16 %v2833
  %v2905 = vunpack.c.l.b16 %v2834
  %v2906 = vunpack.c.l.b16 %v2835
  %v2907 = vunpack.c.l.b16 %v2836
  %v2908 = vunpack.c.l.b16 %v2837
  %v2909 = vunpack.c.l.b16 %v2838
  %v2910 = vunpack.c.l.b16 %v2839
  %v2911 = vunpack.c.l.b16 %v2840
  %v2912 = vunpack.c.l.b16 %v2841
  %v2913 = vunpack.c.l.b16 %v2842
  %v2914 = vunpack.c.l.b16 %v2843
  %v2915 = vunpack.c.l.b16 %v2844
  %v2916 = vunpack.c.l.b16 %v2845
  %v2917 = vunpack.c.l.b16 %v2846
  %v2918 = vunpack.c.l.b16 %v2847
  %v2919 = vunpack.c.l.b16 %v2848
  %v2920 = vunpack.c.l.b16 %v2849
  %v2921 = vunpack.c.l.b16 %v2850
  %v2922 = vunpack.c.l.b16 %v2851
  %v2923 = vunpack.c.l.b16 %v2852
  %v2924 = vunpack.c.l.b16 %v2853
  %v2925 = vunpack.c.l.b16 %v2854
  %v2926 = vunpack.c.l.b16 %v2855
  %v2927 = vpack.c.b16 %v2896, %v2895
  %v2928 = vpack.c.b16 %v2898, %v2897
  %v2929 = vpack.c.b16 %v2900, %v2899
  %v2930 = vpack.c.b16 %v2902, %v2901
  %v2931 = vpack.c.b16 %v2904, %v2903
  %v2932 = vpack.c.b16 %v2906, %v2905
  %v2933 = vpack.c.b16 %v2908, %v2907
  %v2934 = vpack.c.b16 %v2910, %v2909
  %v2935 = vpack.c.b16 %v2912, %v2911
  %v2936 = vpack.c.b16 %v2914, %v2913
  %v2937 = vpack.c.b16 %v2916, %v2915
  %v2938 = vpack.c.b16 %v2918, %v2917
  %v2939 = vpack.c.b16 %v2920, %v2919
  %v2940 = vpack.c.b16 %v2922, %v2921
  %v2941 = vpack.c.b16 %v2924, %v2923
  %v2942 = vpack.c.b16 %v2926, %v2925
  %2959 = vmatprep.subr.bf16.mxu0 0
  %2960 = vmatpush1.bf16.msra.mxu0 %v2927
  %2961 = vmatprep.subr.bf16.mxu0 0
  %2962 = vmatpush1.bf16.msra.mxu0 %v2928
  %2963 = vmatprep.subr.bf16.mxu0 0
  %2964 = vmatpush1.bf16.msra.mxu0 %v2929
  %2965 = vmatprep.subr.bf16.mxu0 0
  %2966 = vmatpush1.bf16.msra.mxu0 %v2930
  %2967 = vmatprep.subr.bf16.mxu0 0
  %2968 = vmatpush1.bf16.msra.mxu0 %v2931
  %2969 = vmatprep.subr.bf16.mxu0 0
  %2970 = vmatpush1.bf16.msra.mxu0 %v2932
  %2971 = vmatprep.subr.bf16.mxu0 0
  %2972 = vmatpush1.bf16.msra.mxu0 %v2933
  %2973 = vmatprep.subr.bf16.mxu0 0
  %2974 = vmatpush1.bf16.msra.mxu0 %v2934
  %2975 = vmatprep.subr.bf16.mxu0 0
  %2976 = vmatpush1.bf16.msra.mxu0 %v2935
  %2977 = vmatprep.subr.bf16.mxu0 0
  %2978 = vmatpush1.bf16.msra.mxu0 %v2936
  %2979 = vmatprep.subr.bf16.mxu0 0
  %2980 = vmatpush1.bf16.msra.mxu0 %v2937
  %2981 = vmatprep.subr.bf16.mxu0 0
  %2982 = vmatpush1.bf16.msra.mxu0 %v2938
  %2983 = vmatprep.subr.bf16.mxu0 0
  %2984 = vmatpush1.bf16.msra.mxu0 %v2939
  %2985 = vmatprep.subr.bf16.mxu0 0
  %2986 = vmatpush1.bf16.msra.mxu0 %v2940
  %2987 = vmatprep.subr.bf16.mxu0 0
  %2988 = vmatpush1.bf16.msra.mxu0 %v2941
  %2989 = vmatprep.subr.bf16.mxu0 0
  %2990 = vmatpush1.bf16.msra.mxu0 %v2942
  %2991 = vmatprep.mubr.bf16.mxu0 %v2499
  %2992 = vmatmul.mubr.bf16.gmra.mrb[0].mxu0 %v2498
  %v2993 = vpop.f32.mrb[0].mxu0
  %v2994 = vadd.f32 %v2861, %v2993
  %v2995 = vpop.f32.mrb[0].mxu0
  %v2996 = vpop.f32.mrb[0].mxu0
  %v2997 = vadd.f32 %v2861, %v2996
  %v2998 = vpop.f32.mrb[0].mxu0
  %2999 = vmatprep.mubr.bf16.mxu0 %v2501
  %3000 = vmatmul.mubr.bf16.gmra.mrb[0].mxu0 %v2500
  %v3001 = vpop.f32.mrb[0].mxu0
  %v3002 = vadd.f32 %v2861, %v3001
  %v3003 = vpop.f32.mrb[0].mxu0
  %v3004 = vpop.f32.mrb[0].mxu0
  %v3005 = vpop.f32.mrb[0].mxu0
  %3006 = vdwg.mxu0
  %vm3007 = vcmp.gt.f32.partialorder %v2994, 0.0
  %vm3008 = vcmp.gt.f32.partialorder %v2997, 0.0
  %vm3009 = vcmp.gt.f32.partialorder %v3002, 0.0
  %v3010 = vmin.f32 %v2994, 0.0
  %v3011 = vmin.f32 %v2997, 0.0
  %v3012 = vmin.f32 %v3002, 0.0
  %v3013 = vmul.f32 %v3010, 1.442695
  %v3014 = vpow.pop %v3013
  %v3015 = vmul.f32 %v3011, 1.442695
  %v3016 = vpow.pop %v3015
  %v3017 = vmul.f32 %v3012, 1.442695
  %v3018 = vpow.pop %v3017
  %v3019 = vsub.f32 %v3014, 1.0
  %v3020 = vsub.f32 %v3016, 1.0
  %v3021 = vsub.f32 %v3018, 1.0
  %v3022 = vsel %vm3007, %v2994, %v3019
  %v3023 = vsel %vm3008, %v2997, %v3020
  %v3024 = vsel %vm3009, %v3002, %v3021
  %v3025 = vpack.c.bf16 %v3023, %v3022
  %v3026 = vpack.c.bf16 %v3024, %v3024
  %v3027 = vld [vmem:[%s16] sm:$0xf]
  %v3028 = vld [vmem:[%s16 + $0x4] sm:$0xf]
  %v3029 = vld [vmem:[%s16 + $0x8] sm:$0xf]
  %v3030 = vld [vmem:[%s16 + $0xc] sm:$0xf]
  %v3031 = vld [vmem:[%s16 + $0x10] sm:$0xf]
  %v3032 = vld [vmem:[%s16 + $0x14] sm:$0xf]
  %v3033 = vld [vmem:[%s16 + $0x18] sm:$0xf]
  %v3034 = vld [vmem:[%s16 + $0x1c] sm:$0xf]
  %v3035 = vld [vmem:[%s16 + $0x20] sm:$0xf]
  %v3036 = vld [vmem:[%s16 + $0x24] sm:$0xf]
  %v3037 = vld [vmem:[%s16 + $0x28] sm:$0xf]
  %v3038 = vld [vmem:[%s16 + $0x2c] sm:$0xf]
  %v3039 = vld [vmem:[%s16 + $0x30] sm:$0xf]
  %v3040 = vld [vmem:[%s16 + $0x34] sm:$0xf]
  %v3041 = vld [vmem:[%s16 + $0x38] sm:$0xf]
  %v3042 = vld [vmem:[%s16 + $0x3c] sm:$0xf]
  %v3043 = vld [vmem:[#allocation2] sm:$0x1]
  %v3045 = vlaneseq
  %v3046 = vshrl.u32 %v3045, 7
  %v3047 = vsub.s32 0, %v3046
  %v3048 = vrot.slane %v3043, %v3047
  %v3066 = vunpack.c.l.b16 %v3027
  %v3067 = vunpack.c.l.b16 %v3028
  %v3068 = vunpack.c.l.b16 %v3029
  %v3069 = vunpack.c.l.b16 %v3030
  %v3070 = vunpack.c.l.b16 %v3031
  %v3071 = vunpack.c.l.b16 %v3032
  %v3072 = vunpack.c.l.b16 %v3033
  %v3073 = vunpack.c.l.b16 %v3034
  %v3074 = vunpack.c.l.b16 %v3035
  %v3075 = vunpack.c.l.b16 %v3036
  %v3076 = vunpack.c.l.b16 %v3037
  %v3077 = vunpack.c.l.b16 %v3038
  %v3078 = vunpack.c.l.b16 %v3039
  %v3079 = vunpack.c.l.b16 %v3040
  %v3080 = vunpack.c.l.b16 %v3041
  %v3081 = vunpack.c.l.b16 %v3042
  %v3082 = vpack.c.b16 %v3067, %v3066
  %v3083 = vpack.c.b16 %v3069, %v3068
  %v3084 = vpack.c.b16 %v3071, %v3070
  %v3085 = vpack.c.b16 %v3073, %v3072
  %v3086 = vpack.c.b16 %v3075, %v3074
  %v3087 = vpack.c.b16 %v3077, %v3076
  %v3088 = vpack.c.b16 %v3079, %v3078
  %v3089 = vpack.c.b16 %v3081, %v3080
  %3098 = vmatprep.subr.bf16.mxu0 0
  %3099 = vmatpush1.bf16.msra.mxu0 %v3082
  %3100 = vmatprep.subr.bf16.mxu0 0
  %3101 = vmatpush1.bf16.msra.mxu0 %v3083
  %3102 = vmatprep.subr.bf16.mxu0 0
  %3103 = vmatpush1.bf16.msra.mxu0 %v3084
  %3104 = vmatprep.subr.bf16.mxu0 0
  %3105 = vmatpush1.bf16.msra.mxu0 %v3085
  %3106 = vmatprep.subr.bf16.mxu0 0
  %3107 = vmatpush1.bf16.msra.mxu0 %v3086
  %3108 = vmatprep.subr.bf16.mxu0 0
  %3109 = vmatpush1.bf16.msra.mxu0 %v3087
  %3110 = vmatprep.subr.bf16.mxu0 0
  %3111 = vmatpush1.bf16.msra.mxu0 %v3088
  %3112 = vmatprep.subr.bf16.mxu0 0
  %3113 = vmatpush1.bf16.msra.mxu0 %v3089
  %3114 = vmatprep.subr.bf16.mxu0 0
  %3115 = vmatpush1.bf16.msra.mxu0 0
  %3116 = vmatprep.subr.bf16.mxu0 0
  %3117 = vmatpush1.bf16.msra.mxu0 0
  %3118 = vmatprep.subr.bf16.mxu0 0
  %3119 = vmatpush1.bf16.msra.mxu0 0
  %3120 = vmatprep.subr.bf16.mxu0 0
  %3121 = vmatpush1.bf16.msra.mxu0 0
  %3122 = vmatprep.subr.bf16.mxu0 0
  %3123 = vmatpush1.bf16.msra.mxu0 0
  %3124 = vmatprep.subr.bf16.mxu0 0
  %3125 = vmatpush1.bf16.msra.mxu0 0
  %3126 = vmatprep.subr.bf16.mxu0 0
  %3127 = vmatpush1.bf16.msra.mxu0 0
  %3128 = vmatprep.subr.bf16.mxu0 0
  %3129 = vmatpush1.bf16.msra.mxu0 0
  %3130 = vmatprep.mubr.bf16.mxu0 0
  %3131 = vmatmul.mubr.bf16.gmra.mrb[0].mxu0 %v3025
  %v3132 = vpop.f32.mrb[0].mxu0
  %v3133 = vadd.f32 %v3048, %v3132
  %v3134 = vpop.f32.mrb[0].mxu0
  %v3135 = vpop.f32.mrb[0].mxu0
  %v3136 = vadd.f32 %v3048, %v3135
  %v3137 = vpop.f32.mrb[0].mxu0
  %3138 = vmatprep.mubr.bf16.mxu0 0
  %3139 = vmatmul.mubr.bf16.gmra.mrb[0].mxu0 %v3026
  %v3140 = vpop.f32.mrb[0].mxu0
  %v3141 = vadd.f32 %v3048, %v3140
  %v3142 = vpop.f32.mrb[0].mxu0
  %v3143 = vpop.f32.mrb[0].mxu0
  %v3144 = vpop.f32.mrb[0].mxu0
  %3145 = vdwg.mxu0
  %3149 = vrot.lane.b32.xlu0 %v3133, 100
  %v3150 = vpop.permute.xlu0 %3149
  %3151 = vrot.lane.b32.xlu0 %v3136, 100
  %v3152 = vpop.permute.xlu0 %3151
  %3153 = vrot.lane.b32.xlu0 %v3141, 100
  %v3154 = vpop.permute.xlu0 %3153
  %vm3158 = vcmask 818176
  %v3159 = vsel %vm3158, %v2811, %v3150
  %v3160 = vsel %vm3158, %v2814, %v3152
  %v3161 = vsel %vm3158, %v2819, %v3154
  %vm3162 = vcmask 826368
  %v3163 = vsel %vm3162, %v3159, 0.0
  %v3164 = vsel %vm3162, %v3160, 0.0
  %v3165 = vsel %vm3162, %v3161, 0.0
  %3166 = vst [vmem:[%s18] sm:$0xff] %v3163
  %3167 = vst [vmem:[%s18 + $0x8] sm:$0xff] %v3164
  %3168 = vst [vmem:[%s18 + $0x10] sm:$0x3] %v3165
  // Predicated region
  $region74: #{planning_decoder_pallas.5} parent=0 // pred_check
    _
  $region75: #{planning_decoder_pallas.5} parent=0 // pred_check_branch
    %3170 = sbr.rel (0) target = $region77
  $region76: #{planning_decoder_pallas.5} parent=0 // pred_region
    _
  $region77: #{planning_decoder_pallas.5} parent=0 // pred_fallthru
    _
  // Predicated region
  $region78: #{planning_decoder_pallas.5} parent=0 // pred_check
    _
  $region79: #{planning_decoder_pallas.5} parent=0 // pred_check_branch
    %3172 = sbr.rel (0) target = $region81
  $region80: #{planning_decoder_pallas.5} parent=0 // pred_region
    _
  $region81: #{planning_decoder_pallas.5} parent=0 // pred_fallthru
    _

</llo_original>
